<compile_context>
chip_gen: v7x
topology: tpu7x:2x2x1
jax: 0.10.0
libtpu: 0.0.40
codegen_flags: <defaults>
</compile_context>

<pallas_src>
import jax
import jax.numpy as jnp
from jax.experimental import pallas as pl
from jax.experimental.pallas import tpu as pltpu


def ffn_kernel(x_ref, w1_ref, b1_ref, w2_ref, b2_ref, g_ref, beta_ref, o_ref):
    # x_ref: (tm, d_model) f32 tile of flattened tokens. Load once.
    x = x_ref[...]
    x_bf16 = x.astype(jnp.bfloat16)

    # conv1 (1x1) == linear: bf16 operands on the MXU, f32 accumulation.
    h = jnp.dot(x_bf16, w1_ref[...], preferred_element_type=jnp.float32)
    # bias + ReLU in bf16; h feeds the second matmul directly as bf16.
    h = jnp.maximum(h.astype(jnp.bfloat16) + b1_ref[...], 0)

    # conv2 (1x1) == linear back to d_model: bf16 MXU matmul, f32 accumulate, +b2.
    y = jnp.dot(h, w2_ref[...], preferred_element_type=jnp.float32) + b2_ref[...]

    # residual (f32)
    y = y + x

    # LayerNorm over last dim (eps = 1e-5, PyTorch default), affine gamma/beta.
    # Two-pass variance for numerical robustness; reductions land on the XLU.
    mean = jnp.mean(y, axis=-1, keepdims=True)
    c = y - mean
    var = jnp.mean(c * c, axis=-1, keepdims=True)
    y_norm = c * jax.lax.rsqrt(var + 1e-5)
    o_ref[...] = (y_norm * g_ref[...] + beta_ref[...]).astype(o_ref.dtype)


def _physical_vmem_bytes():
    try:
        return int(pltpu.get_tpu_info().vmem_capacity_bytes)
    except Exception:
        return 64 << 20  # conservative (v7x per-TC VMEM)


def _default_tm():
    # Larger tiles on 128-MiB-VMEM generations (v5e/v6e); 512 is safe everywhere.
    try:
        if int(pltpu.get_tpu_info().vmem_capacity_bytes) >= (96 << 20):
            return 1024
    except Exception:
        pass
    return 512


def poswise_ffn(x, w1, b1, w2, b2, gamma, beta, *, tm=None):
    """x: (B, S, d_model) f32. w1: (d_model, d_ff), w2: (d_ff, d_model). Returns (B, S, d_model)."""
    B, S, D = x.shape
    d_ff = w1.shape[1]
    M = B * S

    if tm is None:
        tm = _default_tm()
    # Keep >= 4 grid steps when possible (>= 2 per v7x TensorCore) so the software pipeline
    # has work to overlap; shrink the tile (down to 128 rows) for small token counts.
    while tm > 128 and pl.cdiv(M, tm) < 4:
        tm //= 2

    n_tiles = pl.cdiv(M, tm)
    M_pad = n_tiles * tm

    x2d = x.reshape(M, D)
    if M_pad != M:
        x2d = jnp.pad(x2d, ((0, M_pad - M), (0, 0)))

    # bf16 weights + b1 for the MXU / bf16 bias+ReLU; b2 / LN params stay f32.
    w1_bf = w1.astype(jnp.bfloat16)
    w2_bf = w2.astype(jnp.bfloat16)
    b1_2d = b1.reshape(1, d_ff).astype(jnp.bfloat16)
    b2_2d = b2.reshape(1, D).astype(jnp.float32)
    g_2d = gamma.reshape(1, D).astype(jnp.float32)
    beta_2d = beta.reshape(1, D).astype(jnp.float32)

    # VMEM budget: x + out tiles double-buffered, weights single-buffered, h temporaries.
    vmem_need = (
        2 * tm * D * 4 * 2                   # x + out f32 tiles, double-buffered
        + (D * d_ff + d_ff * D) * 2          # resident bf16 W1 + W2 (single-buffered)
        + tm * d_ff * (4 + 2)                # f32 matmul result + bf16 h temporaries
        + 16 * (d_ff + 3 * D)                # biases / LN params + slack
    )
    phys = _physical_vmem_bytes()
    vmem_limit = max(16 << 20, min(int(vmem_need * 1.5) + (4 << 20), int(phys * 0.75)))

    cost = pl.CostEstimate(
        flops=2 * 2 * M_pad * D * d_ff,          # two matmuls
        transcendentals=M_pad,                   # one rsqrt per row
        bytes_accessed=(M_pad * D * 4            # x in
                        + M_pad * D * 4          # out
                        + w1_bf.size * 2 + w2_bf.size * 2
                        + (d_ff + 3 * D) * 4),   # biases + LN params
    )

    const = dict(pipeline_mode=pl.Buffered(1))   # constant blocks: no double-buffering

    out = pl.pallas_call(
        ffn_kernel,
        out_shape=jax.ShapeDtypeStruct((M_pad, D), x.dtype),
        grid_spec=pltpu.PrefetchScalarGridSpec(
            num_scalar_prefetch=0,
            grid=(n_tiles,),
            in_specs=[
                pl.BlockSpec((tm, D), lambda i: (i, 0)),                 # x tile
                pl.BlockSpec((D, d_ff), lambda i: (0, 0), **const),      # W1 (bf16, resident)
                pl.BlockSpec((1, d_ff), lambda i: (0, 0), **const),      # b1 (bf16)
                pl.BlockSpec((d_ff, D), lambda i: (0, 0), **const),      # W2 (bf16, resident)
                pl.BlockSpec((1, D), lambda i: (0, 0), **const),         # b2
                pl.BlockSpec((1, D), lambda i: (0, 0), **const),         # gamma
                pl.BlockSpec((1, D), lambda i: (0, 0), **const),         # beta
            ],
            out_specs=pl.BlockSpec((tm, D), lambda i: (i, 0)),
        ),
        compiler_params=pltpu.CompilerParams(
            dimension_semantics=("parallel",),
            vmem_limit_bytes=vmem_limit,
        ),
        cost_estimate=cost,
    )(x2d, w1_bf, b1_2d, w2_bf, b2_2d, g_2d, beta_2d)

    return out[:M].reshape(B, S, D)


if __name__ == "__main__":
    # Module dims from the spec (d_model=512, d_ff=2048); small batch/seq so the test is quick.
    B, S = 2, 256
    d_model, d_ff = 512, 2048

    key = jax.random.PRNGKey(0)
    kx, k1, k2, k3, k4 = jax.random.split(key, 5)

    x = jax.random.normal(kx, (B, S, d_model), dtype=jnp.float32)

    # W1 corresponds to conv1.weight.squeeze(-1).T : (d_model, d_ff)
    w1 = jax.random.normal(k1, (d_model, d_ff), dtype=jnp.float32) * 0.02
    b1 = jax.random.normal(k2, (d_ff,), dtype=jnp.float32) * 0.02
    # W2 corresponds to conv2.weight.squeeze(-1).T : (d_ff, d_model)
    w2 = jax.random.normal(k3, (d_ff, d_model), dtype=jnp.float32) * 0.02
    b2 = jax.random.normal(k4, (d_model,), dtype=jnp.float32) * 0.02
    gamma = jnp.ones((d_model,), dtype=jnp.float32)
    beta = jnp.zeros((d_model,), dtype=jnp.float32)

    out = poswise_ffn(x, w1, b1, w2, b2, gamma, beta)
    out = jax.block_until_ready(out)

    # Reference in plain JAX mirroring the kernel's mixed precision
    # (bf16 matmul operands + bf16 bias/ReLU, f32 accumulation / residual / LayerNorm).
    xb = x.astype(jnp.bfloat16)
    h = jnp.dot(xb, w1.astype(jnp.bfloat16), preferred_element_type=jnp.float32)
    h = jnp.maximum(h.astype(jnp.bfloat16) + b1.astype(jnp.bfloat16), 0)
    y = jnp.dot(h, w2.astype(jnp.bfloat16), preferred_element_type=jnp.float32) + b2 + x
    mu = jnp.mean(y, axis=-1, keepdims=True)
    var = jnp.mean((y - mu) ** 2, axis=-1, keepdims=True)
    ref = (y - mu) * jax.lax.rsqrt(var + 1e-5) * gamma + beta

    assert out.shape == (B, S, d_model)
    assert jnp.allclose(out, ref, atol=5e-3, rtol=5e-3), "mismatch vs reference"

    print("KERNEL_OK")
</pallas_src>

<mosaic_0001>
module attributes {stable_mosaic.version = 11 : i64} {
  func.func @ffn_kernel(%arg0: i32, %arg1: memref<128x512xf32, #tpu.memory_space<vmem>>, %arg2: memref<512x2048xbf16, #tpu.memory_space<vmem>>, %arg3: memref<1x2048xbf16, #tpu.memory_space<vmem>>, %arg4: memref<2048x512xbf16, #tpu.memory_space<vmem>>, %arg5: memref<1x512xf32, #tpu.memory_space<vmem>>, %arg6: memref<1x512xf32, #tpu.memory_space<vmem>>, %arg7: memref<1x512xf32, #tpu.memory_space<vmem>>, %arg8: memref<128x512xf32, #tpu.memory_space<vmem>>) attributes {dimension_semantics = [#tpu.dimension_semantics<parallel>], iteration_bounds = array<i64: 4>, scalar_prefetch = 0 : i64, scratch_operands = 0 : i64, tpu.core_type = #tpu.core_type<tc>, window_params = [{transform_indices = @transform_0, window_bounds = array<i64: 128, 512>}, {pipeline_mode = #tpu.pipeline_mode<synchronous>, transform_indices = @transform_1, window_bounds = array<i64: 512, 2048>}, {pipeline_mode = #tpu.pipeline_mode<synchronous>, transform_indices = @transform_2, window_bounds = array<i64: 1, 2048>}, {pipeline_mode = #tpu.pipeline_mode<synchronous>, transform_indices = @transform_3, window_bounds = array<i64: 2048, 512>}, {pipeline_mode = #tpu.pipeline_mode<synchronous>, transform_indices = @transform_4, window_bounds = array<i64: 1, 512>}, {pipeline_mode = #tpu.pipeline_mode<synchronous>, transform_indices = @transform_5, window_bounds = array<i64: 1, 512>}, {pipeline_mode = #tpu.pipeline_mode<synchronous>, transform_indices = @transform_6, window_bounds = array<i64: 1, 512>}, {transform_indices = @transform_7, window_bounds = array<i64: 128, 512>}]} {
    %c0 = arith.constant 0 : index
    %c0_0 = arith.constant 0 : index
    %0 = vector.load %arg1[%c0, %c0_0] : memref<128x512xf32, #tpu.memory_space<vmem>>, vector<128x512xf32>
    %1 = arith.truncf %0 : vector<128x512xf32> to vector<128x512xbf16>
    %c0_1 = arith.constant 0 : index
    %c0_2 = arith.constant 0 : index
    %2 = vector.load %arg2[%c0_1, %c0_2] : memref<512x2048xbf16, #tpu.memory_space<vmem>>, vector<512x2048xbf16>
    %cst = arith.constant dense<0.000000e+00> : vector<128x2048xf32>
    %3 = tpu.matmul %1, %2, %cst {dimension_numbers = #tpu.dot_dimension_numbers<[1], [0], [0], [1], [0, 0, 1, 1], [], []>} : vector<128x512xbf16>, vector<512x2048xbf16>, vector<128x2048xf32> -> vector<128x2048xf32>
    %4 = arith.truncf %3 : vector<128x2048xf32> to vector<128x2048xbf16>
    %c0_3 = arith.constant 0 : index
    %c0_4 = arith.constant 0 : index
    %5 = vector.load %arg3[%c0_3, %c0_4] : memref<1x2048xbf16, #tpu.memory_space<vmem>>, vector<1x2048xbf16>
    %6 = vector.broadcast %5 : vector<1x2048xbf16> to vector<128x2048xbf16>
    %7 = arith.addf %4, %6 : vector<128x2048xbf16>
    %cst_5 = arith.constant 0.000000e+00 : bf16
    %8 = vector.broadcast %cst_5 : bf16 to vector<128x2048xbf16>
    %9 = arith.maximumf %7, %8 : vector<128x2048xbf16>
    %c0_6 = arith.constant 0 : index
    %c0_7 = arith.constant 0 : index
    %10 = vector.load %arg4[%c0_6, %c0_7] : memref<2048x512xbf16, #tpu.memory_space<vmem>>, vector<2048x512xbf16>
    %cst_8 = arith.constant dense<0.000000e+00> : vector<128x512xf32>
    %11 = tpu.matmul %9, %10, %cst_8 {dimension_numbers = #tpu.dot_dimension_numbers<[1], [0], [0], [1], [0, 0, 1, 1], [], []>} : vector<128x2048xbf16>, vector<2048x512xbf16>, vector<128x512xf32> -> vector<128x512xf32>
    %c0_9 = arith.constant 0 : index
    %c0_10 = arith.constant 0 : index
    %12 = vector.load %arg5[%c0_9, %c0_10] : memref<1x512xf32, #tpu.memory_space<vmem>>, vector<1x512xf32>
    %13 = vector.broadcast %12 : vector<1x512xf32> to vector<128x512xf32>
    %14 = arith.addf %11, %13 : vector<128x512xf32>
    %15 = arith.addf %14, %0 : vector<128x512xf32>
    %cst_11 = arith.constant dense<0.000000e+00> : vector<128xf32>
    %16 = vector.multi_reduction <add>, %15, %cst_11 [1] : vector<128x512xf32> to vector<128xf32>
    %17 = vector.shape_cast %16 : vector<128xf32> to vector<128x1xf32>
    %cst_12 = arith.constant 5.120000e+02 : f32
    %18 = vector.broadcast %cst_12 : f32 to vector<128x1xf32>
    %19 = arith.divf %17, %18 : vector<128x1xf32>
    %20 = vector.broadcast %19 : vector<128x1xf32> to vector<128x512xf32>
    %21 = arith.subf %15, %20 : vector<128x512xf32>
    %22 = arith.mulf %21, %21 : vector<128x512xf32>
    %cst_13 = arith.constant dense<0.000000e+00> : vector<128xf32>
    %23 = vector.multi_reduction <add>, %22, %cst_13 [1] : vector<128x512xf32> to vector<128xf32>
    %24 = vector.shape_cast %23 : vector<128xf32> to vector<128x1xf32>
    %cst_14 = arith.constant 5.120000e+02 : f32
    %25 = vector.broadcast %cst_14 : f32 to vector<128x1xf32>
    %26 = arith.divf %24, %25 : vector<128x1xf32>
    %cst_15 = arith.constant 9.99999974E-6 : f32
    %27 = vector.broadcast %cst_15 : f32 to vector<128x1xf32>
    %28 = arith.addf %26, %27 : vector<128x1xf32>
    %29 = math.rsqrt %28 : vector<128x1xf32>
    %30 = vector.broadcast %29 : vector<128x1xf32> to vector<128x512xf32>
    %31 = arith.mulf %21, %30 : vector<128x512xf32>
    %c0_16 = arith.constant 0 : index
    %c0_17 = arith.constant 0 : index
    %32 = vector.load %arg6[%c0_16, %c0_17] : memref<1x512xf32, #tpu.memory_space<vmem>>, vector<1x512xf32>
    %33 = vector.broadcast %32 : vector<1x512xf32> to vector<128x512xf32>
    %34 = arith.mulf %31, %33 : vector<128x512xf32>
    %c0_18 = arith.constant 0 : index
    %c0_19 = arith.constant 0 : index
    %35 = vector.load %arg7[%c0_18, %c0_19] : memref<1x512xf32, #tpu.memory_space<vmem>>, vector<1x512xf32>
    %36 = vector.broadcast %35 : vector<1x512xf32> to vector<128x512xf32>
    %37 = arith.addf %34, %36 : vector<128x512xf32>
    %c0_20 = arith.constant 0 : index
    %c0_21 = arith.constant 0 : index
    %38 = vector.load %arg8[%c0_20, %c0_21] : memref<128x512xf32, #tpu.memory_space<vmem>>, vector<128x512xf32>
    tpu.vector_store %arg8[%c0_20, %c0_21], %37 {strides = array<i32>} : memref<128x512xf32, #tpu.memory_space<vmem>>, vector<128x512xf32>,
    return
  }
  func.func @transform_0(%arg0: i32) -> (i32, i32) {
    %c0_i32 = arith.constant 0 : i32
    %c0_i32_0 = arith.constant 0 : i32
    return %arg0, %c0_i32 : i32, i32
  }
  func.func @transform_1(%arg0: i32) -> (i32, i32) {
    %c0_i32 = arith.constant 0 : i32
    %c0_i32_0 = arith.constant 0 : i32
    %c0_i32_1 = arith.constant 0 : i32
    return %c0_i32, %c0_i32_0 : i32, i32
  }
  func.func @transform_2(%arg0: i32) -> (i32, i32) {
    %c0_i32 = arith.constant 0 : i32
    %c0_i32_0 = arith.constant 0 : i32
    %c0_i32_1 = arith.constant 0 : i32
    return %c0_i32, %c0_i32_0 : i32, i32
  }
  func.func @transform_3(%arg0: i32) -> (i32, i32) {
    %c0_i32 = arith.constant 0 : i32
    %c0_i32_0 = arith.constant 0 : i32
    %c0_i32_1 = arith.constant 0 : i32
    return %c0_i32, %c0_i32_0 : i32, i32
  }
  func.func @transform_4(%arg0: i32) -> (i32, i32) {
    %c0_i32 = arith.constant 0 : i32
    %c0_i32_0 = arith.constant 0 : i32
    %c0_i32_1 = arith.constant 0 : i32
    return %c0_i32, %c0_i32_0 : i32, i32
  }
  func.func @transform_5(%arg0: i32) -> (i32, i32) {
    %c0_i32 = arith.constant 0 : i32
    %c0_i32_0 = arith.constant 0 : i32
    %c0_i32_1 = arith.constant 0 : i32
    return %c0_i32, %c0_i32_0 : i32, i32
  }
  func.func @transform_6(%arg0: i32) -> (i32, i32) {
    %c0_i32 = arith.constant 0 : i32
    %c0_i32_0 = arith.constant 0 : i32
    %c0_i32_1 = arith.constant 0 : i32
    return %c0_i32, %c0_i32_0 : i32, i32
  }
  func.func @transform_7(%arg0: i32) -> (i32, i32) {
    %c0_i32 = arith.constant 0 : i32
    %c0_i32_0 = arith.constant 0 : i32
    return %arg0, %c0_i32 : i32, i32
  }
}

</mosaic_0001>

<llo_original>
// kernel: tpu_custom_call.1
$region0: #{tpu_custom_call.1}
  #allocation0 [shape = 'u32[]', space=smem, size = 0x4, offset = 0x4, fixed_abs, tag = 'smem constant byte address 0x4 - core index']
  #allocation1 [shape = 'u32[144,128]{1,0:T(1,128)}', space=vmem, size = 0x12000, scoped, tag = 'internal scratch']
  %s0 = inlined_call_operand.hbm [shape: f32[512,512], index: 0, kind: input, shape index: {}]
  %s1 = inlined_call_operand.hbm [shape: bf16[512,2048], index: 1, kind: input, shape index: {}]
  %s2 = inlined_call_operand.hbm [shape: bf16[1,2048], index: 2, kind: input, shape index: {}]
  %s3 = inlined_call_operand.hbm [shape: bf16[2048,512], index: 3, kind: input, shape index: {}]
  %s4 = inlined_call_operand.hbm [shape: f32[1,512], index: 4, kind: input, shape index: {}]
  %s5 = inlined_call_operand.hbm [shape: f32[1,512], index: 5, kind: input, shape index: {}]
  %s6 = inlined_call_operand.hbm [shape: f32[1,512], index: 6, kind: input, shape index: {}]
  %s7 = inlined_call_operand.hbm [shape: f32[512,512], index: 7, kind: output, shape index: {}]
  %s8 = sld [smem:[#allocation0]]
  $region89: #{tpu_custom_call.1} parent=0
    _
  %s10 = ssub.s32 1, %s8
  %s11 = scalar_select 0, %s10, %s8
  $region1: #{tpu_custom_call.1} parent=0
    #allocation2 [shape = 'u8[524288]{0}', space=vmem, size = 0x80000, scoped, tag = 'input window, operand 0']
    #allocation3 [shape = 's32[2]{0}', space=sflag, size = 0x8, scoped, tag = 'scoped memory for tpu_custom_call.1']
    #allocation4 [shape = 's32[2]{0}', space=sflag, size = 0x8, scoped, tag = 'scoped memory for tpu_custom_call.1']
    #allocation5 [shape = 'u8[2097152]{0}', space=vmem, size = 0x200000, scoped, tag = 'input window, operand 1, single buffered']
    #allocation6 [shape = 's32[1]{0}', space=sflag, size = 0x4, scoped, tag = 'scoped memory for tpu_custom_call.1']
    #allocation7 [shape = 'u8[8192]{0}', space=vmem, size = 0x2000, scoped, tag = 'input window, operand 2, single buffered']
    #allocation8 [shape = 'u8[2097152]{0}', space=vmem, size = 0x200000, scoped, tag = 'input window, operand 3, single buffered']
    #allocation9 [shape = 's32[1]{0}', space=sflag, size = 0x4, scoped, tag = 'scoped memory for tpu_custom_call.1']
    #allocation10 [shape = 'u8[2048]{0}', space=vmem, size = 0x800, scoped, tag = 'input window, operand 4, single buffered']
    #allocation11 [shape = 'u8[2048]{0}', space=vmem, size = 0x800, scoped, tag = 'input window, operand 5, single buffered']
    #allocation12 [shape = 's32[1]{0}', space=sflag, size = 0x4, scoped, tag = 'scoped memory for tpu_custom_call.1']
    #allocation13 [shape = 'u8[2048]{0}', space=vmem, size = 0x800, scoped, tag = 'input window, operand 6, single buffered']
    #allocation14 [shape = 'u8[524288]{0}', space=vmem, size = 0x80000, scoped, tag = 'output window, operand 0']
    %12 = vsyncpa [#allocation3], 0
    %s13 = scalar_lea.sflag [#allocation3], 1
    %14 = vsyncpa %s13, 0
    %15 = vsyncpa [#allocation6], 0
    %16 = vsyncpa [#allocation9], 0
    %17 = vsyncpa [#allocation12], 0
    %18 = vsyncpa [#allocation4], 0
    %s19 = scalar_lea.sflag [#allocation4], 1
    %20 = vsyncpa %s19, 0
    loop: start=0, step=1, limit=6
    $region2: #{tpu_custom_call.1} parent=1 // loop_pre_header
      _
    $region3: #{tpu_custom_call.1} parent=1 // loop_header
      %s22 = sphi 0, %s26
      %p23 = scmp.ge.s32.totalorder %s22, 6
      %s32 = sphi 0, %s34
      %s35 = sphi 0, %s32
      %s36 = sphi 0, %s35
      %s52 = sphi 0, %s36
      %s56 = sphi 0, %s56
      %s58 = sphi 0, %s56
      %s59 = sphi 0, %s58
      %s73 = sphi 0, %s59
      %s77 = sphi 0, %s77
      %s79 = sphi 0, %s77
      %s80 = sphi 0, %s79
      %s94 = sphi 0, %s80
      %s98 = sphi 0, %s98
      %s100 = sphi 0, %s98
      %s101 = sphi 0, %s100
      %s115 = sphi 0, %s101
      %s119 = sphi 0, %s119
      %s121 = sphi 0, %s119
      %s122 = sphi 0, %s121
      %s136 = sphi 0, %s122
      %s140 = sphi 0, %s140
      %s142 = sphi 0, %s140
      %s143 = sphi 0, %s142
      %s157 = sphi 0, %s143
      %s161 = sphi 0, %s161
      %s163 = sphi 0, %s161
      %s164 = sphi 0, %s163
      %s178 = sphi 0, %s164
      %s184 = sphi 0, %s186
      %s187 = sphi 0, %s184
      %s188 = sphi 0, %s187
      %s204 = sphi 0, %s188
    $region4: #{tpu_custom_call.1} parent=1 // loop_header_branch
      %25 = sbr.rel (%p23) target = $region8
    $region5: #{tpu_custom_call.1} parent=1 // loop_body
      %s27 = ssub.s32 %s22, 1
      %s28 = ssub.s32 %s22, 2
      %s29 = sadd.s32 %s22, 1
      %s30 = ssub.s32 %s22, %s29
      %p31 = scmp.eq.s32.totalorder %s30, 0
      %s33 = sadd.s32 %s32, 1
      %s34 = scalar_select %p31, %s32, %s33
      %p37 = pneg %p31
      %p38 = scmp.eq.s32.totalorder %s22, 3
      %p39 = por %p37, %p38
      %p40 = scmp.ne.s32.totalorder %s32, %s35
      %p41 = scmp.eq.s32.totalorder %s22, 0
      %p42 = por %p40, %p41
      %p43 = scmp.ne.s32.totalorder %s32, %s35
      %p44 = scmp.eq.s32.totalorder %s27, 3
      %p45 = por %p43, %p44
      %p46 = scmp.ne.s32.totalorder %s35, %s36
      %p47 = scmp.eq.s32.totalorder %s27, 0
      %p48 = por %p46, %p47
      %p49 = scmp.ne.s32.totalorder %s35, %s36
      %p50 = scmp.eq.s32.totalorder %s28, 3
      %p51 = por %p49, %p50
      %p53 = scmp.ne.s32.totalorder %s36, %s52
      %p54 = scmp.eq.s32.totalorder %s28, 0
      %p55 = por %p53, %p54
      %s57 = sadd.s32 %s56, 1
      %p60 = scmp.eq.s32.totalorder %s22, 3
      %p61 = scmp.ne.s32.totalorder %s56, %s58
      %p62 = scmp.eq.s32.totalorder %s22, 0
      %p63 = por %p61, %p62
      %p64 = scmp.ne.s32.totalorder %s56, %s58
      %p65 = scmp.eq.s32.totalorder %s27, 3
      %p66 = por %p64, %p65
      %p67 = scmp.ne.s32.totalorder %s58, %s59
      %p68 = scmp.eq.s32.totalorder %s27, 0
      %p69 = por %p67, %p68
      %p70 = scmp.ne.s32.totalorder %s58, %s59
      %p71 = scmp.eq.s32.totalorder %s28, 3
      %p72 = por %p70, %p71
      %p74 = scmp.ne.s32.totalorder %s59, %s73
      %p75 = scmp.eq.s32.totalorder %s28, 0
      %p76 = por %p74, %p75
      %s78 = sadd.s32 %s77, 1
      %p81 = scmp.eq.s32.totalorder %s22, 3
      %p82 = scmp.ne.s32.totalorder %s77, %s79
      %p83 = scmp.eq.s32.totalorder %s22, 0
      %p84 = por %p82, %p83
      %p85 = scmp.ne.s32.totalorder %s77, %s79
      %p86 = scmp.eq.s32.totalorder %s27, 3
      %p87 = por %p85, %p86
      %p88 = scmp.ne.s32.totalorder %s79, %s80
      %p89 = scmp.eq.s32.totalorder %s27, 0
      %p90 = por %p88, %p89
      %p91 = scmp.ne.s32.totalorder %s79, %s80
      %p92 = scmp.eq.s32.totalorder %s28, 3
      %p93 = por %p91, %p92
      %p95 = scmp.ne.s32.totalorder %s80, %s94
      %p96 = scmp.eq.s32.totalorder %s28, 0
      %p97 = por %p95, %p96
      %s99 = sadd.s32 %s98, 1
      %p102 = scmp.eq.s32.totalorder %s22, 3
      %p103 = scmp.ne.s32.totalorder %s98, %s100
      %p104 = scmp.eq.s32.totalorder %s22, 0
      %p105 = por %p103, %p104
      %p106 = scmp.ne.s32.totalorder %s98, %s100
      %p107 = scmp.eq.s32.totalorder %s27, 3
      %p108 = por %p106, %p107
      %p109 = scmp.ne.s32.totalorder %s100, %s101
      %p110 = scmp.eq.s32.totalorder %s27, 0
      %p111 = por %p109, %p110
      %p112 = scmp.ne.s32.totalorder %s100, %s101
      %p113 = scmp.eq.s32.totalorder %s28, 3
      %p114 = por %p112, %p113
      %p116 = scmp.ne.s32.totalorder %s101, %s115
      %p117 = scmp.eq.s32.totalorder %s28, 0
      %p118 = por %p116, %p117
      %s120 = sadd.s32 %s119, 1
      %p123 = scmp.eq.s32.totalorder %s22, 3
      %p124 = scmp.ne.s32.totalorder %s119, %s121
      %p125 = scmp.eq.s32.totalorder %s22, 0
      %p126 = por %p124, %p125
      %p127 = scmp.ne.s32.totalorder %s119, %s121
      %p128 = scmp.eq.s32.totalorder %s27, 3
      %p129 = por %p127, %p128
      %p130 = scmp.ne.s32.totalorder %s121, %s122
      %p131 = scmp.eq.s32.totalorder %s27, 0
      %p132 = por %p130, %p131
      %p133 = scmp.ne.s32.totalorder %s121, %s122
      %p134 = scmp.eq.s32.totalorder %s28, 3
      %p135 = por %p133, %p134
      %p137 = scmp.ne.s32.totalorder %s122, %s136
      %p138 = scmp.eq.s32.totalorder %s28, 0
      %p139 = por %p137, %p138
      %s141 = sadd.s32 %s140, 1
      %p144 = scmp.eq.s32.totalorder %s22, 3
      %p145 = scmp.ne.s32.totalorder %s140, %s142
      %p146 = scmp.eq.s32.totalorder %s22, 0
      %p147 = por %p145, %p146
      %p148 = scmp.ne.s32.totalorder %s140, %s142
      %p149 = scmp.eq.s32.totalorder %s27, 3
      %p150 = por %p148, %p149
      %p151 = scmp.ne.s32.totalorder %s142, %s143
      %p152 = scmp.eq.s32.totalorder %s27, 0
      %p153 = por %p151, %p152
      %p154 = scmp.ne.s32.totalorder %s142, %s143
      %p155 = scmp.eq.s32.totalorder %s28, 3
      %p156 = por %p154, %p155
      %p158 = scmp.ne.s32.totalorder %s143, %s157
      %p159 = scmp.eq.s32.totalorder %s28, 0
      %p160 = por %p158, %p159
      %s162 = sadd.s32 %s161, 1
      %p165 = scmp.eq.s32.totalorder %s22, 3
      %p166 = scmp.ne.s32.totalorder %s161, %s163
      %p167 = scmp.eq.s32.totalorder %s22, 0
      %p168 = por %p166, %p167
      %p169 = scmp.ne.s32.totalorder %s161, %s163
      %p170 = scmp.eq.s32.totalorder %s27, 3
      %p171 = por %p169, %p170
      %p172 = scmp.ne.s32.totalorder %s163, %s164
      %p173 = scmp.eq.s32.totalorder %s27, 0
      %p174 = por %p172, %p173
      %p175 = scmp.ne.s32.totalorder %s163, %s164
      %p176 = scmp.eq.s32.totalorder %s28, 3
      %p177 = por %p175, %p176
      %p179 = scmp.ne.s32.totalorder %s164, %s178
      %p180 = scmp.eq.s32.totalorder %s28, 0
      %p181 = por %p179, %p180
      %s182 = ssub.s32 %s22, %s29
      %p183 = scmp.eq.s32.totalorder %s182, 0
      %s185 = sadd.s32 %s184, 1
      %s186 = scalar_select %p183, %s184, %s185
      %p189 = pneg %p183
      %p190 = scmp.eq.s32.totalorder %s22, 3
      %p191 = por %p189, %p190
      %p192 = scmp.ne.s32.totalorder %s184, %s187
      %p193 = scmp.eq.s32.totalorder %s22, 0
      %p194 = por %p192, %p193
      %p195 = scmp.ne.s32.totalorder %s184, %s187
      %p196 = scmp.eq.s32.totalorder %s27, 3
      %p197 = por %p195, %p196
      %p198 = scmp.ne.s32.totalorder %s187, %s188
      %p199 = scmp.eq.s32.totalorder %s27, 0
      %p200 = por %p198, %p199
      %p201 = scmp.ne.s32.totalorder %s187, %s188
      %p202 = scmp.eq.s32.totalorder %s28, 3
      %p203 = por %p201, %p202
      %p205 = scmp.ne.s32.totalorder %s188, %s204
      %p206 = scmp.eq.s32.totalorder %s28, 0
      %p207 = por %p205, %p206
      %p208 = scmp.le.s32.totalorder 1, %s22
      %p209 = scmp.lt.s32.totalorder %s22, 5
      %p210 = pnand %p208, %p209
      %p211 = pneg %p210
      // Predicated region
      $region9: #{tpu_custom_call.1} parent=5 // pred_check
        _
      $region10: #{tpu_custom_call.1} parent=5 // pred_check_branch
        %213 = sbr.rel (%p210) target = $region12
      $region11: #{tpu_custom_call.1} parent=5 // pred_region
        %s214 = ssub.s32 %s22, 1
        // Predicated region
        $region13: #{tpu_custom_call.1} parent=11 // pred_check
          %p215 = pneg %p69
        $region14: #{tpu_custom_call.1} parent=11 // pred_check_branch
          %217 = sbr.rel (%p215) target = $region16
        $region15: #{tpu_custom_call.1} parent=11 // pred_region
          %s219 = ssub.s32 65536, 65536
          %220 = vsyncadd [#allocation6], %s219
          %s221 = sshll.u32 [#allocation5], 4
          %s222 = int_to_ptr.vmem [resolvable:$true] %s221
          %227 = dma.hbm_to_vmem [thread:$0]  %s1, 65536, %s222, [#allocation6], 1024, 1024, 64
        $region16: #{tpu_custom_call.1} parent=11 // pred_fallthru
          _
        // Predicated region
        $region17: #{tpu_custom_call.1} parent=11 // pred_check
          %p228 = pneg %p90
        $region18: #{tpu_custom_call.1} parent=11 // pred_check_branch
          %230 = sbr.rel (%p228) target = $region20
        $region19: #{tpu_custom_call.1} parent=11 // pred_region
          %s232 = ssub.s32 256, 256
          %233 = vsyncadd [#allocation6], %s232
          %s235 = sshll.u32 [#allocation7], 4
          %s236 = int_to_ptr.vmem [resolvable:$true] %s235
          %238 = dma.hbm_to_vmem [thread:$0]  %s2, 256, %s236, [#allocation6]
        $region20: #{tpu_custom_call.1} parent=11 // pred_fallthru
          _
        // Predicated region
        $region21: #{tpu_custom_call.1} parent=11 // pred_check
          %p239 = pneg %p111
        $region22: #{tpu_custom_call.1} parent=11 // pred_check_branch
          %241 = sbr.rel (%p239) target = $region24
        $region23: #{tpu_custom_call.1} parent=11 // pred_region
          %s243 = ssub.s32 65536, 65536
          %244 = vsyncadd [#allocation9], %s243
          %s245 = sshll.u32 [#allocation8], 4
          %s246 = int_to_ptr.vmem [resolvable:$true] %s245
          %251 = dma.hbm_to_vmem [thread:$0]  %s3, 65536, %s246, [#allocation9], 256, 256, 16
        $region24: #{tpu_custom_call.1} parent=11 // pred_fallthru
          _
        // Predicated region
        $region25: #{tpu_custom_call.1} parent=11 // pred_check
          %p252 = pneg %p132
        $region26: #{tpu_custom_call.1} parent=11 // pred_check_branch
          %254 = sbr.rel (%p252) target = $region28
        $region27: #{tpu_custom_call.1} parent=11 // pred_region
          %s256 = ssub.s32 64, 64
          %257 = vsyncadd [#allocation9], %s256
          %s259 = sshll.u32 [#allocation10], 4
          %s260 = int_to_ptr.vmem [resolvable:$true] %s259
          %262 = dma.hbm_to_vmem [thread:$0]  %s4, 64, %s260, [#allocation9]
        $region28: #{tpu_custom_call.1} parent=11 // pred_fallthru
          _
        // Predicated region
        $region29: #{tpu_custom_call.1} parent=11 // pred_check
          %p263 = pneg %p153
        $region30: #{tpu_custom_call.1} parent=11 // pred_check_branch
          %265 = sbr.rel (%p263) target = $region32
        $region31: #{tpu_custom_call.1} parent=11 // pred_region
          %s267 = ssub.s32 64, 64
          %268 = vsyncadd [#allocation12], %s267
          %s270 = sshll.u32 [#allocation11], 4
          %s271 = int_to_ptr.vmem [resolvable:$true] %s270
          %273 = dma.hbm_to_vmem [thread:$0]  %s5, 64, %s271, [#allocation12]
        $region32: #{tpu_custom_call.1} parent=11 // pred_fallthru
          _
        // Predicated region
        $region33: #{tpu_custom_call.1} parent=11 // pred_check
          %p274 = pneg %p174
        $region34: #{tpu_custom_call.1} parent=11 // pred_check_branch
          %276 = sbr.rel (%p274) target = $region36
        $region35: #{tpu_custom_call.1} parent=11 // pred_region
          %s278 = ssub.s32 64, 64
          %279 = vsyncadd [#allocation12], %s278
          %s281 = sshll.u32 [#allocation13], 4
          %s282 = int_to_ptr.vmem [resolvable:$true] %s281
          %284 = dma.hbm_to_vmem [thread:$0]  %s6, 64, %s282, [#allocation12]
        $region36: #{tpu_custom_call.1} parent=11 // pred_fallthru
          _
      $region12: #{tpu_custom_call.1} parent=5 // pred_fallthru
        _
      %p285 = scmp.lt.s32.totalorder %s22, 4
      // Predicated region
      $region37: #{tpu_custom_call.1} parent=5 // pred_check
        %p286 = pneg %p285
      $region38: #{tpu_custom_call.1} parent=5 // pred_check_branch
        %288 = sbr.rel (%p286) target = $region40
      $region39: #{tpu_custom_call.1} parent=5 // pred_region
        // Predicated region
        $region41: #{tpu_custom_call.1} parent=39 // pred_check
          %p289 = pneg %p42
        $region42: #{tpu_custom_call.1} parent=39 // pred_check_branch
          %291 = sbr.rel (%p289) target = $region44
        $region43: #{tpu_custom_call.1} parent=39 // pred_region
          %s292 = sand.u32 %s32, 1
          %s293 = scalar_lea.sflag [#allocation3], %s292
          %s294 = sand.u32 %s32, 1
          %s295 = smul.addr %s294, 512
          %s296 = scalar_lea.vmem [#allocation2], %s295
          %s297 = smul.u32 16, %s22
          %s299 = ssub.s32 8192, 8192
          %300 = vsyncadd %s293, %s299
          %s301 = smul.addr %s297, 4
          %s302 = smul.addr %s301, 128
          %s303 = scalar_lea.hbm %s0, %s302
          %s304 = sshll.u32 %s296, 4
          %s305 = int_to_ptr.vmem [resolvable:$true] %s304
          %310 = dma.hbm_to_vmem [thread:$0]  %s303, 8192, %s305, %s293, 512, 512, 32
        $region44: #{tpu_custom_call.1} parent=39 // pred_fallthru
          _
      $region40: #{tpu_custom_call.1} parent=5 // pred_fallthru
        _
      %p311 = scmp.le.s32.totalorder 1, %s22
      %p312 = scmp.lt.s32.totalorder %s22, 5
      %p313 = pnand %p311, %p312
      %p314 = pneg %p313
      // Predicated region
      $region45: #{tpu_custom_call.1} parent=5 // pred_check
        _
      $region46: #{tpu_custom_call.1} parent=5 // pred_check_branch
        %316 = sbr.rel (%p313) target = $region48
      $region47: #{tpu_custom_call.1} parent=5 // pred_region
        %s317 = ssub.s32 %s22, 1
        %s318 = sand.u32 %s35, 1
        %s319 = scalar_lea.sflag [#allocation3], %s318
        %s320 = sand.u32 %s35, 1
        %s321 = smul.addr %s320, 512
        %s322 = scalar_lea.vmem [#allocation2], %s321
        // Predicated region
        $region49: #{tpu_custom_call.1} parent=47 // pred_check
          %p323 = pneg %p48
        $region50: #{tpu_custom_call.1} parent=47 // pred_check_branch
          %325 = sbr.rel (%p323) target = $region52
        $region51: #{tpu_custom_call.1} parent=47 // pred_region
          %326 = dma.done %s319, 8192
        $region52: #{tpu_custom_call.1} parent=47 // pred_fallthru
          _
        // Predicated region
        $region53: #{tpu_custom_call.1} parent=47 // pred_check
          %p327 = pneg %p69
        $region54: #{tpu_custom_call.1} parent=47 // pred_check_branch
          %329 = sbr.rel (%p327) target = $region56
        $region55: #{tpu_custom_call.1} parent=47 // pred_region
          %330 = dma.done [#allocation6], 65536
        $region56: #{tpu_custom_call.1} parent=47 // pred_fallthru
          _
        // Predicated region
        $region57: #{tpu_custom_call.1} parent=47 // pred_check
          %p331 = pneg %p90
        $region58: #{tpu_custom_call.1} parent=47 // pred_check_branch
          %333 = sbr.rel (%p331) target = $region60
        $region59: #{tpu_custom_call.1} parent=47 // pred_region
          %334 = dma.done [#allocation6], 256
        $region60: #{tpu_custom_call.1} parent=47 // pred_fallthru
          _
        // Predicated region
        $region61: #{tpu_custom_call.1} parent=47 // pred_check
          %p335 = pneg %p111
        $region62: #{tpu_custom_call.1} parent=47 // pred_check_branch
          %337 = sbr.rel (%p335) target = $region64
        $region63: #{tpu_custom_call.1} parent=47 // pred_region
          %338 = dma.done [#allocation9], 65536
        $region64: #{tpu_custom_call.1} parent=47 // pred_fallthru
          _
        // Predicated region
        $region65: #{tpu_custom_call.1} parent=47 // pred_check
          %p339 = pneg %p132
        $region66: #{tpu_custom_call.1} parent=47 // pred_check_branch
          %341 = sbr.rel (%p339) target = $region68
        $region67: #{tpu_custom_call.1} parent=47 // pred_region
          %342 = dma.done [#allocation9], 64
        $region68: #{tpu_custom_call.1} parent=47 // pred_fallthru
          _
        // Predicated region
        $region69: #{tpu_custom_call.1} parent=47 // pred_check
          %p343 = pneg %p153
        $region70: #{tpu_custom_call.1} parent=47 // pred_check_branch
          %345 = sbr.rel (%p343) target = $region72
        $region71: #{tpu_custom_call.1} parent=47 // pred_region
          %346 = dma.done [#allocation12], 64
        $region72: #{tpu_custom_call.1} parent=47 // pred_fallthru
          _
        // Predicated region
        $region73: #{tpu_custom_call.1} parent=47 // pred_check
          %p347 = pneg %p174
        $region74: #{tpu_custom_call.1} parent=47 // pred_check_branch
          %349 = sbr.rel (%p347) target = $region76
        $region75: #{tpu_custom_call.1} parent=47 // pred_region
          %350 = dma.done [#allocation12], 64
        $region76: #{tpu_custom_call.1} parent=47 // pred_fallthru
          _
        %s351 = sand.u32 %s35, 1
        %s352 = scalar_lea.sflag [#allocation3], %s351
        %s353 = sand.u32 %s35, 1
        %s354 = smul.addr %s353, 512
        %s355 = scalar_lea.vmem [#allocation2], %s354
        %p356 = pneg %p48
        %p357 = pneg %p45
        %p358 = pneg %p69
        %p359 = pneg %p66
        %p360 = pneg %p90
        %p361 = pneg %p87
        %p362 = pneg %p111
        %p363 = pneg %p108
        %p364 = pneg %p132
        %p365 = pneg %p129
        %p366 = pneg %p153
        %p367 = pneg %p150
        %p368 = pneg %p174
        %p369 = pneg %p171
        %p370 = pneg %p200
        %p371 = pneg %p197
        %s372 = sand.u32 %s187, 1
        %s373 = scalar_lea.sflag [#allocation4], %s372
        %s374 = sand.u32 %s187, 1
        %s375 = smul.addr %s374, 512
        %s376 = scalar_lea.vmem [#allocation14], %s375
        %s377 = smul.u32 16, %s27
        %s378 = smul.u32 16, %s27
        %v380 = vld [vmem:[%s322] sm:$0xff]
        %v381 = vld [vmem:[%s322 + $0x8] sm:$0xff]
        %v382 = vld [vmem:[%s322 + $0x10] sm:$0xff]
        %v383 = vld [vmem:[%s322 + $0x18] sm:$0xff]
        %v384 = vld [vmem:[%s322 + $0x20] sm:$0xff]
        %v385 = vld [vmem:[%s322 + $0x28] sm:$0xff]
        %v386 = vld [vmem:[%s322 + $0x30] sm:$0xff]
        %v387 = vld [vmem:[%s322 + $0x38] sm:$0xff]
        %v388 = vld [vmem:[%s322 + $0x40] sm:$0xff]
        %v389 = vld [vmem:[%s322 + $0x48] sm:$0xff]
        %v390 = vld [vmem:[%s322 + $0x50] sm:$0xff]
        %v391 = vld [vmem:[%s322 + $0x58] sm:$0xff]
        %v392 = vld [vmem:[%s322 + $0x60] sm:$0xff]
        %v393 = vld [vmem:[%s322 + $0x68] sm:$0xff]
        %v394 = vld [vmem:[%s322 + $0x70] sm:$0xff]
        %v395 = vld [vmem:[%s322 + $0x78] sm:$0xff]
        %v396 = vld [vmem:[%s322 + $0x80] sm:$0xff]
        %v397 = vld [vmem:[%s322 + $0x88] sm:$0xff]
        %v398 = vld [vmem:[%s322 + $0x90] sm:$0xff]
        %v399 = vld [vmem:[%s322 + $0x98] sm:$0xff]
        %v400 = vld [vmem:[%s322 + $0xa0] sm:$0xff]
        %v401 = vld [vmem:[%s322 + $0xa8] sm:$0xff]
        %v402 = vld [vmem:[%s322 + $0xb0] sm:$0xff]
        %v403 = vld [vmem:[%s322 + $0xb8] sm:$0xff]
        %v404 = vld [vmem:[%s322 + $0xc0] sm:$0xff]
        %v405 = vld [vmem:[%s322 + $0xc8] sm:$0xff]
        %v406 = vld [vmem:[%s322 + $0xd0] sm:$0xff]
        %v407 = vld [vmem:[%s322 + $0xd8] sm:$0xff]
        %v408 = vld [vmem:[%s322 + $0xe0] sm:$0xff]
        %v409 = vld [vmem:[%s322 + $0xe8] sm:$0xff]
        %v410 = vld [vmem:[%s322 + $0xf0] sm:$0xff]
        %v411 = vld [vmem:[%s322 + $0xf8] sm:$0xff]
        %v412 = vld [vmem:[%s322 + $0x100] sm:$0xff]
        %v413 = vld [vmem:[%s322 + $0x108] sm:$0xff]
        %v414 = vld [vmem:[%s322 + $0x110] sm:$0xff]
        %v415 = vld [vmem:[%s322 + $0x118] sm:$0xff]
        %v416 = vld [vmem:[%s322 + $0x120] sm:$0xff]
        %v417 = vld [vmem:[%s322 + $0x128] sm:$0xff]
        %v418 = vld [vmem:[%s322 + $0x130] sm:$0xff]
        %v419 = vld [vmem:[%s322 + $0x138] sm:$0xff]
        %v420 = vld [vmem:[%s322 + $0x140] sm:$0xff]
        %v421 = vld [vmem:[%s322 + $0x148] sm:$0xff]
        %v422 = vld [vmem:[%s322 + $0x150] sm:$0xff]
        %v423 = vld [vmem:[%s322 + $0x158] sm:$0xff]
        %v424 = vld [vmem:[%s322 + $0x160] sm:$0xff]
        %v425 = vld [vmem:[%s322 + $0x168] sm:$0xff]
        %v426 = vld [vmem:[%s322 + $0x170] sm:$0xff]
        %v427 = vld [vmem:[%s322 + $0x178] sm:$0xff]
        %v428 = vld [vmem:[%s322 + $0x180] sm:$0xff]
        %v429 = vld [vmem:[%s322 + $0x188] sm:$0xff]
        %v430 = vld [vmem:[%s322 + $0x190] sm:$0xff]
        %v431 = vld [vmem:[%s322 + $0x198] sm:$0xff]
        %v432 = vld [vmem:[%s322 + $0x1a0] sm:$0xff]
        %v433 = vld [vmem:[%s322 + $0x1a8] sm:$0xff]
        %v434 = vld [vmem:[%s322 + $0x1b0] sm:$0xff]
        %v435 = vld [vmem:[%s322 + $0x1b8] sm:$0xff]
        %v436 = vld [vmem:[%s322 + $0x1c0] sm:$0xff]
        %v437 = vld [vmem:[%s322 + $0x1c8] sm:$0xff]
        %v438 = vld [vmem:[%s322 + $0x1d0] sm:$0xff]
        %v439 = vld [vmem:[%s322 + $0x1d8] sm:$0xff]
        %v440 = vld [vmem:[%s322 + $0x1e0] sm:$0xff]
        %v441 = vld [vmem:[%s322 + $0x1e8] sm:$0xff]
        %v442 = vld [vmem:[%s322 + $0x1f0] sm:$0xff]
        %v443 = vld [vmem:[%s322 + $0x1f8] sm:$0xff]
        %v444 = vpack.c.bf16 %v384, %v380
        %v445 = vpack.c.bf16 %v385, %v381
        %v446 = vpack.c.bf16 %v386, %v382
        %v447 = vpack.c.bf16 %v387, %v383
        %v448 = vpack.c.bf16 %v392, %v388
        %v449 = vpack.c.bf16 %v393, %v389
        %v450 = vpack.c.bf16 %v394, %v390
        %v451 = vpack.c.bf16 %v395, %v391
        %v452 = vpack.c.bf16 %v400, %v396
        %v453 = vpack.c.bf16 %v401, %v397
        %v454 = vpack.c.bf16 %v402, %v398
        %v455 = vpack.c.bf16 %v403, %v399
        %v456 = vpack.c.bf16 %v408, %v404
        %v457 = vpack.c.bf16 %v409, %v405
        %v458 = vpack.c.bf16 %v410, %v406
        %v459 = vpack.c.bf16 %v411, %v407
        %v460 = vpack.c.bf16 %v416, %v412
        %v461 = vpack.c.bf16 %v417, %v413
        %v462 = vpack.c.bf16 %v418, %v414
        %v463 = vpack.c.bf16 %v419, %v415
        %v464 = vpack.c.bf16 %v424, %v420
        %v465 = vpack.c.bf16 %v425, %v421
        %v466 = vpack.c.bf16 %v426, %v422
        %v467 = vpack.c.bf16 %v427, %v423
        %v468 = vpack.c.bf16 %v432, %v428
        %v469 = vpack.c.bf16 %v433, %v429
        %v470 = vpack.c.bf16 %v434, %v430
        %v471 = vpack.c.bf16 %v435, %v431
        %v472 = vpack.c.bf16 %v440, %v436
        %v473 = vpack.c.bf16 %v441, %v437
        %v474 = vpack.c.bf16 %v442, %v438
        %v475 = vpack.c.bf16 %v443, %v439
        %v476 = vld [vmem:[#allocation5] sm:$0xff]
        %v477 = vld [vmem:[#allocation5 + $0x8] sm:$0xff]
        %v478 = vld [vmem:[#allocation5 + $0x10] sm:$0xff]
        %v479 = vld [vmem:[#allocation5 + $0x18] sm:$0xff]
        %v480 = vld [vmem:[#allocation5 + $0x20] sm:$0xff]
        %v481 = vld [vmem:[#allocation5 + $0x28] sm:$0xff]
        %v482 = vld [vmem:[#allocation5 + $0x30] sm:$0xff]
        %v483 = vld [vmem:[#allocation5 + $0x38] sm:$0xff]
        %v484 = vld [vmem:[#allocation5 + $0x40] sm:$0xff]
        %v485 = vld [vmem:[#allocation5 + $0x48] sm:$0xff]
        %v486 = vld [vmem:[#allocation5 + $0x50] sm:$0xff]
        %v487 = vld [vmem:[#allocation5 + $0x58] sm:$0xff]
        %v488 = vld [vmem:[#allocation5 + $0x60] sm:$0xff]
        %v489 = vld [vmem:[#allocation5 + $0x68] sm:$0xff]
        %v490 = vld [vmem:[#allocation5 + $0x70] sm:$0xff]
        %v491 = vld [vmem:[#allocation5 + $0x78] sm:$0xff]
        %v492 = vld [vmem:[#allocation5 + $0x80] sm:$0xff]
        %v493 = vld [vmem:[#allocation5 + $0x88] sm:$0xff]
        %v494 = vld [vmem:[#allocation5 + $0x90] sm:$0xff]
        %v495 = vld [vmem:[#allocation5 + $0x98] sm:$0xff]
        %v496 = vld [vmem:[#allocation5 + $0xa0] sm:$0xff]
        %v497 = vld [vmem:[#allocation5 + $0xa8] sm:$0xff]
        %v498 = vld [vmem:[#allocation5 + $0xb0] sm:$0xff]
        %v499 = vld [vmem:[#allocation5 + $0xb8] sm:$0xff]
        %v500 = vld [vmem:[#allocation5 + $0xc0] sm:$0xff]
        %v501 = vld [vmem:[#allocation5 + $0xc8] sm:$0xff]
        %v502 = vld [vmem:[#allocation5 + $0xd0] sm:$0xff]
        %v503 = vld [vmem:[#allocation5 + $0xd8] sm:$0xff]
        %v504 = vld [vmem:[#allocation5 + $0xe0] sm:$0xff]
        %v505 = vld [vmem:[#allocation5 + $0xe8] sm:$0xff]
        %v506 = vld [vmem:[#allocation5 + $0xf0] sm:$0xff]
        %v507 = vld [vmem:[#allocation5 + $0xf8] sm:$0xff]
        %v508 = vld [vmem:[#allocation5 + $0x100] sm:$0xff]
        %v509 = vld [vmem:[#allocation5 + $0x108] sm:$0xff]
        %v510 = vld [vmem:[#allocation5 + $0x110] sm:$0xff]
        %v511 = vld [vmem:[#allocation5 + $0x118] sm:$0xff]
        %v512 = vld [vmem:[#allocation5 + $0x120] sm:$0xff]
        %v513 = vld [vmem:[#allocation5 + $0x128] sm:$0xff]
        %v514 = vld [vmem:[#allocation5 + $0x130] sm:$0xff]
        %v515 = vld [vmem:[#allocation5 + $0x138] sm:$0xff]
        %v516 = vld [vmem:[#allocation5 + $0x140] sm:$0xff]
        %v517 = vld [vmem:[#allocation5 + $0x148] sm:$0xff]
        %v518 = vld [vmem:[#allocation5 + $0x150] sm:$0xff]
        %v519 = vld [vmem:[#allocation5 + $0x158] sm:$0xff]
        %v520 = vld [vmem:[#allocation5 + $0x160] sm:$0xff]
        %v521 = vld [vmem:[#allocation5 + $0x168] sm:$0xff]
        %v522 = vld [vmem:[#allocation5 + $0x170] sm:$0xff]
        %v523 = vld [vmem:[#allocation5 + $0x178] sm:$0xff]
        %v524 = vld [vmem:[#allocation5 + $0x180] sm:$0xff]
        %v525 = vld [vmem:[#allocation5 + $0x188] sm:$0xff]
        %v526 = vld [vmem:[#allocation5 + $0x190] sm:$0xff]
        %v527 = vld [vmem:[#allocation5 + $0x198] sm:$0xff]
        %v528 = vld [vmem:[#allocation5 + $0x1a0] sm:$0xff]
        %v529 = vld [vmem:[#allocation5 + $0x1a8] sm:$0xff]
        %v530 = vld [vmem:[#allocation5 + $0x1b0] sm:$0xff]
        %v531 = vld [vmem:[#allocation5 + $0x1b8] sm:$0xff]
        %v532 = vld [vmem:[#allocation5 + $0x1c0] sm:$0xff]
        %v533 = vld [vmem:[#allocation5 + $0x1c8] sm:$0xff]
        %v534 = vld [vmem:[#allocation5 + $0x1d0] sm:$0xff]
        %v535 = vld [vmem:[#allocation5 + $0x1d8] sm:$0xff]
        %v536 = vld [vmem:[#allocation5 + $0x1e0] sm:$0xff]
        %v537 = vld [vmem:[#allocation5 + $0x1e8] sm:$0xff]
        %v538 = vld [vmem:[#allocation5 + $0x1f0] sm:$0xff]
        %v539 = vld [vmem:[#allocation5 + $0x1f8] sm:$0xff]
        %v540 = vld [vmem:[#allocation5 + $0x200] sm:$0xff]
        %v541 = vld [vmem:[#allocation5 + $0x208] sm:$0xff]
        %v542 = vld [vmem:[#allocation5 + $0x210] sm:$0xff]
        %v543 = vld [vmem:[#allocation5 + $0x218] sm:$0xff]
        %v544 = vld [vmem:[#allocation5 + $0x220] sm:$0xff]
        %v545 = vld [vmem:[#allocation5 + $0x228] sm:$0xff]
        %v546 = vld [vmem:[#allocation5 + $0x230] sm:$0xff]
        %v547 = vld [vmem:[#allocation5 + $0x238] sm:$0xff]
        %v548 = vld [vmem:[#allocation5 + $0x240] sm:$0xff]
        %v549 = vld [vmem:[#allocation5 + $0x248] sm:$0xff]
        %v550 = vld [vmem:[#allocation5 + $0x250] sm:$0xff]
        %v551 = vld [vmem:[#allocation5 + $0x258] sm:$0xff]
        %v552 = vld [vmem:[#allocation5 + $0x260] sm:$0xff]
        %v553 = vld [vmem:[#allocation5 + $0x268] sm:$0xff]
        %v554 = vld [vmem:[#allocation5 + $0x270] sm:$0xff]
        %v555 = vld [vmem:[#allocation5 + $0x278] sm:$0xff]
        %v556 = vld [vmem:[#allocation5 + $0x280] sm:$0xff]
        %v557 = vld [vmem:[#allocation5 + $0x288] sm:$0xff]
        %v558 = vld [vmem:[#allocation5 + $0x290] sm:$0xff]
        %v559 = vld [vmem:[#allocation5 + $0x298] sm:$0xff]
        %v560 = vld [vmem:[#allocation5 + $0x2a0] sm:$0xff]
        %v561 = vld [vmem:[#allocation5 + $0x2a8] sm:$0xff]
        %v562 = vld [vmem:[#allocation5 + $0x2b0] sm:$0xff]
        %v563 = vld [vmem:[#allocation5 + $0x2b8] sm:$0xff]
        %v564 = vld [vmem:[#allocation5 + $0x2c0] sm:$0xff]
        %v565 = vld [vmem:[#allocation5 + $0x2c8] sm:$0xff]
        %v566 = vld [vmem:[#allocation5 + $0x2d0] sm:$0xff]
        %v567 = vld [vmem:[#allocation5 + $0x2d8] sm:$0xff]
        %v568 = vld [vmem:[#allocation5 + $0x2e0] sm:$0xff]
        %v569 = vld [vmem:[#allocation5 + $0x2e8] sm:$0xff]
        %v570 = vld [vmem:[#allocation5 + $0x2f0] sm:$0xff]
        %v571 = vld [vmem:[#allocation5 + $0x2f8] sm:$0xff]
        %v572 = vld [vmem:[#allocation5 + $0x300] sm:$0xff]
        %v573 = vld [vmem:[#allocation5 + $0x308] sm:$0xff]
        %v574 = vld [vmem:[#allocation5 + $0x310] sm:$0xff]
        %v575 = vld [vmem:[#allocation5 + $0x318] sm:$0xff]
        %v576 = vld [vmem:[#allocation5 + $0x320] sm:$0xff]
        %v577 = vld [vmem:[#allocation5 + $0x328] sm:$0xff]
        %v578 = vld [vmem:[#allocation5 + $0x330] sm:$0xff]
        %v579 = vld [vmem:[#allocation5 + $0x338] sm:$0xff]
        %v580 = vld [vmem:[#allocation5 + $0x340] sm:$0xff]
        %v581 = vld [vmem:[#allocation5 + $0x348] sm:$0xff]
        %v582 = vld [vmem:[#allocation5 + $0x350] sm:$0xff]
        %v583 = vld [vmem:[#allocation5 + $0x358] sm:$0xff]
        %v584 = vld [vmem:[#allocation5 + $0x360] sm:$0xff]
        %v585 = vld [vmem:[#allocation5 + $0x368] sm:$0xff]
        %v586 = vld [vmem:[#allocation5 + $0x370] sm:$0xff]
        %v587 = vld [vmem:[#allocation5 + $0x378] sm:$0xff]
        %v588 = vld [vmem:[#allocation5 + $0x380] sm:$0xff]
        %v589 = vld [vmem:[#allocation5 + $0x388] sm:$0xff]
        %v590 = vld [vmem:[#allocation5 + $0x390] sm:$0xff]
        %v591 = vld [vmem:[#allocation5 + $0x398] sm:$0xff]
        %v592 = vld [vmem:[#allocation5 + $0x3a0] sm:$0xff]
        %v593 = vld [vmem:[#allocation5 + $0x3a8] sm:$0xff]
        %v594 = vld [vmem:[#allocation5 + $0x3b0] sm:$0xff]
        %v595 = vld [vmem:[#allocation5 + $0x3b8] sm:$0xff]
        %v596 = vld [vmem:[#allocation5 + $0x3c0] sm:$0xff]
        %v597 = vld [vmem:[#allocation5 + $0x3c8] sm:$0xff]
        %v598 = vld [vmem:[#allocation5 + $0x3d0] sm:$0xff]
        %v599 = vld [vmem:[#allocation5 + $0x3d8] sm:$0xff]
        %v600 = vld [vmem:[#allocation5 + $0x3e0] sm:$0xff]
        %v601 = vld [vmem:[#allocation5 + $0x3e8] sm:$0xff]
        %v602 = vld [vmem:[#allocation5 + $0x3f0] sm:$0xff]
        %v603 = vld [vmem:[#allocation5 + $0x3f8] sm:$0xff]
        %v604 = vld [vmem:[#allocation5 + $0x400] sm:$0xff]
        %v605 = vld [vmem:[#allocation5 + $0x408] sm:$0xff]
        %v606 = vld [vmem:[#allocation5 + $0x410] sm:$0xff]
        %v607 = vld [vmem:[#allocation5 + $0x418] sm:$0xff]
        %v608 = vld [vmem:[#allocation5 + $0x420] sm:$0xff]
        %v609 = vld [vmem:[#allocation5 + $0x428] sm:$0xff]
        %v610 = vld [vmem:[#allocation5 + $0x430] sm:$0xff]
        %v611 = vld [vmem:[#allocation5 + $0x438] sm:$0xff]
        %v612 = vld [vmem:[#allocation5 + $0x440] sm:$0xff]
        %v613 = vld [vmem:[#allocation5 + $0x448] sm:$0xff]
        %v614 = vld [vmem:[#allocation5 + $0x450] sm:$0xff]
        %v615 = vld [vmem:[#allocation5 + $0x458] sm:$0xff]
        %v616 = vld [vmem:[#allocation5 + $0x460] sm:$0xff]
        %v617 = vld [vmem:[#allocation5 + $0x468] sm:$0xff]
        %v618 = vld [vmem:[#allocation5 + $0x470] sm:$0xff]
        %v619 = vld [vmem:[#allocation5 + $0x478] sm:$0xff]
        %v620 = vld [vmem:[#allocation5 + $0x480] sm:$0xff]
        %v621 = vld [vmem:[#allocation5 + $0x488] sm:$0xff]
        %v622 = vld [vmem:[#allocation5 + $0x490] sm:$0xff]
        %v623 = vld [vmem:[#allocation5 + $0x498] sm:$0xff]
        %v624 = vld [vmem:[#allocation5 + $0x4a0] sm:$0xff]
        %v625 = vld [vmem:[#allocation5 + $0x4a8] sm:$0xff]
        %v626 = vld [vmem:[#allocation5 + $0x4b0] sm:$0xff]
        %v627 = vld [vmem:[#allocation5 + $0x4b8] sm:$0xff]
        %v628 = vld [vmem:[#allocation5 + $0x4c0] sm:$0xff]
        %v629 = vld [vmem:[#allocation5 + $0x4c8] sm:$0xff]
        %v630 = vld [vmem:[#allocation5 + $0x4d0] sm:$0xff]
        %v631 = vld [vmem:[#allocation5 + $0x4d8] sm:$0xff]
        %v632 = vld [vmem:[#allocation5 + $0x4e0] sm:$0xff]
        %v633 = vld [vmem:[#allocation5 + $0x4e8] sm:$0xff]
        %v634 = vld [vmem:[#allocation5 + $0x4f0] sm:$0xff]
        %v635 = vld [vmem:[#allocation5 + $0x4f8] sm:$0xff]
        %v636 = vld [vmem:[#allocation5 + $0x500] sm:$0xff]
        %v637 = vld [vmem:[#allocation5 + $0x508] sm:$0xff]
        %v638 = vld [vmem:[#allocation5 + $0x510] sm:$0xff]
        %v639 = vld [vmem:[#allocation5 + $0x518] sm:$0xff]
        %v640 = vld [vmem:[#allocation5 + $0x520] sm:$0xff]
        %v641 = vld [vmem:[#allocation5 + $0x528] sm:$0xff]
        %v642 = vld [vmem:[#allocation5 + $0x530] sm:$0xff]
        %v643 = vld [vmem:[#allocation5 + $0x538] sm:$0xff]
        %v644 = vld [vmem:[#allocation5 + $0x540] sm:$0xff]
        %v645 = vld [vmem:[#allocation5 + $0x548] sm:$0xff]
        %v646 = vld [vmem:[#allocation5 + $0x550] sm:$0xff]
        %v647 = vld [vmem:[#allocation5 + $0x558] sm:$0xff]
        %v648 = vld [vmem:[#allocation5 + $0x560] sm:$0xff]
        %v649 = vld [vmem:[#allocation5 + $0x568] sm:$0xff]
        %v650 = vld [vmem:[#allocation5 + $0x570] sm:$0xff]
        %v651 = vld [vmem:[#allocation5 + $0x578] sm:$0xff]
        %v652 = vld [vmem:[#allocation5 + $0x580] sm:$0xff]
        %v653 = vld [vmem:[#allocation5 + $0x588] sm:$0xff]
        %v654 = vld [vmem:[#allocation5 + $0x590] sm:$0xff]
        %v655 = vld [vmem:[#allocation5 + $0x598] sm:$0xff]
        %v656 = vld [vmem:[#allocation5 + $0x5a0] sm:$0xff]
        %v657 = vld [vmem:[#allocation5 + $0x5a8] sm:$0xff]
        %v658 = vld [vmem:[#allocation5 + $0x5b0] sm:$0xff]
        %v659 = vld [vmem:[#allocation5 + $0x5b8] sm:$0xff]
        %v660 = vld [vmem:[#allocation5 + $0x5c0] sm:$0xff]
        %v661 = vld [vmem:[#allocation5 + $0x5c8] sm:$0xff]
        %v662 = vld [vmem:[#allocation5 + $0x5d0] sm:$0xff]
        %v663 = vld [vmem:[#allocation5 + $0x5d8] sm:$0xff]
        %v664 = vld [vmem:[#allocation5 + $0x5e0] sm:$0xff]
        %v665 = vld [vmem:[#allocation5 + $0x5e8] sm:$0xff]
        %v666 = vld [vmem:[#allocation5 + $0x5f0] sm:$0xff]
        %v667 = vld [vmem:[#allocation5 + $0x5f8] sm:$0xff]
        %v668 = vld [vmem:[#allocation5 + $0x600] sm:$0xff]
        %v669 = vld [vmem:[#allocation5 + $0x608] sm:$0xff]
        %v670 = vld [vmem:[#allocation5 + $0x610] sm:$0xff]
        %v671 = vld [vmem:[#allocation5 + $0x618] sm:$0xff]
        %v672 = vld [vmem:[#allocation5 + $0x620] sm:$0xff]
        %v673 = vld [vmem:[#allocation5 + $0x628] sm:$0xff]
        %v674 = vld [vmem:[#allocation5 + $0x630] sm:$0xff]
        %v675 = vld [vmem:[#allocation5 + $0x638] sm:$0xff]
        %v676 = vld [vmem:[#allocation5 + $0x640] sm:$0xff]
        %v677 = vld [vmem:[#allocation5 + $0x648] sm:$0xff]
        %v678 = vld [vmem:[#allocation5 + $0x650] sm:$0xff]
        %v679 = vld [vmem:[#allocation5 + $0x658] sm:$0xff]
        %v680 = vld [vmem:[#allocation5 + $0x660] sm:$0xff]
        %v681 = vld [vmem:[#allocation5 + $0x668] sm:$0xff]
        %v682 = vld [vmem:[#allocation5 + $0x670] sm:$0xff]
        %v683 = vld [vmem:[#allocation5 + $0x678] sm:$0xff]
        %v684 = vld [vmem:[#allocation5 + $0x680] sm:$0xff]
        %v685 = vld [vmem:[#allocation5 + $0x688] sm:$0xff]
        %v686 = vld [vmem:[#allocation5 + $0x690] sm:$0xff]
        %v687 = vld [vmem:[#allocation5 + $0x698] sm:$0xff]
        %v688 = vld [vmem:[#allocation5 + $0x6a0] sm:$0xff]
        %v689 = vld [vmem:[#allocation5 + $0x6a8] sm:$0xff]
        %v690 = vld [vmem:[#allocation5 + $0x6b0] sm:$0xff]
        %v691 = vld [vmem:[#allocation5 + $0x6b8] sm:$0xff]
        %v692 = vld [vmem:[#allocation5 + $0x6c0] sm:$0xff]
        %v693 = vld [vmem:[#allocation5 + $0x6c8] sm:$0xff]
        %v694 = vld [vmem:[#allocation5 + $0x6d0] sm:$0xff]
        %v695 = vld [vmem:[#allocation5 + $0x6d8] sm:$0xff]
        %v696 = vld [vmem:[#allocation5 + $0x6e0] sm:$0xff]
        %v697 = vld [vmem:[#allocation5 + $0x6e8] sm:$0xff]
        %v698 = vld [vmem:[#allocation5 + $0x6f0] sm:$0xff]
        %v699 = vld [vmem:[#allocation5 + $0x6f8] sm:$0xff]
        %v700 = vld [vmem:[#allocation5 + $0x700] sm:$0xff]
        %v701 = vld [vmem:[#allocation5 + $0x708] sm:$0xff]
        %v702 = vld [vmem:[#allocation5 + $0x710] sm:$0xff]
        %v703 = vld [vmem:[#allocation5 + $0x718] sm:$0xff]
        %v704 = vld [vmem:[#allocation5 + $0x720] sm:$0xff]
        %v705 = vld [vmem:[#allocation5 + $0x728] sm:$0xff]
        %v706 = vld [vmem:[#allocation5 + $0x730] sm:$0xff]
        %v707 = vld [vmem:[#allocation5 + $0x738] sm:$0xff]
        %v708 = vld [vmem:[#allocation5 + $0x740] sm:$0xff]
        %v709 = vld [vmem:[#allocation5 + $0x748] sm:$0xff]
        %v710 = vld [vmem:[#allocation5 + $0x750] sm:$0xff]
        %v711 = vld [vmem:[#allocation5 + $0x758] sm:$0xff]
        %v712 = vld [vmem:[#allocation5 + $0x760] sm:$0xff]
        %v713 = vld [vmem:[#allocation5 + $0x768] sm:$0xff]
        %v714 = vld [vmem:[#allocation5 + $0x770] sm:$0xff]
        %v715 = vld [vmem:[#allocation5 + $0x778] sm:$0xff]
        %v716 = vld [vmem:[#allocation5 + $0x780] sm:$0xff]
        %v717 = vld [vmem:[#allocation5 + $0x788] sm:$0xff]
        %v718 = vld [vmem:[#allocation5 + $0x790] sm:$0xff]
        %v719 = vld [vmem:[#allocation5 + $0x798] sm:$0xff]
        %v720 = vld [vmem:[#allocation5 + $0x7a0] sm:$0xff]
        %v721 = vld [vmem:[#allocation5 + $0x7a8] sm:$0xff]
        %v722 = vld [vmem:[#allocation5 + $0x7b0] sm:$0xff]
        %v723 = vld [vmem:[#allocation5 + $0x7b8] sm:$0xff]
        %v724 = vld [vmem:[#allocation5 + $0x7c0] sm:$0xff]
        %v725 = vld [vmem:[#allocation5 + $0x7c8] sm:$0xff]
        %v726 = vld [vmem:[#allocation5 + $0x7d0] sm:$0xff]
        %v727 = vld [vmem:[#allocation5 + $0x7d8] sm:$0xff]
        %v728 = vld [vmem:[#allocation5 + $0x7e0] sm:$0xff]
        %v729 = vld [vmem:[#allocation5 + $0x7e8] sm:$0xff]
        %v730 = vld [vmem:[#allocation5 + $0x7f0] sm:$0xff]
        %v731 = vld [vmem:[#allocation5 + $0x7f8] sm:$0xff]
        %v732 = vld [vmem:[#allocation5 + $0x800] sm:$0xff]
        %v733 = vld [vmem:[#allocation5 + $0x808] sm:$0xff]
        %v734 = vld [vmem:[#allocation5 + $0x810] sm:$0xff]
        %v735 = vld [vmem:[#allocation5 + $0x818] sm:$0xff]
        %v736 = vld [vmem:[#allocation5 + $0x820] sm:$0xff]
        %v737 = vld [vmem:[#allocation5 + $0x828] sm:$0xff]
        %v738 = vld [vmem:[#allocation5 + $0x830] sm:$0xff]
        %v739 = vld [vmem:[#allocation5 + $0x838] sm:$0xff]
        %v740 = vld [vmem:[#allocation5 + $0x840] sm:$0xff]
        %v741 = vld [vmem:[#allocation5 + $0x848] sm:$0xff]
        %v742 = vld [vmem:[#allocation5 + $0x850] sm:$0xff]
        %v743 = vld [vmem:[#allocation5 + $0x858] sm:$0xff]
        %v744 = vld [vmem:[#allocation5 + $0x860] sm:$0xff]
        %v745 = vld [vmem:[#allocation5 + $0x868] sm:$0xff]
        %v746 = vld [vmem:[#allocation5 + $0x870] sm:$0xff]
        %v747 = vld [vmem:[#allocation5 + $0x878] sm:$0xff]
        %v748 = vld [vmem:[#allocation5 + $0x880] sm:$0xff]
        %v749 = vld [vmem:[#allocation5 + $0x888] sm:$0xff]
        %v750 = vld [vmem:[#allocation5 + $0x890] sm:$0xff]
        %v751 = vld [vmem:[#allocation5 + $0x898] sm:$0xff]
        %v752 = vld [vmem:[#allocation5 + $0x8a0] sm:$0xff]
        %v753 = vld [vmem:[#allocation5 + $0x8a8] sm:$0xff]
        %v754 = vld [vmem:[#allocation5 + $0x8b0] sm:$0xff]
        %v755 = vld [vmem:[#allocation5 + $0x8b8] sm:$0xff]
        %v756 = vld [vmem:[#allocation5 + $0x8c0] sm:$0xff]
        %v757 = vld [vmem:[#allocation5 + $0x8c8] sm:$0xff]
        %v758 = vld [vmem:[#allocation5 + $0x8d0] sm:$0xff]
        %v759 = vld [vmem:[#allocation5 + $0x8d8] sm:$0xff]
        %v760 = vld [vmem:[#allocation5 + $0x8e0] sm:$0xff]
        %v761 = vld [vmem:[#allocation5 + $0x8e8] sm:$0xff]
        %v762 = vld [vmem:[#allocation5 + $0x8f0] sm:$0xff]
        %v763 = vld [vmem:[#allocation5 + $0x8f8] sm:$0xff]
        %v764 = vld [vmem:[#allocation5 + $0x900] sm:$0xff]
        %v765 = vld [vmem:[#allocation5 + $0x908] sm:$0xff]
        %v766 = vld [vmem:[#allocation5 + $0x910] sm:$0xff]
        %v767 = vld [vmem:[#allocation5 + $0x918] sm:$0xff]
        %v768 = vld [vmem:[#allocation5 + $0x920] sm:$0xff]
        %v769 = vld [vmem:[#allocation5 + $0x928] sm:$0xff]
        %v770 = vld [vmem:[#allocation5 + $0x930] sm:$0xff]
        %v771 = vld [vmem:[#allocation5 + $0x938] sm:$0xff]
        %v772 = vld [vmem:[#allocation5 + $0x940] sm:$0xff]
        %v773 = vld [vmem:[#allocation5 + $0x948] sm:$0xff]
        %v774 = vld [vmem:[#allocation5 + $0x950] sm:$0xff]
        %v775 = vld [vmem:[#allocation5 + $0x958] sm:$0xff]
        %v776 = vld [vmem:[#allocation5 + $0x960] sm:$0xff]
        %v777 = vld [vmem:[#allocation5 + $0x968] sm:$0xff]
        %v778 = vld [vmem:[#allocation5 + $0x970] sm:$0xff]
        %v779 = vld [vmem:[#allocation5 + $0x978] sm:$0xff]
        %v780 = vld [vmem:[#allocation5 + $0x980] sm:$0xff]
        %v781 = vld [vmem:[#allocation5 + $0x988] sm:$0xff]
        %v782 = vld [vmem:[#allocation5 + $0x990] sm:$0xff]
        %v783 = vld [vmem:[#allocation5 + $0x998] sm:$0xff]
        %v784 = vld [vmem:[#allocation5 + $0x9a0] sm:$0xff]
        %v785 = vld [vmem:[#allocation5 + $0x9a8] sm:$0xff]
        %v786 = vld [vmem:[#allocation5 + $0x9b0] sm:$0xff]
        %v787 = vld [vmem:[#allocation5 + $0x9b8] sm:$0xff]
        %v788 = vld [vmem:[#allocation5 + $0x9c0] sm:$0xff]
        %v789 = vld [vmem:[#allocation5 + $0x9c8] sm:$0xff]
        %v790 = vld [vmem:[#allocation5 + $0x9d0] sm:$0xff]
        %v791 = vld [vmem:[#allocation5 + $0x9d8] sm:$0xff]
        %v792 = vld [vmem:[#allocation5 + $0x9e0] sm:$0xff]
        %v793 = vld [vmem:[#allocation5 + $0x9e8] sm:$0xff]
        %v794 = vld [vmem:[#allocation5 + $0x9f0] sm:$0xff]
        %v795 = vld [vmem:[#allocation5 + $0x9f8] sm:$0xff]
        %v796 = vld [vmem:[#allocation5 + $0xa00] sm:$0xff]
        %v797 = vld [vmem:[#allocation5 + $0xa08] sm:$0xff]
        %v798 = vld [vmem:[#allocation5 + $0xa10] sm:$0xff]
        %v799 = vld [vmem:[#allocation5 + $0xa18] sm:$0xff]
        %v800 = vld [vmem:[#allocation5 + $0xa20] sm:$0xff]
        %v801 = vld [vmem:[#allocation5 + $0xa28] sm:$0xff]
        %v802 = vld [vmem:[#allocation5 + $0xa30] sm:$0xff]
        %v803 = vld [vmem:[#allocation5 + $0xa38] sm:$0xff]
        %v804 = vld [vmem:[#allocation5 + $0xa40] sm:$0xff]
        %v805 = vld [vmem:[#allocation5 + $0xa48] sm:$0xff]
        %v806 = vld [vmem:[#allocation5 + $0xa50] sm:$0xff]
        %v807 = vld [vmem:[#allocation5 + $0xa58] sm:$0xff]
        %v808 = vld [vmem:[#allocation5 + $0xa60] sm:$0xff]
        %v809 = vld [vmem:[#allocation5 + $0xa68] sm:$0xff]
        %v810 = vld [vmem:[#allocation5 + $0xa70] sm:$0xff]
        %v811 = vld [vmem:[#allocation5 + $0xa78] sm:$0xff]
        %v812 = vld [vmem:[#allocation5 + $0xa80] sm:$0xff]
        %v813 = vld [vmem:[#allocation5 + $0xa88] sm:$0xff]
        %v814 = vld [vmem:[#allocation5 + $0xa90] sm:$0xff]
        %v815 = vld [vmem:[#allocation5 + $0xa98] sm:$0xff]
        %v816 = vld [vmem:[#allocation5 + $0xaa0] sm:$0xff]
        %v817 = vld [vmem:[#allocation5 + $0xaa8] sm:$0xff]
        %v818 = vld [vmem:[#allocation5 + $0xab0] sm:$0xff]
        %v819 = vld [vmem:[#allocation5 + $0xab8] sm:$0xff]
        %v820 = vld [vmem:[#allocation5 + $0xac0] sm:$0xff]
        %v821 = vld [vmem:[#allocation5 + $0xac8] sm:$0xff]
        %v822 = vld [vmem:[#allocation5 + $0xad0] sm:$0xff]
        %v823 = vld [vmem:[#allocation5 + $0xad8] sm:$0xff]
        %v824 = vld [vmem:[#allocation5 + $0xae0] sm:$0xff]
        %v825 = vld [vmem:[#allocation5 + $0xae8] sm:$0xff]
        %v826 = vld [vmem:[#allocation5 + $0xaf0] sm:$0xff]
        %v827 = vld [vmem:[#allocation5 + $0xaf8] sm:$0xff]
        %v828 = vld [vmem:[#allocation5 + $0xb00] sm:$0xff]
        %v829 = vld [vmem:[#allocation5 + $0xb08] sm:$0xff]
        %v830 = vld [vmem:[#allocation5 + $0xb10] sm:$0xff]
        %v831 = vld [vmem:[#allocation5 + $0xb18] sm:$0xff]
        %v832 = vld [vmem:[#allocation5 + $0xb20] sm:$0xff]
        %v833 = vld [vmem:[#allocation5 + $0xb28] sm:$0xff]
        %v834 = vld [vmem:[#allocation5 + $0xb30] sm:$0xff]
        %v835 = vld [vmem:[#allocation5 + $0xb38] sm:$0xff]
        %v836 = vld [vmem:[#allocation5 + $0xb40] sm:$0xff]
        %v837 = vld [vmem:[#allocation5 + $0xb48] sm:$0xff]
        %v838 = vld [vmem:[#allocation5 + $0xb50] sm:$0xff]
        %v839 = vld [vmem:[#allocation5 + $0xb58] sm:$0xff]
        %v840 = vld [vmem:[#allocation5 + $0xb60] sm:$0xff]
        %v841 = vld [vmem:[#allocation5 + $0xb68] sm:$0xff]
        %v842 = vld [vmem:[#allocation5 + $0xb70] sm:$0xff]
        %v843 = vld [vmem:[#allocation5 + $0xb78] sm:$0xff]
        %v844 = vld [vmem:[#allocation5 + $0xb80] sm:$0xff]
        %v845 = vld [vmem:[#allocation5 + $0xb88] sm:$0xff]
        %v846 = vld [vmem:[#allocation5 + $0xb90] sm:$0xff]
        %v847 = vld [vmem:[#allocation5 + $0xb98] sm:$0xff]
        %v848 = vld [vmem:[#allocation5 + $0xba0] sm:$0xff]
        %v849 = vld [vmem:[#allocation5 + $0xba8] sm:$0xff]
        %v850 = vld [vmem:[#allocation5 + $0xbb0] sm:$0xff]
        %v851 = vld [vmem:[#allocation5 + $0xbb8] sm:$0xff]
        %v852 = vld [vmem:[#allocation5 + $0xbc0] sm:$0xff]
        %v853 = vld [vmem:[#allocation5 + $0xbc8] sm:$0xff]
        %v854 = vld [vmem:[#allocation5 + $0xbd0] sm:$0xff]
        %v855 = vld [vmem:[#allocation5 + $0xbd8] sm:$0xff]
        %v856 = vld [vmem:[#allocation5 + $0xbe0] sm:$0xff]
        %v857 = vld [vmem:[#allocation5 + $0xbe8] sm:$0xff]
        %v858 = vld [vmem:[#allocation5 + $0xbf0] sm:$0xff]
        %v859 = vld [vmem:[#allocation5 + $0xbf8] sm:$0xff]
        %v860 = vld [vmem:[#allocation5 + $0xc00] sm:$0xff]
        %v861 = vld [vmem:[#allocation5 + $0xc08] sm:$0xff]
        %v862 = vld [vmem:[#allocation5 + $0xc10] sm:$0xff]
        %v863 = vld [vmem:[#allocation5 + $0xc18] sm:$0xff]
        %v864 = vld [vmem:[#allocation5 + $0xc20] sm:$0xff]
        %v865 = vld [vmem:[#allocation5 + $0xc28] sm:$0xff]
        %v866 = vld [vmem:[#allocation5 + $0xc30] sm:$0xff]
        %v867 = vld [vmem:[#allocation5 + $0xc38] sm:$0xff]
        %v868 = vld [vmem:[#allocation5 + $0xc40] sm:$0xff]
        %v869 = vld [vmem:[#allocation5 + $0xc48] sm:$0xff]
        %v870 = vld [vmem:[#allocation5 + $0xc50] sm:$0xff]
        %v871 = vld [vmem:[#allocation5 + $0xc58] sm:$0xff]
        %v872 = vld [vmem:[#allocation5 + $0xc60] sm:$0xff]
        %v873 = vld [vmem:[#allocation5 + $0xc68] sm:$0xff]
        %v874 = vld [vmem:[#allocation5 + $0xc70] sm:$0xff]
        %v875 = vld [vmem:[#allocation5 + $0xc78] sm:$0xff]
        %v876 = vld [vmem:[#allocation5 + $0xc80] sm:$0xff]
        %v877 = vld [vmem:[#allocation5 + $0xc88] sm:$0xff]
        %v878 = vld [vmem:[#allocation5 + $0xc90] sm:$0xff]
        %v879 = vld [vmem:[#allocation5 + $0xc98] sm:$0xff]
        %v880 = vld [vmem:[#allocation5 + $0xca0] sm:$0xff]
        %v881 = vld [vmem:[#allocation5 + $0xca8] sm:$0xff]
        %v882 = vld [vmem:[#allocation5 + $0xcb0] sm:$0xff]
        %v883 = vld [vmem:[#allocation5 + $0xcb8] sm:$0xff]
        %v884 = vld [vmem:[#allocation5 + $0xcc0] sm:$0xff]
        %v885 = vld [vmem:[#allocation5 + $0xcc8] sm:$0xff]
        %v886 = vld [vmem:[#allocation5 + $0xcd0] sm:$0xff]
        %v887 = vld [vmem:[#allocation5 + $0xcd8] sm:$0xff]
        %v888 = vld [vmem:[#allocation5 + $0xce0] sm:$0xff]
        %v889 = vld [vmem:[#allocation5 + $0xce8] sm:$0xff]
        %v890 = vld [vmem:[#allocation5 + $0xcf0] sm:$0xff]
        %v891 = vld [vmem:[#allocation5 + $0xcf8] sm:$0xff]
        %v892 = vld [vmem:[#allocation5 + $0xd00] sm:$0xff]
        %v893 = vld [vmem:[#allocation5 + $0xd08] sm:$0xff]
        %v894 = vld [vmem:[#allocation5 + $0xd10] sm:$0xff]
        %v895 = vld [vmem:[#allocation5 + $0xd18] sm:$0xff]
        %v896 = vld [vmem:[#allocation5 + $0xd20] sm:$0xff]
        %v897 = vld [vmem:[#allocation5 + $0xd28] sm:$0xff]
        %v898 = vld [vmem:[#allocation5 + $0xd30] sm:$0xff]
        %v899 = vld [vmem:[#allocation5 + $0xd38] sm:$0xff]
        %v900 = vld [vmem:[#allocation5 + $0xd40] sm:$0xff]
        %v901 = vld [vmem:[#allocation5 + $0xd48] sm:$0xff]
        %v902 = vld [vmem:[#allocation5 + $0xd50] sm:$0xff]
        %v903 = vld [vmem:[#allocation5 + $0xd58] sm:$0xff]
        %v904 = vld [vmem:[#allocation5 + $0xd60] sm:$0xff]
        %v905 = vld [vmem:[#allocation5 + $0xd68] sm:$0xff]
        %v906 = vld [vmem:[#allocation5 + $0xd70] sm:$0xff]
        %v907 = vld [vmem:[#allocation5 + $0xd78] sm:$0xff]
        %v908 = vld [vmem:[#allocation5 + $0xd80] sm:$0xff]
        %v909 = vld [vmem:[#allocation5 + $0xd88] sm:$0xff]
        %v910 = vld [vmem:[#allocation5 + $0xd90] sm:$0xff]
        %v911 = vld [vmem:[#allocation5 + $0xd98] sm:$0xff]
        %v912 = vld [vmem:[#allocation5 + $0xda0] sm:$0xff]
        %v913 = vld [vmem:[#allocation5 + $0xda8] sm:$0xff]
        %v914 = vld [vmem:[#allocation5 + $0xdb0] sm:$0xff]
        %v915 = vld [vmem:[#allocation5 + $0xdb8] sm:$0xff]
        %v916 = vld [vmem:[#allocation5 + $0xdc0] sm:$0xff]
        %v917 = vld [vmem:[#allocation5 + $0xdc8] sm:$0xff]
        %v918 = vld [vmem:[#allocation5 + $0xdd0] sm:$0xff]
        %v919 = vld [vmem:[#allocation5 + $0xdd8] sm:$0xff]
        %v920 = vld [vmem:[#allocation5 + $0xde0] sm:$0xff]
        %v921 = vld [vmem:[#allocation5 + $0xde8] sm:$0xff]
        %v922 = vld [vmem:[#allocation5 + $0xdf0] sm:$0xff]
        %v923 = vld [vmem:[#allocation5 + $0xdf8] sm:$0xff]
        %v924 = vld [vmem:[#allocation5 + $0xe00] sm:$0xff]
        %v925 = vld [vmem:[#allocation5 + $0xe08] sm:$0xff]
        %v926 = vld [vmem:[#allocation5 + $0xe10] sm:$0xff]
        %v927 = vld [vmem:[#allocation5 + $0xe18] sm:$0xff]
        %v928 = vld [vmem:[#allocation5 + $0xe20] sm:$0xff]
        %v929 = vld [vmem:[#allocation5 + $0xe28] sm:$0xff]
        %v930 = vld [vmem:[#allocation5 + $0xe30] sm:$0xff]
        %v931 = vld [vmem:[#allocation5 + $0xe38] sm:$0xff]
        %v932 = vld [vmem:[#allocation5 + $0xe40] sm:$0xff]
        %v933 = vld [vmem:[#allocation5 + $0xe48] sm:$0xff]
        %v934 = vld [vmem:[#allocation5 + $0xe50] sm:$0xff]
        %v935 = vld [vmem:[#allocation5 + $0xe58] sm:$0xff]
        %v936 = vld [vmem:[#allocation5 + $0xe60] sm:$0xff]
        %v937 = vld [vmem:[#allocation5 + $0xe68] sm:$0xff]
        %v938 = vld [vmem:[#allocation5 + $0xe70] sm:$0xff]
        %v939 = vld [vmem:[#allocation5 + $0xe78] sm:$0xff]
        %v940 = vld [vmem:[#allocation5 + $0xe80] sm:$0xff]
        %v941 = vld [vmem:[#allocation5 + $0xe88] sm:$0xff]
        %v942 = vld [vmem:[#allocation5 + $0xe90] sm:$0xff]
        %v943 = vld [vmem:[#allocation5 + $0xe98] sm:$0xff]
        %v944 = vld [vmem:[#allocation5 + $0xea0] sm:$0xff]
        %v945 = vld [vmem:[#allocation5 + $0xea8] sm:$0xff]
        %v946 = vld [vmem:[#allocation5 + $0xeb0] sm:$0xff]
        %v947 = vld [vmem:[#allocation5 + $0xeb8] sm:$0xff]
        %v948 = vld [vmem:[#allocation5 + $0xec0] sm:$0xff]
        %v949 = vld [vmem:[#allocation5 + $0xec8] sm:$0xff]
        %v950 = vld [vmem:[#allocation5 + $0xed0] sm:$0xff]
        %v951 = vld [vmem:[#allocation5 + $0xed8] sm:$0xff]
        %v952 = vld [vmem:[#allocation5 + $0xee0] sm:$0xff]
        %v953 = vld [vmem:[#allocation5 + $0xee8] sm:$0xff]
        %v954 = vld [vmem:[#allocation5 + $0xef0] sm:$0xff]
        %v955 = vld [vmem:[#allocation5 + $0xef8] sm:$0xff]
        %v956 = vld [vmem:[#allocation5 + $0xf00] sm:$0xff]
        %v957 = vld [vmem:[#allocation5 + $0xf08] sm:$0xff]
        %v958 = vld [vmem:[#allocation5 + $0xf10] sm:$0xff]
        %v959 = vld [vmem:[#allocation5 + $0xf18] sm:$0xff]
        %v960 = vld [vmem:[#allocation5 + $0xf20] sm:$0xff]
        %v961 = vld [vmem:[#allocation5 + $0xf28] sm:$0xff]
        %v962 = vld [vmem:[#allocation5 + $0xf30] sm:$0xff]
        %v963 = vld [vmem:[#allocation5 + $0xf38] sm:$0xff]
        %v964 = vld [vmem:[#allocation5 + $0xf40] sm:$0xff]
        %v965 = vld [vmem:[#allocation5 + $0xf48] sm:$0xff]
        %v966 = vld [vmem:[#allocation5 + $0xf50] sm:$0xff]
        %v967 = vld [vmem:[#allocation5 + $0xf58] sm:$0xff]
        %v968 = vld [vmem:[#allocation5 + $0xf60] sm:$0xff]
        %v969 = vld [vmem:[#allocation5 + $0xf68] sm:$0xff]
        %v970 = vld [vmem:[#allocation5 + $0xf70] sm:$0xff]
        %v971 = vld [vmem:[#allocation5 + $0xf78] sm:$0xff]
        %v972 = vld [vmem:[#allocation5 + $0xf80] sm:$0xff]
        %v973 = vld [vmem:[#allocation5 + $0xf88] sm:$0xff]
        %v974 = vld [vmem:[#allocation5 + $0xf90] sm:$0xff]
        %v975 = vld [vmem:[#allocation5 + $0xf98] sm:$0xff]
        %v976 = vld [vmem:[#allocation5 + $0xfa0] sm:$0xff]
        %v977 = vld [vmem:[#allocation5 + $0xfa8] sm:$0xff]
        %v978 = vld [vmem:[#allocation5 + $0xfb0] sm:$0xff]
        %v979 = vld [vmem:[#allocation5 + $0xfb8] sm:$0xff]
        %v980 = vld [vmem:[#allocation5 + $0xfc0] sm:$0xff]
        %v981 = vld [vmem:[#allocation5 + $0xfc8] sm:$0xff]
        %v982 = vld [vmem:[#allocation5 + $0xfd0] sm:$0xff]
        %v983 = vld [vmem:[#allocation5 + $0xfd8] sm:$0xff]
        %v984 = vld [vmem:[#allocation5 + $0xfe0] sm:$0xff]
        %v985 = vld [vmem:[#allocation5 + $0xfe8] sm:$0xff]
        %v986 = vld [vmem:[#allocation5 + $0xff0] sm:$0xff]
        %v987 = vld [vmem:[#allocation5 + $0xff8] sm:$0xff]
        %v1500 = vunpack.c.l.b16 %v476
        %v1501 = vunpack.c.h.b16 %v476
        %v1502 = vunpack.c.l.b16 %v477
        %v1503 = vunpack.c.h.b16 %v477
        %v1504 = vunpack.c.l.b16 %v478
        %v1505 = vunpack.c.h.b16 %v478
        %v1506 = vunpack.c.l.b16 %v479
        %v1507 = vunpack.c.h.b16 %v479
        %v1508 = vunpack.c.l.b16 %v480
        %v1509 = vunpack.c.h.b16 %v480
        %v1510 = vunpack.c.l.b16 %v481
        %v1511 = vunpack.c.h.b16 %v481
        %v1512 = vunpack.c.l.b16 %v482
        %v1513 = vunpack.c.h.b16 %v482
        %v1514 = vunpack.c.l.b16 %v483
        %v1515 = vunpack.c.h.b16 %v483
        %v1516 = vunpack.c.l.b16 %v484
        %v1517 = vunpack.c.h.b16 %v484
        %v1518 = vunpack.c.l.b16 %v485
        %v1519 = vunpack.c.h.b16 %v485
        %v1520 = vunpack.c.l.b16 %v486
        %v1521 = vunpack.c.h.b16 %v486
        %v1522 = vunpack.c.l.b16 %v487
        %v1523 = vunpack.c.h.b16 %v487
        %v1524 = vunpack.c.l.b16 %v488
        %v1525 = vunpack.c.h.b16 %v488
        %v1526 = vunpack.c.l.b16 %v489
        %v1527 = vunpack.c.h.b16 %v489
        %v1528 = vunpack.c.l.b16 %v490
        %v1529 = vunpack.c.h.b16 %v490
        %v1530 = vunpack.c.l.b16 %v491
        %v1531 = vunpack.c.h.b16 %v491
        %v1532 = vunpack.c.l.b16 %v492
        %v1533 = vunpack.c.h.b16 %v492
        %v1534 = vunpack.c.l.b16 %v493
        %v1535 = vunpack.c.h.b16 %v493
        %v1536 = vunpack.c.l.b16 %v494
        %v1537 = vunpack.c.h.b16 %v494
        %v1538 = vunpack.c.l.b16 %v495
        %v1539 = vunpack.c.h.b16 %v495
        %v1540 = vunpack.c.l.b16 %v496
        %v1541 = vunpack.c.h.b16 %v496
        %v1542 = vunpack.c.l.b16 %v497
        %v1543 = vunpack.c.h.b16 %v497
        %v1544 = vunpack.c.l.b16 %v498
        %v1545 = vunpack.c.h.b16 %v498
        %v1546 = vunpack.c.l.b16 %v499
        %v1547 = vunpack.c.h.b16 %v499
        %v1548 = vunpack.c.l.b16 %v500
        %v1549 = vunpack.c.h.b16 %v500
        %v1550 = vunpack.c.l.b16 %v501
        %v1551 = vunpack.c.h.b16 %v501
        %v1552 = vunpack.c.l.b16 %v502
        %v1553 = vunpack.c.h.b16 %v502
        %v1554 = vunpack.c.l.b16 %v503
        %v1555 = vunpack.c.h.b16 %v503
        %v1556 = vunpack.c.l.b16 %v504
        %v1557 = vunpack.c.h.b16 %v504
        %v1558 = vunpack.c.l.b16 %v505
        %v1559 = vunpack.c.h.b16 %v505
        %v1560 = vunpack.c.l.b16 %v506
        %v1561 = vunpack.c.h.b16 %v506
        %v1562 = vunpack.c.l.b16 %v507
        %v1563 = vunpack.c.h.b16 %v507
        %v1564 = vunpack.c.l.b16 %v508
        %v1565 = vunpack.c.h.b16 %v508
        %v1566 = vunpack.c.l.b16 %v509
        %v1567 = vunpack.c.h.b16 %v509
        %v1568 = vunpack.c.l.b16 %v510
        %v1569 = vunpack.c.h.b16 %v510
        %v1570 = vunpack.c.l.b16 %v511
        %v1571 = vunpack.c.h.b16 %v511
        %v1572 = vunpack.c.l.b16 %v512
        %v1573 = vunpack.c.h.b16 %v512
        %v1574 = vunpack.c.l.b16 %v513
        %v1575 = vunpack.c.h.b16 %v513
        %v1576 = vunpack.c.l.b16 %v514
        %v1577 = vunpack.c.h.b16 %v514
        %v1578 = vunpack.c.l.b16 %v515
        %v1579 = vunpack.c.h.b16 %v515
        %v1580 = vunpack.c.l.b16 %v516
        %v1581 = vunpack.c.h.b16 %v516
        %v1582 = vunpack.c.l.b16 %v517
        %v1583 = vunpack.c.h.b16 %v517
        %v1584 = vunpack.c.l.b16 %v518
        %v1585 = vunpack.c.h.b16 %v518
        %v1586 = vunpack.c.l.b16 %v519
        %v1587 = vunpack.c.h.b16 %v519
        %v1588 = vunpack.c.l.b16 %v520
        %v1589 = vunpack.c.h.b16 %v520
        %v1590 = vunpack.c.l.b16 %v521
        %v1591 = vunpack.c.h.b16 %v521
        %v1592 = vunpack.c.l.b16 %v522
        %v1593 = vunpack.c.h.b16 %v522
        %v1594 = vunpack.c.l.b16 %v523
        %v1595 = vunpack.c.h.b16 %v523
        %v1596 = vunpack.c.l.b16 %v524
        %v1597 = vunpack.c.h.b16 %v524
        %v1598 = vunpack.c.l.b16 %v525
        %v1599 = vunpack.c.h.b16 %v525
        %v1600 = vunpack.c.l.b16 %v526
        %v1601 = vunpack.c.h.b16 %v526
        %v1602 = vunpack.c.l.b16 %v527
        %v1603 = vunpack.c.h.b16 %v527
        %v1604 = vunpack.c.l.b16 %v528
        %v1605 = vunpack.c.h.b16 %v528
        %v1606 = vunpack.c.l.b16 %v529
        %v1607 = vunpack.c.h.b16 %v529
        %v1608 = vunpack.c.l.b16 %v530
        %v1609 = vunpack.c.h.b16 %v530
        %v1610 = vunpack.c.l.b16 %v531
        %v1611 = vunpack.c.h.b16 %v531
        %v1612 = vunpack.c.l.b16 %v532
        %v1613 = vunpack.c.h.b16 %v532
        %v1614 = vunpack.c.l.b16 %v533
        %v1615 = vunpack.c.h.b16 %v533
        %v1616 = vunpack.c.l.b16 %v534
        %v1617 = vunpack.c.h.b16 %v534
        %v1618 = vunpack.c.l.b16 %v535
        %v1619 = vunpack.c.h.b16 %v535
        %v1620 = vunpack.c.l.b16 %v536
        %v1621 = vunpack.c.h.b16 %v536
        %v1622 = vunpack.c.l.b16 %v537
        %v1623 = vunpack.c.h.b16 %v537
        %v1624 = vunpack.c.l.b16 %v538
        %v1625 = vunpack.c.h.b16 %v538
        %v1626 = vunpack.c.l.b16 %v539
        %v1627 = vunpack.c.h.b16 %v539
        %v1628 = vunpack.c.l.b16 %v540
        %v1629 = vunpack.c.h.b16 %v540
        %v1630 = vunpack.c.l.b16 %v541
        %v1631 = vunpack.c.h.b16 %v541
        %v1632 = vunpack.c.l.b16 %v542
        %v1633 = vunpack.c.h.b16 %v542
        %v1634 = vunpack.c.l.b16 %v543
        %v1635 = vunpack.c.h.b16 %v543
        %v1636 = vunpack.c.l.b16 %v544
        %v1637 = vunpack.c.h.b16 %v544
        %v1638 = vunpack.c.l.b16 %v545
        %v1639 = vunpack.c.h.b16 %v545
        %v1640 = vunpack.c.l.b16 %v546
        %v1641 = vunpack.c.h.b16 %v546
        %v1642 = vunpack.c.l.b16 %v547
        %v1643 = vunpack.c.h.b16 %v547
        %v1644 = vunpack.c.l.b16 %v548
        %v1645 = vunpack.c.h.b16 %v548
        %v1646 = vunpack.c.l.b16 %v549
        %v1647 = vunpack.c.h.b16 %v549
        %v1648 = vunpack.c.l.b16 %v550
        %v1649 = vunpack.c.h.b16 %v550
        %v1650 = vunpack.c.l.b16 %v551
        %v1651 = vunpack.c.h.b16 %v551
        %v1652 = vunpack.c.l.b16 %v552
        %v1653 = vunpack.c.h.b16 %v552
        %v1654 = vunpack.c.l.b16 %v553
        %v1655 = vunpack.c.h.b16 %v553
        %v1656 = vunpack.c.l.b16 %v554
        %v1657 = vunpack.c.h.b16 %v554
        %v1658 = vunpack.c.l.b16 %v555
        %v1659 = vunpack.c.h.b16 %v555
        %v1660 = vunpack.c.l.b16 %v556
        %v1661 = vunpack.c.h.b16 %v556
        %v1662 = vunpack.c.l.b16 %v557
        %v1663 = vunpack.c.h.b16 %v557
        %v1664 = vunpack.c.l.b16 %v558
        %v1665 = vunpack.c.h.b16 %v558
        %v1666 = vunpack.c.l.b16 %v559
        %v1667 = vunpack.c.h.b16 %v559
        %v1668 = vunpack.c.l.b16 %v560
        %v1669 = vunpack.c.h.b16 %v560
        %v1670 = vunpack.c.l.b16 %v561
        %v1671 = vunpack.c.h.b16 %v561
        %v1672 = vunpack.c.l.b16 %v562
        %v1673 = vunpack.c.h.b16 %v562
        %v1674 = vunpack.c.l.b16 %v563
        %v1675 = vunpack.c.h.b16 %v563
        %v1676 = vunpack.c.l.b16 %v564
        %v1677 = vunpack.c.h.b16 %v564
        %v1678 = vunpack.c.l.b16 %v565
        %v1679 = vunpack.c.h.b16 %v565
        %v1680 = vunpack.c.l.b16 %v566
        %v1681 = vunpack.c.h.b16 %v566
        %v1682 = vunpack.c.l.b16 %v567
        %v1683 = vunpack.c.h.b16 %v567
        %v1684 = vunpack.c.l.b16 %v568
        %v1685 = vunpack.c.h.b16 %v568
        %v1686 = vunpack.c.l.b16 %v569
        %v1687 = vunpack.c.h.b16 %v569
        %v1688 = vunpack.c.l.b16 %v570
        %v1689 = vunpack.c.h.b16 %v570
        %v1690 = vunpack.c.l.b16 %v571
        %v1691 = vunpack.c.h.b16 %v571
        %v1692 = vunpack.c.l.b16 %v572
        %v1693 = vunpack.c.h.b16 %v572
        %v1694 = vunpack.c.l.b16 %v573
        %v1695 = vunpack.c.h.b16 %v573
        %v1696 = vunpack.c.l.b16 %v574
        %v1697 = vunpack.c.h.b16 %v574
        %v1698 = vunpack.c.l.b16 %v575
        %v1699 = vunpack.c.h.b16 %v575
        %v1700 = vunpack.c.l.b16 %v576
        %v1701 = vunpack.c.h.b16 %v576
        %v1702 = vunpack.c.l.b16 %v577
        %v1703 = vunpack.c.h.b16 %v577
        %v1704 = vunpack.c.l.b16 %v578
        %v1705 = vunpack.c.h.b16 %v578
        %v1706 = vunpack.c.l.b16 %v579
        %v1707 = vunpack.c.h.b16 %v579
        %v1708 = vunpack.c.l.b16 %v580
        %v1709 = vunpack.c.h.b16 %v580
        %v1710 = vunpack.c.l.b16 %v581
        %v1711 = vunpack.c.h.b16 %v581
        %v1712 = vunpack.c.l.b16 %v582
        %v1713 = vunpack.c.h.b16 %v582
        %v1714 = vunpack.c.l.b16 %v583
        %v1715 = vunpack.c.h.b16 %v583
        %v1716 = vunpack.c.l.b16 %v584
        %v1717 = vunpack.c.h.b16 %v584
        %v1718 = vunpack.c.l.b16 %v585
        %v1719 = vunpack.c.h.b16 %v585
        %v1720 = vunpack.c.l.b16 %v586
        %v1721 = vunpack.c.h.b16 %v586
        %v1722 = vunpack.c.l.b16 %v587
        %v1723 = vunpack.c.h.b16 %v587
        %v1724 = vunpack.c.l.b16 %v588
        %v1725 = vunpack.c.h.b16 %v588
        %v1726 = vunpack.c.l.b16 %v589
        %v1727 = vunpack.c.h.b16 %v589
        %v1728 = vunpack.c.l.b16 %v590
        %v1729 = vunpack.c.h.b16 %v590
        %v1730 = vunpack.c.l.b16 %v591
        %v1731 = vunpack.c.h.b16 %v591
        %v1732 = vunpack.c.l.b16 %v592
        %v1733 = vunpack.c.h.b16 %v592
        %v1734 = vunpack.c.l.b16 %v593
        %v1735 = vunpack.c.h.b16 %v593
        %v1736 = vunpack.c.l.b16 %v594
        %v1737 = vunpack.c.h.b16 %v594
        %v1738 = vunpack.c.l.b16 %v595
        %v1739 = vunpack.c.h.b16 %v595
        %v1740 = vunpack.c.l.b16 %v596
        %v1741 = vunpack.c.h.b16 %v596
        %v1742 = vunpack.c.l.b16 %v597
        %v1743 = vunpack.c.h.b16 %v597
        %v1744 = vunpack.c.l.b16 %v598
        %v1745 = vunpack.c.h.b16 %v598
        %v1746 = vunpack.c.l.b16 %v599
        %v1747 = vunpack.c.h.b16 %v599
        %v1748 = vunpack.c.l.b16 %v600
        %v1749 = vunpack.c.h.b16 %v600
        %v1750 = vunpack.c.l.b16 %v601
        %v1751 = vunpack.c.h.b16 %v601
        %v1752 = vunpack.c.l.b16 %v602
        %v1753 = vunpack.c.h.b16 %v602
        %v1754 = vunpack.c.l.b16 %v603
        %v1755 = vunpack.c.h.b16 %v603
        %v1756 = vunpack.c.l.b16 %v604
        %v1757 = vunpack.c.h.b16 %v604
        %v1758 = vunpack.c.l.b16 %v605
        %v1759 = vunpack.c.h.b16 %v605
        %v1760 = vunpack.c.l.b16 %v606
        %v1761 = vunpack.c.h.b16 %v606
        %v1762 = vunpack.c.l.b16 %v607
        %v1763 = vunpack.c.h.b16 %v607
        %v1764 = vunpack.c.l.b16 %v608
        %v1765 = vunpack.c.h.b16 %v608
        %v1766 = vunpack.c.l.b16 %v609
        %v1767 = vunpack.c.h.b16 %v609
        %v1768 = vunpack.c.l.b16 %v610
        %v1769 = vunpack.c.h.b16 %v610
        %v1770 = vunpack.c.l.b16 %v611
        %v1771 = vunpack.c.h.b16 %v611
        %v1772 = vunpack.c.l.b16 %v612
        %v1773 = vunpack.c.h.b16 %v612
        %v1774 = vunpack.c.l.b16 %v613
        %v1775 = vunpack.c.h.b16 %v613
        %v1776 = vunpack.c.l.b16 %v614
        %v1777 = vunpack.c.h.b16 %v614
        %v1778 = vunpack.c.l.b16 %v615
        %v1779 = vunpack.c.h.b16 %v615
        %v1780 = vunpack.c.l.b16 %v616
        %v1781 = vunpack.c.h.b16 %v616
        %v1782 = vunpack.c.l.b16 %v617
        %v1783 = vunpack.c.h.b16 %v617
        %v1784 = vunpack.c.l.b16 %v618
        %v1785 = vunpack.c.h.b16 %v618
        %v1786 = vunpack.c.l.b16 %v619
        %v1787 = vunpack.c.h.b16 %v619
        %v1788 = vunpack.c.l.b16 %v620
        %v1789 = vunpack.c.h.b16 %v620
        %v1790 = vunpack.c.l.b16 %v621
        %v1791 = vunpack.c.h.b16 %v621
        %v1792 = vunpack.c.l.b16 %v622
        %v1793 = vunpack.c.h.b16 %v622
        %v1794 = vunpack.c.l.b16 %v623
        %v1795 = vunpack.c.h.b16 %v623
        %v1796 = vunpack.c.l.b16 %v624
        %v1797 = vunpack.c.h.b16 %v624
        %v1798 = vunpack.c.l.b16 %v625
        %v1799 = vunpack.c.h.b16 %v625
        %v1800 = vunpack.c.l.b16 %v626
        %v1801 = vunpack.c.h.b16 %v626
        %v1802 = vunpack.c.l.b16 %v627
        %v1803 = vunpack.c.h.b16 %v627
        %v1804 = vunpack.c.l.b16 %v628
        %v1805 = vunpack.c.h.b16 %v628
        %v1806 = vunpack.c.l.b16 %v629
        %v1807 = vunpack.c.h.b16 %v629
        %v1808 = vunpack.c.l.b16 %v630
        %v1809 = vunpack.c.h.b16 %v630
        %v1810 = vunpack.c.l.b16 %v631
        %v1811 = vunpack.c.h.b16 %v631
        %v1812 = vunpack.c.l.b16 %v632
        %v1813 = vunpack.c.h.b16 %v632
        %v1814 = vunpack.c.l.b16 %v633
        %v1815 = vunpack.c.h.b16 %v633
        %v1816 = vunpack.c.l.b16 %v634
        %v1817 = vunpack.c.h.b16 %v634
        %v1818 = vunpack.c.l.b16 %v635
        %v1819 = vunpack.c.h.b16 %v635
        %v1820 = vunpack.c.l.b16 %v636
        %v1821 = vunpack.c.h.b16 %v636
        %v1822 = vunpack.c.l.b16 %v637
        %v1823 = vunpack.c.h.b16 %v637
        %v1824 = vunpack.c.l.b16 %v638
        %v1825 = vunpack.c.h.b16 %v638
        %v1826 = vunpack.c.l.b16 %v639
        %v1827 = vunpack.c.h.b16 %v639
        %v1828 = vunpack.c.l.b16 %v640
        %v1829 = vunpack.c.h.b16 %v640
        %v1830 = vunpack.c.l.b16 %v641
        %v1831 = vunpack.c.h.b16 %v641
        %v1832 = vunpack.c.l.b16 %v642
        %v1833 = vunpack.c.h.b16 %v642
        %v1834 = vunpack.c.l.b16 %v643
        %v1835 = vunpack.c.h.b16 %v643
        %v1836 = vunpack.c.l.b16 %v644
        %v1837 = vunpack.c.h.b16 %v644
        %v1838 = vunpack.c.l.b16 %v645
        %v1839 = vunpack.c.h.b16 %v645
        %v1840 = vunpack.c.l.b16 %v646
        %v1841 = vunpack.c.h.b16 %v646
        %v1842 = vunpack.c.l.b16 %v647
        %v1843 = vunpack.c.h.b16 %v647
        %v1844 = vunpack.c.l.b16 %v648
        %v1845 = vunpack.c.h.b16 %v648
        %v1846 = vunpack.c.l.b16 %v649
        %v1847 = vunpack.c.h.b16 %v649
        %v1848 = vunpack.c.l.b16 %v650
        %v1849 = vunpack.c.h.b16 %v650
        %v1850 = vunpack.c.l.b16 %v651
        %v1851 = vunpack.c.h.b16 %v651
        %v1852 = vunpack.c.l.b16 %v652
        %v1853 = vunpack.c.h.b16 %v652
        %v1854 = vunpack.c.l.b16 %v653
        %v1855 = vunpack.c.h.b16 %v653
        %v1856 = vunpack.c.l.b16 %v654
        %v1857 = vunpack.c.h.b16 %v654
        %v1858 = vunpack.c.l.b16 %v655
        %v1859 = vunpack.c.h.b16 %v655
        %v1860 = vunpack.c.l.b16 %v656
        %v1861 = vunpack.c.h.b16 %v656
        %v1862 = vunpack.c.l.b16 %v657
        %v1863 = vunpack.c.h.b16 %v657
        %v1864 = vunpack.c.l.b16 %v658
        %v1865 = vunpack.c.h.b16 %v658
        %v1866 = vunpack.c.l.b16 %v659
        %v1867 = vunpack.c.h.b16 %v659
        %v1868 = vunpack.c.l.b16 %v660
        %v1869 = vunpack.c.h.b16 %v660
        %v1870 = vunpack.c.l.b16 %v661
        %v1871 = vunpack.c.h.b16 %v661
        %v1872 = vunpack.c.l.b16 %v662
        %v1873 = vunpack.c.h.b16 %v662
        %v1874 = vunpack.c.l.b16 %v663
        %v1875 = vunpack.c.h.b16 %v663
        %v1876 = vunpack.c.l.b16 %v664
        %v1877 = vunpack.c.h.b16 %v664
        %v1878 = vunpack.c.l.b16 %v665
        %v1879 = vunpack.c.h.b16 %v665
        %v1880 = vunpack.c.l.b16 %v666
        %v1881 = vunpack.c.h.b16 %v666
        %v1882 = vunpack.c.l.b16 %v667
        %v1883 = vunpack.c.h.b16 %v667
        %v1884 = vunpack.c.l.b16 %v668
        %v1885 = vunpack.c.h.b16 %v668
        %v1886 = vunpack.c.l.b16 %v669
        %v1887 = vunpack.c.h.b16 %v669
        %v1888 = vunpack.c.l.b16 %v670
        %v1889 = vunpack.c.h.b16 %v670
        %v1890 = vunpack.c.l.b16 %v671
        %v1891 = vunpack.c.h.b16 %v671
        %v1892 = vunpack.c.l.b16 %v672
        %v1893 = vunpack.c.h.b16 %v672
        %v1894 = vunpack.c.l.b16 %v673
        %v1895 = vunpack.c.h.b16 %v673
        %v1896 = vunpack.c.l.b16 %v674
        %v1897 = vunpack.c.h.b16 %v674
        %v1898 = vunpack.c.l.b16 %v675
        %v1899 = vunpack.c.h.b16 %v675
        %v1900 = vunpack.c.l.b16 %v676
        %v1901 = vunpack.c.h.b16 %v676
        %v1902 = vunpack.c.l.b16 %v677
        %v1903 = vunpack.c.h.b16 %v677
        %v1904 = vunpack.c.l.b16 %v678
        %v1905 = vunpack.c.h.b16 %v678
        %v1906 = vunpack.c.l.b16 %v679
        %v1907 = vunpack.c.h.b16 %v679
        %v1908 = vunpack.c.l.b16 %v680
        %v1909 = vunpack.c.h.b16 %v680
        %v1910 = vunpack.c.l.b16 %v681
        %v1911 = vunpack.c.h.b16 %v681
        %v1912 = vunpack.c.l.b16 %v682
        %v1913 = vunpack.c.h.b16 %v682
        %v1914 = vunpack.c.l.b16 %v683
        %v1915 = vunpack.c.h.b16 %v683
        %v1916 = vunpack.c.l.b16 %v684
        %v1917 = vunpack.c.h.b16 %v684
        %v1918 = vunpack.c.l.b16 %v685
        %v1919 = vunpack.c.h.b16 %v685
        %v1920 = vunpack.c.l.b16 %v686
        %v1921 = vunpack.c.h.b16 %v686
        %v1922 = vunpack.c.l.b16 %v687
        %v1923 = vunpack.c.h.b16 %v687
        %v1924 = vunpack.c.l.b16 %v688
        %v1925 = vunpack.c.h.b16 %v688
        %v1926 = vunpack.c.l.b16 %v689
        %v1927 = vunpack.c.h.b16 %v689
        %v1928 = vunpack.c.l.b16 %v690
        %v1929 = vunpack.c.h.b16 %v690
        %v1930 = vunpack.c.l.b16 %v691
        %v1931 = vunpack.c.h.b16 %v691
        %v1932 = vunpack.c.l.b16 %v692
        %v1933 = vunpack.c.h.b16 %v692
        %v1934 = vunpack.c.l.b16 %v693
        %v1935 = vunpack.c.h.b16 %v693
        %v1936 = vunpack.c.l.b16 %v694
        %v1937 = vunpack.c.h.b16 %v694
        %v1938 = vunpack.c.l.b16 %v695
        %v1939 = vunpack.c.h.b16 %v695
        %v1940 = vunpack.c.l.b16 %v696
        %v1941 = vunpack.c.h.b16 %v696
        %v1942 = vunpack.c.l.b16 %v697
        %v1943 = vunpack.c.h.b16 %v697
        %v1944 = vunpack.c.l.b16 %v698
        %v1945 = vunpack.c.h.b16 %v698
        %v1946 = vunpack.c.l.b16 %v699
        %v1947 = vunpack.c.h.b16 %v699
        %v1948 = vunpack.c.l.b16 %v700
        %v1949 = vunpack.c.h.b16 %v700
        %v1950 = vunpack.c.l.b16 %v701
        %v1951 = vunpack.c.h.b16 %v701
        %v1952 = vunpack.c.l.b16 %v702
        %v1953 = vunpack.c.h.b16 %v702
        %v1954 = vunpack.c.l.b16 %v703
        %v1955 = vunpack.c.h.b16 %v703
        %v1956 = vunpack.c.l.b16 %v704
        %v1957 = vunpack.c.h.b16 %v704
        %v1958 = vunpack.c.l.b16 %v705
        %v1959 = vunpack.c.h.b16 %v705
        %v1960 = vunpack.c.l.b16 %v706
        %v1961 = vunpack.c.h.b16 %v706
        %v1962 = vunpack.c.l.b16 %v707
        %v1963 = vunpack.c.h.b16 %v707
        %v1964 = vunpack.c.l.b16 %v708
        %v1965 = vunpack.c.h.b16 %v708
        %v1966 = vunpack.c.l.b16 %v709
        %v1967 = vunpack.c.h.b16 %v709
        %v1968 = vunpack.c.l.b16 %v710
        %v1969 = vunpack.c.h.b16 %v710
        %v1970 = vunpack.c.l.b16 %v711
        %v1971 = vunpack.c.h.b16 %v711
        %v1972 = vunpack.c.l.b16 %v712
        %v1973 = vunpack.c.h.b16 %v712
        %v1974 = vunpack.c.l.b16 %v713
        %v1975 = vunpack.c.h.b16 %v713
        %v1976 = vunpack.c.l.b16 %v714
        %v1977 = vunpack.c.h.b16 %v714
        %v1978 = vunpack.c.l.b16 %v715
        %v1979 = vunpack.c.h.b16 %v715
        %v1980 = vunpack.c.l.b16 %v716
        %v1981 = vunpack.c.h.b16 %v716
        %v1982 = vunpack.c.l.b16 %v717
        %v1983 = vunpack.c.h.b16 %v717
        %v1984 = vunpack.c.l.b16 %v718
        %v1985 = vunpack.c.h.b16 %v718
        %v1986 = vunpack.c.l.b16 %v719
        %v1987 = vunpack.c.h.b16 %v719
        %v1988 = vunpack.c.l.b16 %v720
        %v1989 = vunpack.c.h.b16 %v720
        %v1990 = vunpack.c.l.b16 %v721
        %v1991 = vunpack.c.h.b16 %v721
        %v1992 = vunpack.c.l.b16 %v722
        %v1993 = vunpack.c.h.b16 %v722
        %v1994 = vunpack.c.l.b16 %v723
        %v1995 = vunpack.c.h.b16 %v723
        %v1996 = vunpack.c.l.b16 %v724
        %v1997 = vunpack.c.h.b16 %v724
        %v1998 = vunpack.c.l.b16 %v725
        %v1999 = vunpack.c.h.b16 %v725
        %v2000 = vunpack.c.l.b16 %v726
        %v2001 = vunpack.c.h.b16 %v726
        %v2002 = vunpack.c.l.b16 %v727
        %v2003 = vunpack.c.h.b16 %v727
        %v2004 = vunpack.c.l.b16 %v728
        %v2005 = vunpack.c.h.b16 %v728
        %v2006 = vunpack.c.l.b16 %v729
        %v2007 = vunpack.c.h.b16 %v729
        %v2008 = vunpack.c.l.b16 %v730
        %v2009 = vunpack.c.h.b16 %v730
        %v2010 = vunpack.c.l.b16 %v731
        %v2011 = vunpack.c.h.b16 %v731
        %v2012 = vunpack.c.l.b16 %v732
        %v2013 = vunpack.c.h.b16 %v732
        %v2014 = vunpack.c.l.b16 %v733
        %v2015 = vunpack.c.h.b16 %v733
        %v2016 = vunpack.c.l.b16 %v734
        %v2017 = vunpack.c.h.b16 %v734
        %v2018 = vunpack.c.l.b16 %v735
        %v2019 = vunpack.c.h.b16 %v735
        %v2020 = vunpack.c.l.b16 %v736
        %v2021 = vunpack.c.h.b16 %v736
        %v2022 = vunpack.c.l.b16 %v737
        %v2023 = vunpack.c.h.b16 %v737
        %v2024 = vunpack.c.l.b16 %v738
        %v2025 = vunpack.c.h.b16 %v738
        %v2026 = vunpack.c.l.b16 %v739
        %v2027 = vunpack.c.h.b16 %v739
        %v2028 = vunpack.c.l.b16 %v740
        %v2029 = vunpack.c.h.b16 %v740
        %v2030 = vunpack.c.l.b16 %v741
        %v2031 = vunpack.c.h.b16 %v741
        %v2032 = vunpack.c.l.b16 %v742
        %v2033 = vunpack.c.h.b16 %v742
        %v2034 = vunpack.c.l.b16 %v743
        %v2035 = vunpack.c.h.b16 %v743
        %v2036 = vunpack.c.l.b16 %v744
        %v2037 = vunpack.c.h.b16 %v744
        %v2038 = vunpack.c.l.b16 %v745
        %v2039 = vunpack.c.h.b16 %v745
        %v2040 = vunpack.c.l.b16 %v746
        %v2041 = vunpack.c.h.b16 %v746
        %v2042 = vunpack.c.l.b16 %v747
        %v2043 = vunpack.c.h.b16 %v747
        %v2044 = vunpack.c.l.b16 %v748
        %v2045 = vunpack.c.h.b16 %v748
        %v2046 = vunpack.c.l.b16 %v749
        %v2047 = vunpack.c.h.b16 %v749
        %v2048 = vunpack.c.l.b16 %v750
        %v2049 = vunpack.c.h.b16 %v750
        %v2050 = vunpack.c.l.b16 %v751
        %v2051 = vunpack.c.h.b16 %v751
        %v2052 = vunpack.c.l.b16 %v752
        %v2053 = vunpack.c.h.b16 %v752
        %v2054 = vunpack.c.l.b16 %v753
        %v2055 = vunpack.c.h.b16 %v753
        %v2056 = vunpack.c.l.b16 %v754
        %v2057 = vunpack.c.h.b16 %v754
        %v2058 = vunpack.c.l.b16 %v755
        %v2059 = vunpack.c.h.b16 %v755
        %v2060 = vunpack.c.l.b16 %v756
        %v2061 = vunpack.c.h.b16 %v756
        %v2062 = vunpack.c.l.b16 %v757
        %v2063 = vunpack.c.h.b16 %v757
        %v2064 = vunpack.c.l.b16 %v758
        %v2065 = vunpack.c.h.b16 %v758
        %v2066 = vunpack.c.l.b16 %v759
        %v2067 = vunpack.c.h.b16 %v759
        %v2068 = vunpack.c.l.b16 %v760
        %v2069 = vunpack.c.h.b16 %v760
        %v2070 = vunpack.c.l.b16 %v761
        %v2071 = vunpack.c.h.b16 %v761
        %v2072 = vunpack.c.l.b16 %v762
        %v2073 = vunpack.c.h.b16 %v762
        %v2074 = vunpack.c.l.b16 %v763
        %v2075 = vunpack.c.h.b16 %v763
        %v2076 = vunpack.c.l.b16 %v764
        %v2077 = vunpack.c.h.b16 %v764
        %v2078 = vunpack.c.l.b16 %v765
        %v2079 = vunpack.c.h.b16 %v765
        %v2080 = vunpack.c.l.b16 %v766
        %v2081 = vunpack.c.h.b16 %v766
        %v2082 = vunpack.c.l.b16 %v767
        %v2083 = vunpack.c.h.b16 %v767
        %v2084 = vunpack.c.l.b16 %v768
        %v2085 = vunpack.c.h.b16 %v768
        %v2086 = vunpack.c.l.b16 %v769
        %v2087 = vunpack.c.h.b16 %v769
        %v2088 = vunpack.c.l.b16 %v770
        %v2089 = vunpack.c.h.b16 %v770
        %v2090 = vunpack.c.l.b16 %v771
        %v2091 = vunpack.c.h.b16 %v771
        %v2092 = vunpack.c.l.b16 %v772
        %v2093 = vunpack.c.h.b16 %v772
        %v2094 = vunpack.c.l.b16 %v773
        %v2095 = vunpack.c.h.b16 %v773
        %v2096 = vunpack.c.l.b16 %v774
        %v2097 = vunpack.c.h.b16 %v774
        %v2098 = vunpack.c.l.b16 %v775
        %v2099 = vunpack.c.h.b16 %v775
        %v2100 = vunpack.c.l.b16 %v776
        %v2101 = vunpack.c.h.b16 %v776
        %v2102 = vunpack.c.l.b16 %v777
        %v2103 = vunpack.c.h.b16 %v777
        %v2104 = vunpack.c.l.b16 %v778
        %v2105 = vunpack.c.h.b16 %v778
        %v2106 = vunpack.c.l.b16 %v779
        %v2107 = vunpack.c.h.b16 %v779
        %v2108 = vunpack.c.l.b16 %v780
        %v2109 = vunpack.c.h.b16 %v780
        %v2110 = vunpack.c.l.b16 %v781
        %v2111 = vunpack.c.h.b16 %v781
        %v2112 = vunpack.c.l.b16 %v782
        %v2113 = vunpack.c.h.b16 %v782
        %v2114 = vunpack.c.l.b16 %v783
        %v2115 = vunpack.c.h.b16 %v783
        %v2116 = vunpack.c.l.b16 %v784
        %v2117 = vunpack.c.h.b16 %v784
        %v2118 = vunpack.c.l.b16 %v785
        %v2119 = vunpack.c.h.b16 %v785
        %v2120 = vunpack.c.l.b16 %v786
        %v2121 = vunpack.c.h.b16 %v786
        %v2122 = vunpack.c.l.b16 %v787
        %v2123 = vunpack.c.h.b16 %v787
        %v2124 = vunpack.c.l.b16 %v788
        %v2125 = vunpack.c.h.b16 %v788
        %v2126 = vunpack.c.l.b16 %v789
        %v2127 = vunpack.c.h.b16 %v789
        %v2128 = vunpack.c.l.b16 %v790
        %v2129 = vunpack.c.h.b16 %v790
        %v2130 = vunpack.c.l.b16 %v791
        %v2131 = vunpack.c.h.b16 %v791
        %v2132 = vunpack.c.l.b16 %v792
        %v2133 = vunpack.c.h.b16 %v792
        %v2134 = vunpack.c.l.b16 %v793
        %v2135 = vunpack.c.h.b16 %v793
        %v2136 = vunpack.c.l.b16 %v794
        %v2137 = vunpack.c.h.b16 %v794
        %v2138 = vunpack.c.l.b16 %v795
        %v2139 = vunpack.c.h.b16 %v795
        %v2140 = vunpack.c.l.b16 %v796
        %v2141 = vunpack.c.h.b16 %v796
        %v2142 = vunpack.c.l.b16 %v797
        %v2143 = vunpack.c.h.b16 %v797
        %v2144 = vunpack.c.l.b16 %v798
        %v2145 = vunpack.c.h.b16 %v798
        %v2146 = vunpack.c.l.b16 %v799
        %v2147 = vunpack.c.h.b16 %v799
        %v2148 = vunpack.c.l.b16 %v800
        %v2149 = vunpack.c.h.b16 %v800
        %v2150 = vunpack.c.l.b16 %v801
        %v2151 = vunpack.c.h.b16 %v801
        %v2152 = vunpack.c.l.b16 %v802
        %v2153 = vunpack.c.h.b16 %v802
        %v2154 = vunpack.c.l.b16 %v803
        %v2155 = vunpack.c.h.b16 %v803
        %v2156 = vunpack.c.l.b16 %v804
        %v2157 = vunpack.c.h.b16 %v804
        %v2158 = vunpack.c.l.b16 %v805
        %v2159 = vunpack.c.h.b16 %v805
        %v2160 = vunpack.c.l.b16 %v806
        %v2161 = vunpack.c.h.b16 %v806
        %v2162 = vunpack.c.l.b16 %v807
        %v2163 = vunpack.c.h.b16 %v807
        %v2164 = vunpack.c.l.b16 %v808
        %v2165 = vunpack.c.h.b16 %v808
        %v2166 = vunpack.c.l.b16 %v809
        %v2167 = vunpack.c.h.b16 %v809
        %v2168 = vunpack.c.l.b16 %v810
        %v2169 = vunpack.c.h.b16 %v810
        %v2170 = vunpack.c.l.b16 %v811
        %v2171 = vunpack.c.h.b16 %v811
        %v2172 = vunpack.c.l.b16 %v812
        %v2173 = vunpack.c.h.b16 %v812
        %v2174 = vunpack.c.l.b16 %v813
        %v2175 = vunpack.c.h.b16 %v813
        %v2176 = vunpack.c.l.b16 %v814
        %v2177 = vunpack.c.h.b16 %v814
        %v2178 = vunpack.c.l.b16 %v815
        %v2179 = vunpack.c.h.b16 %v815
        %v2180 = vunpack.c.l.b16 %v816
        %v2181 = vunpack.c.h.b16 %v816
        %v2182 = vunpack.c.l.b16 %v817
        %v2183 = vunpack.c.h.b16 %v817
        %v2184 = vunpack.c.l.b16 %v818
        %v2185 = vunpack.c.h.b16 %v818
        %v2186 = vunpack.c.l.b16 %v819
        %v2187 = vunpack.c.h.b16 %v819
        %v2188 = vunpack.c.l.b16 %v820
        %v2189 = vunpack.c.h.b16 %v820
        %v2190 = vunpack.c.l.b16 %v821
        %v2191 = vunpack.c.h.b16 %v821
        %v2192 = vunpack.c.l.b16 %v822
        %v2193 = vunpack.c.h.b16 %v822
        %v2194 = vunpack.c.l.b16 %v823
        %v2195 = vunpack.c.h.b16 %v823
        %v2196 = vunpack.c.l.b16 %v824
        %v2197 = vunpack.c.h.b16 %v824
        %v2198 = vunpack.c.l.b16 %v825
        %v2199 = vunpack.c.h.b16 %v825
        %v2200 = vunpack.c.l.b16 %v826
        %v2201 = vunpack.c.h.b16 %v826
        %v2202 = vunpack.c.l.b16 %v827
        %v2203 = vunpack.c.h.b16 %v827
        %v2204 = vunpack.c.l.b16 %v828
        %v2205 = vunpack.c.h.b16 %v828
        %v2206 = vunpack.c.l.b16 %v829
        %v2207 = vunpack.c.h.b16 %v829
        %v2208 = vunpack.c.l.b16 %v830
        %v2209 = vunpack.c.h.b16 %v830
        %v2210 = vunpack.c.l.b16 %v831
        %v2211 = vunpack.c.h.b16 %v831
        %v2212 = vunpack.c.l.b16 %v832
        %v2213 = vunpack.c.h.b16 %v832
        %v2214 = vunpack.c.l.b16 %v833
        %v2215 = vunpack.c.h.b16 %v833
        %v2216 = vunpack.c.l.b16 %v834
        %v2217 = vunpack.c.h.b16 %v834
        %v2218 = vunpack.c.l.b16 %v835
        %v2219 = vunpack.c.h.b16 %v835
        %v2220 = vunpack.c.l.b16 %v836
        %v2221 = vunpack.c.h.b16 %v836
        %v2222 = vunpack.c.l.b16 %v837
        %v2223 = vunpack.c.h.b16 %v837
        %v2224 = vunpack.c.l.b16 %v838
        %v2225 = vunpack.c.h.b16 %v838
        %v2226 = vunpack.c.l.b16 %v839
        %v2227 = vunpack.c.h.b16 %v839
        %v2228 = vunpack.c.l.b16 %v840
        %v2229 = vunpack.c.h.b16 %v840
        %v2230 = vunpack.c.l.b16 %v841
        %v2231 = vunpack.c.h.b16 %v841
        %v2232 = vunpack.c.l.b16 %v842
        %v2233 = vunpack.c.h.b16 %v842
        %v2234 = vunpack.c.l.b16 %v843
        %v2235 = vunpack.c.h.b16 %v843
        %v2236 = vunpack.c.l.b16 %v844
        %v2237 = vunpack.c.h.b16 %v844
        %v2238 = vunpack.c.l.b16 %v845
        %v2239 = vunpack.c.h.b16 %v845
        %v2240 = vunpack.c.l.b16 %v846
        %v2241 = vunpack.c.h.b16 %v846
        %v2242 = vunpack.c.l.b16 %v847
        %v2243 = vunpack.c.h.b16 %v847
        %v2244 = vunpack.c.l.b16 %v848
        %v2245 = vunpack.c.h.b16 %v848
        %v2246 = vunpack.c.l.b16 %v849
        %v2247 = vunpack.c.h.b16 %v849
        %v2248 = vunpack.c.l.b16 %v850
        %v2249 = vunpack.c.h.b16 %v850
        %v2250 = vunpack.c.l.b16 %v851
        %v2251 = vunpack.c.h.b16 %v851
        %v2252 = vunpack.c.l.b16 %v852
        %v2253 = vunpack.c.h.b16 %v852
        %v2254 = vunpack.c.l.b16 %v853
        %v2255 = vunpack.c.h.b16 %v853
        %v2256 = vunpack.c.l.b16 %v854
        %v2257 = vunpack.c.h.b16 %v854
        %v2258 = vunpack.c.l.b16 %v855
        %v2259 = vunpack.c.h.b16 %v855
        %v2260 = vunpack.c.l.b16 %v856
        %v2261 = vunpack.c.h.b16 %v856
        %v2262 = vunpack.c.l.b16 %v857
        %v2263 = vunpack.c.h.b16 %v857
        %v2264 = vunpack.c.l.b16 %v858
        %v2265 = vunpack.c.h.b16 %v858
        %v2266 = vunpack.c.l.b16 %v859
        %v2267 = vunpack.c.h.b16 %v859
        %v2268 = vunpack.c.l.b16 %v860
        %v2269 = vunpack.c.h.b16 %v860
        %v2270 = vunpack.c.l.b16 %v861
        %v2271 = vunpack.c.h.b16 %v861
        %v2272 = vunpack.c.l.b16 %v862
        %v2273 = vunpack.c.h.b16 %v862
        %v2274 = vunpack.c.l.b16 %v863
        %v2275 = vunpack.c.h.b16 %v863
        %v2276 = vunpack.c.l.b16 %v864
        %v2277 = vunpack.c.h.b16 %v864
        %v2278 = vunpack.c.l.b16 %v865
        %v2279 = vunpack.c.h.b16 %v865
        %v2280 = vunpack.c.l.b16 %v866
        %v2281 = vunpack.c.h.b16 %v866
        %v2282 = vunpack.c.l.b16 %v867
        %v2283 = vunpack.c.h.b16 %v867
        %v2284 = vunpack.c.l.b16 %v868
        %v2285 = vunpack.c.h.b16 %v868
        %v2286 = vunpack.c.l.b16 %v869
        %v2287 = vunpack.c.h.b16 %v869
        %v2288 = vunpack.c.l.b16 %v870
        %v2289 = vunpack.c.h.b16 %v870
        %v2290 = vunpack.c.l.b16 %v871
        %v2291 = vunpack.c.h.b16 %v871
        %v2292 = vunpack.c.l.b16 %v872
        %v2293 = vunpack.c.h.b16 %v872
        %v2294 = vunpack.c.l.b16 %v873
        %v2295 = vunpack.c.h.b16 %v873
        %v2296 = vunpack.c.l.b16 %v874
        %v2297 = vunpack.c.h.b16 %v874
        %v2298 = vunpack.c.l.b16 %v875
        %v2299 = vunpack.c.h.b16 %v875
        %v2300 = vunpack.c.l.b16 %v876
        %v2301 = vunpack.c.h.b16 %v876
        %v2302 = vunpack.c.l.b16 %v877
        %v2303 = vunpack.c.h.b16 %v877
        %v2304 = vunpack.c.l.b16 %v878
        %v2305 = vunpack.c.h.b16 %v878
        %v2306 = vunpack.c.l.b16 %v879
        %v2307 = vunpack.c.h.b16 %v879
        %v2308 = vunpack.c.l.b16 %v880
        %v2309 = vunpack.c.h.b16 %v880
        %v2310 = vunpack.c.l.b16 %v881
        %v2311 = vunpack.c.h.b16 %v881
        %v2312 = vunpack.c.l.b16 %v882
        %v2313 = vunpack.c.h.b16 %v882
        %v2314 = vunpack.c.l.b16 %v883
        %v2315 = vunpack.c.h.b16 %v883
        %v2316 = vunpack.c.l.b16 %v884
        %v2317 = vunpack.c.h.b16 %v884
        %v2318 = vunpack.c.l.b16 %v885
        %v2319 = vunpack.c.h.b16 %v885
        %v2320 = vunpack.c.l.b16 %v886
        %v2321 = vunpack.c.h.b16 %v886
        %v2322 = vunpack.c.l.b16 %v887
        %v2323 = vunpack.c.h.b16 %v887
        %v2324 = vunpack.c.l.b16 %v888
        %v2325 = vunpack.c.h.b16 %v888
        %v2326 = vunpack.c.l.b16 %v889
        %v2327 = vunpack.c.h.b16 %v889
        %v2328 = vunpack.c.l.b16 %v890
        %v2329 = vunpack.c.h.b16 %v890
        %v2330 = vunpack.c.l.b16 %v891
        %v2331 = vunpack.c.h.b16 %v891
        %v2332 = vunpack.c.l.b16 %v892
        %v2333 = vunpack.c.h.b16 %v892
        %v2334 = vunpack.c.l.b16 %v893
        %v2335 = vunpack.c.h.b16 %v893
        %v2336 = vunpack.c.l.b16 %v894
        %v2337 = vunpack.c.h.b16 %v894
        %v2338 = vunpack.c.l.b16 %v895
        %v2339 = vunpack.c.h.b16 %v895
        %v2340 = vunpack.c.l.b16 %v896
        %v2341 = vunpack.c.h.b16 %v896
        %v2342 = vunpack.c.l.b16 %v897
        %v2343 = vunpack.c.h.b16 %v897
        %v2344 = vunpack.c.l.b16 %v898
        %v2345 = vunpack.c.h.b16 %v898
        %v2346 = vunpack.c.l.b16 %v899
        %v2347 = vunpack.c.h.b16 %v899
        %v2348 = vunpack.c.l.b16 %v900
        %v2349 = vunpack.c.h.b16 %v900
        %v2350 = vunpack.c.l.b16 %v901
        %v2351 = vunpack.c.h.b16 %v901
        %v2352 = vunpack.c.l.b16 %v902
        %v2353 = vunpack.c.h.b16 %v902
        %v2354 = vunpack.c.l.b16 %v903
        %v2355 = vunpack.c.h.b16 %v903
        %v2356 = vunpack.c.l.b16 %v904
        %v2357 = vunpack.c.h.b16 %v904
        %v2358 = vunpack.c.l.b16 %v905
        %v2359 = vunpack.c.h.b16 %v905
        %v2360 = vunpack.c.l.b16 %v906
        %v2361 = vunpack.c.h.b16 %v906
        %v2362 = vunpack.c.l.b16 %v907
        %v2363 = vunpack.c.h.b16 %v907
        %v2364 = vunpack.c.l.b16 %v908
        %v2365 = vunpack.c.h.b16 %v908
        %v2366 = vunpack.c.l.b16 %v909
        %v2367 = vunpack.c.h.b16 %v909
        %v2368 = vunpack.c.l.b16 %v910
        %v2369 = vunpack.c.h.b16 %v910
        %v2370 = vunpack.c.l.b16 %v911
        %v2371 = vunpack.c.h.b16 %v911
        %v2372 = vunpack.c.l.b16 %v912
        %v2373 = vunpack.c.h.b16 %v912
        %v2374 = vunpack.c.l.b16 %v913
        %v2375 = vunpack.c.h.b16 %v913
        %v2376 = vunpack.c.l.b16 %v914
        %v2377 = vunpack.c.h.b16 %v914
        %v2378 = vunpack.c.l.b16 %v915
        %v2379 = vunpack.c.h.b16 %v915
        %v2380 = vunpack.c.l.b16 %v916
        %v2381 = vunpack.c.h.b16 %v916
        %v2382 = vunpack.c.l.b16 %v917
        %v2383 = vunpack.c.h.b16 %v917
        %v2384 = vunpack.c.l.b16 %v918
        %v2385 = vunpack.c.h.b16 %v918
        %v2386 = vunpack.c.l.b16 %v919
        %v2387 = vunpack.c.h.b16 %v919
        %v2388 = vunpack.c.l.b16 %v920
        %v2389 = vunpack.c.h.b16 %v920
        %v2390 = vunpack.c.l.b16 %v921
        %v2391 = vunpack.c.h.b16 %v921
        %v2392 = vunpack.c.l.b16 %v922
        %v2393 = vunpack.c.h.b16 %v922
        %v2394 = vunpack.c.l.b16 %v923
        %v2395 = vunpack.c.h.b16 %v923
        %v2396 = vunpack.c.l.b16 %v924
        %v2397 = vunpack.c.h.b16 %v924
        %v2398 = vunpack.c.l.b16 %v925
        %v2399 = vunpack.c.h.b16 %v925
        %v2400 = vunpack.c.l.b16 %v926
        %v2401 = vunpack.c.h.b16 %v926
        %v2402 = vunpack.c.l.b16 %v927
        %v2403 = vunpack.c.h.b16 %v927
        %v2404 = vunpack.c.l.b16 %v928
        %v2405 = vunpack.c.h.b16 %v928
        %v2406 = vunpack.c.l.b16 %v929
        %v2407 = vunpack.c.h.b16 %v929
        %v2408 = vunpack.c.l.b16 %v930
        %v2409 = vunpack.c.h.b16 %v930
        %v2410 = vunpack.c.l.b16 %v931
        %v2411 = vunpack.c.h.b16 %v931
        %v2412 = vunpack.c.l.b16 %v932
        %v2413 = vunpack.c.h.b16 %v932
        %v2414 = vunpack.c.l.b16 %v933
        %v2415 = vunpack.c.h.b16 %v933
        %v2416 = vunpack.c.l.b16 %v934
        %v2417 = vunpack.c.h.b16 %v934
        %v2418 = vunpack.c.l.b16 %v935
        %v2419 = vunpack.c.h.b16 %v935
        %v2420 = vunpack.c.l.b16 %v936
        %v2421 = vunpack.c.h.b16 %v936
        %v2422 = vunpack.c.l.b16 %v937
        %v2423 = vunpack.c.h.b16 %v937
        %v2424 = vunpack.c.l.b16 %v938
        %v2425 = vunpack.c.h.b16 %v938
        %v2426 = vunpack.c.l.b16 %v939
        %v2427 = vunpack.c.h.b16 %v939
        %v2428 = vunpack.c.l.b16 %v940
        %v2429 = vunpack.c.h.b16 %v940
        %v2430 = vunpack.c.l.b16 %v941
        %v2431 = vunpack.c.h.b16 %v941
        %v2432 = vunpack.c.l.b16 %v942
        %v2433 = vunpack.c.h.b16 %v942
        %v2434 = vunpack.c.l.b16 %v943
        %v2435 = vunpack.c.h.b16 %v943
        %v2436 = vunpack.c.l.b16 %v944
        %v2437 = vunpack.c.h.b16 %v944
        %v2438 = vunpack.c.l.b16 %v945
        %v2439 = vunpack.c.h.b16 %v945
        %v2440 = vunpack.c.l.b16 %v946
        %v2441 = vunpack.c.h.b16 %v946
        %v2442 = vunpack.c.l.b16 %v947
        %v2443 = vunpack.c.h.b16 %v947
        %v2444 = vunpack.c.l.b16 %v948
        %v2445 = vunpack.c.h.b16 %v948
        %v2446 = vunpack.c.l.b16 %v949
        %v2447 = vunpack.c.h.b16 %v949
        %v2448 = vunpack.c.l.b16 %v950
        %v2449 = vunpack.c.h.b16 %v950
        %v2450 = vunpack.c.l.b16 %v951
        %v2451 = vunpack.c.h.b16 %v951
        %v2452 = vunpack.c.l.b16 %v952
        %v2453 = vunpack.c.h.b16 %v952
        %v2454 = vunpack.c.l.b16 %v953
        %v2455 = vunpack.c.h.b16 %v953
        %v2456 = vunpack.c.l.b16 %v954
        %v2457 = vunpack.c.h.b16 %v954
        %v2458 = vunpack.c.l.b16 %v955
        %v2459 = vunpack.c.h.b16 %v955
        %v2460 = vunpack.c.l.b16 %v956
        %v2461 = vunpack.c.h.b16 %v956
        %v2462 = vunpack.c.l.b16 %v957
        %v2463 = vunpack.c.h.b16 %v957
        %v2464 = vunpack.c.l.b16 %v958
        %v2465 = vunpack.c.h.b16 %v958
        %v2466 = vunpack.c.l.b16 %v959
        %v2467 = vunpack.c.h.b16 %v959
        %v2468 = vunpack.c.l.b16 %v960
        %v2469 = vunpack.c.h.b16 %v960
        %v2470 = vunpack.c.l.b16 %v961
        %v2471 = vunpack.c.h.b16 %v961
        %v2472 = vunpack.c.l.b16 %v962
        %v2473 = vunpack.c.h.b16 %v962
        %v2474 = vunpack.c.l.b16 %v963
        %v2475 = vunpack.c.h.b16 %v963
        %v2476 = vunpack.c.l.b16 %v964
        %v2477 = vunpack.c.h.b16 %v964
        %v2478 = vunpack.c.l.b16 %v965
        %v2479 = vunpack.c.h.b16 %v965
        %v2480 = vunpack.c.l.b16 %v966
        %v2481 = vunpack.c.h.b16 %v966
        %v2482 = vunpack.c.l.b16 %v967
        %v2483 = vunpack.c.h.b16 %v967
        %v2484 = vunpack.c.l.b16 %v968
        %v2485 = vunpack.c.h.b16 %v968
        %v2486 = vunpack.c.l.b16 %v969
        %v2487 = vunpack.c.h.b16 %v969
        %v2488 = vunpack.c.l.b16 %v970
        %v2489 = vunpack.c.h.b16 %v970
        %v2490 = vunpack.c.l.b16 %v971
        %v2491 = vunpack.c.h.b16 %v971
        %v2492 = vunpack.c.l.b16 %v972
        %v2493 = vunpack.c.h.b16 %v972
        %v2494 = vunpack.c.l.b16 %v973
        %v2495 = vunpack.c.h.b16 %v973
        %v2496 = vunpack.c.l.b16 %v974
        %v2497 = vunpack.c.h.b16 %v974
        %v2498 = vunpack.c.l.b16 %v975
        %v2499 = vunpack.c.h.b16 %v975
        %v2500 = vunpack.c.l.b16 %v976
        %v2501 = vunpack.c.h.b16 %v976
        %v2502 = vunpack.c.l.b16 %v977
        %v2503 = vunpack.c.h.b16 %v977
        %v2504 = vunpack.c.l.b16 %v978
        %v2505 = vunpack.c.h.b16 %v978
        %v2506 = vunpack.c.l.b16 %v979
        %v2507 = vunpack.c.h.b16 %v979
        %v2508 = vunpack.c.l.b16 %v980
        %v2509 = vunpack.c.h.b16 %v980
        %v2510 = vunpack.c.l.b16 %v981
        %v2511 = vunpack.c.h.b16 %v981
        %v2512 = vunpack.c.l.b16 %v982
        %v2513 = vunpack.c.h.b16 %v982
        %v2514 = vunpack.c.l.b16 %v983
        %v2515 = vunpack.c.h.b16 %v983
        %v2516 = vunpack.c.l.b16 %v984
        %v2517 = vunpack.c.h.b16 %v984
        %v2518 = vunpack.c.l.b16 %v985
        %v2519 = vunpack.c.h.b16 %v985
        %v2520 = vunpack.c.l.b16 %v986
        %v2521 = vunpack.c.h.b16 %v986
        %v2522 = vunpack.c.l.b16 %v987
        %v2523 = vunpack.c.h.b16 %v987
        %v2524 = vpack.c.b16 %v1516, %v1500
        %v2525 = vpack.c.b16 %v1517, %v1501
        %v2526 = vpack.c.b16 %v1518, %v1502
        %v2527 = vpack.c.b16 %v1519, %v1503
        %v2528 = vpack.c.b16 %v1520, %v1504
        %v2529 = vpack.c.b16 %v1521, %v1505
        %v2530 = vpack.c.b16 %v1522, %v1506
        %v2531 = vpack.c.b16 %v1523, %v1507
        %v2532 = vpack.c.b16 %v1524, %v1508
        %v2533 = vpack.c.b16 %v1525, %v1509
        %v2534 = vpack.c.b16 %v1526, %v1510
        %v2535 = vpack.c.b16 %v1527, %v1511
        %v2536 = vpack.c.b16 %v1528, %v1512
        %v2537 = vpack.c.b16 %v1529, %v1513
        %v2538 = vpack.c.b16 %v1530, %v1514
        %v2539 = vpack.c.b16 %v1531, %v1515
        %v2540 = vpack.c.b16 %v1548, %v1532
        %v2541 = vpack.c.b16 %v1549, %v1533
        %v2542 = vpack.c.b16 %v1550, %v1534
        %v2543 = vpack.c.b16 %v1551, %v1535
        %v2544 = vpack.c.b16 %v1552, %v1536
        %v2545 = vpack.c.b16 %v1553, %v1537
        %v2546 = vpack.c.b16 %v1554, %v1538
        %v2547 = vpack.c.b16 %v1555, %v1539
        %v2548 = vpack.c.b16 %v1556, %v1540
        %v2549 = vpack.c.b16 %v1557, %v1541
        %v2550 = vpack.c.b16 %v1558, %v1542
        %v2551 = vpack.c.b16 %v1559, %v1543
        %v2552 = vpack.c.b16 %v1560, %v1544
        %v2553 = vpack.c.b16 %v1561, %v1545
        %v2554 = vpack.c.b16 %v1562, %v1546
        %v2555 = vpack.c.b16 %v1563, %v1547
        %v2556 = vpack.c.b16 %v1580, %v1564
        %v2557 = vpack.c.b16 %v1581, %v1565
        %v2558 = vpack.c.b16 %v1582, %v1566
        %v2559 = vpack.c.b16 %v1583, %v1567
        %v2560 = vpack.c.b16 %v1584, %v1568
        %v2561 = vpack.c.b16 %v1585, %v1569
        %v2562 = vpack.c.b16 %v1586, %v1570
        %v2563 = vpack.c.b16 %v1587, %v1571
        %v2564 = vpack.c.b16 %v1588, %v1572
        %v2565 = vpack.c.b16 %v1589, %v1573
        %v2566 = vpack.c.b16 %v1590, %v1574
        %v2567 = vpack.c.b16 %v1591, %v1575
        %v2568 = vpack.c.b16 %v1592, %v1576
        %v2569 = vpack.c.b16 %v1593, %v1577
        %v2570 = vpack.c.b16 %v1594, %v1578
        %v2571 = vpack.c.b16 %v1595, %v1579
        %v2572 = vpack.c.b16 %v1612, %v1596
        %v2573 = vpack.c.b16 %v1613, %v1597
        %v2574 = vpack.c.b16 %v1614, %v1598
        %v2575 = vpack.c.b16 %v1615, %v1599
        %v2576 = vpack.c.b16 %v1616, %v1600
        %v2577 = vpack.c.b16 %v1617, %v1601
        %v2578 = vpack.c.b16 %v1618, %v1602
        %v2579 = vpack.c.b16 %v1619, %v1603
        %v2580 = vpack.c.b16 %v1620, %v1604
        %v2581 = vpack.c.b16 %v1621, %v1605
        %v2582 = vpack.c.b16 %v1622, %v1606
        %v2583 = vpack.c.b16 %v1623, %v1607
        %v2584 = vpack.c.b16 %v1624, %v1608
        %v2585 = vpack.c.b16 %v1625, %v1609
        %v2586 = vpack.c.b16 %v1626, %v1610
        %v2587 = vpack.c.b16 %v1627, %v1611
        %v2588 = vpack.c.b16 %v1644, %v1628
        %v2589 = vpack.c.b16 %v1645, %v1629
        %v2590 = vpack.c.b16 %v1646, %v1630
        %v2591 = vpack.c.b16 %v1647, %v1631
        %v2592 = vpack.c.b16 %v1648, %v1632
        %v2593 = vpack.c.b16 %v1649, %v1633
        %v2594 = vpack.c.b16 %v1650, %v1634
        %v2595 = vpack.c.b16 %v1651, %v1635
        %v2596 = vpack.c.b16 %v1652, %v1636
        %v2597 = vpack.c.b16 %v1653, %v1637
        %v2598 = vpack.c.b16 %v1654, %v1638
        %v2599 = vpack.c.b16 %v1655, %v1639
        %v2600 = vpack.c.b16 %v1656, %v1640
        %v2601 = vpack.c.b16 %v1657, %v1641
        %v2602 = vpack.c.b16 %v1658, %v1642
        %v2603 = vpack.c.b16 %v1659, %v1643
        %v2604 = vpack.c.b16 %v1676, %v1660
        %v2605 = vpack.c.b16 %v1677, %v1661
        %v2606 = vpack.c.b16 %v1678, %v1662
        %v2607 = vpack.c.b16 %v1679, %v1663
        %v2608 = vpack.c.b16 %v1680, %v1664
        %v2609 = vpack.c.b16 %v1681, %v1665
        %v2610 = vpack.c.b16 %v1682, %v1666
        %v2611 = vpack.c.b16 %v1683, %v1667
        %v2612 = vpack.c.b16 %v1684, %v1668
        %v2613 = vpack.c.b16 %v1685, %v1669
        %v2614 = vpack.c.b16 %v1686, %v1670
        %v2615 = vpack.c.b16 %v1687, %v1671
        %v2616 = vpack.c.b16 %v1688, %v1672
        %v2617 = vpack.c.b16 %v1689, %v1673
        %v2618 = vpack.c.b16 %v1690, %v1674
        %v2619 = vpack.c.b16 %v1691, %v1675
        %v2620 = vpack.c.b16 %v1708, %v1692
        %v2621 = vpack.c.b16 %v1709, %v1693
        %v2622 = vpack.c.b16 %v1710, %v1694
        %v2623 = vpack.c.b16 %v1711, %v1695
        %v2624 = vpack.c.b16 %v1712, %v1696
        %v2625 = vpack.c.b16 %v1713, %v1697
        %v2626 = vpack.c.b16 %v1714, %v1698
        %v2627 = vpack.c.b16 %v1715, %v1699
        %v2628 = vpack.c.b16 %v1716, %v1700
        %v2629 = vpack.c.b16 %v1717, %v1701
        %v2630 = vpack.c.b16 %v1718, %v1702
        %v2631 = vpack.c.b16 %v1719, %v1703
        %v2632 = vpack.c.b16 %v1720, %v1704
        %v2633 = vpack.c.b16 %v1721, %v1705
        %v2634 = vpack.c.b16 %v1722, %v1706
        %v2635 = vpack.c.b16 %v1723, %v1707
        %v2636 = vpack.c.b16 %v1740, %v1724
        %v2637 = vpack.c.b16 %v1741, %v1725
        %v2638 = vpack.c.b16 %v1742, %v1726
        %v2639 = vpack.c.b16 %v1743, %v1727
        %v2640 = vpack.c.b16 %v1744, %v1728
        %v2641 = vpack.c.b16 %v1745, %v1729
        %v2642 = vpack.c.b16 %v1746, %v1730
        %v2643 = vpack.c.b16 %v1747, %v1731
        %v2644 = vpack.c.b16 %v1748, %v1732
        %v2645 = vpack.c.b16 %v1749, %v1733
        %v2646 = vpack.c.b16 %v1750, %v1734
        %v2647 = vpack.c.b16 %v1751, %v1735
        %v2648 = vpack.c.b16 %v1752, %v1736
        %v2649 = vpack.c.b16 %v1753, %v1737
        %v2650 = vpack.c.b16 %v1754, %v1738
        %v2651 = vpack.c.b16 %v1755, %v1739
        %v2652 = vpack.c.b16 %v1772, %v1756
        %v2653 = vpack.c.b16 %v1773, %v1757
        %v2654 = vpack.c.b16 %v1774, %v1758
        %v2655 = vpack.c.b16 %v1775, %v1759
        %v2656 = vpack.c.b16 %v1776, %v1760
        %v2657 = vpack.c.b16 %v1777, %v1761
        %v2658 = vpack.c.b16 %v1778, %v1762
        %v2659 = vpack.c.b16 %v1779, %v1763
        %v2660 = vpack.c.b16 %v1780, %v1764
        %v2661 = vpack.c.b16 %v1781, %v1765
        %v2662 = vpack.c.b16 %v1782, %v1766
        %v2663 = vpack.c.b16 %v1783, %v1767
        %v2664 = vpack.c.b16 %v1784, %v1768
        %v2665 = vpack.c.b16 %v1785, %v1769
        %v2666 = vpack.c.b16 %v1786, %v1770
        %v2667 = vpack.c.b16 %v1787, %v1771
        %v2668 = vpack.c.b16 %v1804, %v1788
        %v2669 = vpack.c.b16 %v1805, %v1789
        %v2670 = vpack.c.b16 %v1806, %v1790
        %v2671 = vpack.c.b16 %v1807, %v1791
        %v2672 = vpack.c.b16 %v1808, %v1792
        %v2673 = vpack.c.b16 %v1809, %v1793
        %v2674 = vpack.c.b16 %v1810, %v1794
        %v2675 = vpack.c.b16 %v1811, %v1795
        %v2676 = vpack.c.b16 %v1812, %v1796
        %v2677 = vpack.c.b16 %v1813, %v1797
        %v2678 = vpack.c.b16 %v1814, %v1798
        %v2679 = vpack.c.b16 %v1815, %v1799
        %v2680 = vpack.c.b16 %v1816, %v1800
        %v2681 = vpack.c.b16 %v1817, %v1801
        %v2682 = vpack.c.b16 %v1818, %v1802
        %v2683 = vpack.c.b16 %v1819, %v1803
        %v2684 = vpack.c.b16 %v1836, %v1820
        %v2685 = vpack.c.b16 %v1837, %v1821
        %v2686 = vpack.c.b16 %v1838, %v1822
        %v2687 = vpack.c.b16 %v1839, %v1823
        %v2688 = vpack.c.b16 %v1840, %v1824
        %v2689 = vpack.c.b16 %v1841, %v1825
        %v2690 = vpack.c.b16 %v1842, %v1826
        %v2691 = vpack.c.b16 %v1843, %v1827
        %v2692 = vpack.c.b16 %v1844, %v1828
        %v2693 = vpack.c.b16 %v1845, %v1829
        %v2694 = vpack.c.b16 %v1846, %v1830
        %v2695 = vpack.c.b16 %v1847, %v1831
        %v2696 = vpack.c.b16 %v1848, %v1832
        %v2697 = vpack.c.b16 %v1849, %v1833
        %v2698 = vpack.c.b16 %v1850, %v1834
        %v2699 = vpack.c.b16 %v1851, %v1835
        %v2700 = vpack.c.b16 %v1868, %v1852
        %v2701 = vpack.c.b16 %v1869, %v1853
        %v2702 = vpack.c.b16 %v1870, %v1854
        %v2703 = vpack.c.b16 %v1871, %v1855
        %v2704 = vpack.c.b16 %v1872, %v1856
        %v2705 = vpack.c.b16 %v1873, %v1857
        %v2706 = vpack.c.b16 %v1874, %v1858
        %v2707 = vpack.c.b16 %v1875, %v1859
        %v2708 = vpack.c.b16 %v1876, %v1860
        %v2709 = vpack.c.b16 %v1877, %v1861
        %v2710 = vpack.c.b16 %v1878, %v1862
        %v2711 = vpack.c.b16 %v1879, %v1863
        %v2712 = vpack.c.b16 %v1880, %v1864
        %v2713 = vpack.c.b16 %v1881, %v1865
        %v2714 = vpack.c.b16 %v1882, %v1866
        %v2715 = vpack.c.b16 %v1883, %v1867
        %v2716 = vpack.c.b16 %v1900, %v1884
        %v2717 = vpack.c.b16 %v1901, %v1885
        %v2718 = vpack.c.b16 %v1902, %v1886
        %v2719 = vpack.c.b16 %v1903, %v1887
        %v2720 = vpack.c.b16 %v1904, %v1888
        %v2721 = vpack.c.b16 %v1905, %v1889
        %v2722 = vpack.c.b16 %v1906, %v1890
        %v2723 = vpack.c.b16 %v1907, %v1891
        %v2724 = vpack.c.b16 %v1908, %v1892
        %v2725 = vpack.c.b16 %v1909, %v1893
        %v2726 = vpack.c.b16 %v1910, %v1894
        %v2727 = vpack.c.b16 %v1911, %v1895
        %v2728 = vpack.c.b16 %v1912, %v1896
        %v2729 = vpack.c.b16 %v1913, %v1897
        %v2730 = vpack.c.b16 %v1914, %v1898
        %v2731 = vpack.c.b16 %v1915, %v1899
        %v2732 = vpack.c.b16 %v1932, %v1916
        %v2733 = vpack.c.b16 %v1933, %v1917
        %v2734 = vpack.c.b16 %v1934, %v1918
        %v2735 = vpack.c.b16 %v1935, %v1919
        %v2736 = vpack.c.b16 %v1936, %v1920
        %v2737 = vpack.c.b16 %v1937, %v1921
        %v2738 = vpack.c.b16 %v1938, %v1922
        %v2739 = vpack.c.b16 %v1939, %v1923
        %v2740 = vpack.c.b16 %v1940, %v1924
        %v2741 = vpack.c.b16 %v1941, %v1925
        %v2742 = vpack.c.b16 %v1942, %v1926
        %v2743 = vpack.c.b16 %v1943, %v1927
        %v2744 = vpack.c.b16 %v1944, %v1928
        %v2745 = vpack.c.b16 %v1945, %v1929
        %v2746 = vpack.c.b16 %v1946, %v1930
        %v2747 = vpack.c.b16 %v1947, %v1931
        %v2748 = vpack.c.b16 %v1964, %v1948
        %v2749 = vpack.c.b16 %v1965, %v1949
        %v2750 = vpack.c.b16 %v1966, %v1950
        %v2751 = vpack.c.b16 %v1967, %v1951
        %v2752 = vpack.c.b16 %v1968, %v1952
        %v2753 = vpack.c.b16 %v1969, %v1953
        %v2754 = vpack.c.b16 %v1970, %v1954
        %v2755 = vpack.c.b16 %v1971, %v1955
        %v2756 = vpack.c.b16 %v1972, %v1956
        %v2757 = vpack.c.b16 %v1973, %v1957
        %v2758 = vpack.c.b16 %v1974, %v1958
        %v2759 = vpack.c.b16 %v1975, %v1959
        %v2760 = vpack.c.b16 %v1976, %v1960
        %v2761 = vpack.c.b16 %v1977, %v1961
        %v2762 = vpack.c.b16 %v1978, %v1962
        %v2763 = vpack.c.b16 %v1979, %v1963
        %v2764 = vpack.c.b16 %v1996, %v1980
        %v2765 = vpack.c.b16 %v1997, %v1981
        %v2766 = vpack.c.b16 %v1998, %v1982
        %v2767 = vpack.c.b16 %v1999, %v1983
        %v2768 = vpack.c.b16 %v2000, %v1984
        %v2769 = vpack.c.b16 %v2001, %v1985
        %v2770 = vpack.c.b16 %v2002, %v1986
        %v2771 = vpack.c.b16 %v2003, %v1987
        %v2772 = vpack.c.b16 %v2004, %v1988
        %v2773 = vpack.c.b16 %v2005, %v1989
        %v2774 = vpack.c.b16 %v2006, %v1990
        %v2775 = vpack.c.b16 %v2007, %v1991
        %v2776 = vpack.c.b16 %v2008, %v1992
        %v2777 = vpack.c.b16 %v2009, %v1993
        %v2778 = vpack.c.b16 %v2010, %v1994
        %v2779 = vpack.c.b16 %v2011, %v1995
        %v2780 = vpack.c.b16 %v2028, %v2012
        %v2781 = vpack.c.b16 %v2029, %v2013
        %v2782 = vpack.c.b16 %v2030, %v2014
        %v2783 = vpack.c.b16 %v2031, %v2015
        %v2784 = vpack.c.b16 %v2032, %v2016
        %v2785 = vpack.c.b16 %v2033, %v2017
        %v2786 = vpack.c.b16 %v2034, %v2018
        %v2787 = vpack.c.b16 %v2035, %v2019
        %v2788 = vpack.c.b16 %v2036, %v2020
        %v2789 = vpack.c.b16 %v2037, %v2021
        %v2790 = vpack.c.b16 %v2038, %v2022
        %v2791 = vpack.c.b16 %v2039, %v2023
        %v2792 = vpack.c.b16 %v2040, %v2024
        %v2793 = vpack.c.b16 %v2041, %v2025
        %v2794 = vpack.c.b16 %v2042, %v2026
        %v2795 = vpack.c.b16 %v2043, %v2027
        %v2796 = vpack.c.b16 %v2060, %v2044
        %v2797 = vpack.c.b16 %v2061, %v2045
        %v2798 = vpack.c.b16 %v2062, %v2046
        %v2799 = vpack.c.b16 %v2063, %v2047
        %v2800 = vpack.c.b16 %v2064, %v2048
        %v2801 = vpack.c.b16 %v2065, %v2049
        %v2802 = vpack.c.b16 %v2066, %v2050
        %v2803 = vpack.c.b16 %v2067, %v2051
        %v2804 = vpack.c.b16 %v2068, %v2052
        %v2805 = vpack.c.b16 %v2069, %v2053
        %v2806 = vpack.c.b16 %v2070, %v2054
        %v2807 = vpack.c.b16 %v2071, %v2055
        %v2808 = vpack.c.b16 %v2072, %v2056
        %v2809 = vpack.c.b16 %v2073, %v2057
        %v2810 = vpack.c.b16 %v2074, %v2058
        %v2811 = vpack.c.b16 %v2075, %v2059
        %v2812 = vpack.c.b16 %v2092, %v2076
        %v2813 = vpack.c.b16 %v2093, %v2077
        %v2814 = vpack.c.b16 %v2094, %v2078
        %v2815 = vpack.c.b16 %v2095, %v2079
        %v2816 = vpack.c.b16 %v2096, %v2080
        %v2817 = vpack.c.b16 %v2097, %v2081
        %v2818 = vpack.c.b16 %v2098, %v2082
        %v2819 = vpack.c.b16 %v2099, %v2083
        %v2820 = vpack.c.b16 %v2100, %v2084
        %v2821 = vpack.c.b16 %v2101, %v2085
        %v2822 = vpack.c.b16 %v2102, %v2086
        %v2823 = vpack.c.b16 %v2103, %v2087
        %v2824 = vpack.c.b16 %v2104, %v2088
        %v2825 = vpack.c.b16 %v2105, %v2089
        %v2826 = vpack.c.b16 %v2106, %v2090
        %v2827 = vpack.c.b16 %v2107, %v2091
        %v2828 = vpack.c.b16 %v2124, %v2108
        %v2829 = vpack.c.b16 %v2125, %v2109
        %v2830 = vpack.c.b16 %v2126, %v2110
        %v2831 = vpack.c.b16 %v2127, %v2111
        %v2832 = vpack.c.b16 %v2128, %v2112
        %v2833 = vpack.c.b16 %v2129, %v2113
        %v2834 = vpack.c.b16 %v2130, %v2114
        %v2835 = vpack.c.b16 %v2131, %v2115
        %v2836 = vpack.c.b16 %v2132, %v2116
        %v2837 = vpack.c.b16 %v2133, %v2117
        %v2838 = vpack.c.b16 %v2134, %v2118
        %v2839 = vpack.c.b16 %v2135, %v2119
        %v2840 = vpack.c.b16 %v2136, %v2120
        %v2841 = vpack.c.b16 %v2137, %v2121
        %v2842 = vpack.c.b16 %v2138, %v2122
        %v2843 = vpack.c.b16 %v2139, %v2123
        %v2844 = vpack.c.b16 %v2156, %v2140
        %v2845 = vpack.c.b16 %v2157, %v2141
        %v2846 = vpack.c.b16 %v2158, %v2142
        %v2847 = vpack.c.b16 %v2159, %v2143
        %v2848 = vpack.c.b16 %v2160, %v2144
        %v2849 = vpack.c.b16 %v2161, %v2145
        %v2850 = vpack.c.b16 %v2162, %v2146
        %v2851 = vpack.c.b16 %v2163, %v2147
        %v2852 = vpack.c.b16 %v2164, %v2148
        %v2853 = vpack.c.b16 %v2165, %v2149
        %v2854 = vpack.c.b16 %v2166, %v2150
        %v2855 = vpack.c.b16 %v2167, %v2151
        %v2856 = vpack.c.b16 %v2168, %v2152
        %v2857 = vpack.c.b16 %v2169, %v2153
        %v2858 = vpack.c.b16 %v2170, %v2154
        %v2859 = vpack.c.b16 %v2171, %v2155
        %v2860 = vpack.c.b16 %v2188, %v2172
        %v2861 = vpack.c.b16 %v2189, %v2173
        %v2862 = vpack.c.b16 %v2190, %v2174
        %v2863 = vpack.c.b16 %v2191, %v2175
        %v2864 = vpack.c.b16 %v2192, %v2176
        %v2865 = vpack.c.b16 %v2193, %v2177
        %v2866 = vpack.c.b16 %v2194, %v2178
        %v2867 = vpack.c.b16 %v2195, %v2179
        %v2868 = vpack.c.b16 %v2196, %v2180
        %v2869 = vpack.c.b16 %v2197, %v2181
        %v2870 = vpack.c.b16 %v2198, %v2182
        %v2871 = vpack.c.b16 %v2199, %v2183
        %v2872 = vpack.c.b16 %v2200, %v2184
        %v2873 = vpack.c.b16 %v2201, %v2185
        %v2874 = vpack.c.b16 %v2202, %v2186
        %v2875 = vpack.c.b16 %v2203, %v2187
        %v2876 = vpack.c.b16 %v2220, %v2204
        %v2877 = vpack.c.b16 %v2221, %v2205
        %v2878 = vpack.c.b16 %v2222, %v2206
        %v2879 = vpack.c.b16 %v2223, %v2207
        %v2880 = vpack.c.b16 %v2224, %v2208
        %v2881 = vpack.c.b16 %v2225, %v2209
        %v2882 = vpack.c.b16 %v2226, %v2210
        %v2883 = vpack.c.b16 %v2227, %v2211
        %v2884 = vpack.c.b16 %v2228, %v2212
        %v2885 = vpack.c.b16 %v2229, %v2213
        %v2886 = vpack.c.b16 %v2230, %v2214
        %v2887 = vpack.c.b16 %v2231, %v2215
        %v2888 = vpack.c.b16 %v2232, %v2216
        %v2889 = vpack.c.b16 %v2233, %v2217
        %v2890 = vpack.c.b16 %v2234, %v2218
        %v2891 = vpack.c.b16 %v2235, %v2219
        %v2892 = vpack.c.b16 %v2252, %v2236
        %v2893 = vpack.c.b16 %v2253, %v2237
        %v2894 = vpack.c.b16 %v2254, %v2238
        %v2895 = vpack.c.b16 %v2255, %v2239
        %v2896 = vpack.c.b16 %v2256, %v2240
        %v2897 = vpack.c.b16 %v2257, %v2241
        %v2898 = vpack.c.b16 %v2258, %v2242
        %v2899 = vpack.c.b16 %v2259, %v2243
        %v2900 = vpack.c.b16 %v2260, %v2244
        %v2901 = vpack.c.b16 %v2261, %v2245
        %v2902 = vpack.c.b16 %v2262, %v2246
        %v2903 = vpack.c.b16 %v2263, %v2247
        %v2904 = vpack.c.b16 %v2264, %v2248
        %v2905 = vpack.c.b16 %v2265, %v2249
        %v2906 = vpack.c.b16 %v2266, %v2250
        %v2907 = vpack.c.b16 %v2267, %v2251
        %v2908 = vpack.c.b16 %v2284, %v2268
        %v2909 = vpack.c.b16 %v2285, %v2269
        %v2910 = vpack.c.b16 %v2286, %v2270
        %v2911 = vpack.c.b16 %v2287, %v2271
        %v2912 = vpack.c.b16 %v2288, %v2272
        %v2913 = vpack.c.b16 %v2289, %v2273
        %v2914 = vpack.c.b16 %v2290, %v2274
        %v2915 = vpack.c.b16 %v2291, %v2275
        %v2916 = vpack.c.b16 %v2292, %v2276
        %v2917 = vpack.c.b16 %v2293, %v2277
        %v2918 = vpack.c.b16 %v2294, %v2278
        %v2919 = vpack.c.b16 %v2295, %v2279
        %v2920 = vpack.c.b16 %v2296, %v2280
        %v2921 = vpack.c.b16 %v2297, %v2281
        %v2922 = vpack.c.b16 %v2298, %v2282
        %v2923 = vpack.c.b16 %v2299, %v2283
        %v2924 = vpack.c.b16 %v2316, %v2300
        %v2925 = vpack.c.b16 %v2317, %v2301
        %v2926 = vpack.c.b16 %v2318, %v2302
        %v2927 = vpack.c.b16 %v2319, %v2303
        %v2928 = vpack.c.b16 %v2320, %v2304
        %v2929 = vpack.c.b16 %v2321, %v2305
        %v2930 = vpack.c.b16 %v2322, %v2306
        %v2931 = vpack.c.b16 %v2323, %v2307
        %v2932 = vpack.c.b16 %v2324, %v2308
        %v2933 = vpack.c.b16 %v2325, %v2309
        %v2934 = vpack.c.b16 %v2326, %v2310
        %v2935 = vpack.c.b16 %v2327, %v2311
        %v2936 = vpack.c.b16 %v2328, %v2312
        %v2937 = vpack.c.b16 %v2329, %v2313
        %v2938 = vpack.c.b16 %v2330, %v2314
        %v2939 = vpack.c.b16 %v2331, %v2315
        %v2940 = vpack.c.b16 %v2348, %v2332
        %v2941 = vpack.c.b16 %v2349, %v2333
        %v2942 = vpack.c.b16 %v2350, %v2334
        %v2943 = vpack.c.b16 %v2351, %v2335
        %v2944 = vpack.c.b16 %v2352, %v2336
        %v2945 = vpack.c.b16 %v2353, %v2337
        %v2946 = vpack.c.b16 %v2354, %v2338
        %v2947 = vpack.c.b16 %v2355, %v2339
        %v2948 = vpack.c.b16 %v2356, %v2340
        %v2949 = vpack.c.b16 %v2357, %v2341
        %v2950 = vpack.c.b16 %v2358, %v2342
        %v2951 = vpack.c.b16 %v2359, %v2343
        %v2952 = vpack.c.b16 %v2360, %v2344
        %v2953 = vpack.c.b16 %v2361, %v2345
        %v2954 = vpack.c.b16 %v2362, %v2346
        %v2955 = vpack.c.b16 %v2363, %v2347
        %v2956 = vpack.c.b16 %v2380, %v2364
        %v2957 = vpack.c.b16 %v2381, %v2365
        %v2958 = vpack.c.b16 %v2382, %v2366
        %v2959 = vpack.c.b16 %v2383, %v2367
        %v2960 = vpack.c.b16 %v2384, %v2368
        %v2961 = vpack.c.b16 %v2385, %v2369
        %v2962 = vpack.c.b16 %v2386, %v2370
        %v2963 = vpack.c.b16 %v2387, %v2371
        %v2964 = vpack.c.b16 %v2388, %v2372
        %v2965 = vpack.c.b16 %v2389, %v2373
        %v2966 = vpack.c.b16 %v2390, %v2374
        %v2967 = vpack.c.b16 %v2391, %v2375
        %v2968 = vpack.c.b16 %v2392, %v2376
        %v2969 = vpack.c.b16 %v2393, %v2377
        %v2970 = vpack.c.b16 %v2394, %v2378
        %v2971 = vpack.c.b16 %v2395, %v2379
        %v2972 = vpack.c.b16 %v2412, %v2396
        %v2973 = vpack.c.b16 %v2413, %v2397
        %v2974 = vpack.c.b16 %v2414, %v2398
        %v2975 = vpack.c.b16 %v2415, %v2399
        %v2976 = vpack.c.b16 %v2416, %v2400
        %v2977 = vpack.c.b16 %v2417, %v2401
        %v2978 = vpack.c.b16 %v2418, %v2402
        %v2979 = vpack.c.b16 %v2419, %v2403
        %v2980 = vpack.c.b16 %v2420, %v2404
        %v2981 = vpack.c.b16 %v2421, %v2405
        %v2982 = vpack.c.b16 %v2422, %v2406
        %v2983 = vpack.c.b16 %v2423, %v2407
        %v2984 = vpack.c.b16 %v2424, %v2408
        %v2985 = vpack.c.b16 %v2425, %v2409
        %v2986 = vpack.c.b16 %v2426, %v2410
        %v2987 = vpack.c.b16 %v2427, %v2411
        %v2988 = vpack.c.b16 %v2444, %v2428
        %v2989 = vpack.c.b16 %v2445, %v2429
        %v2990 = vpack.c.b16 %v2446, %v2430
        %v2991 = vpack.c.b16 %v2447, %v2431
        %v2992 = vpack.c.b16 %v2448, %v2432
        %v2993 = vpack.c.b16 %v2449, %v2433
        %v2994 = vpack.c.b16 %v2450, %v2434
        %v2995 = vpack.c.b16 %v2451, %v2435
        %v2996 = vpack.c.b16 %v2452, %v2436
        %v2997 = vpack.c.b16 %v2453, %v2437
        %v2998 = vpack.c.b16 %v2454, %v2438
        %v2999 = vpack.c.b16 %v2455, %v2439
        %v3000 = vpack.c.b16 %v2456, %v2440
        %v3001 = vpack.c.b16 %v2457, %v2441
        %v3002 = vpack.c.b16 %v2458, %v2442
        %v3003 = vpack.c.b16 %v2459, %v2443
        %v3004 = vpack.c.b16 %v2476, %v2460
        %v3005 = vpack.c.b16 %v2477, %v2461
        %v3006 = vpack.c.b16 %v2478, %v2462
        %v3007 = vpack.c.b16 %v2479, %v2463
        %v3008 = vpack.c.b16 %v2480, %v2464
        %v3009 = vpack.c.b16 %v2481, %v2465
        %v3010 = vpack.c.b16 %v2482, %v2466
        %v3011 = vpack.c.b16 %v2483, %v2467
        %v3012 = vpack.c.b16 %v2484, %v2468
        %v3013 = vpack.c.b16 %v2485, %v2469
        %v3014 = vpack.c.b16 %v2486, %v2470
        %v3015 = vpack.c.b16 %v2487, %v2471
        %v3016 = vpack.c.b16 %v2488, %v2472
        %v3017 = vpack.c.b16 %v2489, %v2473
        %v3018 = vpack.c.b16 %v2490, %v2474
        %v3019 = vpack.c.b16 %v2491, %v2475
        %v3020 = vpack.c.b16 %v2508, %v2492
        %v3021 = vpack.c.b16 %v2509, %v2493
        %v3022 = vpack.c.b16 %v2510, %v2494
        %v3023 = vpack.c.b16 %v2511, %v2495
        %v3024 = vpack.c.b16 %v2512, %v2496
        %v3025 = vpack.c.b16 %v2513, %v2497
        %v3026 = vpack.c.b16 %v2514, %v2498
        %v3027 = vpack.c.b16 %v2515, %v2499
        %v3028 = vpack.c.b16 %v2516, %v2500
        %v3029 = vpack.c.b16 %v2517, %v2501
        %v3030 = vpack.c.b16 %v2518, %v2502
        %v3031 = vpack.c.b16 %v2519, %v2503
        %v3032 = vpack.c.b16 %v2520, %v2504
        %v3033 = vpack.c.b16 %v2521, %v2505
        %v3034 = vpack.c.b16 %v2522, %v2506
        %v3035 = vpack.c.b16 %v2523, %v2507
        %3548 = vmatprep.subr.bf16.mxu0 %v2525
        %3549 = vmatpush1.bf16.msra.mxu0 %v2524
        %3550 = vmatprep.subr.bf16.mxu0 %v2541
        %3551 = vmatpush1.bf16.msra.mxu0 %v2540
        %3552 = vmatprep.subr.bf16.mxu0 %v2557
        %3553 = vmatpush1.bf16.msra.mxu0 %v2556
        %3554 = vmatprep.subr.bf16.mxu0 %v2573
        %3555 = vmatpush1.bf16.msra.mxu0 %v2572
        %3556 = vmatprep.subr.bf16.mxu0 %v2589
        %3557 = vmatpush1.bf16.msra.mxu0 %v2588
        %3558 = vmatprep.subr.bf16.mxu0 %v2605
        %3559 = vmatpush1.bf16.msra.mxu0 %v2604
        %3560 = vmatprep.subr.bf16.mxu0 %v2621
        %3561 = vmatpush1.bf16.msra.mxu0 %v2620
        %3562 = vmatprep.subr.bf16.mxu0 %v2637
        %3563 = vmatpush1.bf16.msra.mxu0 %v2636
        %3564 = vmatprep.subr.bf16.mxu0 %v2653
        %3565 = vmatpush1.bf16.msra.mxu0 %v2652
        %3566 = vmatprep.subr.bf16.mxu0 %v2669
        %3567 = vmatpush1.bf16.msra.mxu0 %v2668
        %3568 = vmatprep.subr.bf16.mxu0 %v2685
        %3569 = vmatpush1.bf16.msra.mxu0 %v2684
        %3570 = vmatprep.subr.bf16.mxu0 %v2701
        %3571 = vmatpush1.bf16.msra.mxu0 %v2700
        %3572 = vmatprep.subr.bf16.mxu0 %v2717
        %3573 = vmatpush1.bf16.msra.mxu0 %v2716
        %3574 = vmatprep.subr.bf16.mxu0 %v2733
        %3575 = vmatpush1.bf16.msra.mxu0 %v2732
        %3576 = vmatprep.subr.bf16.mxu0 %v2749
        %3577 = vmatpush1.bf16.msra.mxu0 %v2748
        %3578 = vmatprep.subr.bf16.mxu0 %v2765
        %3579 = vmatpush1.bf16.msra.mxu0 %v2764
        %3580 = vmatprep.mubr.bf16.mxu0 %v445
        %3581 = vmatmul.mubr.bf16.gmra.mrb[0].mxu0 %v444
        %v3582 = vpop.f32.mrb[0].mxu0
        %v3583 = vadd.f32 0.0, %v3582
        %v3584 = vpop.f32.mrb[0].mxu0
        %v3585 = vadd.f32 0.0, %v3584
        %v3586 = vpop.f32.mrb[0].mxu0
        %v3587 = vadd.f32 0.0, %v3586
        %v3588 = vpop.f32.mrb[0].mxu0
        %v3589 = vadd.f32 0.0, %v3588
        %3590 = vmatprep.mubr.bf16.mxu0 %v449
        %3591 = vmatmul.mubr.bf16.gmra.mrb[0].mxu0 %v448
        %v3592 = vpop.f32.mrb[0].mxu0
        %v3593 = vadd.f32 0.0, %v3592
        %v3594 = vpop.f32.mrb[0].mxu0
        %v3595 = vadd.f32 0.0, %v3594
        %v3596 = vpop.f32.mrb[0].mxu0
        %v3597 = vadd.f32 0.0, %v3596
        %v3598 = vpop.f32.mrb[0].mxu0
        %v3599 = vadd.f32 0.0, %v3598
        %3600 = vmatprep.mubr.bf16.mxu0 %v453
        %3601 = vmatmul.mubr.bf16.gmra.mrb[0].mxu0 %v452
        %v3602 = vpop.f32.mrb[0].mxu0
        %v3603 = vadd.f32 0.0, %v3602
        %v3604 = vpop.f32.mrb[0].mxu0
        %v3605 = vadd.f32 0.0, %v3604
        %v3606 = vpop.f32.mrb[0].mxu0
        %v3607 = vadd.f32 0.0, %v3606
        %v3608 = vpop.f32.mrb[0].mxu0
        %v3609 = vadd.f32 0.0, %v3608
        %3610 = vmatprep.mubr.bf16.mxu0 %v457
        %3611 = vmatmul.mubr.bf16.gmra.mrb[0].mxu0 %v456
        %v3612 = vpop.f32.mrb[0].mxu0
        %v3613 = vadd.f32 0.0, %v3612
        %v3614 = vpop.f32.mrb[0].mxu0
        %v3615 = vadd.f32 0.0, %v3614
        %v3616 = vpop.f32.mrb[0].mxu0
        %v3617 = vadd.f32 0.0, %v3616
        %v3618 = vpop.f32.mrb[0].mxu0
        %v3619 = vadd.f32 0.0, %v3618
        %3620 = vmatprep.mubr.bf16.mxu0 %v461
        %3621 = vmatmul.mubr.bf16.gmra.mrb[0].mxu0 %v460
        %v3622 = vpop.f32.mrb[0].mxu0
        %v3623 = vadd.f32 0.0, %v3622
        %v3624 = vpop.f32.mrb[0].mxu0
        %v3625 = vadd.f32 0.0, %v3624
        %v3626 = vpop.f32.mrb[0].mxu0
        %v3627 = vadd.f32 0.0, %v3626
        %v3628 = vpop.f32.mrb[0].mxu0
        %v3629 = vadd.f32 0.0, %v3628
        %3630 = vmatprep.mubr.bf16.mxu0 %v465
        %3631 = vmatmul.mubr.bf16.gmra.mrb[0].mxu0 %v464
        %v3632 = vpop.f32.mrb[0].mxu0
        %v3633 = vadd.f32 0.0, %v3632
        %v3634 = vpop.f32.mrb[0].mxu0
        %v3635 = vadd.f32 0.0, %v3634
        %v3636 = vpop.f32.mrb[0].mxu0
        %v3637 = vadd.f32 0.0, %v3636
        %v3638 = vpop.f32.mrb[0].mxu0
        %v3639 = vadd.f32 0.0, %v3638
        %3640 = vmatprep.mubr.bf16.mxu0 %v469
        %3641 = vmatmul.mubr.bf16.gmra.mrb[0].mxu0 %v468
        %v3642 = vpop.f32.mrb[0].mxu0
        %v3643 = vadd.f32 0.0, %v3642
        %v3644 = vpop.f32.mrb[0].mxu0
        %v3645 = vadd.f32 0.0, %v3644
        %v3646 = vpop.f32.mrb[0].mxu0
        %v3647 = vadd.f32 0.0, %v3646
        %v3648 = vpop.f32.mrb[0].mxu0
        %v3649 = vadd.f32 0.0, %v3648
        %3650 = vmatprep.mubr.bf16.mxu0 %v473
        %3651 = vmatmul.mubr.bf16.gmra.mrb[0].mxu0 %v472
        %v3652 = vpop.f32.mrb[0].mxu0
        %v3653 = vadd.f32 0.0, %v3652
        %v3654 = vpop.f32.mrb[0].mxu0
        %v3655 = vadd.f32 0.0, %v3654
        %v3656 = vpop.f32.mrb[0].mxu0
        %v3657 = vadd.f32 0.0, %v3656
        %v3658 = vpop.f32.mrb[0].mxu0
        %v3659 = vadd.f32 0.0, %v3658
        %3660 = vdwg.mxu0
        %3661 = vmatprep.subr.bf16.mxu0 %v2781
        %3662 = vmatpush1.bf16.msra.mxu0 %v2780
        %3663 = vmatprep.subr.bf16.mxu0 %v2797
        %3664 = vmatpush1.bf16.msra.mxu0 %v2796
        %3665 = vmatprep.subr.bf16.mxu0 %v2813
        %3666 = vmatpush1.bf16.msra.mxu0 %v2812
        %3667 = vmatprep.subr.bf16.mxu0 %v2829
        %3668 = vmatpush1.bf16.msra.mxu0 %v2828
        %3669 = vmatprep.subr.bf16.mxu0 %v2845
        %3670 = vmatpush1.bf16.msra.mxu0 %v2844
        %3671 = vmatprep.subr.bf16.mxu0 %v2861
        %3672 = vmatpush1.bf16.msra.mxu0 %v2860
        %3673 = vmatprep.subr.bf16.mxu0 %v2877
        %3674 = vmatpush1.bf16.msra.mxu0 %v2876
        %3675 = vmatprep.subr.bf16.mxu0 %v2893
        %3676 = vmatpush1.bf16.msra.mxu0 %v2892
        %3677 = vmatprep.subr.bf16.mxu0 %v2909
        %3678 = vmatpush1.bf16.msra.mxu0 %v2908
        %3679 = vmatprep.subr.bf16.mxu0 %v2925
        %3680 = vmatpush1.bf16.msra.mxu0 %v2924
        %3681 = vmatprep.subr.bf16.mxu0 %v2941
        %3682 = vmatpush1.bf16.msra.mxu0 %v2940
        %3683 = vmatprep.subr.bf16.mxu0 %v2957
        %3684 = vmatpush1.bf16.msra.mxu0 %v2956
        %3685 = vmatprep.subr.bf16.mxu0 %v2973
        %3686 = vmatpush1.bf16.msra.mxu0 %v2972
        %3687 = vmatprep.subr.bf16.mxu0 %v2989
        %3688 = vmatpush1.bf16.msra.mxu0 %v2988
        %3689 = vmatprep.subr.bf16.mxu0 %v3005
        %3690 = vmatpush1.bf16.msra.mxu0 %v3004
        %3691 = vmatprep.subr.bf16.mxu0 %v3021
        %3692 = vmatpush1.bf16.msra.mxu0 %v3020
        %3693 = vmatprep.mubr.bf16.mxu0 %v447
        %3694 = vmatmul.mubr.bf16.gmra.mrb[0].mxu0 %v446
        %v3695 = vpop.f32.mrb[0].mxu0
        %v3696 = vadd.f32 %v3583, %v3695
        %v3697 = vpop.f32.mrb[0].mxu0
        %v3698 = vadd.f32 %v3585, %v3697
        %v3699 = vpop.f32.mrb[0].mxu0
        %v3700 = vadd.f32 %v3587, %v3699
        %v3701 = vpop.f32.mrb[0].mxu0
        %v3702 = vadd.f32 %v3589, %v3701
        %3703 = vmatprep.mubr.bf16.mxu0 %v451
        %3704 = vmatmul.mubr.bf16.gmra.mrb[0].mxu0 %v450
        %v3705 = vpop.f32.mrb[0].mxu0
        %v3706 = vadd.f32 %v3593, %v3705
        %v3707 = vpop.f32.mrb[0].mxu0
        %v3708 = vadd.f32 %v3595, %v3707
        %v3709 = vpop.f32.mrb[0].mxu0
        %v3710 = vadd.f32 %v3597, %v3709
        %v3711 = vpop.f32.mrb[0].mxu0
        %v3712 = vadd.f32 %v3599, %v3711
        %3713 = vmatprep.mubr.bf16.mxu0 %v455
        %3714 = vmatmul.mubr.bf16.gmra.mrb[0].mxu0 %v454
        %v3715 = vpop.f32.mrb[0].mxu0
        %v3716 = vadd.f32 %v3603, %v3715
        %v3717 = vpop.f32.mrb[0].mxu0
        %v3718 = vadd.f32 %v3605, %v3717
        %v3719 = vpop.f32.mrb[0].mxu0
        %v3720 = vadd.f32 %v3607, %v3719
        %v3721 = vpop.f32.mrb[0].mxu0
        %v3722 = vadd.f32 %v3609, %v3721
        %3723 = vmatprep.mubr.bf16.mxu0 %v459
        %3724 = vmatmul.mubr.bf16.gmra.mrb[0].mxu0 %v458
        %v3725 = vpop.f32.mrb[0].mxu0
        %v3726 = vadd.f32 %v3613, %v3725
        %v3727 = vpop.f32.mrb[0].mxu0
        %v3728 = vadd.f32 %v3615, %v3727
        %v3729 = vpop.f32.mrb[0].mxu0
        %v3730 = vadd.f32 %v3617, %v3729
        %v3731 = vpop.f32.mrb[0].mxu0
        %v3732 = vadd.f32 %v3619, %v3731
        %3733 = vmatprep.mubr.bf16.mxu0 %v463
        %3734 = vmatmul.mubr.bf16.gmra.mrb[0].mxu0 %v462
        %v3735 = vpop.f32.mrb[0].mxu0
        %v3736 = vadd.f32 %v3623, %v3735
        %v3737 = vpop.f32.mrb[0].mxu0
        %v3738 = vadd.f32 %v3625, %v3737
        %v3739 = vpop.f32.mrb[0].mxu0
        %v3740 = vadd.f32 %v3627, %v3739
        %v3741 = vpop.f32.mrb[0].mxu0
        %v3742 = vadd.f32 %v3629, %v3741
        %3743 = vmatprep.mubr.bf16.mxu0 %v467
        %3744 = vmatmul.mubr.bf16.gmra.mrb[0].mxu0 %v466
        %v3745 = vpop.f32.mrb[0].mxu0
        %v3746 = vadd.f32 %v3633, %v3745
        %v3747 = vpop.f32.mrb[0].mxu0
        %v3748 = vadd.f32 %v3635, %v3747
        %v3749 = vpop.f32.mrb[0].mxu0
        %v3750 = vadd.f32 %v3637, %v3749
        %v3751 = vpop.f32.mrb[0].mxu0
        %v3752 = vadd.f32 %v3639, %v3751
        %3753 = vmatprep.mubr.bf16.mxu0 %v471
        %3754 = vmatmul.mubr.bf16.gmra.mrb[0].mxu0 %v470
        %v3755 = vpop.f32.mrb[0].mxu0
        %v3756 = vadd.f32 %v3643, %v3755
        %v3757 = vpop.f32.mrb[0].mxu0
        %v3758 = vadd.f32 %v3645, %v3757
        %v3759 = vpop.f32.mrb[0].mxu0
        %v3760 = vadd.f32 %v3647, %v3759
        %v3761 = vpop.f32.mrb[0].mxu0
        %v3762 = vadd.f32 %v3649, %v3761
        %3763 = vmatprep.mubr.bf16.mxu0 %v475
        %3764 = vmatmul.mubr.bf16.gmra.mrb[0].mxu0 %v474
        %v3765 = vpop.f32.mrb[0].mxu0
        %v3766 = vadd.f32 %v3653, %v3765
        %v3767 = vpop.f32.mrb[0].mxu0
        %v3768 = vadd.f32 %v3655, %v3767
        %v3769 = vpop.f32.mrb[0].mxu0
        %v3770 = vadd.f32 %v3657, %v3769
        %v3771 = vpop.f32.mrb[0].mxu0
        %v3772 = vadd.f32 %v3659, %v3771
        %3773 = vdwg.mxu0
        %3774 = vmatprep.subr.bf16.mxu0 %v2527
        %3775 = vmatpush1.bf16.msra.mxu0 %v2526
        %3776 = vmatprep.subr.bf16.mxu0 %v2543
        %3777 = vmatpush1.bf16.msra.mxu0 %v2542
        %3778 = vmatprep.subr.bf16.mxu0 %v2559
        %3779 = vmatpush1.bf16.msra.mxu0 %v2558
        %3780 = vmatprep.subr.bf16.mxu0 %v2575
        %3781 = vmatpush1.bf16.msra.mxu0 %v2574
        %3782 = vmatprep.subr.bf16.mxu0 %v2591
        %3783 = vmatpush1.bf16.msra.mxu0 %v2590
        %3784 = vmatprep.subr.bf16.mxu0 %v2607
        %3785 = vmatpush1.bf16.msra.mxu0 %v2606
        %3786 = vmatprep.subr.bf16.mxu0 %v2623
        %3787 = vmatpush1.bf16.msra.mxu0 %v2622
        %3788 = vmatprep.subr.bf16.mxu0 %v2639
        %3789 = vmatpush1.bf16.msra.mxu0 %v2638
        %3790 = vmatprep.subr.bf16.mxu0 %v2655
        %3791 = vmatpush1.bf16.msra.mxu0 %v2654
        %3792 = vmatprep.subr.bf16.mxu0 %v2671
        %3793 = vmatpush1.bf16.msra.mxu0 %v2670
        %3794 = vmatprep.subr.bf16.mxu0 %v2687
        %3795 = vmatpush1.bf16.msra.mxu0 %v2686
        %3796 = vmatprep.subr.bf16.mxu0 %v2703
        %3797 = vmatpush1.bf16.msra.mxu0 %v2702
        %3798 = vmatprep.subr.bf16.mxu0 %v2719
        %3799 = vmatpush1.bf16.msra.mxu0 %v2718
        %3800 = vmatprep.subr.bf16.mxu0 %v2735
        %3801 = vmatpush1.bf16.msra.mxu0 %v2734
        %3802 = vmatprep.subr.bf16.mxu0 %v2751
        %3803 = vmatpush1.bf16.msra.mxu0 %v2750
        %3804 = vmatprep.subr.bf16.mxu0 %v2767
        %3805 = vmatpush1.bf16.msra.mxu0 %v2766
        %3806 = vmatprep.mubr.bf16.mxu0 %v445
        %3807 = vmatmul.mubr.bf16.gmra.mrb[0].mxu0 %v444
        %v3808 = vpop.f32.mrb[0].mxu0
        %v3809 = vadd.f32 0.0, %v3808
        %v3810 = vpop.f32.mrb[0].mxu0
        %v3811 = vadd.f32 0.0, %v3810
        %v3812 = vpop.f32.mrb[0].mxu0
        %v3813 = vadd.f32 0.0, %v3812
        %v3814 = vpop.f32.mrb[0].mxu0
        %v3815 = vadd.f32 0.0, %v3814
        %3816 = vmatprep.mubr.bf16.mxu0 %v449
        %3817 = vmatmul.mubr.bf16.gmra.mrb[0].mxu0 %v448
        %v3818 = vpop.f32.mrb[0].mxu0
        %v3819 = vadd.f32 0.0, %v3818
        %v3820 = vpop.f32.mrb[0].mxu0
        %v3821 = vadd.f32 0.0, %v3820
        %v3822 = vpop.f32.mrb[0].mxu0
        %v3823 = vadd.f32 0.0, %v3822
        %v3824 = vpop.f32.mrb[0].mxu0
        %v3825 = vadd.f32 0.0, %v3824
        %3826 = vmatprep.mubr.bf16.mxu0 %v453
        %3827 = vmatmul.mubr.bf16.gmra.mrb[0].mxu0 %v452
        %v3828 = vpop.f32.mrb[0].mxu0
        %v3829 = vadd.f32 0.0, %v3828
        %v3830 = vpop.f32.mrb[0].mxu0
        %v3831 = vadd.f32 0.0, %v3830
        %v3832 = vpop.f32.mrb[0].mxu0
        %v3833 = vadd.f32 0.0, %v3832
        %v3834 = vpop.f32.mrb[0].mxu0
        %v3835 = vadd.f32 0.0, %v3834
        %3836 = vmatprep.mubr.bf16.mxu0 %v457
        %3837 = vmatmul.mubr.bf16.gmra.mrb[0].mxu0 %v456
        %v3838 = vpop.f32.mrb[0].mxu0
        %v3839 = vadd.f32 0.0, %v3838
        %v3840 = vpop.f32.mrb[0].mxu0
        %v3841 = vadd.f32 0.0, %v3840
        %v3842 = vpop.f32.mrb[0].mxu0
        %v3843 = vadd.f32 0.0, %v3842
        %v3844 = vpop.f32.mrb[0].mxu0
        %v3845 = vadd.f32 0.0, %v3844
        %3846 = vmatprep.mubr.bf16.mxu0 %v461
        %3847 = vmatmul.mubr.bf16.gmra.mrb[0].mxu0 %v460
        %v3848 = vpop.f32.mrb[0].mxu0
        %v3849 = vadd.f32 0.0, %v3848
        %v3850 = vpop.f32.mrb[0].mxu0
        %v3851 = vadd.f32 0.0, %v3850
        %v3852 = vpop.f32.mrb[0].mxu0
        %v3853 = vadd.f32 0.0, %v3852
        %v3854 = vpop.f32.mrb[0].mxu0
        %v3855 = vadd.f32 0.0, %v3854
        %3856 = vmatprep.mubr.bf16.mxu0 %v465
        %3857 = vmatmul.mubr.bf16.gmra.mrb[0].mxu0 %v464
        %v3858 = vpop.f32.mrb[0].mxu0
        %v3859 = vadd.f32 0.0, %v3858
        %v3860 = vpop.f32.mrb[0].mxu0
        %v3861 = vadd.f32 0.0, %v3860
        %v3862 = vpop.f32.mrb[0].mxu0
        %v3863 = vadd.f32 0.0, %v3862
        %v3864 = vpop.f32.mrb[0].mxu0
        %v3865 = vadd.f32 0.0, %v3864
        %3866 = vmatprep.mubr.bf16.mxu0 %v469
        %3867 = vmatmul.mubr.bf16.gmra.mrb[0].mxu0 %v468
        %v3868 = vpop.f32.mrb[0].mxu0
        %v3869 = vadd.f32 0.0, %v3868
        %v3870 = vpop.f32.mrb[0].mxu0
        %v3871 = vadd.f32 0.0, %v3870
        %v3872 = vpop.f32.mrb[0].mxu0
        %v3873 = vadd.f32 0.0, %v3872
        %v3874 = vpop.f32.mrb[0].mxu0
        %v3875 = vadd.f32 0.0, %v3874
        %3876 = vmatprep.mubr.bf16.mxu0 %v473
        %3877 = vmatmul.mubr.bf16.gmra.mrb[0].mxu0 %v472
        %v3878 = vpop.f32.mrb[0].mxu0
        %v3879 = vadd.f32 0.0, %v3878
        %v3880 = vpop.f32.mrb[0].mxu0
        %v3881 = vadd.f32 0.0, %v3880
        %v3882 = vpop.f32.mrb[0].mxu0
        %v3883 = vadd.f32 0.0, %v3882
        %v3884 = vpop.f32.mrb[0].mxu0
        %v3885 = vadd.f32 0.0, %v3884
        %3886 = vdwg.mxu0
        %3887 = vmatprep.subr.bf16.mxu0 %v2783
        %3888 = vmatpush1.bf16.msra.mxu0 %v2782
        %3889 = vmatprep.subr.bf16.mxu0 %v2799
        %3890 = vmatpush1.bf16.msra.mxu0 %v2798
        %3891 = vmatprep.subr.bf16.mxu0 %v2815
        %3892 = vmatpush1.bf16.msra.mxu0 %v2814
        %3893 = vmatprep.subr.bf16.mxu0 %v2831
        %3894 = vmatpush1.bf16.msra.mxu0 %v2830
        %3895 = vmatprep.subr.bf16.mxu0 %v2847
        %3896 = vmatpush1.bf16.msra.mxu0 %v2846
        %3897 = vmatprep.subr.bf16.mxu0 %v2863
        %3898 = vmatpush1.bf16.msra.mxu0 %v2862
        %3899 = vmatprep.subr.bf16.mxu0 %v2879
        %3900 = vmatpush1.bf16.msra.mxu0 %v2878
        %3901 = vmatprep.subr.bf16.mxu0 %v2895
        %3902 = vmatpush1.bf16.msra.mxu0 %v2894
        %3903 = vmatprep.subr.bf16.mxu0 %v2911
        %3904 = vmatpush1.bf16.msra.mxu0 %v2910
        %3905 = vmatprep.subr.bf16.mxu0 %v2927
        %3906 = vmatpush1.bf16.msra.mxu0 %v2926
        %3907 = vmatprep.subr.bf16.mxu0 %v2943
        %3908 = vmatpush1.bf16.msra.mxu0 %v2942
        %3909 = vmatprep.subr.bf16.mxu0 %v2959
        %3910 = vmatpush1.bf16.msra.mxu0 %v2958
        %3911 = vmatprep.subr.bf16.mxu0 %v2975
        %3912 = vmatpush1.bf16.msra.mxu0 %v2974
        %3913 = vmatprep.subr.bf16.mxu0 %v2991
        %3914 = vmatpush1.bf16.msra.mxu0 %v2990
        %3915 = vmatprep.subr.bf16.mxu0 %v3007
        %3916 = vmatpush1.bf16.msra.mxu0 %v3006
        %3917 = vmatprep.subr.bf16.mxu0 %v3023
        %3918 = vmatpush1.bf16.msra.mxu0 %v3022
        %3919 = vmatprep.mubr.bf16.mxu0 %v447
        %3920 = vmatmul.mubr.bf16.gmra.mrb[0].mxu0 %v446
        %v3921 = vpop.f32.mrb[0].mxu0
        %v3922 = vadd.f32 %v3809, %v3921
        %v3923 = vpop.f32.mrb[0].mxu0
        %v3924 = vadd.f32 %v3811, %v3923
        %v3925 = vpop.f32.mrb[0].mxu0
        %v3926 = vadd.f32 %v3813, %v3925
        %v3927 = vpop.f32.mrb[0].mxu0
        %v3928 = vadd.f32 %v3815, %v3927
        %3929 = vmatprep.mubr.bf16.mxu0 %v451
        %3930 = vmatmul.mubr.bf16.gmra.mrb[0].mxu0 %v450
        %v3931 = vpop.f32.mrb[0].mxu0
        %v3932 = vadd.f32 %v3819, %v3931
        %v3933 = vpop.f32.mrb[0].mxu0
        %v3934 = vadd.f32 %v3821, %v3933
        %v3935 = vpop.f32.mrb[0].mxu0
        %v3936 = vadd.f32 %v3823, %v3935
        %v3937 = vpop.f32.mrb[0].mxu0
        %v3938 = vadd.f32 %v3825, %v3937
        %3939 = vmatprep.mubr.bf16.mxu0 %v455
        %3940 = vmatmul.mubr.bf16.gmra.mrb[0].mxu0 %v454
        %v3941 = vpop.f32.mrb[0].mxu0
        %v3942 = vadd.f32 %v3829, %v3941
        %v3943 = vpop.f32.mrb[0].mxu0
        %v3944 = vadd.f32 %v3831, %v3943
        %v3945 = vpop.f32.mrb[0].mxu0
        %v3946 = vadd.f32 %v3833, %v3945
        %v3947 = vpop.f32.mrb[0].mxu0
        %v3948 = vadd.f32 %v3835, %v3947
        %3949 = vmatprep.mubr.bf16.mxu0 %v459
        %3950 = vmatmul.mubr.bf16.gmra.mrb[0].mxu0 %v458
        %v3951 = vpop.f32.mrb[0].mxu0
        %v3952 = vadd.f32 %v3839, %v3951
        %v3953 = vpop.f32.mrb[0].mxu0
        %v3954 = vadd.f32 %v3841, %v3953
        %v3955 = vpop.f32.mrb[0].mxu0
        %v3956 = vadd.f32 %v3843, %v3955
        %v3957 = vpop.f32.mrb[0].mxu0
        %v3958 = vadd.f32 %v3845, %v3957
        %3959 = vmatprep.mubr.bf16.mxu0 %v463
        %3960 = vmatmul.mubr.bf16.gmra.mrb[0].mxu0 %v462
        %v3961 = vpop.f32.mrb[0].mxu0
        %v3962 = vadd.f32 %v3849, %v3961
        %v3963 = vpop.f32.mrb[0].mxu0
        %v3964 = vadd.f32 %v3851, %v3963
        %v3965 = vpop.f32.mrb[0].mxu0
        %v3966 = vadd.f32 %v3853, %v3965
        %v3967 = vpop.f32.mrb[0].mxu0
        %v3968 = vadd.f32 %v3855, %v3967
        %3969 = vmatprep.mubr.bf16.mxu0 %v467
        %3970 = vmatmul.mubr.bf16.gmra.mrb[0].mxu0 %v466
        %v3971 = vpop.f32.mrb[0].mxu0
        %v3972 = vadd.f32 %v3859, %v3971
        %v3973 = vpop.f32.mrb[0].mxu0
        %v3974 = vadd.f32 %v3861, %v3973
        %v3975 = vpop.f32.mrb[0].mxu0
        %v3976 = vadd.f32 %v3863, %v3975
        %v3977 = vpop.f32.mrb[0].mxu0
        %v3978 = vadd.f32 %v3865, %v3977
        %3979 = vmatprep.mubr.bf16.mxu0 %v471
        %3980 = vmatmul.mubr.bf16.gmra.mrb[0].mxu0 %v470
        %v3981 = vpop.f32.mrb[0].mxu0
        %v3982 = vadd.f32 %v3869, %v3981
        %v3983 = vpop.f32.mrb[0].mxu0
        %v3984 = vadd.f32 %v3871, %v3983
        %v3985 = vpop.f32.mrb[0].mxu0
        %v3986 = vadd.f32 %v3873, %v3985
        %v3987 = vpop.f32.mrb[0].mxu0
        %v3988 = vadd.f32 %v3875, %v3987
        %3989 = vmatprep.mubr.bf16.mxu0 %v475
        %3990 = vmatmul.mubr.bf16.gmra.mrb[0].mxu0 %v474
        %v3991 = vpop.f32.mrb[0].mxu0
        %v3992 = vadd.f32 %v3879, %v3991
        %v3993 = vpop.f32.mrb[0].mxu0
        %v3994 = vadd.f32 %v3881, %v3993
        %v3995 = vpop.f32.mrb[0].mxu0
        %v3996 = vadd.f32 %v3883, %v3995
        %v3997 = vpop.f32.mrb[0].mxu0
        %v3998 = vadd.f32 %v3885, %v3997
        %3999 = vdwg.mxu0
        %4000 = vmatprep.subr.bf16.mxu0 %v2529
        %4001 = vmatpush1.bf16.msra.mxu0 %v2528
        %4002 = vmatprep.subr.bf16.mxu0 %v2545
        %4003 = vmatpush1.bf16.msra.mxu0 %v2544
        %4004 = vmatprep.subr.bf16.mxu0 %v2561
        %4005 = vmatpush1.bf16.msra.mxu0 %v2560
        %4006 = vmatprep.subr.bf16.mxu0 %v2577
        %4007 = vmatpush1.bf16.msra.mxu0 %v2576
        %4008 = vmatprep.subr.bf16.mxu0 %v2593
        %4009 = vmatpush1.bf16.msra.mxu0 %v2592
        %4010 = vmatprep.subr.bf16.mxu0 %v2609
        %4011 = vmatpush1.bf16.msra.mxu0 %v2608
        %4012 = vmatprep.subr.bf16.mxu0 %v2625
        %4013 = vmatpush1.bf16.msra.mxu0 %v2624
        %4014 = vmatprep.subr.bf16.mxu0 %v2641
        %4015 = vmatpush1.bf16.msra.mxu0 %v2640
        %4016 = vmatprep.subr.bf16.mxu0 %v2657
        %4017 = vmatpush1.bf16.msra.mxu0 %v2656
        %4018 = vmatprep.subr.bf16.mxu0 %v2673
        %4019 = vmatpush1.bf16.msra.mxu0 %v2672
        %4020 = vmatprep.subr.bf16.mxu0 %v2689
        %4021 = vmatpush1.bf16.msra.mxu0 %v2688
        %4022 = vmatprep.subr.bf16.mxu0 %v2705
        %4023 = vmatpush1.bf16.msra.mxu0 %v2704
        %4024 = vmatprep.subr.bf16.mxu0 %v2721
        %4025 = vmatpush1.bf16.msra.mxu0 %v2720
        %4026 = vmatprep.subr.bf16.mxu0 %v2737
        %4027 = vmatpush1.bf16.msra.mxu0 %v2736
        %4028 = vmatprep.subr.bf16.mxu0 %v2753
        %4029 = vmatpush1.bf16.msra.mxu0 %v2752
        %4030 = vmatprep.subr.bf16.mxu0 %v2769
        %4031 = vmatpush1.bf16.msra.mxu0 %v2768
        %4032 = vmatprep.mubr.bf16.mxu0 %v445
        %4033 = vmatmul.mubr.bf16.gmra.mrb[0].mxu0 %v444
        %v4034 = vpop.f32.mrb[0].mxu0
        %v4035 = vadd.f32 0.0, %v4034
        %v4036 = vpop.f32.mrb[0].mxu0
        %v4037 = vadd.f32 0.0, %v4036
        %v4038 = vpop.f32.mrb[0].mxu0
        %v4039 = vadd.f32 0.0, %v4038
        %v4040 = vpop.f32.mrb[0].mxu0
        %v4041 = vadd.f32 0.0, %v4040
        %4042 = vmatprep.mubr.bf16.mxu0 %v449
        %4043 = vmatmul.mubr.bf16.gmra.mrb[0].mxu0 %v448
        %v4044 = vpop.f32.mrb[0].mxu0
        %v4045 = vadd.f32 0.0, %v4044
        %v4046 = vpop.f32.mrb[0].mxu0
        %v4047 = vadd.f32 0.0, %v4046
        %v4048 = vpop.f32.mrb[0].mxu0
        %v4049 = vadd.f32 0.0, %v4048
        %v4050 = vpop.f32.mrb[0].mxu0
        %v4051 = vadd.f32 0.0, %v4050
        %4052 = vmatprep.mubr.bf16.mxu0 %v453
        %4053 = vmatmul.mubr.bf16.gmra.mrb[0].mxu0 %v452
        %v4054 = vpop.f32.mrb[0].mxu0
        %v4055 = vadd.f32 0.0, %v4054
        %v4056 = vpop.f32.mrb[0].mxu0
        %v4057 = vadd.f32 0.0, %v4056
        %v4058 = vpop.f32.mrb[0].mxu0
        %v4059 = vadd.f32 0.0, %v4058
        %v4060 = vpop.f32.mrb[0].mxu0
        %v4061 = vadd.f32 0.0, %v4060
        %4062 = vmatprep.mubr.bf16.mxu0 %v457
        %4063 = vmatmul.mubr.bf16.gmra.mrb[0].mxu0 %v456
        %v4064 = vpop.f32.mrb[0].mxu0
        %v4065 = vadd.f32 0.0, %v4064
        %v4066 = vpop.f32.mrb[0].mxu0
        %v4067 = vadd.f32 0.0, %v4066
        %v4068 = vpop.f32.mrb[0].mxu0
        %v4069 = vadd.f32 0.0, %v4068
        %v4070 = vpop.f32.mrb[0].mxu0
        %v4071 = vadd.f32 0.0, %v4070
        %4072 = vmatprep.mubr.bf16.mxu0 %v461
        %4073 = vmatmul.mubr.bf16.gmra.mrb[0].mxu0 %v460
        %v4074 = vpop.f32.mrb[0].mxu0
        %v4075 = vadd.f32 0.0, %v4074
        %v4076 = vpop.f32.mrb[0].mxu0
        %v4077 = vadd.f32 0.0, %v4076
        %v4078 = vpop.f32.mrb[0].mxu0
        %v4079 = vadd.f32 0.0, %v4078
        %v4080 = vpop.f32.mrb[0].mxu0
        %v4081 = vadd.f32 0.0, %v4080
        %4082 = vmatprep.mubr.bf16.mxu0 %v465
        %4083 = vmatmul.mubr.bf16.gmra.mrb[0].mxu0 %v464
        %v4084 = vpop.f32.mrb[0].mxu0
        %v4085 = vadd.f32 0.0, %v4084
        %v4086 = vpop.f32.mrb[0].mxu0
        %v4087 = vadd.f32 0.0, %v4086
        %v4088 = vpop.f32.mrb[0].mxu0
        %v4089 = vadd.f32 0.0, %v4088
        %v4090 = vpop.f32.mrb[0].mxu0
        %v4091 = vadd.f32 0.0, %v4090
        %4092 = vmatprep.mubr.bf16.mxu0 %v469
        %4093 = vmatmul.mubr.bf16.gmra.mrb[0].mxu0 %v468
        %v4094 = vpop.f32.mrb[0].mxu0
        %v4095 = vadd.f32 0.0, %v4094
        %v4096 = vpop.f32.mrb[0].mxu0
        %v4097 = vadd.f32 0.0, %v4096
        %v4098 = vpop.f32.mrb[0].mxu0
        %v4099 = vadd.f32 0.0, %v4098
        %v4100 = vpop.f32.mrb[0].mxu0
        %v4101 = vadd.f32 0.0, %v4100
        %4102 = vmatprep.mubr.bf16.mxu0 %v473
        %4103 = vmatmul.mubr.bf16.gmra.mrb[0].mxu0 %v472
        %v4104 = vpop.f32.mrb[0].mxu0
        %v4105 = vadd.f32 0.0, %v4104
        %v4106 = vpop.f32.mrb[0].mxu0
        %v4107 = vadd.f32 0.0, %v4106
        %v4108 = vpop.f32.mrb[0].mxu0
        %v4109 = vadd.f32 0.0, %v4108
        %v4110 = vpop.f32.mrb[0].mxu0
        %v4111 = vadd.f32 0.0, %v4110
        %4112 = vdwg.mxu0
        %4113 = vmatprep.subr.bf16.mxu0 %v2785
        %4114 = vmatpush1.bf16.msra.mxu0 %v2784
        %4115 = vmatprep.subr.bf16.mxu0 %v2801
        %4116 = vmatpush1.bf16.msra.mxu0 %v2800
        %4117 = vmatprep.subr.bf16.mxu0 %v2817
        %4118 = vmatpush1.bf16.msra.mxu0 %v2816
        %4119 = vmatprep.subr.bf16.mxu0 %v2833
        %4120 = vmatpush1.bf16.msra.mxu0 %v2832
        %4121 = vmatprep.subr.bf16.mxu0 %v2849
        %4122 = vmatpush1.bf16.msra.mxu0 %v2848
        %4123 = vmatprep.subr.bf16.mxu0 %v2865
        %4124 = vmatpush1.bf16.msra.mxu0 %v2864
        %4125 = vmatprep.subr.bf16.mxu0 %v2881
        %4126 = vmatpush1.bf16.msra.mxu0 %v2880
        %4127 = vmatprep.subr.bf16.mxu0 %v2897
        %4128 = vmatpush1.bf16.msra.mxu0 %v2896
        %4129 = vmatprep.subr.bf16.mxu0 %v2913
        %4130 = vmatpush1.bf16.msra.mxu0 %v2912
        %4131 = vmatprep.subr.bf16.mxu0 %v2929
        %4132 = vmatpush1.bf16.msra.mxu0 %v2928
        %4133 = vmatprep.subr.bf16.mxu0 %v2945
        %4134 = vmatpush1.bf16.msra.mxu0 %v2944
        %4135 = vmatprep.subr.bf16.mxu0 %v2961
        %4136 = vmatpush1.bf16.msra.mxu0 %v2960
        %4137 = vmatprep.subr.bf16.mxu0 %v2977
        %4138 = vmatpush1.bf16.msra.mxu0 %v2976
        %4139 = vmatprep.subr.bf16.mxu0 %v2993
        %4140 = vmatpush1.bf16.msra.mxu0 %v2992
        %4141 = vmatprep.subr.bf16.mxu0 %v3009
        %4142 = vmatpush1.bf16.msra.mxu0 %v3008
        %4143 = vmatprep.subr.bf16.mxu0 %v3025
        %4144 = vmatpush1.bf16.msra.mxu0 %v3024
        %4145 = vmatprep.mubr.bf16.mxu0 %v447
        %4146 = vmatmul.mubr.bf16.gmra.mrb[0].mxu0 %v446
        %v4147 = vpop.f32.mrb[0].mxu0
        %v4148 = vadd.f32 %v4035, %v4147
        %v4149 = vpop.f32.mrb[0].mxu0
        %v4150 = vadd.f32 %v4037, %v4149
        %v4151 = vpop.f32.mrb[0].mxu0
        %v4152 = vadd.f32 %v4039, %v4151
        %v4153 = vpop.f32.mrb[0].mxu0
        %v4154 = vadd.f32 %v4041, %v4153
        %4155 = vmatprep.mubr.bf16.mxu0 %v451
        %4156 = vmatmul.mubr.bf16.gmra.mrb[0].mxu0 %v450
        %v4157 = vpop.f32.mrb[0].mxu0
        %v4158 = vadd.f32 %v4045, %v4157
        %v4159 = vpop.f32.mrb[0].mxu0
        %v4160 = vadd.f32 %v4047, %v4159
        %v4161 = vpop.f32.mrb[0].mxu0
        %v4162 = vadd.f32 %v4049, %v4161
        %v4163 = vpop.f32.mrb[0].mxu0
        %v4164 = vadd.f32 %v4051, %v4163
        %4165 = vmatprep.mubr.bf16.mxu0 %v455
        %4166 = vmatmul.mubr.bf16.gmra.mrb[0].mxu0 %v454
        %v4167 = vpop.f32.mrb[0].mxu0
        %v4168 = vadd.f32 %v4055, %v4167
        %v4169 = vpop.f32.mrb[0].mxu0
        %v4170 = vadd.f32 %v4057, %v4169
        %v4171 = vpop.f32.mrb[0].mxu0
        %v4172 = vadd.f32 %v4059, %v4171
        %v4173 = vpop.f32.mrb[0].mxu0
        %v4174 = vadd.f32 %v4061, %v4173
        %4175 = vmatprep.mubr.bf16.mxu0 %v459
        %4176 = vmatmul.mubr.bf16.gmra.mrb[0].mxu0 %v458
        %v4177 = vpop.f32.mrb[0].mxu0
        %v4178 = vadd.f32 %v4065, %v4177
        %v4179 = vpop.f32.mrb[0].mxu0
        %v4180 = vadd.f32 %v4067, %v4179
        %v4181 = vpop.f32.mrb[0].mxu0
        %v4182 = vadd.f32 %v4069, %v4181
        %v4183 = vpop.f32.mrb[0].mxu0
        %v4184 = vadd.f32 %v4071, %v4183
        %4185 = vmatprep.mubr.bf16.mxu0 %v463
        %4186 = vmatmul.mubr.bf16.gmra.mrb[0].mxu0 %v462
        %v4187 = vpop.f32.mrb[0].mxu0
        %v4188 = vadd.f32 %v4075, %v4187
        %v4189 = vpop.f32.mrb[0].mxu0
        %v4190 = vadd.f32 %v4077, %v4189
        %v4191 = vpop.f32.mrb[0].mxu0
        %v4192 = vadd.f32 %v4079, %v4191
        %v4193 = vpop.f32.mrb[0].mxu0
        %v4194 = vadd.f32 %v4081, %v4193
        %4195 = vmatprep.mubr.bf16.mxu0 %v467
        %4196 = vmatmul.mubr.bf16.gmra.mrb[0].mxu0 %v466
        %v4197 = vpop.f32.mrb[0].mxu0
        %v4198 = vadd.f32 %v4085, %v4197
        %v4199 = vpop.f32.mrb[0].mxu0
        %v4200 = vadd.f32 %v4087, %v4199
        %v4201 = vpop.f32.mrb[0].mxu0
        %v4202 = vadd.f32 %v4089, %v4201
        %v4203 = vpop.f32.mrb[0].mxu0
        %v4204 = vadd.f32 %v4091, %v4203
        %4205 = vmatprep.mubr.bf16.mxu0 %v471
        %4206 = vmatmul.mubr.bf16.gmra.mrb[0].mxu0 %v470
        %v4207 = vpop.f32.mrb[0].mxu0
        %v4208 = vadd.f32 %v4095, %v4207
        %v4209 = vpop.f32.mrb[0].mxu0
        %v4210 = vadd.f32 %v4097, %v4209
        %v4211 = vpop.f32.mrb[0].mxu0
        %v4212 = vadd.f32 %v4099, %v4211
        %v4213 = vpop.f32.mrb[0].mxu0
        %v4214 = vadd.f32 %v4101, %v4213
        %4215 = vmatprep.mubr.bf16.mxu0 %v475
        %4216 = vmatmul.mubr.bf16.gmra.mrb[0].mxu0 %v474
        %v4217 = vpop.f32.mrb[0].mxu0
        %v4218 = vadd.f32 %v4105, %v4217
        %v4219 = vpop.f32.mrb[0].mxu0
        %v4220 = vadd.f32 %v4107, %v4219
        %v4221 = vpop.f32.mrb[0].mxu0
        %v4222 = vadd.f32 %v4109, %v4221
        %v4223 = vpop.f32.mrb[0].mxu0
        %v4224 = vadd.f32 %v4111, %v4223
        %4225 = vdwg.mxu0
        %4226 = vmatprep.subr.bf16.mxu0 %v2531
        %4227 = vmatpush1.bf16.msra.mxu0 %v2530
        %4228 = vmatprep.subr.bf16.mxu0 %v2547
        %4229 = vmatpush1.bf16.msra.mxu0 %v2546
        %4230 = vmatprep.subr.bf16.mxu0 %v2563
        %4231 = vmatpush1.bf16.msra.mxu0 %v2562
        %4232 = vmatprep.subr.bf16.mxu0 %v2579
        %4233 = vmatpush1.bf16.msra.mxu0 %v2578
        %4234 = vmatprep.subr.bf16.mxu0 %v2595
        %4235 = vmatpush1.bf16.msra.mxu0 %v2594
        %4236 = vmatprep.subr.bf16.mxu0 %v2611
        %4237 = vmatpush1.bf16.msra.mxu0 %v2610
        %4238 = vmatprep.subr.bf16.mxu0 %v2627
        %4239 = vmatpush1.bf16.msra.mxu0 %v2626
        %4240 = vmatprep.subr.bf16.mxu0 %v2643
        %4241 = vmatpush1.bf16.msra.mxu0 %v2642
        %4242 = vmatprep.subr.bf16.mxu0 %v2659
        %4243 = vmatpush1.bf16.msra.mxu0 %v2658
        %4244 = vmatprep.subr.bf16.mxu0 %v2675
        %4245 = vmatpush1.bf16.msra.mxu0 %v2674
        %4246 = vmatprep.subr.bf16.mxu0 %v2691
        %4247 = vmatpush1.bf16.msra.mxu0 %v2690
        %4248 = vmatprep.subr.bf16.mxu0 %v2707
        %4249 = vmatpush1.bf16.msra.mxu0 %v2706
        %4250 = vmatprep.subr.bf16.mxu0 %v2723
        %4251 = vmatpush1.bf16.msra.mxu0 %v2722
        %4252 = vmatprep.subr.bf16.mxu0 %v2739
        %4253 = vmatpush1.bf16.msra.mxu0 %v2738
        %4254 = vmatprep.subr.bf16.mxu0 %v2755
        %4255 = vmatpush1.bf16.msra.mxu0 %v2754
        %4256 = vmatprep.subr.bf16.mxu0 %v2771
        %4257 = vmatpush1.bf16.msra.mxu0 %v2770
        %4258 = vmatprep.mubr.bf16.mxu0 %v445
        %4259 = vmatmul.mubr.bf16.gmra.mrb[0].mxu0 %v444
        %v4260 = vpop.f32.mrb[0].mxu0
        %v4261 = vadd.f32 0.0, %v4260
        %v4262 = vpop.f32.mrb[0].mxu0
        %v4263 = vadd.f32 0.0, %v4262
        %v4264 = vpop.f32.mrb[0].mxu0
        %v4265 = vadd.f32 0.0, %v4264
        %v4266 = vpop.f32.mrb[0].mxu0
        %v4267 = vadd.f32 0.0, %v4266
        %4268 = vmatprep.mubr.bf16.mxu0 %v449
        %4269 = vmatmul.mubr.bf16.gmra.mrb[0].mxu0 %v448
        %v4270 = vpop.f32.mrb[0].mxu0
        %v4271 = vadd.f32 0.0, %v4270
        %v4272 = vpop.f32.mrb[0].mxu0
        %v4273 = vadd.f32 0.0, %v4272
        %v4274 = vpop.f32.mrb[0].mxu0
        %v4275 = vadd.f32 0.0, %v4274
        %v4276 = vpop.f32.mrb[0].mxu0
        %v4277 = vadd.f32 0.0, %v4276
        %4278 = vmatprep.mubr.bf16.mxu0 %v453
        %4279 = vmatmul.mubr.bf16.gmra.mrb[0].mxu0 %v452
        %v4280 = vpop.f32.mrb[0].mxu0
        %v4281 = vadd.f32 0.0, %v4280
        %v4282 = vpop.f32.mrb[0].mxu0
        %v4283 = vadd.f32 0.0, %v4282
        %v4284 = vpop.f32.mrb[0].mxu0
        %v4285 = vadd.f32 0.0, %v4284
        %v4286 = vpop.f32.mrb[0].mxu0
        %v4287 = vadd.f32 0.0, %v4286
        %4288 = vmatprep.mubr.bf16.mxu0 %v457
        %4289 = vmatmul.mubr.bf16.gmra.mrb[0].mxu0 %v456
        %v4290 = vpop.f32.mrb[0].mxu0
        %v4291 = vadd.f32 0.0, %v4290
        %v4292 = vpop.f32.mrb[0].mxu0
        %v4293 = vadd.f32 0.0, %v4292
        %v4294 = vpop.f32.mrb[0].mxu0
        %v4295 = vadd.f32 0.0, %v4294
        %v4296 = vpop.f32.mrb[0].mxu0
        %v4297 = vadd.f32 0.0, %v4296
        %4298 = vmatprep.mubr.bf16.mxu0 %v461
        %4299 = vmatmul.mubr.bf16.gmra.mrb[0].mxu0 %v460
        %v4300 = vpop.f32.mrb[0].mxu0
        %v4301 = vadd.f32 0.0, %v4300
        %v4302 = vpop.f32.mrb[0].mxu0
        %v4303 = vadd.f32 0.0, %v4302
        %v4304 = vpop.f32.mrb[0].mxu0
        %v4305 = vadd.f32 0.0, %v4304
        %v4306 = vpop.f32.mrb[0].mxu0
        %v4307 = vadd.f32 0.0, %v4306
        %4308 = vmatprep.mubr.bf16.mxu0 %v465
        %4309 = vmatmul.mubr.bf16.gmra.mrb[0].mxu0 %v464
        %v4310 = vpop.f32.mrb[0].mxu0
        %v4311 = vadd.f32 0.0, %v4310
        %v4312 = vpop.f32.mrb[0].mxu0
        %v4313 = vadd.f32 0.0, %v4312
        %v4314 = vpop.f32.mrb[0].mxu0
        %v4315 = vadd.f32 0.0, %v4314
        %v4316 = vpop.f32.mrb[0].mxu0
        %v4317 = vadd.f32 0.0, %v4316
        %4318 = vmatprep.mubr.bf16.mxu0 %v469
        %4319 = vmatmul.mubr.bf16.gmra.mrb[0].mxu0 %v468
        %v4320 = vpop.f32.mrb[0].mxu0
        %v4321 = vadd.f32 0.0, %v4320
        %v4322 = vpop.f32.mrb[0].mxu0
        %v4323 = vadd.f32 0.0, %v4322
        %v4324 = vpop.f32.mrb[0].mxu0
        %v4325 = vadd.f32 0.0, %v4324
        %v4326 = vpop.f32.mrb[0].mxu0
        %v4327 = vadd.f32 0.0, %v4326
        %4328 = vmatprep.mubr.bf16.mxu0 %v473
        %4329 = vmatmul.mubr.bf16.gmra.mrb[0].mxu0 %v472
        %v4330 = vpop.f32.mrb[0].mxu0
        %v4331 = vadd.f32 0.0, %v4330
        %v4332 = vpop.f32.mrb[0].mxu0
        %v4333 = vadd.f32 0.0, %v4332
        %v4334 = vpop.f32.mrb[0].mxu0
        %v4335 = vadd.f32 0.0, %v4334
        %v4336 = vpop.f32.mrb[0].mxu0
        %v4337 = vadd.f32 0.0, %v4336
        %4338 = vdwg.mxu0
        %4339 = vmatprep.subr.bf16.mxu0 %v2787
        %4340 = vmatpush1.bf16.msra.mxu0 %v2786
        %4341 = vmatprep.subr.bf16.mxu0 %v2803
        %4342 = vmatpush1.bf16.msra.mxu0 %v2802
        %4343 = vmatprep.subr.bf16.mxu0 %v2819
        %4344 = vmatpush1.bf16.msra.mxu0 %v2818
        %4345 = vmatprep.subr.bf16.mxu0 %v2835
        %4346 = vmatpush1.bf16.msra.mxu0 %v2834
        %4347 = vmatprep.subr.bf16.mxu0 %v2851
        %4348 = vmatpush1.bf16.msra.mxu0 %v2850
        %4349 = vmatprep.subr.bf16.mxu0 %v2867
        %4350 = vmatpush1.bf16.msra.mxu0 %v2866
        %4351 = vmatprep.subr.bf16.mxu0 %v2883
        %4352 = vmatpush1.bf16.msra.mxu0 %v2882
        %4353 = vmatprep.subr.bf16.mxu0 %v2899
        %4354 = vmatpush1.bf16.msra.mxu0 %v2898
        %4355 = vmatprep.subr.bf16.mxu0 %v2915
        %4356 = vmatpush1.bf16.msra.mxu0 %v2914
        %4357 = vmatprep.subr.bf16.mxu0 %v2931
        %4358 = vmatpush1.bf16.msra.mxu0 %v2930
        %4359 = vmatprep.subr.bf16.mxu0 %v2947
        %4360 = vmatpush1.bf16.msra.mxu0 %v2946
        %4361 = vmatprep.subr.bf16.mxu0 %v2963
        %4362 = vmatpush1.bf16.msra.mxu0 %v2962
        %4363 = vmatprep.subr.bf16.mxu0 %v2979
        %4364 = vmatpush1.bf16.msra.mxu0 %v2978
        %4365 = vmatprep.subr.bf16.mxu0 %v2995
        %4366 = vmatpush1.bf16.msra.mxu0 %v2994
        %4367 = vmatprep.subr.bf16.mxu0 %v3011
        %4368 = vmatpush1.bf16.msra.mxu0 %v3010
        %4369 = vmatprep.subr.bf16.mxu0 %v3027
        %4370 = vmatpush1.bf16.msra.mxu0 %v3026
        %4371 = vmatprep.mubr.bf16.mxu0 %v447
        %4372 = vmatmul.mubr.bf16.gmra.mrb[0].mxu0 %v446
        %v4373 = vpop.f32.mrb[0].mxu0
        %v4374 = vadd.f32 %v4261, %v4373
        %v4375 = vpop.f32.mrb[0].mxu0
        %v4376 = vadd.f32 %v4263, %v4375
        %v4377 = vpop.f32.mrb[0].mxu0
        %v4378 = vadd.f32 %v4265, %v4377
        %v4379 = vpop.f32.mrb[0].mxu0
        %v4380 = vadd.f32 %v4267, %v4379
        %4381 = vmatprep.mubr.bf16.mxu0 %v451
        %4382 = vmatmul.mubr.bf16.gmra.mrb[0].mxu0 %v450
        %v4383 = vpop.f32.mrb[0].mxu0
        %v4384 = vadd.f32 %v4271, %v4383
        %v4385 = vpop.f32.mrb[0].mxu0
        %v4386 = vadd.f32 %v4273, %v4385
        %v4387 = vpop.f32.mrb[0].mxu0
        %v4388 = vadd.f32 %v4275, %v4387
        %v4389 = vpop.f32.mrb[0].mxu0
        %v4390 = vadd.f32 %v4277, %v4389
        %4391 = vmatprep.mubr.bf16.mxu0 %v455
        %4392 = vmatmul.mubr.bf16.gmra.mrb[0].mxu0 %v454
        %v4393 = vpop.f32.mrb[0].mxu0
        %v4394 = vadd.f32 %v4281, %v4393
        %v4395 = vpop.f32.mrb[0].mxu0
        %v4396 = vadd.f32 %v4283, %v4395
        %v4397 = vpop.f32.mrb[0].mxu0
        %v4398 = vadd.f32 %v4285, %v4397
        %v4399 = vpop.f32.mrb[0].mxu0
        %v4400 = vadd.f32 %v4287, %v4399
        %4401 = vmatprep.mubr.bf16.mxu0 %v459
        %4402 = vmatmul.mubr.bf16.gmra.mrb[0].mxu0 %v458
        %v4403 = vpop.f32.mrb[0].mxu0
        %v4404 = vadd.f32 %v4291, %v4403
        %v4405 = vpop.f32.mrb[0].mxu0
        %v4406 = vadd.f32 %v4293, %v4405
        %v4407 = vpop.f32.mrb[0].mxu0
        %v4408 = vadd.f32 %v4295, %v4407
        %v4409 = vpop.f32.mrb[0].mxu0
        %v4410 = vadd.f32 %v4297, %v4409
        %4411 = vmatprep.mubr.bf16.mxu0 %v463
        %4412 = vmatmul.mubr.bf16.gmra.mrb[0].mxu0 %v462
        %v4413 = vpop.f32.mrb[0].mxu0
        %v4414 = vadd.f32 %v4301, %v4413
        %v4415 = vpop.f32.mrb[0].mxu0
        %v4416 = vadd.f32 %v4303, %v4415
        %v4417 = vpop.f32.mrb[0].mxu0
        %v4418 = vadd.f32 %v4305, %v4417
        %v4419 = vpop.f32.mrb[0].mxu0
        %v4420 = vadd.f32 %v4307, %v4419
        %4421 = vmatprep.mubr.bf16.mxu0 %v467
        %4422 = vmatmul.mubr.bf16.gmra.mrb[0].mxu0 %v466
        %v4423 = vpop.f32.mrb[0].mxu0
        %v4424 = vadd.f32 %v4311, %v4423
        %v4425 = vpop.f32.mrb[0].mxu0
        %v4426 = vadd.f32 %v4313, %v4425
        %v4427 = vpop.f32.mrb[0].mxu0
        %v4428 = vadd.f32 %v4315, %v4427
        %v4429 = vpop.f32.mrb[0].mxu0
        %v4430 = vadd.f32 %v4317, %v4429
        %4431 = vmatprep.mubr.bf16.mxu0 %v471
        %4432 = vmatmul.mubr.bf16.gmra.mrb[0].mxu0 %v470
        %v4433 = vpop.f32.mrb[0].mxu0
        %v4434 = vadd.f32 %v4321, %v4433
        %v4435 = vpop.f32.mrb[0].mxu0
        %v4436 = vadd.f32 %v4323, %v4435
        %v4437 = vpop.f32.mrb[0].mxu0
        %v4438 = vadd.f32 %v4325, %v4437
        %v4439 = vpop.f32.mrb[0].mxu0
        %v4440 = vadd.f32 %v4327, %v4439
        %4441 = vmatprep.mubr.bf16.mxu0 %v475
        %4442 = vmatmul.mubr.bf16.gmra.mrb[0].mxu0 %v474
        %v4443 = vpop.f32.mrb[0].mxu0
        %v4444 = vadd.f32 %v4331, %v4443
        %v4445 = vpop.f32.mrb[0].mxu0
        %v4446 = vadd.f32 %v4333, %v4445
        %v4447 = vpop.f32.mrb[0].mxu0
        %v4448 = vadd.f32 %v4335, %v4447
        %v4449 = vpop.f32.mrb[0].mxu0
        %v4450 = vadd.f32 %v4337, %v4449
        %4451 = vdwg.mxu0
        %4452 = vmatprep.subr.bf16.mxu0 %v2533
        %4453 = vmatpush1.bf16.msra.mxu0 %v2532
        %4454 = vmatprep.subr.bf16.mxu0 %v2549
        %4455 = vmatpush1.bf16.msra.mxu0 %v2548
        %4456 = vmatprep.subr.bf16.mxu0 %v2565
        %4457 = vmatpush1.bf16.msra.mxu0 %v2564
        %4458 = vmatprep.subr.bf16.mxu0 %v2581
        %4459 = vmatpush1.bf16.msra.mxu0 %v2580
        %4460 = vmatprep.subr.bf16.mxu0 %v2597
        %4461 = vmatpush1.bf16.msra.mxu0 %v2596
        %4462 = vmatprep.subr.bf16.mxu0 %v2613
        %4463 = vmatpush1.bf16.msra.mxu0 %v2612
        %4464 = vmatprep.subr.bf16.mxu0 %v2629
        %4465 = vmatpush1.bf16.msra.mxu0 %v2628
        %4466 = vmatprep.subr.bf16.mxu0 %v2645
        %4467 = vmatpush1.bf16.msra.mxu0 %v2644
        %4468 = vmatprep.subr.bf16.mxu0 %v2661
        %4469 = vmatpush1.bf16.msra.mxu0 %v2660
        %4470 = vmatprep.subr.bf16.mxu0 %v2677
        %4471 = vmatpush1.bf16.msra.mxu0 %v2676
        %4472 = vmatprep.subr.bf16.mxu0 %v2693
        %4473 = vmatpush1.bf16.msra.mxu0 %v2692
        %4474 = vmatprep.subr.bf16.mxu0 %v2709
        %4475 = vmatpush1.bf16.msra.mxu0 %v2708
        %4476 = vmatprep.subr.bf16.mxu0 %v2725
        %4477 = vmatpush1.bf16.msra.mxu0 %v2724
        %4478 = vmatprep.subr.bf16.mxu0 %v2741
        %4479 = vmatpush1.bf16.msra.mxu0 %v2740
        %4480 = vmatprep.subr.bf16.mxu0 %v2757
        %4481 = vmatpush1.bf16.msra.mxu0 %v2756
        %4482 = vmatprep.subr.bf16.mxu0 %v2773
        %4483 = vmatpush1.bf16.msra.mxu0 %v2772
        %4484 = vmatprep.mubr.bf16.mxu0 %v445
        %4485 = vmatmul.mubr.bf16.gmra.mrb[0].mxu0 %v444
        %v4486 = vpop.f32.mrb[0].mxu0
        %v4487 = vadd.f32 0.0, %v4486
        %v4488 = vpop.f32.mrb[0].mxu0
        %v4489 = vadd.f32 0.0, %v4488
        %v4490 = vpop.f32.mrb[0].mxu0
        %v4491 = vadd.f32 0.0, %v4490
        %v4492 = vpop.f32.mrb[0].mxu0
        %v4493 = vadd.f32 0.0, %v4492
        %4494 = vmatprep.mubr.bf16.mxu0 %v449
        %4495 = vmatmul.mubr.bf16.gmra.mrb[0].mxu0 %v448
        %v4496 = vpop.f32.mrb[0].mxu0
        %v4497 = vadd.f32 0.0, %v4496
        %v4498 = vpop.f32.mrb[0].mxu0
        %v4499 = vadd.f32 0.0, %v4498
        %v4500 = vpop.f32.mrb[0].mxu0
        %v4501 = vadd.f32 0.0, %v4500
        %v4502 = vpop.f32.mrb[0].mxu0
        %v4503 = vadd.f32 0.0, %v4502
        %4504 = vmatprep.mubr.bf16.mxu0 %v453
        %4505 = vmatmul.mubr.bf16.gmra.mrb[0].mxu0 %v452
        %v4506 = vpop.f32.mrb[0].mxu0
        %v4507 = vadd.f32 0.0, %v4506
        %v4508 = vpop.f32.mrb[0].mxu0
        %v4509 = vadd.f32 0.0, %v4508
        %v4510 = vpop.f32.mrb[0].mxu0
        %v4511 = vadd.f32 0.0, %v4510
        %v4512 = vpop.f32.mrb[0].mxu0
        %v4513 = vadd.f32 0.0, %v4512
        %4514 = vmatprep.mubr.bf16.mxu0 %v457
        %4515 = vmatmul.mubr.bf16.gmra.mrb[0].mxu0 %v456
        %v4516 = vpop.f32.mrb[0].mxu0
        %v4517 = vadd.f32 0.0, %v4516
        %v4518 = vpop.f32.mrb[0].mxu0
        %v4519 = vadd.f32 0.0, %v4518
        %v4520 = vpop.f32.mrb[0].mxu0
        %v4521 = vadd.f32 0.0, %v4520
        %v4522 = vpop.f32.mrb[0].mxu0
        %v4523 = vadd.f32 0.0, %v4522
        %4524 = vmatprep.mubr.bf16.mxu0 %v461
        %4525 = vmatmul.mubr.bf16.gmra.mrb[0].mxu0 %v460
        %v4526 = vpop.f32.mrb[0].mxu0
        %v4527 = vadd.f32 0.0, %v4526
        %v4528 = vpop.f32.mrb[0].mxu0
        %v4529 = vadd.f32 0.0, %v4528
        %v4530 = vpop.f32.mrb[0].mxu0
        %v4531 = vadd.f32 0.0, %v4530
        %v4532 = vpop.f32.mrb[0].mxu0
        %v4533 = vadd.f32 0.0, %v4532
        %4534 = vmatprep.mubr.bf16.mxu0 %v465
        %4535 = vmatmul.mubr.bf16.gmra.mrb[0].mxu0 %v464
        %v4536 = vpop.f32.mrb[0].mxu0
        %v4537 = vadd.f32 0.0, %v4536
        %v4538 = vpop.f32.mrb[0].mxu0
        %v4539 = vadd.f32 0.0, %v4538
        %v4540 = vpop.f32.mrb[0].mxu0
        %v4541 = vadd.f32 0.0, %v4540
        %v4542 = vpop.f32.mrb[0].mxu0
        %v4543 = vadd.f32 0.0, %v4542
        %4544 = vmatprep.mubr.bf16.mxu0 %v469
        %4545 = vmatmul.mubr.bf16.gmra.mrb[0].mxu0 %v468
        %v4546 = vpop.f32.mrb[0].mxu0
        %v4547 = vadd.f32 0.0, %v4546
        %v4548 = vpop.f32.mrb[0].mxu0
        %v4549 = vadd.f32 0.0, %v4548
        %v4550 = vpop.f32.mrb[0].mxu0
        %v4551 = vadd.f32 0.0, %v4550
        %v4552 = vpop.f32.mrb[0].mxu0
        %v4553 = vadd.f32 0.0, %v4552
        %4554 = vmatprep.mubr.bf16.mxu0 %v473
        %4555 = vmatmul.mubr.bf16.gmra.mrb[0].mxu0 %v472
        %v4556 = vpop.f32.mrb[0].mxu0
        %v4557 = vadd.f32 0.0, %v4556
        %v4558 = vpop.f32.mrb[0].mxu0
        %v4559 = vadd.f32 0.0, %v4558
        %v4560 = vpop.f32.mrb[0].mxu0
        %v4561 = vadd.f32 0.0, %v4560
        %v4562 = vpop.f32.mrb[0].mxu0
        %v4563 = vadd.f32 0.0, %v4562
        %4564 = vdwg.mxu0
        %4565 = vmatprep.subr.bf16.mxu0 %v2789
        %4566 = vmatpush1.bf16.msra.mxu0 %v2788
        %4567 = vmatprep.subr.bf16.mxu0 %v2805
        %4568 = vmatpush1.bf16.msra.mxu0 %v2804
        %4569 = vmatprep.subr.bf16.mxu0 %v2821
        %4570 = vmatpush1.bf16.msra.mxu0 %v2820
        %4571 = vmatprep.subr.bf16.mxu0 %v2837
        %4572 = vmatpush1.bf16.msra.mxu0 %v2836
        %4573 = vmatprep.subr.bf16.mxu0 %v2853
        %4574 = vmatpush1.bf16.msra.mxu0 %v2852
        %4575 = vmatprep.subr.bf16.mxu0 %v2869
        %4576 = vmatpush1.bf16.msra.mxu0 %v2868
        %4577 = vmatprep.subr.bf16.mxu0 %v2885
        %4578 = vmatpush1.bf16.msra.mxu0 %v2884
        %4579 = vmatprep.subr.bf16.mxu0 %v2901
        %4580 = vmatpush1.bf16.msra.mxu0 %v2900
        %4581 = vmatprep.subr.bf16.mxu0 %v2917
        %4582 = vmatpush1.bf16.msra.mxu0 %v2916
        %4583 = vmatprep.subr.bf16.mxu0 %v2933
        %4584 = vmatpush1.bf16.msra.mxu0 %v2932
        %4585 = vmatprep.subr.bf16.mxu0 %v2949
        %4586 = vmatpush1.bf16.msra.mxu0 %v2948
        %4587 = vmatprep.subr.bf16.mxu0 %v2965
        %4588 = vmatpush1.bf16.msra.mxu0 %v2964
        %4589 = vmatprep.subr.bf16.mxu0 %v2981
        %4590 = vmatpush1.bf16.msra.mxu0 %v2980
        %4591 = vmatprep.subr.bf16.mxu0 %v2997
        %4592 = vmatpush1.bf16.msra.mxu0 %v2996
        %4593 = vmatprep.subr.bf16.mxu0 %v3013
        %4594 = vmatpush1.bf16.msra.mxu0 %v3012
        %4595 = vmatprep.subr.bf16.mxu0 %v3029
        %4596 = vmatpush1.bf16.msra.mxu0 %v3028
        %4597 = vmatprep.mubr.bf16.mxu0 %v447
        %4598 = vmatmul.mubr.bf16.gmra.mrb[0].mxu0 %v446
        %v4599 = vpop.f32.mrb[0].mxu0
        %v4600 = vadd.f32 %v4487, %v4599
        %v4601 = vpop.f32.mrb[0].mxu0
        %v4602 = vadd.f32 %v4489, %v4601
        %v4603 = vpop.f32.mrb[0].mxu0
        %v4604 = vadd.f32 %v4491, %v4603
        %v4605 = vpop.f32.mrb[0].mxu0
        %v4606 = vadd.f32 %v4493, %v4605
        %4607 = vmatprep.mubr.bf16.mxu0 %v451
        %4608 = vmatmul.mubr.bf16.gmra.mrb[0].mxu0 %v450
        %v4609 = vpop.f32.mrb[0].mxu0
        %v4610 = vadd.f32 %v4497, %v4609
        %v4611 = vpop.f32.mrb[0].mxu0
        %v4612 = vadd.f32 %v4499, %v4611
        %v4613 = vpop.f32.mrb[0].mxu0
        %v4614 = vadd.f32 %v4501, %v4613
        %v4615 = vpop.f32.mrb[0].mxu0
        %v4616 = vadd.f32 %v4503, %v4615
        %4617 = vmatprep.mubr.bf16.mxu0 %v455
        %4618 = vmatmul.mubr.bf16.gmra.mrb[0].mxu0 %v454
        %v4619 = vpop.f32.mrb[0].mxu0
        %v4620 = vadd.f32 %v4507, %v4619
        %v4621 = vpop.f32.mrb[0].mxu0
        %v4622 = vadd.f32 %v4509, %v4621
        %v4623 = vpop.f32.mrb[0].mxu0
        %v4624 = vadd.f32 %v4511, %v4623
        %v4625 = vpop.f32.mrb[0].mxu0
        %v4626 = vadd.f32 %v4513, %v4625
        %4627 = vmatprep.mubr.bf16.mxu0 %v459
        %4628 = vmatmul.mubr.bf16.gmra.mrb[0].mxu0 %v458
        %v4629 = vpop.f32.mrb[0].mxu0
        %v4630 = vadd.f32 %v4517, %v4629
        %v4631 = vpop.f32.mrb[0].mxu0
        %v4632 = vadd.f32 %v4519, %v4631
        %v4633 = vpop.f32.mrb[0].mxu0
        %v4634 = vadd.f32 %v4521, %v4633
        %v4635 = vpop.f32.mrb[0].mxu0
        %v4636 = vadd.f32 %v4523, %v4635
        %4637 = vmatprep.mubr.bf16.mxu0 %v463
        %4638 = vmatmul.mubr.bf16.gmra.mrb[0].mxu0 %v462
        %v4639 = vpop.f32.mrb[0].mxu0
        %v4640 = vadd.f32 %v4527, %v4639
        %v4641 = vpop.f32.mrb[0].mxu0
        %v4642 = vadd.f32 %v4529, %v4641
        %v4643 = vpop.f32.mrb[0].mxu0
        %v4644 = vadd.f32 %v4531, %v4643
        %v4645 = vpop.f32.mrb[0].mxu0
        %v4646 = vadd.f32 %v4533, %v4645
        %4647 = vmatprep.mubr.bf16.mxu0 %v467
        %4648 = vmatmul.mubr.bf16.gmra.mrb[0].mxu0 %v466
        %v4649 = vpop.f32.mrb[0].mxu0
        %v4650 = vadd.f32 %v4537, %v4649
        %v4651 = vpop.f32.mrb[0].mxu0
        %v4652 = vadd.f32 %v4539, %v4651
        %v4653 = vpop.f32.mrb[0].mxu0
        %v4654 = vadd.f32 %v4541, %v4653
        %v4655 = vpop.f32.mrb[0].mxu0
        %v4656 = vadd.f32 %v4543, %v4655
        %4657 = vmatprep.mubr.bf16.mxu0 %v471
        %4658 = vmatmul.mubr.bf16.gmra.mrb[0].mxu0 %v470
        %v4659 = vpop.f32.mrb[0].mxu0
        %v4660 = vadd.f32 %v4547, %v4659
        %v4661 = vpop.f32.mrb[0].mxu0
        %v4662 = vadd.f32 %v4549, %v4661
        %v4663 = vpop.f32.mrb[0].mxu0
        %v4664 = vadd.f32 %v4551, %v4663
        %v4665 = vpop.f32.mrb[0].mxu0
        %v4666 = vadd.f32 %v4553, %v4665
        %4667 = vmatprep.mubr.bf16.mxu0 %v475
        %4668 = vmatmul.mubr.bf16.gmra.mrb[0].mxu0 %v474
        %v4669 = vpop.f32.mrb[0].mxu0
        %v4670 = vadd.f32 %v4557, %v4669
        %v4671 = vpop.f32.mrb[0].mxu0
        %v4672 = vadd.f32 %v4559, %v4671
        %v4673 = vpop.f32.mrb[0].mxu0
        %v4674 = vadd.f32 %v4561, %v4673
        %v4675 = vpop.f32.mrb[0].mxu0
        %v4676 = vadd.f32 %v4563, %v4675
        %4677 = vdwg.mxu0
        %4678 = vmatprep.subr.bf16.mxu0 %v2535
        %4679 = vmatpush1.bf16.msra.mxu0 %v2534
        %4680 = vmatprep.subr.bf16.mxu0 %v2551
        %4681 = vmatpush1.bf16.msra.mxu0 %v2550
        %4682 = vmatprep.subr.bf16.mxu0 %v2567
        %4683 = vmatpush1.bf16.msra.mxu0 %v2566
        %4684 = vmatprep.subr.bf16.mxu0 %v2583
        %4685 = vmatpush1.bf16.msra.mxu0 %v2582
        %4686 = vmatprep.subr.bf16.mxu0 %v2599
        %4687 = vmatpush1.bf16.msra.mxu0 %v2598
        %4688 = vmatprep.subr.bf16.mxu0 %v2615
        %4689 = vmatpush1.bf16.msra.mxu0 %v2614
        %4690 = vmatprep.subr.bf16.mxu0 %v2631
        %4691 = vmatpush1.bf16.msra.mxu0 %v2630
        %4692 = vmatprep.subr.bf16.mxu0 %v2647
        %4693 = vmatpush1.bf16.msra.mxu0 %v2646
        %4694 = vmatprep.subr.bf16.mxu0 %v2663
        %4695 = vmatpush1.bf16.msra.mxu0 %v2662
        %4696 = vmatprep.subr.bf16.mxu0 %v2679
        %4697 = vmatpush1.bf16.msra.mxu0 %v2678
        %4698 = vmatprep.subr.bf16.mxu0 %v2695
        %4699 = vmatpush1.bf16.msra.mxu0 %v2694
        %4700 = vmatprep.subr.bf16.mxu0 %v2711
        %4701 = vmatpush1.bf16.msra.mxu0 %v2710
        %4702 = vmatprep.subr.bf16.mxu0 %v2727
        %4703 = vmatpush1.bf16.msra.mxu0 %v2726
        %4704 = vmatprep.subr.bf16.mxu0 %v2743
        %4705 = vmatpush1.bf16.msra.mxu0 %v2742
        %4706 = vmatprep.subr.bf16.mxu0 %v2759
        %4707 = vmatpush1.bf16.msra.mxu0 %v2758
        %4708 = vmatprep.subr.bf16.mxu0 %v2775
        %4709 = vmatpush1.bf16.msra.mxu0 %v2774
        %4710 = vmatprep.mubr.bf16.mxu0 %v445
        %4711 = vmatmul.mubr.bf16.gmra.mrb[0].mxu0 %v444
        %v4712 = vpop.f32.mrb[0].mxu0
        %v4713 = vadd.f32 0.0, %v4712
        %v4714 = vpop.f32.mrb[0].mxu0
        %v4715 = vadd.f32 0.0, %v4714
        %v4716 = vpop.f32.mrb[0].mxu0
        %v4717 = vadd.f32 0.0, %v4716
        %v4718 = vpop.f32.mrb[0].mxu0
        %v4719 = vadd.f32 0.0, %v4718
        %4720 = vmatprep.mubr.bf16.mxu0 %v449
        %4721 = vmatmul.mubr.bf16.gmra.mrb[0].mxu0 %v448
        %v4722 = vpop.f32.mrb[0].mxu0
        %v4723 = vadd.f32 0.0, %v4722
        %v4724 = vpop.f32.mrb[0].mxu0
        %v4725 = vadd.f32 0.0, %v4724
        %v4726 = vpop.f32.mrb[0].mxu0
        %v4727 = vadd.f32 0.0, %v4726
        %v4728 = vpop.f32.mrb[0].mxu0
        %v4729 = vadd.f32 0.0, %v4728
        %4730 = vmatprep.mubr.bf16.mxu0 %v453
        %4731 = vmatmul.mubr.bf16.gmra.mrb[0].mxu0 %v452
        %v4732 = vpop.f32.mrb[0].mxu0
        %v4733 = vadd.f32 0.0, %v4732
        %v4734 = vpop.f32.mrb[0].mxu0
        %v4735 = vadd.f32 0.0, %v4734
        %v4736 = vpop.f32.mrb[0].mxu0
        %v4737 = vadd.f32 0.0, %v4736
        %v4738 = vpop.f32.mrb[0].mxu0
        %v4739 = vadd.f32 0.0, %v4738
        %4740 = vmatprep.mubr.bf16.mxu0 %v457
        %4741 = vmatmul.mubr.bf16.gmra.mrb[0].mxu0 %v456
        %v4742 = vpop.f32.mrb[0].mxu0
        %v4743 = vadd.f32 0.0, %v4742
        %v4744 = vpop.f32.mrb[0].mxu0
        %v4745 = vadd.f32 0.0, %v4744
        %v4746 = vpop.f32.mrb[0].mxu0
        %v4747 = vadd.f32 0.0, %v4746
        %v4748 = vpop.f32.mrb[0].mxu0
        %v4749 = vadd.f32 0.0, %v4748
        %4750 = vmatprep.mubr.bf16.mxu0 %v461
        %4751 = vmatmul.mubr.bf16.gmra.mrb[0].mxu0 %v460
        %v4752 = vpop.f32.mrb[0].mxu0
        %v4753 = vadd.f32 0.0, %v4752
        %v4754 = vpop.f32.mrb[0].mxu0
        %v4755 = vadd.f32 0.0, %v4754
        %v4756 = vpop.f32.mrb[0].mxu0
        %v4757 = vadd.f32 0.0, %v4756
        %v4758 = vpop.f32.mrb[0].mxu0
        %v4759 = vadd.f32 0.0, %v4758
        %4760 = vmatprep.mubr.bf16.mxu0 %v465
        %4761 = vmatmul.mubr.bf16.gmra.mrb[0].mxu0 %v464
        %v4762 = vpop.f32.mrb[0].mxu0
        %v4763 = vadd.f32 0.0, %v4762
        %v4764 = vpop.f32.mrb[0].mxu0
        %v4765 = vadd.f32 0.0, %v4764
        %v4766 = vpop.f32.mrb[0].mxu0
        %v4767 = vadd.f32 0.0, %v4766
        %v4768 = vpop.f32.mrb[0].mxu0
        %v4769 = vadd.f32 0.0, %v4768
        %4770 = vmatprep.mubr.bf16.mxu0 %v469
        %4771 = vmatmul.mubr.bf16.gmra.mrb[0].mxu0 %v468
        %v4772 = vpop.f32.mrb[0].mxu0
        %v4773 = vadd.f32 0.0, %v4772
        %v4774 = vpop.f32.mrb[0].mxu0
        %v4775 = vadd.f32 0.0, %v4774
        %v4776 = vpop.f32.mrb[0].mxu0
        %v4777 = vadd.f32 0.0, %v4776
        %v4778 = vpop.f32.mrb[0].mxu0
        %v4779 = vadd.f32 0.0, %v4778
        %4780 = vmatprep.mubr.bf16.mxu0 %v473
        %4781 = vmatmul.mubr.bf16.gmra.mrb[0].mxu0 %v472
        %v4782 = vpop.f32.mrb[0].mxu0
        %v4783 = vadd.f32 0.0, %v4782
        %v4784 = vpop.f32.mrb[0].mxu0
        %v4785 = vadd.f32 0.0, %v4784
        %v4786 = vpop.f32.mrb[0].mxu0
        %v4787 = vadd.f32 0.0, %v4786
        %v4788 = vpop.f32.mrb[0].mxu0
        %v4789 = vadd.f32 0.0, %v4788
        %4790 = vdwg.mxu0
        %4791 = vmatprep.subr.bf16.mxu0 %v2791
        %4792 = vmatpush1.bf16.msra.mxu0 %v2790
        %4793 = vmatprep.subr.bf16.mxu0 %v2807
        %4794 = vmatpush1.bf16.msra.mxu0 %v2806
        %4795 = vmatprep.subr.bf16.mxu0 %v2823
        %4796 = vmatpush1.bf16.msra.mxu0 %v2822
        %4797 = vmatprep.subr.bf16.mxu0 %v2839
        %4798 = vmatpush1.bf16.msra.mxu0 %v2838
        %4799 = vmatprep.subr.bf16.mxu0 %v2855
        %4800 = vmatpush1.bf16.msra.mxu0 %v2854
        %4801 = vmatprep.subr.bf16.mxu0 %v2871
        %4802 = vmatpush1.bf16.msra.mxu0 %v2870
        %4803 = vmatprep.subr.bf16.mxu0 %v2887
        %4804 = vmatpush1.bf16.msra.mxu0 %v2886
        %4805 = vmatprep.subr.bf16.mxu0 %v2903
        %4806 = vmatpush1.bf16.msra.mxu0 %v2902
        %4807 = vmatprep.subr.bf16.mxu0 %v2919
        %4808 = vmatpush1.bf16.msra.mxu0 %v2918
        %4809 = vmatprep.subr.bf16.mxu0 %v2935
        %4810 = vmatpush1.bf16.msra.mxu0 %v2934
        %4811 = vmatprep.subr.bf16.mxu0 %v2951
        %4812 = vmatpush1.bf16.msra.mxu0 %v2950
        %4813 = vmatprep.subr.bf16.mxu0 %v2967
        %4814 = vmatpush1.bf16.msra.mxu0 %v2966
        %4815 = vmatprep.subr.bf16.mxu0 %v2983
        %4816 = vmatpush1.bf16.msra.mxu0 %v2982
        %4817 = vmatprep.subr.bf16.mxu0 %v2999
        %4818 = vmatpush1.bf16.msra.mxu0 %v2998
        %4819 = vmatprep.subr.bf16.mxu0 %v3015
        %4820 = vmatpush1.bf16.msra.mxu0 %v3014
        %4821 = vmatprep.subr.bf16.mxu0 %v3031
        %4822 = vmatpush1.bf16.msra.mxu0 %v3030
        %4823 = vmatprep.mubr.bf16.mxu0 %v447
        %4824 = vmatmul.mubr.bf16.gmra.mrb[0].mxu0 %v446
        %v4825 = vpop.f32.mrb[0].mxu0
        %v4826 = vadd.f32 %v4713, %v4825
        %v4827 = vpop.f32.mrb[0].mxu0
        %v4828 = vadd.f32 %v4715, %v4827
        %v4829 = vpop.f32.mrb[0].mxu0
        %v4830 = vadd.f32 %v4717, %v4829
        %v4831 = vpop.f32.mrb[0].mxu0
        %v4832 = vadd.f32 %v4719, %v4831
        %4833 = vmatprep.mubr.bf16.mxu0 %v451
        %4834 = vmatmul.mubr.bf16.gmra.mrb[0].mxu0 %v450
        %v4835 = vpop.f32.mrb[0].mxu0
        %v4836 = vadd.f32 %v4723, %v4835
        %v4837 = vpop.f32.mrb[0].mxu0
        %v4838 = vadd.f32 %v4725, %v4837
        %v4839 = vpop.f32.mrb[0].mxu0
        %v4840 = vadd.f32 %v4727, %v4839
        %v4841 = vpop.f32.mrb[0].mxu0
        %v4842 = vadd.f32 %v4729, %v4841
        %4843 = vmatprep.mubr.bf16.mxu0 %v455
        %4844 = vmatmul.mubr.bf16.gmra.mrb[0].mxu0 %v454
        %v4845 = vpop.f32.mrb[0].mxu0
        %v4846 = vadd.f32 %v4733, %v4845
        %v4847 = vpop.f32.mrb[0].mxu0
        %v4848 = vadd.f32 %v4735, %v4847
        %v4849 = vpop.f32.mrb[0].mxu0
        %v4850 = vadd.f32 %v4737, %v4849
        %v4851 = vpop.f32.mrb[0].mxu0
        %v4852 = vadd.f32 %v4739, %v4851
        %4853 = vmatprep.mubr.bf16.mxu0 %v459
        %4854 = vmatmul.mubr.bf16.gmra.mrb[0].mxu0 %v458
        %v4855 = vpop.f32.mrb[0].mxu0
        %v4856 = vadd.f32 %v4743, %v4855
        %v4857 = vpop.f32.mrb[0].mxu0
        %v4858 = vadd.f32 %v4745, %v4857
        %v4859 = vpop.f32.mrb[0].mxu0
        %v4860 = vadd.f32 %v4747, %v4859
        %v4861 = vpop.f32.mrb[0].mxu0
        %v4862 = vadd.f32 %v4749, %v4861
        %4863 = vmatprep.mubr.bf16.mxu0 %v463
        %4864 = vmatmul.mubr.bf16.gmra.mrb[0].mxu0 %v462
        %v4865 = vpop.f32.mrb[0].mxu0
        %v4866 = vadd.f32 %v4753, %v4865
        %v4867 = vpop.f32.mrb[0].mxu0
        %v4868 = vadd.f32 %v4755, %v4867
        %v4869 = vpop.f32.mrb[0].mxu0
        %v4870 = vadd.f32 %v4757, %v4869
        %v4871 = vpop.f32.mrb[0].mxu0
        %v4872 = vadd.f32 %v4759, %v4871
        %4873 = vmatprep.mubr.bf16.mxu0 %v467
        %4874 = vmatmul.mubr.bf16.gmra.mrb[0].mxu0 %v466
        %v4875 = vpop.f32.mrb[0].mxu0
        %v4876 = vadd.f32 %v4763, %v4875
        %v4877 = vpop.f32.mrb[0].mxu0
        %v4878 = vadd.f32 %v4765, %v4877
        %v4879 = vpop.f32.mrb[0].mxu0
        %v4880 = vadd.f32 %v4767, %v4879
        %v4881 = vpop.f32.mrb[0].mxu0
        %v4882 = vadd.f32 %v4769, %v4881
        %4883 = vmatprep.mubr.bf16.mxu0 %v471
        %4884 = vmatmul.mubr.bf16.gmra.mrb[0].mxu0 %v470
        %v4885 = vpop.f32.mrb[0].mxu0
        %v4886 = vadd.f32 %v4773, %v4885
        %v4887 = vpop.f32.mrb[0].mxu0
        %v4888 = vadd.f32 %v4775, %v4887
        %v4889 = vpop.f32.mrb[0].mxu0
        %v4890 = vadd.f32 %v4777, %v4889
        %v4891 = vpop.f32.mrb[0].mxu0
        %v4892 = vadd.f32 %v4779, %v4891
        %4893 = vmatprep.mubr.bf16.mxu0 %v475
        %4894 = vmatmul.mubr.bf16.gmra.mrb[0].mxu0 %v474
        %v4895 = vpop.f32.mrb[0].mxu0
        %v4896 = vadd.f32 %v4783, %v4895
        %v4897 = vpop.f32.mrb[0].mxu0
        %v4898 = vadd.f32 %v4785, %v4897
        %v4899 = vpop.f32.mrb[0].mxu0
        %v4900 = vadd.f32 %v4787, %v4899
        %v4901 = vpop.f32.mrb[0].mxu0
        %v4902 = vadd.f32 %v4789, %v4901
        %4903 = vdwg.mxu0
        %4904 = vmatprep.subr.bf16.mxu0 %v2537
        %4905 = vmatpush1.bf16.msra.mxu0 %v2536
        %4906 = vmatprep.subr.bf16.mxu0 %v2553
        %4907 = vmatpush1.bf16.msra.mxu0 %v2552
        %4908 = vmatprep.subr.bf16.mxu0 %v2569
        %4909 = vmatpush1.bf16.msra.mxu0 %v2568
        %4910 = vmatprep.subr.bf16.mxu0 %v2585
        %4911 = vmatpush1.bf16.msra.mxu0 %v2584
        %4912 = vmatprep.subr.bf16.mxu0 %v2601
        %4913 = vmatpush1.bf16.msra.mxu0 %v2600
        %4914 = vmatprep.subr.bf16.mxu0 %v2617
        %4915 = vmatpush1.bf16.msra.mxu0 %v2616
        %4916 = vmatprep.subr.bf16.mxu0 %v2633
        %4917 = vmatpush1.bf16.msra.mxu0 %v2632
        %4918 = vmatprep.subr.bf16.mxu0 %v2649
        %4919 = vmatpush1.bf16.msra.mxu0 %v2648
        %4920 = vmatprep.subr.bf16.mxu0 %v2665
        %4921 = vmatpush1.bf16.msra.mxu0 %v2664
        %4922 = vmatprep.subr.bf16.mxu0 %v2681
        %4923 = vmatpush1.bf16.msra.mxu0 %v2680
        %4924 = vmatprep.subr.bf16.mxu0 %v2697
        %4925 = vmatpush1.bf16.msra.mxu0 %v2696
        %4926 = vmatprep.subr.bf16.mxu0 %v2713
        %4927 = vmatpush1.bf16.msra.mxu0 %v2712
        %4928 = vmatprep.subr.bf16.mxu0 %v2729
        %4929 = vmatpush1.bf16.msra.mxu0 %v2728
        %4930 = vmatprep.subr.bf16.mxu0 %v2745
        %4931 = vmatpush1.bf16.msra.mxu0 %v2744
        %4932 = vmatprep.subr.bf16.mxu0 %v2761
        %4933 = vmatpush1.bf16.msra.mxu0 %v2760
        %4934 = vmatprep.subr.bf16.mxu0 %v2777
        %4935 = vmatpush1.bf16.msra.mxu0 %v2776
        %4936 = vmatprep.mubr.bf16.mxu0 %v445
        %4937 = vmatmul.mubr.bf16.gmra.mrb[0].mxu0 %v444
        %v4938 = vpop.f32.mrb[0].mxu0
        %v4939 = vadd.f32 0.0, %v4938
        %v4940 = vpop.f32.mrb[0].mxu0
        %v4941 = vadd.f32 0.0, %v4940
        %v4942 = vpop.f32.mrb[0].mxu0
        %v4943 = vadd.f32 0.0, %v4942
        %v4944 = vpop.f32.mrb[0].mxu0
        %v4945 = vadd.f32 0.0, %v4944
        %4946 = vmatprep.mubr.bf16.mxu0 %v449
        %4947 = vmatmul.mubr.bf16.gmra.mrb[0].mxu0 %v448
        %v4948 = vpop.f32.mrb[0].mxu0
        %v4949 = vadd.f32 0.0, %v4948
        %v4950 = vpop.f32.mrb[0].mxu0
        %v4951 = vadd.f32 0.0, %v4950
        %v4952 = vpop.f32.mrb[0].mxu0
        %v4953 = vadd.f32 0.0, %v4952
        %v4954 = vpop.f32.mrb[0].mxu0
        %v4955 = vadd.f32 0.0, %v4954
        %4956 = vmatprep.mubr.bf16.mxu0 %v453
        %4957 = vmatmul.mubr.bf16.gmra.mrb[0].mxu0 %v452
        %v4958 = vpop.f32.mrb[0].mxu0
        %v4959 = vadd.f32 0.0, %v4958
        %v4960 = vpop.f32.mrb[0].mxu0
        %v4961 = vadd.f32 0.0, %v4960
        %v4962 = vpop.f32.mrb[0].mxu0
        %v4963 = vadd.f32 0.0, %v4962
        %v4964 = vpop.f32.mrb[0].mxu0
        %v4965 = vadd.f32 0.0, %v4964
        %4966 = vmatprep.mubr.bf16.mxu0 %v457
        %4967 = vmatmul.mubr.bf16.gmra.mrb[0].mxu0 %v456
        %v4968 = vpop.f32.mrb[0].mxu0
        %v4969 = vadd.f32 0.0, %v4968
        %v4970 = vpop.f32.mrb[0].mxu0
        %v4971 = vadd.f32 0.0, %v4970
        %v4972 = vpop.f32.mrb[0].mxu0
        %v4973 = vadd.f32 0.0, %v4972
        %v4974 = vpop.f32.mrb[0].mxu0
        %v4975 = vadd.f32 0.0, %v4974
        %4976 = vmatprep.mubr.bf16.mxu0 %v461
        %4977 = vmatmul.mubr.bf16.gmra.mrb[0].mxu0 %v460
        %v4978 = vpop.f32.mrb[0].mxu0
        %v4979 = vadd.f32 0.0, %v4978
        %v4980 = vpop.f32.mrb[0].mxu0
        %v4981 = vadd.f32 0.0, %v4980
        %v4982 = vpop.f32.mrb[0].mxu0
        %v4983 = vadd.f32 0.0, %v4982
        %v4984 = vpop.f32.mrb[0].mxu0
        %v4985 = vadd.f32 0.0, %v4984
        %4986 = vmatprep.mubr.bf16.mxu0 %v465
        %4987 = vmatmul.mubr.bf16.gmra.mrb[0].mxu0 %v464
        %v4988 = vpop.f32.mrb[0].mxu0
        %v4989 = vadd.f32 0.0, %v4988
        %v4990 = vpop.f32.mrb[0].mxu0
        %v4991 = vadd.f32 0.0, %v4990
        %v4992 = vpop.f32.mrb[0].mxu0
        %v4993 = vadd.f32 0.0, %v4992
        %v4994 = vpop.f32.mrb[0].mxu0
        %v4995 = vadd.f32 0.0, %v4994
        %4996 = vmatprep.mubr.bf16.mxu0 %v469
        %4997 = vmatmul.mubr.bf16.gmra.mrb[0].mxu0 %v468
        %v4998 = vpop.f32.mrb[0].mxu0
        %v4999 = vadd.f32 0.0, %v4998
        %v5000 = vpop.f32.mrb[0].mxu0
        %v5001 = vadd.f32 0.0, %v5000
        %v5002 = vpop.f32.mrb[0].mxu0
        %v5003 = vadd.f32 0.0, %v5002
        %v5004 = vpop.f32.mrb[0].mxu0
        %v5005 = vadd.f32 0.0, %v5004
        %5006 = vmatprep.mubr.bf16.mxu0 %v473
        %5007 = vmatmul.mubr.bf16.gmra.mrb[0].mxu0 %v472
        %v5008 = vpop.f32.mrb[0].mxu0
        %v5009 = vadd.f32 0.0, %v5008
        %v5010 = vpop.f32.mrb[0].mxu0
        %v5011 = vadd.f32 0.0, %v5010
        %v5012 = vpop.f32.mrb[0].mxu0
        %v5013 = vadd.f32 0.0, %v5012
        %v5014 = vpop.f32.mrb[0].mxu0
        %v5015 = vadd.f32 0.0, %v5014
        %5016 = vdwg.mxu0
        %5017 = vmatprep.subr.bf16.mxu0 %v2793
        %5018 = vmatpush1.bf16.msra.mxu0 %v2792
        %5019 = vmatprep.subr.bf16.mxu0 %v2809
        %5020 = vmatpush1.bf16.msra.mxu0 %v2808
        %5021 = vmatprep.subr.bf16.mxu0 %v2825
        %5022 = vmatpush1.bf16.msra.mxu0 %v2824
        %5023 = vmatprep.subr.bf16.mxu0 %v2841
        %5024 = vmatpush1.bf16.msra.mxu0 %v2840
        %5025 = vmatprep.subr.bf16.mxu0 %v2857
        %5026 = vmatpush1.bf16.msra.mxu0 %v2856
        %5027 = vmatprep.subr.bf16.mxu0 %v2873
        %5028 = vmatpush1.bf16.msra.mxu0 %v2872
        %5029 = vmatprep.subr.bf16.mxu0 %v2889
        %5030 = vmatpush1.bf16.msra.mxu0 %v2888
        %5031 = vmatprep.subr.bf16.mxu0 %v2905
        %5032 = vmatpush1.bf16.msra.mxu0 %v2904
        %5033 = vmatprep.subr.bf16.mxu0 %v2921
        %5034 = vmatpush1.bf16.msra.mxu0 %v2920
        %5035 = vmatprep.subr.bf16.mxu0 %v2937
        %5036 = vmatpush1.bf16.msra.mxu0 %v2936
        %5037 = vmatprep.subr.bf16.mxu0 %v2953
        %5038 = vmatpush1.bf16.msra.mxu0 %v2952
        %5039 = vmatprep.subr.bf16.mxu0 %v2969
        %5040 = vmatpush1.bf16.msra.mxu0 %v2968
        %5041 = vmatprep.subr.bf16.mxu0 %v2985
        %5042 = vmatpush1.bf16.msra.mxu0 %v2984
        %5043 = vmatprep.subr.bf16.mxu0 %v3001
        %5044 = vmatpush1.bf16.msra.mxu0 %v3000
        %5045 = vmatprep.subr.bf16.mxu0 %v3017
        %5046 = vmatpush1.bf16.msra.mxu0 %v3016
        %5047 = vmatprep.subr.bf16.mxu0 %v3033
        %5048 = vmatpush1.bf16.msra.mxu0 %v3032
        %5049 = vmatprep.mubr.bf16.mxu0 %v447
        %5050 = vmatmul.mubr.bf16.gmra.mrb[0].mxu0 %v446
        %v5051 = vpop.f32.mrb[0].mxu0
        %v5052 = vadd.f32 %v4939, %v5051
        %v5053 = vpop.f32.mrb[0].mxu0
        %v5054 = vadd.f32 %v4941, %v5053
        %v5055 = vpop.f32.mrb[0].mxu0
        %v5056 = vadd.f32 %v4943, %v5055
        %v5057 = vpop.f32.mrb[0].mxu0
        %v5058 = vadd.f32 %v4945, %v5057
        %5059 = vmatprep.mubr.bf16.mxu0 %v451
        %5060 = vmatmul.mubr.bf16.gmra.mrb[0].mxu0 %v450
        %v5061 = vpop.f32.mrb[0].mxu0
        %v5062 = vadd.f32 %v4949, %v5061
        %v5063 = vpop.f32.mrb[0].mxu0
        %v5064 = vadd.f32 %v4951, %v5063
        %v5065 = vpop.f32.mrb[0].mxu0
        %v5066 = vadd.f32 %v4953, %v5065
        %v5067 = vpop.f32.mrb[0].mxu0
        %v5068 = vadd.f32 %v4955, %v5067
        %5069 = vmatprep.mubr.bf16.mxu0 %v455
        %5070 = vmatmul.mubr.bf16.gmra.mrb[0].mxu0 %v454
        %v5071 = vpop.f32.mrb[0].mxu0
        %v5072 = vadd.f32 %v4959, %v5071
        %v5073 = vpop.f32.mrb[0].mxu0
        %v5074 = vadd.f32 %v4961, %v5073
        %v5075 = vpop.f32.mrb[0].mxu0
        %v5076 = vadd.f32 %v4963, %v5075
        %v5077 = vpop.f32.mrb[0].mxu0
        %v5078 = vadd.f32 %v4965, %v5077
        %5079 = vmatprep.mubr.bf16.mxu0 %v459
        %5080 = vmatmul.mubr.bf16.gmra.mrb[0].mxu0 %v458
        %v5081 = vpop.f32.mrb[0].mxu0
        %v5082 = vadd.f32 %v4969, %v5081
        %v5083 = vpop.f32.mrb[0].mxu0
        %v5084 = vadd.f32 %v4971, %v5083
        %v5085 = vpop.f32.mrb[0].mxu0
        %v5086 = vadd.f32 %v4973, %v5085
        %v5087 = vpop.f32.mrb[0].mxu0
        %v5088 = vadd.f32 %v4975, %v5087
        %5089 = vmatprep.mubr.bf16.mxu0 %v463
        %5090 = vmatmul.mubr.bf16.gmra.mrb[0].mxu0 %v462
        %v5091 = vpop.f32.mrb[0].mxu0
        %v5092 = vadd.f32 %v4979, %v5091
        %v5093 = vpop.f32.mrb[0].mxu0
        %v5094 = vadd.f32 %v4981, %v5093
        %v5095 = vpop.f32.mrb[0].mxu0
        %v5096 = vadd.f32 %v4983, %v5095
        %v5097 = vpop.f32.mrb[0].mxu0
        %v5098 = vadd.f32 %v4985, %v5097
        %5099 = vmatprep.mubr.bf16.mxu0 %v467
        %5100 = vmatmul.mubr.bf16.gmra.mrb[0].mxu0 %v466
        %v5101 = vpop.f32.mrb[0].mxu0
        %v5102 = vadd.f32 %v4989, %v5101
        %v5103 = vpop.f32.mrb[0].mxu0
        %v5104 = vadd.f32 %v4991, %v5103
        %v5105 = vpop.f32.mrb[0].mxu0
        %v5106 = vadd.f32 %v4993, %v5105
        %v5107 = vpop.f32.mrb[0].mxu0
        %v5108 = vadd.f32 %v4995, %v5107
        %5109 = vmatprep.mubr.bf16.mxu0 %v471
        %5110 = vmatmul.mubr.bf16.gmra.mrb[0].mxu0 %v470
        %v5111 = vpop.f32.mrb[0].mxu0
        %v5112 = vadd.f32 %v4999, %v5111
        %v5113 = vpop.f32.mrb[0].mxu0
        %v5114 = vadd.f32 %v5001, %v5113
        %v5115 = vpop.f32.mrb[0].mxu0
        %v5116 = vadd.f32 %v5003, %v5115
        %v5117 = vpop.f32.mrb[0].mxu0
        %v5118 = vadd.f32 %v5005, %v5117
        %5119 = vmatprep.mubr.bf16.mxu0 %v475
        %5120 = vmatmul.mubr.bf16.gmra.mrb[0].mxu0 %v474
        %v5121 = vpop.f32.mrb[0].mxu0
        %v5122 = vadd.f32 %v5009, %v5121
        %v5123 = vpop.f32.mrb[0].mxu0
        %v5124 = vadd.f32 %v5011, %v5123
        %v5125 = vpop.f32.mrb[0].mxu0
        %v5126 = vadd.f32 %v5013, %v5125
        %v5127 = vpop.f32.mrb[0].mxu0
        %v5128 = vadd.f32 %v5015, %v5127
        %5129 = vdwg.mxu0
        %5130 = vmatprep.subr.bf16.mxu0 %v2539
        %5131 = vmatpush1.bf16.msra.mxu0 %v2538
        %5132 = vmatprep.subr.bf16.mxu0 %v2555
        %5133 = vmatpush1.bf16.msra.mxu0 %v2554
        %5134 = vmatprep.subr.bf16.mxu0 %v2571
        %5135 = vmatpush1.bf16.msra.mxu0 %v2570
        %5136 = vmatprep.subr.bf16.mxu0 %v2587
        %5137 = vmatpush1.bf16.msra.mxu0 %v2586
        %5138 = vmatprep.subr.bf16.mxu0 %v2603
        %5139 = vmatpush1.bf16.msra.mxu0 %v2602
        %5140 = vmatprep.subr.bf16.mxu0 %v2619
        %5141 = vmatpush1.bf16.msra.mxu0 %v2618
        %5142 = vmatprep.subr.bf16.mxu0 %v2635
        %5143 = vmatpush1.bf16.msra.mxu0 %v2634
        %5144 = vmatprep.subr.bf16.mxu0 %v2651
        %5145 = vmatpush1.bf16.msra.mxu0 %v2650
        %5146 = vmatprep.subr.bf16.mxu0 %v2667
        %5147 = vmatpush1.bf16.msra.mxu0 %v2666
        %5148 = vmatprep.subr.bf16.mxu0 %v2683
        %5149 = vmatpush1.bf16.msra.mxu0 %v2682
        %5150 = vmatprep.subr.bf16.mxu0 %v2699
        %5151 = vmatpush1.bf16.msra.mxu0 %v2698
        %5152 = vmatprep.subr.bf16.mxu0 %v2715
        %5153 = vmatpush1.bf16.msra.mxu0 %v2714
        %5154 = vmatprep.subr.bf16.mxu0 %v2731
        %5155 = vmatpush1.bf16.msra.mxu0 %v2730
        %5156 = vmatprep.subr.bf16.mxu0 %v2747
        %5157 = vmatpush1.bf16.msra.mxu0 %v2746
        %5158 = vmatprep.subr.bf16.mxu0 %v2763
        %5159 = vmatpush1.bf16.msra.mxu0 %v2762
        %5160 = vmatprep.subr.bf16.mxu0 %v2779
        %5161 = vmatpush1.bf16.msra.mxu0 %v2778
        %5162 = vmatprep.mubr.bf16.mxu0 %v445
        %5163 = vmatmul.mubr.bf16.gmra.mrb[0].mxu0 %v444
        %v5164 = vpop.f32.mrb[0].mxu0
        %v5165 = vadd.f32 0.0, %v5164
        %v5166 = vpop.f32.mrb[0].mxu0
        %v5167 = vadd.f32 0.0, %v5166
        %v5168 = vpop.f32.mrb[0].mxu0
        %v5169 = vadd.f32 0.0, %v5168
        %v5170 = vpop.f32.mrb[0].mxu0
        %v5171 = vadd.f32 0.0, %v5170
        %5172 = vmatprep.mubr.bf16.mxu0 %v449
        %5173 = vmatmul.mubr.bf16.gmra.mrb[0].mxu0 %v448
        %v5174 = vpop.f32.mrb[0].mxu0
        %v5175 = vadd.f32 0.0, %v5174
        %v5176 = vpop.f32.mrb[0].mxu0
        %v5177 = vadd.f32 0.0, %v5176
        %v5178 = vpop.f32.mrb[0].mxu0
        %v5179 = vadd.f32 0.0, %v5178
        %v5180 = vpop.f32.mrb[0].mxu0
        %v5181 = vadd.f32 0.0, %v5180
        %5182 = vmatprep.mubr.bf16.mxu0 %v453
        %5183 = vmatmul.mubr.bf16.gmra.mrb[0].mxu0 %v452
        %v5184 = vpop.f32.mrb[0].mxu0
        %v5185 = vadd.f32 0.0, %v5184
        %v5186 = vpop.f32.mrb[0].mxu0
        %v5187 = vadd.f32 0.0, %v5186
        %v5188 = vpop.f32.mrb[0].mxu0
        %v5189 = vadd.f32 0.0, %v5188
        %v5190 = vpop.f32.mrb[0].mxu0
        %v5191 = vadd.f32 0.0, %v5190
        %5192 = vmatprep.mubr.bf16.mxu0 %v457
        %5193 = vmatmul.mubr.bf16.gmra.mrb[0].mxu0 %v456
        %v5194 = vpop.f32.mrb[0].mxu0
        %v5195 = vadd.f32 0.0, %v5194
        %v5196 = vpop.f32.mrb[0].mxu0
        %v5197 = vadd.f32 0.0, %v5196
        %v5198 = vpop.f32.mrb[0].mxu0
        %v5199 = vadd.f32 0.0, %v5198
        %v5200 = vpop.f32.mrb[0].mxu0
        %v5201 = vadd.f32 0.0, %v5200
        %5202 = vmatprep.mubr.bf16.mxu0 %v461
        %5203 = vmatmul.mubr.bf16.gmra.mrb[0].mxu0 %v460
        %v5204 = vpop.f32.mrb[0].mxu0
        %v5205 = vadd.f32 0.0, %v5204
        %v5206 = vpop.f32.mrb[0].mxu0
        %v5207 = vadd.f32 0.0, %v5206
        %v5208 = vpop.f32.mrb[0].mxu0
        %v5209 = vadd.f32 0.0, %v5208
        %v5210 = vpop.f32.mrb[0].mxu0
        %v5211 = vadd.f32 0.0, %v5210
        %5212 = vmatprep.mubr.bf16.mxu0 %v465
        %5213 = vmatmul.mubr.bf16.gmra.mrb[0].mxu0 %v464
        %v5214 = vpop.f32.mrb[0].mxu0
        %v5215 = vadd.f32 0.0, %v5214
        %v5216 = vpop.f32.mrb[0].mxu0
        %v5217 = vadd.f32 0.0, %v5216
        %v5218 = vpop.f32.mrb[0].mxu0
        %v5219 = vadd.f32 0.0, %v5218
        %v5220 = vpop.f32.mrb[0].mxu0
        %v5221 = vadd.f32 0.0, %v5220
        %5222 = vmatprep.mubr.bf16.mxu0 %v469
        %5223 = vmatmul.mubr.bf16.gmra.mrb[0].mxu0 %v468
        %v5224 = vpop.f32.mrb[0].mxu0
        %v5225 = vadd.f32 0.0, %v5224
        %v5226 = vpop.f32.mrb[0].mxu0
        %v5227 = vadd.f32 0.0, %v5226
        %v5228 = vpop.f32.mrb[0].mxu0
        %v5229 = vadd.f32 0.0, %v5228
        %v5230 = vpop.f32.mrb[0].mxu0
        %v5231 = vadd.f32 0.0, %v5230
        %5232 = vmatprep.mubr.bf16.mxu0 %v473
        %5233 = vmatmul.mubr.bf16.gmra.mrb[0].mxu0 %v472
        %v5234 = vpop.f32.mrb[0].mxu0
        %v5235 = vadd.f32 0.0, %v5234
        %v5236 = vpop.f32.mrb[0].mxu0
        %v5237 = vadd.f32 0.0, %v5236
        %v5238 = vpop.f32.mrb[0].mxu0
        %v5239 = vadd.f32 0.0, %v5238
        %v5240 = vpop.f32.mrb[0].mxu0
        %v5241 = vadd.f32 0.0, %v5240
        %5242 = vdwg.mxu0
        %5243 = vmatprep.subr.bf16.mxu0 %v2795
        %5244 = vmatpush1.bf16.msra.mxu0 %v2794
        %5245 = vmatprep.subr.bf16.mxu0 %v2811
        %5246 = vmatpush1.bf16.msra.mxu0 %v2810
        %5247 = vmatprep.subr.bf16.mxu0 %v2827
        %5248 = vmatpush1.bf16.msra.mxu0 %v2826
        %5249 = vmatprep.subr.bf16.mxu0 %v2843
        %5250 = vmatpush1.bf16.msra.mxu0 %v2842
        %5251 = vmatprep.subr.bf16.mxu0 %v2859
        %5252 = vmatpush1.bf16.msra.mxu0 %v2858
        %5253 = vmatprep.subr.bf16.mxu0 %v2875
        %5254 = vmatpush1.bf16.msra.mxu0 %v2874
        %5255 = vmatprep.subr.bf16.mxu0 %v2891
        %5256 = vmatpush1.bf16.msra.mxu0 %v2890
        %5257 = vmatprep.subr.bf16.mxu0 %v2907
        %5258 = vmatpush1.bf16.msra.mxu0 %v2906
        %5259 = vmatprep.subr.bf16.mxu0 %v2923
        %5260 = vmatpush1.bf16.msra.mxu0 %v2922
        %5261 = vmatprep.subr.bf16.mxu0 %v2939
        %5262 = vmatpush1.bf16.msra.mxu0 %v2938
        %5263 = vmatprep.subr.bf16.mxu0 %v2955
        %5264 = vmatpush1.bf16.msra.mxu0 %v2954
        %5265 = vmatprep.subr.bf16.mxu0 %v2971
        %5266 = vmatpush1.bf16.msra.mxu0 %v2970
        %5267 = vmatprep.subr.bf16.mxu0 %v2987
        %5268 = vmatpush1.bf16.msra.mxu0 %v2986
        %5269 = vmatprep.subr.bf16.mxu0 %v3003
        %5270 = vmatpush1.bf16.msra.mxu0 %v3002
        %5271 = vmatprep.subr.bf16.mxu0 %v3019
        %5272 = vmatpush1.bf16.msra.mxu0 %v3018
        %5273 = vmatprep.subr.bf16.mxu0 %v3035
        %5274 = vmatpush1.bf16.msra.mxu0 %v3034
        %5275 = vmatprep.mubr.bf16.mxu0 %v447
        %5276 = vmatmul.mubr.bf16.gmra.mrb[0].mxu0 %v446
        %v5277 = vpop.f32.mrb[0].mxu0
        %v5278 = vadd.f32 %v5165, %v5277
        %v5279 = vpop.f32.mrb[0].mxu0
        %v5280 = vadd.f32 %v5167, %v5279
        %v5281 = vpop.f32.mrb[0].mxu0
        %v5282 = vadd.f32 %v5169, %v5281
        %v5283 = vpop.f32.mrb[0].mxu0
        %v5284 = vadd.f32 %v5171, %v5283
        %5285 = vmatprep.mubr.bf16.mxu0 %v451
        %5286 = vmatmul.mubr.bf16.gmra.mrb[0].mxu0 %v450
        %v5287 = vpop.f32.mrb[0].mxu0
        %v5288 = vadd.f32 %v5175, %v5287
        %v5289 = vpop.f32.mrb[0].mxu0
        %v5290 = vadd.f32 %v5177, %v5289
        %v5291 = vpop.f32.mrb[0].mxu0
        %v5292 = vadd.f32 %v5179, %v5291
        %v5293 = vpop.f32.mrb[0].mxu0
        %v5294 = vadd.f32 %v5181, %v5293
        %5295 = vmatprep.mubr.bf16.mxu0 %v455
        %5296 = vmatmul.mubr.bf16.gmra.mrb[0].mxu0 %v454
        %v5297 = vpop.f32.mrb[0].mxu0
        %v5298 = vadd.f32 %v5185, %v5297
        %v5299 = vpop.f32.mrb[0].mxu0
        %v5300 = vadd.f32 %v5187, %v5299
        %v5301 = vpop.f32.mrb[0].mxu0
        %v5302 = vadd.f32 %v5189, %v5301
        %v5303 = vpop.f32.mrb[0].mxu0
        %v5304 = vadd.f32 %v5191, %v5303
        %5305 = vmatprep.mubr.bf16.mxu0 %v459
        %5306 = vmatmul.mubr.bf16.gmra.mrb[0].mxu0 %v458
        %v5307 = vpop.f32.mrb[0].mxu0
        %v5308 = vadd.f32 %v5195, %v5307
        %v5309 = vpop.f32.mrb[0].mxu0
        %v5310 = vadd.f32 %v5197, %v5309
        %v5311 = vpop.f32.mrb[0].mxu0
        %v5312 = vadd.f32 %v5199, %v5311
        %v5313 = vpop.f32.mrb[0].mxu0
        %v5314 = vadd.f32 %v5201, %v5313
        %5315 = vmatprep.mubr.bf16.mxu0 %v463
        %5316 = vmatmul.mubr.bf16.gmra.mrb[0].mxu0 %v462
        %v5317 = vpop.f32.mrb[0].mxu0
        %v5318 = vadd.f32 %v5205, %v5317
        %v5319 = vpop.f32.mrb[0].mxu0
        %v5320 = vadd.f32 %v5207, %v5319
        %v5321 = vpop.f32.mrb[0].mxu0
        %v5322 = vadd.f32 %v5209, %v5321
        %v5323 = vpop.f32.mrb[0].mxu0
        %v5324 = vadd.f32 %v5211, %v5323
        %5325 = vmatprep.mubr.bf16.mxu0 %v467
        %5326 = vmatmul.mubr.bf16.gmra.mrb[0].mxu0 %v466
        %v5327 = vpop.f32.mrb[0].mxu0
        %v5328 = vadd.f32 %v5215, %v5327
        %v5329 = vpop.f32.mrb[0].mxu0
        %v5330 = vadd.f32 %v5217, %v5329
        %v5331 = vpop.f32.mrb[0].mxu0
        %v5332 = vadd.f32 %v5219, %v5331
        %v5333 = vpop.f32.mrb[0].mxu0
        %v5334 = vadd.f32 %v5221, %v5333
        %5335 = vmatprep.mubr.bf16.mxu0 %v471
        %5336 = vmatmul.mubr.bf16.gmra.mrb[0].mxu0 %v470
        %v5337 = vpop.f32.mrb[0].mxu0
        %v5338 = vadd.f32 %v5225, %v5337
        %v5339 = vpop.f32.mrb[0].mxu0
        %v5340 = vadd.f32 %v5227, %v5339
        %v5341 = vpop.f32.mrb[0].mxu0
        %v5342 = vadd.f32 %v5229, %v5341
        %v5343 = vpop.f32.mrb[0].mxu0
        %v5344 = vadd.f32 %v5231, %v5343
        %5345 = vmatprep.mubr.bf16.mxu0 %v475
        %5346 = vmatmul.mubr.bf16.gmra.mrb[0].mxu0 %v474
        %v5347 = vpop.f32.mrb[0].mxu0
        %v5348 = vadd.f32 %v5235, %v5347
        %v5349 = vpop.f32.mrb[0].mxu0
        %v5350 = vadd.f32 %v5237, %v5349
        %v5351 = vpop.f32.mrb[0].mxu0
        %v5352 = vadd.f32 %v5239, %v5351
        %v5353 = vpop.f32.mrb[0].mxu0
        %v5354 = vadd.f32 %v5241, %v5353
        %5355 = vdwg.mxu0
        %v5356 = vpack.c.bf16 %v3700, %v3696
        %v5357 = vpack.c.bf16 %v3702, %v3698
        %v5358 = vpack.c.bf16 %v3926, %v3922
        %v5359 = vpack.c.bf16 %v3928, %v3924
        %v5360 = vpack.c.bf16 %v4152, %v4148
        %v5361 = vpack.c.bf16 %v4154, %v4150
        %v5362 = vpack.c.bf16 %v4378, %v4374
        %v5363 = vpack.c.bf16 %v4380, %v4376
        %v5364 = vpack.c.bf16 %v4604, %v4600
        %v5365 = vpack.c.bf16 %v4606, %v4602
        %v5366 = vpack.c.bf16 %v4830, %v4826
        %v5367 = vpack.c.bf16 %v4832, %v4828
        %v5368 = vpack.c.bf16 %v5056, %v5052
        %v5369 = vpack.c.bf16 %v5058, %v5054
        %v5370 = vpack.c.bf16 %v5282, %v5278
        %v5371 = vpack.c.bf16 %v5284, %v5280
        %v5372 = vpack.c.bf16 %v3710, %v3706
        %v5373 = vpack.c.bf16 %v3712, %v3708
        %v5374 = vpack.c.bf16 %v3936, %v3932
        %v5375 = vpack.c.bf16 %v3938, %v3934
        %v5376 = vpack.c.bf16 %v4162, %v4158
        %v5377 = vpack.c.bf16 %v4164, %v4160
        %v5378 = vpack.c.bf16 %v4388, %v4384
        %v5379 = vpack.c.bf16 %v4390, %v4386
        %v5380 = vpack.c.bf16 %v4614, %v4610
        %v5381 = vpack.c.bf16 %v4616, %v4612
        %v5382 = vpack.c.bf16 %v4840, %v4836
        %v5383 = vpack.c.bf16 %v4842, %v4838
        %v5384 = vpack.c.bf16 %v5066, %v5062
        %v5385 = vpack.c.bf16 %v5068, %v5064
        %v5386 = vpack.c.bf16 %v5292, %v5288
        %v5387 = vpack.c.bf16 %v5294, %v5290
        %v5388 = vpack.c.bf16 %v3720, %v3716
        %v5389 = vpack.c.bf16 %v3722, %v3718
        %v5390 = vpack.c.bf16 %v3946, %v3942
        %v5391 = vpack.c.bf16 %v3948, %v3944
        %v5392 = vpack.c.bf16 %v4172, %v4168
        %v5393 = vpack.c.bf16 %v4174, %v4170
        %v5394 = vpack.c.bf16 %v4398, %v4394
        %v5395 = vpack.c.bf16 %v4400, %v4396
        %v5396 = vpack.c.bf16 %v4624, %v4620
        %v5397 = vpack.c.bf16 %v4626, %v4622
        %v5398 = vpack.c.bf16 %v4850, %v4846
        %v5399 = vpack.c.bf16 %v4852, %v4848
        %v5400 = vpack.c.bf16 %v5076, %v5072
        %v5401 = vpack.c.bf16 %v5078, %v5074
        %v5402 = vpack.c.bf16 %v5302, %v5298
        %v5403 = vpack.c.bf16 %v5304, %v5300
        %v5404 = vpack.c.bf16 %v3730, %v3726
        %v5405 = vpack.c.bf16 %v3732, %v3728
        %v5406 = vpack.c.bf16 %v3956, %v3952
        %v5407 = vpack.c.bf16 %v3958, %v3954
        %v5408 = vpack.c.bf16 %v4182, %v4178
        %v5409 = vpack.c.bf16 %v4184, %v4180
        %v5410 = vpack.c.bf16 %v4408, %v4404
        %v5411 = vpack.c.bf16 %v4410, %v4406
        %v5412 = vpack.c.bf16 %v4634, %v4630
        %v5413 = vpack.c.bf16 %v4636, %v4632
        %v5414 = vpack.c.bf16 %v4860, %v4856
        %v5415 = vpack.c.bf16 %v4862, %v4858
        %v5416 = vpack.c.bf16 %v5086, %v5082
        %v5417 = vpack.c.bf16 %v5088, %v5084
        %v5418 = vpack.c.bf16 %v5312, %v5308
        %v5419 = vpack.c.bf16 %v5314, %v5310
        %v5420 = vpack.c.bf16 %v3740, %v3736
        %v5421 = vpack.c.bf16 %v3742, %v3738
        %v5422 = vpack.c.bf16 %v3966, %v3962
        %v5423 = vpack.c.bf16 %v3968, %v3964
        %v5424 = vpack.c.bf16 %v4192, %v4188
        %v5425 = vpack.c.bf16 %v4194, %v4190
        %v5426 = vpack.c.bf16 %v4418, %v4414
        %v5427 = vpack.c.bf16 %v4420, %v4416
        %v5428 = vpack.c.bf16 %v4644, %v4640
        %v5429 = vpack.c.bf16 %v4646, %v4642
        %v5430 = vpack.c.bf16 %v4870, %v4866
        %v5431 = vpack.c.bf16 %v4872, %v4868
        %v5432 = vpack.c.bf16 %v5096, %v5092
        %v5433 = vpack.c.bf16 %v5098, %v5094
        %v5434 = vpack.c.bf16 %v5322, %v5318
        %v5435 = vpack.c.bf16 %v5324, %v5320
        %v5436 = vpack.c.bf16 %v3750, %v3746
        %v5437 = vpack.c.bf16 %v3752, %v3748
        %v5438 = vpack.c.bf16 %v3976, %v3972
        %v5439 = vpack.c.bf16 %v3978, %v3974
        %v5440 = vpack.c.bf16 %v4202, %v4198
        %v5441 = vpack.c.bf16 %v4204, %v4200
        %v5442 = vpack.c.bf16 %v4428, %v4424
        %v5443 = vpack.c.bf16 %v4430, %v4426
        %v5444 = vpack.c.bf16 %v4654, %v4650
        %v5445 = vpack.c.bf16 %v4656, %v4652
        %v5446 = vpack.c.bf16 %v4880, %v4876
        %v5447 = vpack.c.bf16 %v4882, %v4878
        %v5448 = vpack.c.bf16 %v5106, %v5102
        %v5449 = vpack.c.bf16 %v5108, %v5104
        %v5450 = vpack.c.bf16 %v5332, %v5328
        %v5451 = vpack.c.bf16 %v5334, %v5330
        %v5452 = vpack.c.bf16 %v3760, %v3756
        %v5453 = vpack.c.bf16 %v3762, %v3758
        %v5454 = vpack.c.bf16 %v3986, %v3982
        %v5455 = vpack.c.bf16 %v3988, %v3984
        %v5456 = vpack.c.bf16 %v4212, %v4208
        %v5457 = vpack.c.bf16 %v4214, %v4210
        %v5458 = vpack.c.bf16 %v4438, %v4434
        %v5459 = vpack.c.bf16 %v4440, %v4436
        %v5460 = vpack.c.bf16 %v4664, %v4660
        %v5461 = vpack.c.bf16 %v4666, %v4662
        %v5462 = vpack.c.bf16 %v4890, %v4886
        %v5463 = vpack.c.bf16 %v4892, %v4888
        %v5464 = vpack.c.bf16 %v5116, %v5112
        %v5465 = vpack.c.bf16 %v5118, %v5114
        %v5466 = vpack.c.bf16 %v5342, %v5338
        %v5467 = vpack.c.bf16 %v5344, %v5340
        %v5468 = vpack.c.bf16 %v3770, %v3766
        %v5469 = vpack.c.bf16 %v3772, %v3768
        %v5470 = vpack.c.bf16 %v3996, %v3992
        %v5471 = vpack.c.bf16 %v3998, %v3994
        %v5472 = vpack.c.bf16 %v4222, %v4218
        %v5473 = vpack.c.bf16 %v4224, %v4220
        %v5474 = vpack.c.bf16 %v4448, %v4444
        %v5475 = vpack.c.bf16 %v4450, %v4446
        %v5476 = vpack.c.bf16 %v4674, %v4670
        %v5477 = vpack.c.bf16 %v4676, %v4672
        %v5478 = vpack.c.bf16 %v4900, %v4896
        %v5479 = vpack.c.bf16 %v4902, %v4898
        %v5480 = vpack.c.bf16 %v5126, %v5122
        %v5481 = vpack.c.bf16 %v5128, %v5124
        %v5482 = vpack.c.bf16 %v5352, %v5348
        %v5483 = vpack.c.bf16 %v5354, %v5350
        %v5484 = vld [vmem:[#allocation7] sm:$0xff]
        %v5485 = vld [vmem:[#allocation7 + $0x8] sm:$0xff]
        %v5488 = vcombine.high %v5484, %v5484
        %v5490 = vunpack.c.l.s4 1966171168
        %v5491 = vunpack.c.0.s8 %v5490
        %v5492 = vlaneseq
        %v5493 = vshrl.u32 %v5492, 7
        %v5494 = vsub.s32 %v5491, %v5493
        %v5495 = vrot.slane %v5484, %v5494
        %v5497 = vunpack.c.l.s4 1966171168
        %v5498 = vunpack.c.0.s8 %v5497
        %v5499 = vlaneseq
        %v5500 = vshrl.u32 %v5499, 7
        %v5501 = vsub.s32 %v5498, %v5500
        %v5502 = vrot.slane %v5488, %v5501
        %v5503 = vcombine.high %v5495, %v5495
        %v5504 = vcombine.high %v5502, %v5502
        %v5506 = vunpack.c.l.s4 1966171168
        %v5507 = vunpack.c.0.s8 %v5506
        %v5508 = vlaneseq
        %v5509 = vshrl.u32 %v5508, 7
        %v5510 = vsub.s32 %v5507, %v5509
        %v5511 = vrot.slane %v5495, %v5510
        %v5513 = vunpack.c.l.s4 1966171168
        %v5514 = vunpack.c.0.s8 %v5513
        %v5515 = vlaneseq
        %v5516 = vshrl.u32 %v5515, 7
        %v5517 = vsub.s32 %v5514, %v5516
        %v5518 = vrot.slane %v5502, %v5517
        %v5520 = vunpack.c.l.s4 1966171168
        %v5521 = vunpack.c.0.s8 %v5520
        %v5522 = vlaneseq
        %v5523 = vshrl.u32 %v5522, 7
        %v5524 = vsub.s32 %v5521, %v5523
        %v5525 = vrot.slane %v5503, %v5524
        %v5527 = vunpack.c.l.s4 1966171168
        %v5528 = vunpack.c.0.s8 %v5527
        %v5529 = vlaneseq
        %v5530 = vshrl.u32 %v5529, 7
        %v5531 = vsub.s32 %v5528, %v5530
        %v5532 = vrot.slane %v5504, %v5531
        %v5533 = vcombine.high %v5511, %v5511
        %v5534 = vcombine.high %v5518, %v5518
        %v5535 = vcombine.high %v5525, %v5525
        %v5536 = vcombine.high %v5532, %v5532
        %v5537 = vcombine.high %v5485, %v5485
        %v5539 = vunpack.c.l.s4 1966171168
        %v5540 = vunpack.c.0.s8 %v5539
        %v5541 = vlaneseq
        %v5542 = vshrl.u32 %v5541, 7
        %v5543 = vsub.s32 %v5540, %v5542
        %v5544 = vrot.slane %v5485, %v5543
        %v5546 = vunpack.c.l.s4 1966171168
        %v5547 = vunpack.c.0.s8 %v5546
        %v5548 = vlaneseq
        %v5549 = vshrl.u32 %v5548, 7
        %v5550 = vsub.s32 %v5547, %v5549
        %v5551 = vrot.slane %v5537, %v5550
        %v5552 = vcombine.high %v5544, %v5544
        %v5553 = vcombine.high %v5551, %v5551
        %v5555 = vunpack.c.l.s4 1966171168
        %v5556 = vunpack.c.0.s8 %v5555
        %v5557 = vlaneseq
        %v5558 = vshrl.u32 %v5557, 7
        %v5559 = vsub.s32 %v5556, %v5558
        %v5560 = vrot.slane %v5544, %v5559
        %v5562 = vunpack.c.l.s4 1966171168
        %v5563 = vunpack.c.0.s8 %v5562
        %v5564 = vlaneseq
        %v5565 = vshrl.u32 %v5564, 7
        %v5566 = vsub.s32 %v5563, %v5565
        %v5567 = vrot.slane %v5551, %v5566
        %v5569 = vunpack.c.l.s4 1966171168
        %v5570 = vunpack.c.0.s8 %v5569
        %v5571 = vlaneseq
        %v5572 = vshrl.u32 %v5571, 7
        %v5573 = vsub.s32 %v5570, %v5572
        %v5574 = vrot.slane %v5552, %v5573
        %v5576 = vunpack.c.l.s4 1966171168
        %v5577 = vunpack.c.0.s8 %v5576
        %v5578 = vlaneseq
        %v5579 = vshrl.u32 %v5578, 7
        %v5580 = vsub.s32 %v5577, %v5579
        %v5581 = vrot.slane %v5553, %v5580
        %v5582 = vcombine.high %v5560, %v5560
        %v5583 = vcombine.high %v5567, %v5567
        %v5584 = vcombine.high %v5574, %v5574
        %v5585 = vcombine.high %v5581, %v5581
        %v5587 = vpack.i.b16 %v5511, %v5511
        %v5589 = vlaneseq
        %v5590 = vshrl.u32 %v5589, 7
        %v5591 = vsub.s32 0, %v5590
        %v5592 = vrot.slane %v5587, %v5591
        %v5594 = vpack.i.b16 %v5525, %v5525
        %v5596 = vlaneseq
        %v5597 = vshrl.u32 %v5596, 7
        %v5598 = vsub.s32 0, %v5597
        %v5599 = vrot.slane %v5594, %v5598
        %v5601 = vpack.i.b16 %v5533, %v5533
        %v5603 = vlaneseq
        %v5604 = vshrl.u32 %v5603, 7
        %v5605 = vsub.s32 0, %v5604
        %v5606 = vrot.slane %v5601, %v5605
        %v5608 = vpack.i.b16 %v5535, %v5535
        %v5610 = vlaneseq
        %v5611 = vshrl.u32 %v5610, 7
        %v5612 = vsub.s32 0, %v5611
        %v5613 = vrot.slane %v5608, %v5612
        %v5615 = vpack.i.b16 %v5518, %v5518
        %v5617 = vlaneseq
        %v5618 = vshrl.u32 %v5617, 7
        %v5619 = vsub.s32 0, %v5618
        %v5620 = vrot.slane %v5615, %v5619
        %v5622 = vpack.i.b16 %v5532, %v5532
        %v5624 = vlaneseq
        %v5625 = vshrl.u32 %v5624, 7
        %v5626 = vsub.s32 0, %v5625
        %v5627 = vrot.slane %v5622, %v5626
        %v5629 = vpack.i.b16 %v5534, %v5534
        %v5631 = vlaneseq
        %v5632 = vshrl.u32 %v5631, 7
        %v5633 = vsub.s32 0, %v5632
        %v5634 = vrot.slane %v5629, %v5633
        %v5636 = vpack.i.b16 %v5536, %v5536
        %v5638 = vlaneseq
        %v5639 = vshrl.u32 %v5638, 7
        %v5640 = vsub.s32 0, %v5639
        %v5641 = vrot.slane %v5636, %v5640
        %v5643 = vpack.i.b16 %v5560, %v5560
        %v5645 = vlaneseq
        %v5646 = vshrl.u32 %v5645, 7
        %v5647 = vsub.s32 0, %v5646
        %v5648 = vrot.slane %v5643, %v5647
        %v5650 = vpack.i.b16 %v5574, %v5574
        %v5652 = vlaneseq
        %v5653 = vshrl.u32 %v5652, 7
        %v5654 = vsub.s32 0, %v5653
        %v5655 = vrot.slane %v5650, %v5654
        %v5657 = vpack.i.b16 %v5582, %v5582
        %v5659 = vlaneseq
        %v5660 = vshrl.u32 %v5659, 7
        %v5661 = vsub.s32 0, %v5660
        %v5662 = vrot.slane %v5657, %v5661
        %v5664 = vpack.i.b16 %v5584, %v5584
        %v5666 = vlaneseq
        %v5667 = vshrl.u32 %v5666, 7
        %v5668 = vsub.s32 0, %v5667
        %v5669 = vrot.slane %v5664, %v5668
        %v5671 = vpack.i.b16 %v5567, %v5567
        %v5673 = vlaneseq
        %v5674 = vshrl.u32 %v5673, 7
        %v5675 = vsub.s32 0, %v5674
        %v5676 = vrot.slane %v5671, %v5675
        %v5678 = vpack.i.b16 %v5581, %v5581
        %v5680 = vlaneseq
        %v5681 = vshrl.u32 %v5680, 7
        %v5682 = vsub.s32 0, %v5681
        %v5683 = vrot.slane %v5678, %v5682
        %v5685 = vpack.i.b16 %v5583, %v5583
        %v5687 = vlaneseq
        %v5688 = vshrl.u32 %v5687, 7
        %v5689 = vsub.s32 0, %v5688
        %v5690 = vrot.slane %v5685, %v5689
        %v5692 = vpack.i.b16 %v5585, %v5585
        %v5694 = vlaneseq
        %v5695 = vshrl.u32 %v5694, 7
        %v5696 = vsub.s32 0, %v5695
        %v5697 = vrot.slane %v5692, %v5696
        %v5698 = vadd.bf16 %v5356, %v5592
        %v5699 = vadd.bf16 %v5357, %v5599
        %v5700 = vadd.bf16 %v5358, %v5606
        %v5701 = vadd.bf16 %v5359, %v5613
        %v5702 = vadd.bf16 %v5360, %v5620
        %v5703 = vadd.bf16 %v5361, %v5627
        %v5704 = vadd.bf16 %v5362, %v5634
        %v5705 = vadd.bf16 %v5363, %v5641
        %v5706 = vadd.bf16 %v5364, %v5648
        %v5707 = vadd.bf16 %v5365, %v5655
        %v5708 = vadd.bf16 %v5366, %v5662
        %v5709 = vadd.bf16 %v5367, %v5669
        %v5710 = vadd.bf16 %v5368, %v5676
        %v5711 = vadd.bf16 %v5369, %v5683
        %v5712 = vadd.bf16 %v5370, %v5690
        %v5713 = vadd.bf16 %v5371, %v5697
        %v5714 = vadd.bf16 %v5372, %v5592
        %v5715 = vadd.bf16 %v5373, %v5599
        %v5716 = vadd.bf16 %v5374, %v5606
        %v5717 = vadd.bf16 %v5375, %v5613
        %v5718 = vadd.bf16 %v5376, %v5620
        %v5719 = vadd.bf16 %v5377, %v5627
        %v5720 = vadd.bf16 %v5378, %v5634
        %v5721 = vadd.bf16 %v5379, %v5641
        %v5722 = vadd.bf16 %v5380, %v5648
        %v5723 = vadd.bf16 %v5381, %v5655
        %v5724 = vadd.bf16 %v5382, %v5662
        %v5725 = vadd.bf16 %v5383, %v5669
        %v5726 = vadd.bf16 %v5384, %v5676
        %v5727 = vadd.bf16 %v5385, %v5683
        %v5728 = vadd.bf16 %v5386, %v5690
        %v5729 = vadd.bf16 %v5387, %v5697
        %v5730 = vadd.bf16 %v5388, %v5592
        %v5731 = vadd.bf16 %v5389, %v5599
        %v5732 = vadd.bf16 %v5390, %v5606
        %v5733 = vadd.bf16 %v5391, %v5613
        %v5734 = vadd.bf16 %v5392, %v5620
        %v5735 = vadd.bf16 %v5393, %v5627
        %v5736 = vadd.bf16 %v5394, %v5634
        %v5737 = vadd.bf16 %v5395, %v5641
        %v5738 = vadd.bf16 %v5396, %v5648
        %v5739 = vadd.bf16 %v5397, %v5655
        %v5740 = vadd.bf16 %v5398, %v5662
        %v5741 = vadd.bf16 %v5399, %v5669
        %v5742 = vadd.bf16 %v5400, %v5676
        %v5743 = vadd.bf16 %v5401, %v5683
        %v5744 = vadd.bf16 %v5402, %v5690
        %v5745 = vadd.bf16 %v5403, %v5697
        %v5746 = vadd.bf16 %v5404, %v5592
        %v5747 = vadd.bf16 %v5405, %v5599
        %v5748 = vadd.bf16 %v5406, %v5606
        %v5749 = vadd.bf16 %v5407, %v5613
        %v5750 = vadd.bf16 %v5408, %v5620
        %v5751 = vadd.bf16 %v5409, %v5627
        %v5752 = vadd.bf16 %v5410, %v5634
        %v5753 = vadd.bf16 %v5411, %v5641
        %v5754 = vadd.bf16 %v5412, %v5648
        %v5755 = vadd.bf16 %v5413, %v5655
        %v5756 = vadd.bf16 %v5414, %v5662
        %v5757 = vadd.bf16 %v5415, %v5669
        %v5758 = vadd.bf16 %v5416, %v5676
        %v5759 = vadd.bf16 %v5417, %v5683
        %v5760 = vadd.bf16 %v5418, %v5690
        %v5761 = vadd.bf16 %v5419, %v5697
        %v5762 = vadd.bf16 %v5420, %v5592
        %v5763 = vadd.bf16 %v5421, %v5599
        %v5764 = vadd.bf16 %v5422, %v5606
        %v5765 = vadd.bf16 %v5423, %v5613
        %v5766 = vadd.bf16 %v5424, %v5620
        %v5767 = vadd.bf16 %v5425, %v5627
        %v5768 = vadd.bf16 %v5426, %v5634
        %v5769 = vadd.bf16 %v5427, %v5641
        %v5770 = vadd.bf16 %v5428, %v5648
        %v5771 = vadd.bf16 %v5429, %v5655
        %v5772 = vadd.bf16 %v5430, %v5662
        %v5773 = vadd.bf16 %v5431, %v5669
        %v5774 = vadd.bf16 %v5432, %v5676
        %v5775 = vadd.bf16 %v5433, %v5683
        %v5776 = vadd.bf16 %v5434, %v5690
        %v5777 = vadd.bf16 %v5435, %v5697
        %v5778 = vadd.bf16 %v5436, %v5592
        %v5779 = vadd.bf16 %v5437, %v5599
        %v5780 = vadd.bf16 %v5438, %v5606
        %v5781 = vadd.bf16 %v5439, %v5613
        %v5782 = vadd.bf16 %v5440, %v5620
        %v5783 = vadd.bf16 %v5441, %v5627
        %v5784 = vadd.bf16 %v5442, %v5634
        %v5785 = vadd.bf16 %v5443, %v5641
        %v5786 = vadd.bf16 %v5444, %v5648
        %v5787 = vadd.bf16 %v5445, %v5655
        %v5788 = vadd.bf16 %v5446, %v5662
        %v5789 = vadd.bf16 %v5447, %v5669
        %v5790 = vadd.bf16 %v5448, %v5676
        %v5791 = vadd.bf16 %v5449, %v5683
        %v5792 = vadd.bf16 %v5450, %v5690
        %v5793 = vadd.bf16 %v5451, %v5697
        %v5794 = vadd.bf16 %v5452, %v5592
        %v5795 = vadd.bf16 %v5453, %v5599
        %v5796 = vadd.bf16 %v5454, %v5606
        %v5797 = vadd.bf16 %v5455, %v5613
        %v5798 = vadd.bf16 %v5456, %v5620
        %v5799 = vadd.bf16 %v5457, %v5627
        %v5800 = vadd.bf16 %v5458, %v5634
        %v5801 = vadd.bf16 %v5459, %v5641
        %v5802 = vadd.bf16 %v5460, %v5648
        %v5803 = vadd.bf16 %v5461, %v5655
        %v5804 = vadd.bf16 %v5462, %v5662
        %v5805 = vadd.bf16 %v5463, %v5669
        %v5806 = vadd.bf16 %v5464, %v5676
        %v5807 = vadd.bf16 %v5465, %v5683
        %v5808 = vadd.bf16 %v5466, %v5690
        %v5809 = vadd.bf16 %v5467, %v5697
        %v5810 = vadd.bf16 %v5468, %v5592
        %v5811 = vadd.bf16 %v5469, %v5599
        %v5812 = vadd.bf16 %v5470, %v5606
        %v5813 = vadd.bf16 %v5471, %v5613
        %v5814 = vadd.bf16 %v5472, %v5620
        %v5815 = vadd.bf16 %v5473, %v5627
        %v5816 = vadd.bf16 %v5474, %v5634
        %v5817 = vadd.bf16 %v5475, %v5641
        %v5818 = vadd.bf16 %v5476, %v5648
        %v5819 = vadd.bf16 %v5477, %v5655
        %v5820 = vadd.bf16 %v5478, %v5662
        %v5821 = vadd.bf16 %v5479, %v5669
        %v5822 = vadd.bf16 %v5480, %v5676
        %v5823 = vadd.bf16 %v5481, %v5683
        %v5824 = vadd.bf16 %v5482, %v5690
        %v5825 = vadd.bf16 %v5483, %v5697
        %v5826 = vmax.bf16 %v5698, 0
        %v5827 = vmax.bf16 %v5699, 0
        %v5828 = vmax.bf16 %v5700, 0
        %v5829 = vmax.bf16 %v5701, 0
        %v5830 = vmax.bf16 %v5702, 0
        %v5831 = vmax.bf16 %v5703, 0
        %v5832 = vmax.bf16 %v5704, 0
        %v5833 = vmax.bf16 %v5705, 0
        %v5834 = vmax.bf16 %v5706, 0
        %v5835 = vmax.bf16 %v5707, 0
        %v5836 = vmax.bf16 %v5708, 0
        %v5837 = vmax.bf16 %v5709, 0
        %v5838 = vmax.bf16 %v5710, 0
        %v5839 = vmax.bf16 %v5711, 0
        %v5840 = vmax.bf16 %v5712, 0
        %v5841 = vmax.bf16 %v5713, 0
        %v5842 = vmax.bf16 %v5714, 0
        %v5843 = vmax.bf16 %v5715, 0
        %v5844 = vmax.bf16 %v5716, 0
        %v5845 = vmax.bf16 %v5717, 0
        %v5846 = vmax.bf16 %v5718, 0
        %v5847 = vmax.bf16 %v5719, 0
        %v5848 = vmax.bf16 %v5720, 0
        %v5849 = vmax.bf16 %v5721, 0
        %v5850 = vmax.bf16 %v5722, 0
        %v5851 = vmax.bf16 %v5723, 0
        %v5852 = vmax.bf16 %v5724, 0
        %v5853 = vmax.bf16 %v5725, 0
        %v5854 = vmax.bf16 %v5726, 0
        %v5855 = vmax.bf16 %v5727, 0
        %v5856 = vmax.bf16 %v5728, 0
        %v5857 = vmax.bf16 %v5729, 0
        %v5858 = vmax.bf16 %v5730, 0
        %v5859 = vmax.bf16 %v5731, 0
        %v5860 = vmax.bf16 %v5732, 0
        %v5861 = vmax.bf16 %v5733, 0
        %v5862 = vmax.bf16 %v5734, 0
        %v5863 = vmax.bf16 %v5735, 0
        %v5864 = vmax.bf16 %v5736, 0
        %v5865 = vmax.bf16 %v5737, 0
        %v5866 = vmax.bf16 %v5738, 0
        %v5867 = vmax.bf16 %v5739, 0
        %v5868 = vmax.bf16 %v5740, 0
        %v5869 = vmax.bf16 %v5741, 0
        %v5870 = vmax.bf16 %v5742, 0
        %v5871 = vmax.bf16 %v5743, 0
        %v5872 = vmax.bf16 %v5744, 0
        %v5873 = vmax.bf16 %v5745, 0
        %v5874 = vmax.bf16 %v5746, 0
        %v5875 = vmax.bf16 %v5747, 0
        %v5876 = vmax.bf16 %v5748, 0
        %v5877 = vmax.bf16 %v5749, 0
        %v5878 = vmax.bf16 %v5750, 0
        %v5879 = vmax.bf16 %v5751, 0
        %v5880 = vmax.bf16 %v5752, 0
        %v5881 = vmax.bf16 %v5753, 0
        %v5882 = vmax.bf16 %v5754, 0
        %v5883 = vmax.bf16 %v5755, 0
        %v5884 = vmax.bf16 %v5756, 0
        %v5885 = vmax.bf16 %v5757, 0
        %v5886 = vmax.bf16 %v5758, 0
        %v5887 = vmax.bf16 %v5759, 0
        %v5888 = vmax.bf16 %v5760, 0
        %v5889 = vmax.bf16 %v5761, 0
        %v5890 = vmax.bf16 %v5762, 0
        %v5891 = vmax.bf16 %v5763, 0
        %v5892 = vmax.bf16 %v5764, 0
        %v5893 = vmax.bf16 %v5765, 0
        %v5894 = vmax.bf16 %v5766, 0
        %v5895 = vmax.bf16 %v5767, 0
        %v5896 = vmax.bf16 %v5768, 0
        %v5897 = vmax.bf16 %v5769, 0
        %v5898 = vmax.bf16 %v5770, 0
        %v5899 = vmax.bf16 %v5771, 0
        %v5900 = vmax.bf16 %v5772, 0
        %v5901 = vmax.bf16 %v5773, 0
        %v5902 = vmax.bf16 %v5774, 0
        %v5903 = vmax.bf16 %v5775, 0
        %v5904 = vmax.bf16 %v5776, 0
        %v5905 = vmax.bf16 %v5777, 0
        %v5906 = vmax.bf16 %v5778, 0
        %v5907 = vmax.bf16 %v5779, 0
        %v5908 = vmax.bf16 %v5780, 0
        %v5909 = vmax.bf16 %v5781, 0
        %v5910 = vmax.bf16 %v5782, 0
        %v5911 = vmax.bf16 %v5783, 0
        %v5912 = vmax.bf16 %v5784, 0
        %v5913 = vmax.bf16 %v5785, 0
        %v5914 = vmax.bf16 %v5786, 0
        %v5915 = vmax.bf16 %v5787, 0
        %v5916 = vmax.bf16 %v5788, 0
        %v5917 = vmax.bf16 %v5789, 0
        %v5918 = vmax.bf16 %v5790, 0
        %v5919 = vmax.bf16 %v5791, 0
        %v5920 = vmax.bf16 %v5792, 0
        %v5921 = vmax.bf16 %v5793, 0
        %v5922 = vmax.bf16 %v5794, 0
        %v5923 = vmax.bf16 %v5795, 0
        %v5924 = vmax.bf16 %v5796, 0
        %v5925 = vmax.bf16 %v5797, 0
        %v5926 = vmax.bf16 %v5798, 0
        %v5927 = vmax.bf16 %v5799, 0
        %v5928 = vmax.bf16 %v5800, 0
        %v5929 = vmax.bf16 %v5801, 0
        %v5930 = vmax.bf16 %v5802, 0
        %v5931 = vmax.bf16 %v5803, 0
        %v5932 = vmax.bf16 %v5804, 0
        %v5933 = vmax.bf16 %v5805, 0
        %v5934 = vmax.bf16 %v5806, 0
        %v5935 = vmax.bf16 %v5807, 0
        %v5936 = vmax.bf16 %v5808, 0
        %v5937 = vmax.bf16 %v5809, 0
        %v5938 = vmax.bf16 %v5810, 0
        %v5939 = vmax.bf16 %v5811, 0
        %v5940 = vmax.bf16 %v5812, 0
        %v5941 = vmax.bf16 %v5813, 0
        %v5942 = vmax.bf16 %v5814, 0
        %v5943 = vmax.bf16 %v5815, 0
        %v5944 = vmax.bf16 %v5816, 0
        %v5945 = vmax.bf16 %v5817, 0
        %v5946 = vmax.bf16 %v5818, 0
        %v5947 = vmax.bf16 %v5819, 0
        %v5948 = vmax.bf16 %v5820, 0
        %v5949 = vmax.bf16 %v5821, 0
        %v5950 = vmax.bf16 %v5822, 0
        %v5951 = vmax.bf16 %v5823, 0
        %v5952 = vmax.bf16 %v5824, 0
        %v5953 = vmax.bf16 %v5825, 0
        %v5954 = vld [vmem:[#allocation8] sm:$0xff]
        %v5955 = vld [vmem:[#allocation8 + $0x8] sm:$0xff]
        %v5956 = vld [vmem:[#allocation8 + $0x10] sm:$0xff]
        %v5957 = vld [vmem:[#allocation8 + $0x18] sm:$0xff]
        %v5958 = vld [vmem:[#allocation8 + $0x20] sm:$0xff]
        %v5959 = vld [vmem:[#allocation8 + $0x28] sm:$0xff]
        %v5960 = vld [vmem:[#allocation8 + $0x30] sm:$0xff]
        %v5961 = vld [vmem:[#allocation8 + $0x38] sm:$0xff]
        %v5962 = vld [vmem:[#allocation8 + $0x40] sm:$0xff]
        %v5963 = vld [vmem:[#allocation8 + $0x48] sm:$0xff]
        %v5964 = vld [vmem:[#allocation8 + $0x50] sm:$0xff]
        %v5965 = vld [vmem:[#allocation8 + $0x58] sm:$0xff]
        %v5966 = vld [vmem:[#allocation8 + $0x60] sm:$0xff]
        %v5967 = vld [vmem:[#allocation8 + $0x68] sm:$0xff]
        %v5968 = vld [vmem:[#allocation8 + $0x70] sm:$0xff]
        %v5969 = vld [vmem:[#allocation8 + $0x78] sm:$0xff]
        %v5970 = vld [vmem:[#allocation8 + $0x80] sm:$0xff]
        %v5971 = vld [vmem:[#allocation8 + $0x88] sm:$0xff]
        %v5972 = vld [vmem:[#allocation8 + $0x90] sm:$0xff]
        %v5973 = vld [vmem:[#allocation8 + $0x98] sm:$0xff]
        %v5974 = vld [vmem:[#allocation8 + $0xa0] sm:$0xff]
        %v5975 = vld [vmem:[#allocation8 + $0xa8] sm:$0xff]
        %v5976 = vld [vmem:[#allocation8 + $0xb0] sm:$0xff]
        %v5977 = vld [vmem:[#allocation8 + $0xb8] sm:$0xff]
        %v5978 = vld [vmem:[#allocation8 + $0xc0] sm:$0xff]
        %v5979 = vld [vmem:[#allocation8 + $0xc8] sm:$0xff]
        %v5980 = vld [vmem:[#allocation8 + $0xd0] sm:$0xff]
        %v5981 = vld [vmem:[#allocation8 + $0xd8] sm:$0xff]
        %v5982 = vld [vmem:[#allocation8 + $0xe0] sm:$0xff]
        %v5983 = vld [vmem:[#allocation8 + $0xe8] sm:$0xff]
        %v5984 = vld [vmem:[#allocation8 + $0xf0] sm:$0xff]
        %v5985 = vld [vmem:[#allocation8 + $0xf8] sm:$0xff]
        %v5986 = vld [vmem:[#allocation8 + $0x100] sm:$0xff]
        %v5987 = vld [vmem:[#allocation8 + $0x108] sm:$0xff]
        %v5988 = vld [vmem:[#allocation8 + $0x110] sm:$0xff]
        %v5989 = vld [vmem:[#allocation8 + $0x118] sm:$0xff]
        %v5990 = vld [vmem:[#allocation8 + $0x120] sm:$0xff]
        %v5991 = vld [vmem:[#allocation8 + $0x128] sm:$0xff]
        %v5992 = vld [vmem:[#allocation8 + $0x130] sm:$0xff]
        %v5993 = vld [vmem:[#allocation8 + $0x138] sm:$0xff]
        %v5994 = vld [vmem:[#allocation8 + $0x140] sm:$0xff]
        %v5995 = vld [vmem:[#allocation8 + $0x148] sm:$0xff]
        %v5996 = vld [vmem:[#allocation8 + $0x150] sm:$0xff]
        %v5997 = vld [vmem:[#allocation8 + $0x158] sm:$0xff]
        %v5998 = vld [vmem:[#allocation8 + $0x160] sm:$0xff]
        %v5999 = vld [vmem:[#allocation8 + $0x168] sm:$0xff]
        %v6000 = vld [vmem:[#allocation8 + $0x170] sm:$0xff]
        %v6001 = vld [vmem:[#allocation8 + $0x178] sm:$0xff]
        %v6002 = vld [vmem:[#allocation8 + $0x180] sm:$0xff]
        %v6003 = vld [vmem:[#allocation8 + $0x188] sm:$0xff]
        %v6004 = vld [vmem:[#allocation8 + $0x190] sm:$0xff]
        %v6005 = vld [vmem:[#allocation8 + $0x198] sm:$0xff]
        %v6006 = vld [vmem:[#allocation8 + $0x1a0] sm:$0xff]
        %v6007 = vld [vmem:[#allocation8 + $0x1a8] sm:$0xff]
        %v6008 = vld [vmem:[#allocation8 + $0x1b0] sm:$0xff]
        %v6009 = vld [vmem:[#allocation8 + $0x1b8] sm:$0xff]
        %v6010 = vld [vmem:[#allocation8 + $0x1c0] sm:$0xff]
        %v6011 = vld [vmem:[#allocation8 + $0x1c8] sm:$0xff]
        %v6012 = vld [vmem:[#allocation8 + $0x1d0] sm:$0xff]
        %v6013 = vld [vmem:[#allocation8 + $0x1d8] sm:$0xff]
        %v6014 = vld [vmem:[#allocation8 + $0x1e0] sm:$0xff]
        %v6015 = vld [vmem:[#allocation8 + $0x1e8] sm:$0xff]
        %v6016 = vld [vmem:[#allocation8 + $0x1f0] sm:$0xff]
        %v6017 = vld [vmem:[#allocation8 + $0x1f8] sm:$0xff]
        %v6018 = vld [vmem:[#allocation8 + $0x200] sm:$0xff]
        %v6019 = vld [vmem:[#allocation8 + $0x208] sm:$0xff]
        %v6020 = vld [vmem:[#allocation8 + $0x210] sm:$0xff]
        %v6021 = vld [vmem:[#allocation8 + $0x218] sm:$0xff]
        %v6022 = vld [vmem:[#allocation8 + $0x220] sm:$0xff]
        %v6023 = vld [vmem:[#allocation8 + $0x228] sm:$0xff]
        %v6024 = vld [vmem:[#allocation8 + $0x230] sm:$0xff]
        %v6025 = vld [vmem:[#allocation8 + $0x238] sm:$0xff]
        %v6026 = vld [vmem:[#allocation8 + $0x240] sm:$0xff]
        %v6027 = vld [vmem:[#allocation8 + $0x248] sm:$0xff]
        %v6028 = vld [vmem:[#allocation8 + $0x250] sm:$0xff]
        %v6029 = vld [vmem:[#allocation8 + $0x258] sm:$0xff]
        %v6030 = vld [vmem:[#allocation8 + $0x260] sm:$0xff]
        %v6031 = vld [vmem:[#allocation8 + $0x268] sm:$0xff]
        %v6032 = vld [vmem:[#allocation8 + $0x270] sm:$0xff]
        %v6033 = vld [vmem:[#allocation8 + $0x278] sm:$0xff]
        %v6034 = vld [vmem:[#allocation8 + $0x280] sm:$0xff]
        %v6035 = vld [vmem:[#allocation8 + $0x288] sm:$0xff]
        %v6036 = vld [vmem:[#allocation8 + $0x290] sm:$0xff]
        %v6037 = vld [vmem:[#allocation8 + $0x298] sm:$0xff]
        %v6038 = vld [vmem:[#allocation8 + $0x2a0] sm:$0xff]
        %v6039 = vld [vmem:[#allocation8 + $0x2a8] sm:$0xff]
        %v6040 = vld [vmem:[#allocation8 + $0x2b0] sm:$0xff]
        %v6041 = vld [vmem:[#allocation8 + $0x2b8] sm:$0xff]
        %v6042 = vld [vmem:[#allocation8 + $0x2c0] sm:$0xff]
        %v6043 = vld [vmem:[#allocation8 + $0x2c8] sm:$0xff]
        %v6044 = vld [vmem:[#allocation8 + $0x2d0] sm:$0xff]
        %v6045 = vld [vmem:[#allocation8 + $0x2d8] sm:$0xff]
        %v6046 = vld [vmem:[#allocation8 + $0x2e0] sm:$0xff]
        %v6047 = vld [vmem:[#allocation8 + $0x2e8] sm:$0xff]
        %v6048 = vld [vmem:[#allocation8 + $0x2f0] sm:$0xff]
        %v6049 = vld [vmem:[#allocation8 + $0x2f8] sm:$0xff]
        %v6050 = vld [vmem:[#allocation8 + $0x300] sm:$0xff]
        %v6051 = vld [vmem:[#allocation8 + $0x308] sm:$0xff]
        %v6052 = vld [vmem:[#allocation8 + $0x310] sm:$0xff]
        %v6053 = vld [vmem:[#allocation8 + $0x318] sm:$0xff]
        %v6054 = vld [vmem:[#allocation8 + $0x320] sm:$0xff]
        %v6055 = vld [vmem:[#allocation8 + $0x328] sm:$0xff]
        %v6056 = vld [vmem:[#allocation8 + $0x330] sm:$0xff]
        %v6057 = vld [vmem:[#allocation8 + $0x338] sm:$0xff]
        %v6058 = vld [vmem:[#allocation8 + $0x340] sm:$0xff]
        %v6059 = vld [vmem:[#allocation8 + $0x348] sm:$0xff]
        %v6060 = vld [vmem:[#allocation8 + $0x350] sm:$0xff]
        %v6061 = vld [vmem:[#allocation8 + $0x358] sm:$0xff]
        %v6062 = vld [vmem:[#allocation8 + $0x360] sm:$0xff]
        %v6063 = vld [vmem:[#allocation8 + $0x368] sm:$0xff]
        %v6064 = vld [vmem:[#allocation8 + $0x370] sm:$0xff]
        %v6065 = vld [vmem:[#allocation8 + $0x378] sm:$0xff]
        %v6066 = vld [vmem:[#allocation8 + $0x380] sm:$0xff]
        %v6067 = vld [vmem:[#allocation8 + $0x388] sm:$0xff]
        %v6068 = vld [vmem:[#allocation8 + $0x390] sm:$0xff]
        %v6069 = vld [vmem:[#allocation8 + $0x398] sm:$0xff]
        %v6070 = vld [vmem:[#allocation8 + $0x3a0] sm:$0xff]
        %v6071 = vld [vmem:[#allocation8 + $0x3a8] sm:$0xff]
        %v6072 = vld [vmem:[#allocation8 + $0x3b0] sm:$0xff]
        %v6073 = vld [vmem:[#allocation8 + $0x3b8] sm:$0xff]
        %v6074 = vld [vmem:[#allocation8 + $0x3c0] sm:$0xff]
        %v6075 = vld [vmem:[#allocation8 + $0x3c8] sm:$0xff]
        %v6076 = vld [vmem:[#allocation8 + $0x3d0] sm:$0xff]
        %v6077 = vld [vmem:[#allocation8 + $0x3d8] sm:$0xff]
        %v6078 = vld [vmem:[#allocation8 + $0x3e0] sm:$0xff]
        %v6079 = vld [vmem:[#allocation8 + $0x3e8] sm:$0xff]
        %v6080 = vld [vmem:[#allocation8 + $0x3f0] sm:$0xff]
        %v6081 = vld [vmem:[#allocation8 + $0x3f8] sm:$0xff]
        %v6082 = vld [vmem:[#allocation8 + $0x400] sm:$0xff]
        %v6083 = vld [vmem:[#allocation8 + $0x408] sm:$0xff]
        %v6084 = vld [vmem:[#allocation8 + $0x410] sm:$0xff]
        %v6085 = vld [vmem:[#allocation8 + $0x418] sm:$0xff]
        %v6086 = vld [vmem:[#allocation8 + $0x420] sm:$0xff]
        %v6087 = vld [vmem:[#allocation8 + $0x428] sm:$0xff]
        %v6088 = vld [vmem:[#allocation8 + $0x430] sm:$0xff]
        %v6089 = vld [vmem:[#allocation8 + $0x438] sm:$0xff]
        %v6090 = vld [vmem:[#allocation8 + $0x440] sm:$0xff]
        %v6091 = vld [vmem:[#allocation8 + $0x448] sm:$0xff]
        %v6092 = vld [vmem:[#allocation8 + $0x450] sm:$0xff]
        %v6093 = vld [vmem:[#allocation8 + $0x458] sm:$0xff]
        %v6094 = vld [vmem:[#allocation8 + $0x460] sm:$0xff]
        %v6095 = vld [vmem:[#allocation8 + $0x468] sm:$0xff]
        %v6096 = vld [vmem:[#allocation8 + $0x470] sm:$0xff]
        %v6097 = vld [vmem:[#allocation8 + $0x478] sm:$0xff]
        %v6098 = vld [vmem:[#allocation8 + $0x480] sm:$0xff]
        %v6099 = vld [vmem:[#allocation8 + $0x488] sm:$0xff]
        %v6100 = vld [vmem:[#allocation8 + $0x490] sm:$0xff]
        %v6101 = vld [vmem:[#allocation8 + $0x498] sm:$0xff]
        %v6102 = vld [vmem:[#allocation8 + $0x4a0] sm:$0xff]
        %v6103 = vld [vmem:[#allocation8 + $0x4a8] sm:$0xff]
        %v6104 = vld [vmem:[#allocation8 + $0x4b0] sm:$0xff]
        %v6105 = vld [vmem:[#allocation8 + $0x4b8] sm:$0xff]
        %v6106 = vld [vmem:[#allocation8 + $0x4c0] sm:$0xff]
        %v6107 = vld [vmem:[#allocation8 + $0x4c8] sm:$0xff]
        %v6108 = vld [vmem:[#allocation8 + $0x4d0] sm:$0xff]
        %v6109 = vld [vmem:[#allocation8 + $0x4d8] sm:$0xff]
        %v6110 = vld [vmem:[#allocation8 + $0x4e0] sm:$0xff]
        %v6111 = vld [vmem:[#allocation8 + $0x4e8] sm:$0xff]
        %v6112 = vld [vmem:[#allocation8 + $0x4f0] sm:$0xff]
        %v6113 = vld [vmem:[#allocation8 + $0x4f8] sm:$0xff]
        %v6114 = vld [vmem:[#allocation8 + $0x500] sm:$0xff]
        %v6115 = vld [vmem:[#allocation8 + $0x508] sm:$0xff]
        %v6116 = vld [vmem:[#allocation8 + $0x510] sm:$0xff]
        %v6117 = vld [vmem:[#allocation8 + $0x518] sm:$0xff]
        %v6118 = vld [vmem:[#allocation8 + $0x520] sm:$0xff]
        %v6119 = vld [vmem:[#allocation8 + $0x528] sm:$0xff]
        %v6120 = vld [vmem:[#allocation8 + $0x530] sm:$0xff]
        %v6121 = vld [vmem:[#allocation8 + $0x538] sm:$0xff]
        %v6122 = vld [vmem:[#allocation8 + $0x540] sm:$0xff]
        %v6123 = vld [vmem:[#allocation8 + $0x548] sm:$0xff]
        %v6124 = vld [vmem:[#allocation8 + $0x550] sm:$0xff]
        %v6125 = vld [vmem:[#allocation8 + $0x558] sm:$0xff]
        %v6126 = vld [vmem:[#allocation8 + $0x560] sm:$0xff]
        %v6127 = vld [vmem:[#allocation8 + $0x568] sm:$0xff]
        %v6128 = vld [vmem:[#allocation8 + $0x570] sm:$0xff]
        %v6129 = vld [vmem:[#allocation8 + $0x578] sm:$0xff]
        %v6130 = vld [vmem:[#allocation8 + $0x580] sm:$0xff]
        %v6131 = vld [vmem:[#allocation8 + $0x588] sm:$0xff]
        %v6132 = vld [vmem:[#allocation8 + $0x590] sm:$0xff]
        %v6133 = vld [vmem:[#allocation8 + $0x598] sm:$0xff]
        %v6134 = vld [vmem:[#allocation8 + $0x5a0] sm:$0xff]
        %v6135 = vld [vmem:[#allocation8 + $0x5a8] sm:$0xff]
        %v6136 = vld [vmem:[#allocation8 + $0x5b0] sm:$0xff]
        %v6137 = vld [vmem:[#allocation8 + $0x5b8] sm:$0xff]
        %v6138 = vld [vmem:[#allocation8 + $0x5c0] sm:$0xff]
        %v6139 = vld [vmem:[#allocation8 + $0x5c8] sm:$0xff]
        %v6140 = vld [vmem:[#allocation8 + $0x5d0] sm:$0xff]
        %v6141 = vld [vmem:[#allocation8 + $0x5d8] sm:$0xff]
        %v6142 = vld [vmem:[#allocation8 + $0x5e0] sm:$0xff]
        %v6143 = vld [vmem:[#allocation8 + $0x5e8] sm:$0xff]
        %v6144 = vld [vmem:[#allocation8 + $0x5f0] sm:$0xff]
        %v6145 = vld [vmem:[#allocation8 + $0x5f8] sm:$0xff]
        %v6146 = vld [vmem:[#allocation8 + $0x600] sm:$0xff]
        %v6147 = vld [vmem:[#allocation8 + $0x608] sm:$0xff]
        %v6148 = vld [vmem:[#allocation8 + $0x610] sm:$0xff]
        %v6149 = vld [vmem:[#allocation8 + $0x618] sm:$0xff]
        %v6150 = vld [vmem:[#allocation8 + $0x620] sm:$0xff]
        %v6151 = vld [vmem:[#allocation8 + $0x628] sm:$0xff]
        %v6152 = vld [vmem:[#allocation8 + $0x630] sm:$0xff]
        %v6153 = vld [vmem:[#allocation8 + $0x638] sm:$0xff]
        %v6154 = vld [vmem:[#allocation8 + $0x640] sm:$0xff]
        %v6155 = vld [vmem:[#allocation8 + $0x648] sm:$0xff]
        %v6156 = vld [vmem:[#allocation8 + $0x650] sm:$0xff]
        %v6157 = vld [vmem:[#allocation8 + $0x658] sm:$0xff]
        %v6158 = vld [vmem:[#allocation8 + $0x660] sm:$0xff]
        %v6159 = vld [vmem:[#allocation8 + $0x668] sm:$0xff]
        %v6160 = vld [vmem:[#allocation8 + $0x670] sm:$0xff]
        %v6161 = vld [vmem:[#allocation8 + $0x678] sm:$0xff]
        %v6162 = vld [vmem:[#allocation8 + $0x680] sm:$0xff]
        %v6163 = vld [vmem:[#allocation8 + $0x688] sm:$0xff]
        %v6164 = vld [vmem:[#allocation8 + $0x690] sm:$0xff]
        %v6165 = vld [vmem:[#allocation8 + $0x698] sm:$0xff]
        %v6166 = vld [vmem:[#allocation8 + $0x6a0] sm:$0xff]
        %v6167 = vld [vmem:[#allocation8 + $0x6a8] sm:$0xff]
        %v6168 = vld [vmem:[#allocation8 + $0x6b0] sm:$0xff]
        %v6169 = vld [vmem:[#allocation8 + $0x6b8] sm:$0xff]
        %v6170 = vld [vmem:[#allocation8 + $0x6c0] sm:$0xff]
        %v6171 = vld [vmem:[#allocation8 + $0x6c8] sm:$0xff]
        %v6172 = vld [vmem:[#allocation8 + $0x6d0] sm:$0xff]
        %v6173 = vld [vmem:[#allocation8 + $0x6d8] sm:$0xff]
        %v6174 = vld [vmem:[#allocation8 + $0x6e0] sm:$0xff]
        %v6175 = vld [vmem:[#allocation8 + $0x6e8] sm:$0xff]
        %v6176 = vld [vmem:[#allocation8 + $0x6f0] sm:$0xff]
        %v6177 = vld [vmem:[#allocation8 + $0x6f8] sm:$0xff]
        %v6178 = vld [vmem:[#allocation8 + $0x700] sm:$0xff]
        %v6179 = vld [vmem:[#allocation8 + $0x708] sm:$0xff]
        %v6180 = vld [vmem:[#allocation8 + $0x710] sm:$0xff]
        %v6181 = vld [vmem:[#allocation8 + $0x718] sm:$0xff]
        %v6182 = vld [vmem:[#allocation8 + $0x720] sm:$0xff]
        %v6183 = vld [vmem:[#allocation8 + $0x728] sm:$0xff]
        %v6184 = vld [vmem:[#allocation8 + $0x730] sm:$0xff]
        %v6185 = vld [vmem:[#allocation8 + $0x738] sm:$0xff]
        %v6186 = vld [vmem:[#allocation8 + $0x740] sm:$0xff]
        %v6187 = vld [vmem:[#allocation8 + $0x748] sm:$0xff]
        %v6188 = vld [vmem:[#allocation8 + $0x750] sm:$0xff]
        %v6189 = vld [vmem:[#allocation8 + $0x758] sm:$0xff]
        %v6190 = vld [vmem:[#allocation8 + $0x760] sm:$0xff]
        %v6191 = vld [vmem:[#allocation8 + $0x768] sm:$0xff]
        %v6192 = vld [vmem:[#allocation8 + $0x770] sm:$0xff]
        %v6193 = vld [vmem:[#allocation8 + $0x778] sm:$0xff]
        %v6194 = vld [vmem:[#allocation8 + $0x780] sm:$0xff]
        %v6195 = vld [vmem:[#allocation8 + $0x788] sm:$0xff]
        %v6196 = vld [vmem:[#allocation8 + $0x790] sm:$0xff]
        %v6197 = vld [vmem:[#allocation8 + $0x798] sm:$0xff]
        %v6198 = vld [vmem:[#allocation8 + $0x7a0] sm:$0xff]
        %v6199 = vld [vmem:[#allocation8 + $0x7a8] sm:$0xff]
        %v6200 = vld [vmem:[#allocation8 + $0x7b0] sm:$0xff]
        %v6201 = vld [vmem:[#allocation8 + $0x7b8] sm:$0xff]
        %v6202 = vld [vmem:[#allocation8 + $0x7c0] sm:$0xff]
        %v6203 = vld [vmem:[#allocation8 + $0x7c8] sm:$0xff]
        %v6204 = vld [vmem:[#allocation8 + $0x7d0] sm:$0xff]
        %v6205 = vld [vmem:[#allocation8 + $0x7d8] sm:$0xff]
        %v6206 = vld [vmem:[#allocation8 + $0x7e0] sm:$0xff]
        %v6207 = vld [vmem:[#allocation8 + $0x7e8] sm:$0xff]
        %v6208 = vld [vmem:[#allocation8 + $0x7f0] sm:$0xff]
        %v6209 = vld [vmem:[#allocation8 + $0x7f8] sm:$0xff]
        %v6210 = vld [vmem:[#allocation8 + $0x800] sm:$0xff]
        %v6211 = vld [vmem:[#allocation8 + $0x808] sm:$0xff]
        %v6212 = vld [vmem:[#allocation8 + $0x810] sm:$0xff]
        %v6213 = vld [vmem:[#allocation8 + $0x818] sm:$0xff]
        %v6214 = vld [vmem:[#allocation8 + $0x820] sm:$0xff]
        %v6215 = vld [vmem:[#allocation8 + $0x828] sm:$0xff]
        %v6216 = vld [vmem:[#allocation8 + $0x830] sm:$0xff]
        %v6217 = vld [vmem:[#allocation8 + $0x838] sm:$0xff]
        %v6218 = vld [vmem:[#allocation8 + $0x840] sm:$0xff]
        %v6219 = vld [vmem:[#allocation8 + $0x848] sm:$0xff]
        %v6220 = vld [vmem:[#allocation8 + $0x850] sm:$0xff]
        %v6221 = vld [vmem:[#allocation8 + $0x858] sm:$0xff]
        %v6222 = vld [vmem:[#allocation8 + $0x860] sm:$0xff]
        %v6223 = vld [vmem:[#allocation8 + $0x868] sm:$0xff]
        %v6224 = vld [vmem:[#allocation8 + $0x870] sm:$0xff]
        %v6225 = vld [vmem:[#allocation8 + $0x878] sm:$0xff]
        %v6226 = vld [vmem:[#allocation8 + $0x880] sm:$0xff]
        %v6227 = vld [vmem:[#allocation8 + $0x888] sm:$0xff]
        %v6228 = vld [vmem:[#allocation8 + $0x890] sm:$0xff]
        %v6229 = vld [vmem:[#allocation8 + $0x898] sm:$0xff]
        %v6230 = vld [vmem:[#allocation8 + $0x8a0] sm:$0xff]
        %v6231 = vld [vmem:[#allocation8 + $0x8a8] sm:$0xff]
        %v6232 = vld [vmem:[#allocation8 + $0x8b0] sm:$0xff]
        %v6233 = vld [vmem:[#allocation8 + $0x8b8] sm:$0xff]
        %v6234 = vld [vmem:[#allocation8 + $0x8c0] sm:$0xff]
        %v6235 = vld [vmem:[#allocation8 + $0x8c8] sm:$0xff]
        %v6236 = vld [vmem:[#allocation8 + $0x8d0] sm:$0xff]
        %v6237 = vld [vmem:[#allocation8 + $0x8d8] sm:$0xff]
        %v6238 = vld [vmem:[#allocation8 + $0x8e0] sm:$0xff]
        %v6239 = vld [vmem:[#allocation8 + $0x8e8] sm:$0xff]
        %v6240 = vld [vmem:[#allocation8 + $0x8f0] sm:$0xff]
        %v6241 = vld [vmem:[#allocation8 + $0x8f8] sm:$0xff]
        %v6242 = vld [vmem:[#allocation8 + $0x900] sm:$0xff]
        %v6243 = vld [vmem:[#allocation8 + $0x908] sm:$0xff]
        %v6244 = vld [vmem:[#allocation8 + $0x910] sm:$0xff]
        %v6245 = vld [vmem:[#allocation8 + $0x918] sm:$0xff]
        %v6246 = vld [vmem:[#allocation8 + $0x920] sm:$0xff]
        %v6247 = vld [vmem:[#allocation8 + $0x928] sm:$0xff]
        %v6248 = vld [vmem:[#allocation8 + $0x930] sm:$0xff]
        %v6249 = vld [vmem:[#allocation8 + $0x938] sm:$0xff]
        %v6250 = vld [vmem:[#allocation8 + $0x940] sm:$0xff]
        %v6251 = vld [vmem:[#allocation8 + $0x948] sm:$0xff]
        %v6252 = vld [vmem:[#allocation8 + $0x950] sm:$0xff]
        %v6253 = vld [vmem:[#allocation8 + $0x958] sm:$0xff]
        %v6254 = vld [vmem:[#allocation8 + $0x960] sm:$0xff]
        %v6255 = vld [vmem:[#allocation8 + $0x968] sm:$0xff]
        %v6256 = vld [vmem:[#allocation8 + $0x970] sm:$0xff]
        %v6257 = vld [vmem:[#allocation8 + $0x978] sm:$0xff]
        %v6258 = vld [vmem:[#allocation8 + $0x980] sm:$0xff]
        %v6259 = vld [vmem:[#allocation8 + $0x988] sm:$0xff]
        %v6260 = vld [vmem:[#allocation8 + $0x990] sm:$0xff]
        %v6261 = vld [vmem:[#allocation8 + $0x998] sm:$0xff]
        %v6262 = vld [vmem:[#allocation8 + $0x9a0] sm:$0xff]
        %v6263 = vld [vmem:[#allocation8 + $0x9a8] sm:$0xff]
        %v6264 = vld [vmem:[#allocation8 + $0x9b0] sm:$0xff]
        %v6265 = vld [vmem:[#allocation8 + $0x9b8] sm:$0xff]
        %v6266 = vld [vmem:[#allocation8 + $0x9c0] sm:$0xff]
        %v6267 = vld [vmem:[#allocation8 + $0x9c8] sm:$0xff]
        %v6268 = vld [vmem:[#allocation8 + $0x9d0] sm:$0xff]
        %v6269 = vld [vmem:[#allocation8 + $0x9d8] sm:$0xff]
        %v6270 = vld [vmem:[#allocation8 + $0x9e0] sm:$0xff]
        %v6271 = vld [vmem:[#allocation8 + $0x9e8] sm:$0xff]
        %v6272 = vld [vmem:[#allocation8 + $0x9f0] sm:$0xff]
        %v6273 = vld [vmem:[#allocation8 + $0x9f8] sm:$0xff]
        %v6274 = vld [vmem:[#allocation8 + $0xa00] sm:$0xff]
        %v6275 = vld [vmem:[#allocation8 + $0xa08] sm:$0xff]
        %v6276 = vld [vmem:[#allocation8 + $0xa10] sm:$0xff]
        %v6277 = vld [vmem:[#allocation8 + $0xa18] sm:$0xff]
        %v6278 = vld [vmem:[#allocation8 + $0xa20] sm:$0xff]
        %v6279 = vld [vmem:[#allocation8 + $0xa28] sm:$0xff]
        %v6280 = vld [vmem:[#allocation8 + $0xa30] sm:$0xff]
        %v6281 = vld [vmem:[#allocation8 + $0xa38] sm:$0xff]
        %v6282 = vld [vmem:[#allocation8 + $0xa40] sm:$0xff]
        %v6283 = vld [vmem:[#allocation8 + $0xa48] sm:$0xff]
        %v6284 = vld [vmem:[#allocation8 + $0xa50] sm:$0xff]
        %v6285 = vld [vmem:[#allocation8 + $0xa58] sm:$0xff]
        %v6286 = vld [vmem:[#allocation8 + $0xa60] sm:$0xff]
        %v6287 = vld [vmem:[#allocation8 + $0xa68] sm:$0xff]
        %v6288 = vld [vmem:[#allocation8 + $0xa70] sm:$0xff]
        %v6289 = vld [vmem:[#allocation8 + $0xa78] sm:$0xff]
        %v6290 = vld [vmem:[#allocation8 + $0xa80] sm:$0xff]
        %v6291 = vld [vmem:[#allocation8 + $0xa88] sm:$0xff]
        %v6292 = vld [vmem:[#allocation8 + $0xa90] sm:$0xff]
        %v6293 = vld [vmem:[#allocation8 + $0xa98] sm:$0xff]
        %v6294 = vld [vmem:[#allocation8 + $0xaa0] sm:$0xff]
        %v6295 = vld [vmem:[#allocation8 + $0xaa8] sm:$0xff]
        %v6296 = vld [vmem:[#allocation8 + $0xab0] sm:$0xff]
        %v6297 = vld [vmem:[#allocation8 + $0xab8] sm:$0xff]
        %v6298 = vld [vmem:[#allocation8 + $0xac0] sm:$0xff]
        %v6299 = vld [vmem:[#allocation8 + $0xac8] sm:$0xff]
        %v6300 = vld [vmem:[#allocation8 + $0xad0] sm:$0xff]
        %v6301 = vld [vmem:[#allocation8 + $0xad8] sm:$0xff]
        %v6302 = vld [vmem:[#allocation8 + $0xae0] sm:$0xff]
        %v6303 = vld [vmem:[#allocation8 + $0xae8] sm:$0xff]
        %v6304 = vld [vmem:[#allocation8 + $0xaf0] sm:$0xff]
        %v6305 = vld [vmem:[#allocation8 + $0xaf8] sm:$0xff]
        %v6306 = vld [vmem:[#allocation8 + $0xb00] sm:$0xff]
        %v6307 = vld [vmem:[#allocation8 + $0xb08] sm:$0xff]
        %v6308 = vld [vmem:[#allocation8 + $0xb10] sm:$0xff]
        %v6309 = vld [vmem:[#allocation8 + $0xb18] sm:$0xff]
        %v6310 = vld [vmem:[#allocation8 + $0xb20] sm:$0xff]
        %v6311 = vld [vmem:[#allocation8 + $0xb28] sm:$0xff]
        %v6312 = vld [vmem:[#allocation8 + $0xb30] sm:$0xff]
        %v6313 = vld [vmem:[#allocation8 + $0xb38] sm:$0xff]
        %v6314 = vld [vmem:[#allocation8 + $0xb40] sm:$0xff]
        %v6315 = vld [vmem:[#allocation8 + $0xb48] sm:$0xff]
        %v6316 = vld [vmem:[#allocation8 + $0xb50] sm:$0xff]
        %v6317 = vld [vmem:[#allocation8 + $0xb58] sm:$0xff]
        %v6318 = vld [vmem:[#allocation8 + $0xb60] sm:$0xff]
        %v6319 = vld [vmem:[#allocation8 + $0xb68] sm:$0xff]
        %v6320 = vld [vmem:[#allocation8 + $0xb70] sm:$0xff]
        %v6321 = vld [vmem:[#allocation8 + $0xb78] sm:$0xff]
        %v6322 = vld [vmem:[#allocation8 + $0xb80] sm:$0xff]
        %v6323 = vld [vmem:[#allocation8 + $0xb88] sm:$0xff]
        %v6324 = vld [vmem:[#allocation8 + $0xb90] sm:$0xff]
        %v6325 = vld [vmem:[#allocation8 + $0xb98] sm:$0xff]
        %v6326 = vld [vmem:[#allocation8 + $0xba0] sm:$0xff]
        %v6327 = vld [vmem:[#allocation8 + $0xba8] sm:$0xff]
        %v6328 = vld [vmem:[#allocation8 + $0xbb0] sm:$0xff]
        %v6329 = vld [vmem:[#allocation8 + $0xbb8] sm:$0xff]
        %v6330 = vld [vmem:[#allocation8 + $0xbc0] sm:$0xff]
        %v6331 = vld [vmem:[#allocation8 + $0xbc8] sm:$0xff]
        %v6332 = vld [vmem:[#allocation8 + $0xbd0] sm:$0xff]
        %v6333 = vld [vmem:[#allocation8 + $0xbd8] sm:$0xff]
        %v6334 = vld [vmem:[#allocation8 + $0xbe0] sm:$0xff]
        %v6335 = vld [vmem:[#allocation8 + $0xbe8] sm:$0xff]
        %v6336 = vld [vmem:[#allocation8 + $0xbf0] sm:$0xff]
        %v6337 = vld [vmem:[#allocation8 + $0xbf8] sm:$0xff]
        %v6338 = vld [vmem:[#allocation8 + $0xc00] sm:$0xff]
        %v6339 = vld [vmem:[#allocation8 + $0xc08] sm:$0xff]
        %v6340 = vld [vmem:[#allocation8 + $0xc10] sm:$0xff]
        %v6341 = vld [vmem:[#allocation8 + $0xc18] sm:$0xff]
        %v6342 = vld [vmem:[#allocation8 + $0xc20] sm:$0xff]
        %v6343 = vld [vmem:[#allocation8 + $0xc28] sm:$0xff]
        %v6344 = vld [vmem:[#allocation8 + $0xc30] sm:$0xff]
        %v6345 = vld [vmem:[#allocation8 + $0xc38] sm:$0xff]
        %v6346 = vld [vmem:[#allocation8 + $0xc40] sm:$0xff]
        %v6347 = vld [vmem:[#allocation8 + $0xc48] sm:$0xff]
        %v6348 = vld [vmem:[#allocation8 + $0xc50] sm:$0xff]
        %v6349 = vld [vmem:[#allocation8 + $0xc58] sm:$0xff]
        %v6350 = vld [vmem:[#allocation8 + $0xc60] sm:$0xff]
        %v6351 = vld [vmem:[#allocation8 + $0xc68] sm:$0xff]
        %v6352 = vld [vmem:[#allocation8 + $0xc70] sm:$0xff]
        %v6353 = vld [vmem:[#allocation8 + $0xc78] sm:$0xff]
        %v6354 = vld [vmem:[#allocation8 + $0xc80] sm:$0xff]
        %v6355 = vld [vmem:[#allocation8 + $0xc88] sm:$0xff]
        %v6356 = vld [vmem:[#allocation8 + $0xc90] sm:$0xff]
        %v6357 = vld [vmem:[#allocation8 + $0xc98] sm:$0xff]
        %v6358 = vld [vmem:[#allocation8 + $0xca0] sm:$0xff]
        %v6359 = vld [vmem:[#allocation8 + $0xca8] sm:$0xff]
        %v6360 = vld [vmem:[#allocation8 + $0xcb0] sm:$0xff]
        %v6361 = vld [vmem:[#allocation8 + $0xcb8] sm:$0xff]
        %v6362 = vld [vmem:[#allocation8 + $0xcc0] sm:$0xff]
        %v6363 = vld [vmem:[#allocation8 + $0xcc8] sm:$0xff]
        %v6364 = vld [vmem:[#allocation8 + $0xcd0] sm:$0xff]
        %v6365 = vld [vmem:[#allocation8 + $0xcd8] sm:$0xff]
        %v6366 = vld [vmem:[#allocation8 + $0xce0] sm:$0xff]
        %v6367 = vld [vmem:[#allocation8 + $0xce8] sm:$0xff]
        %v6368 = vld [vmem:[#allocation8 + $0xcf0] sm:$0xff]
        %v6369 = vld [vmem:[#allocation8 + $0xcf8] sm:$0xff]
        %v6370 = vld [vmem:[#allocation8 + $0xd00] sm:$0xff]
        %v6371 = vld [vmem:[#allocation8 + $0xd08] sm:$0xff]
        %v6372 = vld [vmem:[#allocation8 + $0xd10] sm:$0xff]
        %v6373 = vld [vmem:[#allocation8 + $0xd18] sm:$0xff]
        %v6374 = vld [vmem:[#allocation8 + $0xd20] sm:$0xff]
        %v6375 = vld [vmem:[#allocation8 + $0xd28] sm:$0xff]
        %v6376 = vld [vmem:[#allocation8 + $0xd30] sm:$0xff]
        %v6377 = vld [vmem:[#allocation8 + $0xd38] sm:$0xff]
        %v6378 = vld [vmem:[#allocation8 + $0xd40] sm:$0xff]
        %v6379 = vld [vmem:[#allocation8 + $0xd48] sm:$0xff]
        %v6380 = vld [vmem:[#allocation8 + $0xd50] sm:$0xff]
        %v6381 = vld [vmem:[#allocation8 + $0xd58] sm:$0xff]
        %v6382 = vld [vmem:[#allocation8 + $0xd60] sm:$0xff]
        %v6383 = vld [vmem:[#allocation8 + $0xd68] sm:$0xff]
        %v6384 = vld [vmem:[#allocation8 + $0xd70] sm:$0xff]
        %v6385 = vld [vmem:[#allocation8 + $0xd78] sm:$0xff]
        %v6386 = vld [vmem:[#allocation8 + $0xd80] sm:$0xff]
        %v6387 = vld [vmem:[#allocation8 + $0xd88] sm:$0xff]
        %v6388 = vld [vmem:[#allocation8 + $0xd90] sm:$0xff]
        %v6389 = vld [vmem:[#allocation8 + $0xd98] sm:$0xff]
        %v6390 = vld [vmem:[#allocation8 + $0xda0] sm:$0xff]
        %v6391 = vld [vmem:[#allocation8 + $0xda8] sm:$0xff]
        %v6392 = vld [vmem:[#allocation8 + $0xdb0] sm:$0xff]
        %v6393 = vld [vmem:[#allocation8 + $0xdb8] sm:$0xff]
        %v6394 = vld [vmem:[#allocation8 + $0xdc0] sm:$0xff]
        %v6395 = vld [vmem:[#allocation8 + $0xdc8] sm:$0xff]
        %v6396 = vld [vmem:[#allocation8 + $0xdd0] sm:$0xff]
        %v6397 = vld [vmem:[#allocation8 + $0xdd8] sm:$0xff]
        %v6398 = vld [vmem:[#allocation8 + $0xde0] sm:$0xff]
        %v6399 = vld [vmem:[#allocation8 + $0xde8] sm:$0xff]
        %v6400 = vld [vmem:[#allocation8 + $0xdf0] sm:$0xff]
        %v6401 = vld [vmem:[#allocation8 + $0xdf8] sm:$0xff]
        %v6402 = vld [vmem:[#allocation8 + $0xe00] sm:$0xff]
        %v6403 = vld [vmem:[#allocation8 + $0xe08] sm:$0xff]
        %v6404 = vld [vmem:[#allocation8 + $0xe10] sm:$0xff]
        %v6405 = vld [vmem:[#allocation8 + $0xe18] sm:$0xff]
        %v6406 = vld [vmem:[#allocation8 + $0xe20] sm:$0xff]
        %v6407 = vld [vmem:[#allocation8 + $0xe28] sm:$0xff]
        %v6408 = vld [vmem:[#allocation8 + $0xe30] sm:$0xff]
        %v6409 = vld [vmem:[#allocation8 + $0xe38] sm:$0xff]
        %v6410 = vld [vmem:[#allocation8 + $0xe40] sm:$0xff]
        %v6411 = vld [vmem:[#allocation8 + $0xe48] sm:$0xff]
        %v6412 = vld [vmem:[#allocation8 + $0xe50] sm:$0xff]
        %v6413 = vld [vmem:[#allocation8 + $0xe58] sm:$0xff]
        %v6414 = vld [vmem:[#allocation8 + $0xe60] sm:$0xff]
        %v6415 = vld [vmem:[#allocation8 + $0xe68] sm:$0xff]
        %v6416 = vld [vmem:[#allocation8 + $0xe70] sm:$0xff]
        %v6417 = vld [vmem:[#allocation8 + $0xe78] sm:$0xff]
        %v6418 = vld [vmem:[#allocation8 + $0xe80] sm:$0xff]
        %v6419 = vld [vmem:[#allocation8 + $0xe88] sm:$0xff]
        %v6420 = vld [vmem:[#allocation8 + $0xe90] sm:$0xff]
        %v6421 = vld [vmem:[#allocation8 + $0xe98] sm:$0xff]
        %v6422 = vld [vmem:[#allocation8 + $0xea0] sm:$0xff]
        %v6423 = vld [vmem:[#allocation8 + $0xea8] sm:$0xff]
        %v6424 = vld [vmem:[#allocation8 + $0xeb0] sm:$0xff]
        %v6425 = vld [vmem:[#allocation8 + $0xeb8] sm:$0xff]
        %v6426 = vld [vmem:[#allocation8 + $0xec0] sm:$0xff]
        %v6427 = vld [vmem:[#allocation8 + $0xec8] sm:$0xff]
        %v6428 = vld [vmem:[#allocation8 + $0xed0] sm:$0xff]
        %v6429 = vld [vmem:[#allocation8 + $0xed8] sm:$0xff]
        %v6430 = vld [vmem:[#allocation8 + $0xee0] sm:$0xff]
        %v6431 = vld [vmem:[#allocation8 + $0xee8] sm:$0xff]
        %v6432 = vld [vmem:[#allocation8 + $0xef0] sm:$0xff]
        %v6433 = vld [vmem:[#allocation8 + $0xef8] sm:$0xff]
        %v6434 = vld [vmem:[#allocation8 + $0xf00] sm:$0xff]
        %v6435 = vld [vmem:[#allocation8 + $0xf08] sm:$0xff]
        %v6436 = vld [vmem:[#allocation8 + $0xf10] sm:$0xff]
        %v6437 = vld [vmem:[#allocation8 + $0xf18] sm:$0xff]
        %v6438 = vld [vmem:[#allocation8 + $0xf20] sm:$0xff]
        %v6439 = vld [vmem:[#allocation8 + $0xf28] sm:$0xff]
        %v6440 = vld [vmem:[#allocation8 + $0xf30] sm:$0xff]
        %v6441 = vld [vmem:[#allocation8 + $0xf38] sm:$0xff]
        %v6442 = vld [vmem:[#allocation8 + $0xf40] sm:$0xff]
        %v6443 = vld [vmem:[#allocation8 + $0xf48] sm:$0xff]
        %v6444 = vld [vmem:[#allocation8 + $0xf50] sm:$0xff]
        %v6445 = vld [vmem:[#allocation8 + $0xf58] sm:$0xff]
        %v6446 = vld [vmem:[#allocation8 + $0xf60] sm:$0xff]
        %v6447 = vld [vmem:[#allocation8 + $0xf68] sm:$0xff]
        %v6448 = vld [vmem:[#allocation8 + $0xf70] sm:$0xff]
        %v6449 = vld [vmem:[#allocation8 + $0xf78] sm:$0xff]
        %v6450 = vld [vmem:[#allocation8 + $0xf80] sm:$0xff]
        %v6451 = vld [vmem:[#allocation8 + $0xf88] sm:$0xff]
        %v6452 = vld [vmem:[#allocation8 + $0xf90] sm:$0xff]
        %v6453 = vld [vmem:[#allocation8 + $0xf98] sm:$0xff]
        %v6454 = vld [vmem:[#allocation8 + $0xfa0] sm:$0xff]
        %v6455 = vld [vmem:[#allocation8 + $0xfa8] sm:$0xff]
        %v6456 = vld [vmem:[#allocation8 + $0xfb0] sm:$0xff]
        %v6457 = vld [vmem:[#allocation8 + $0xfb8] sm:$0xff]
        %v6458 = vld [vmem:[#allocation8 + $0xfc0] sm:$0xff]
        %v6459 = vld [vmem:[#allocation8 + $0xfc8] sm:$0xff]
        %v6460 = vld [vmem:[#allocation8 + $0xfd0] sm:$0xff]
        %v6461 = vld [vmem:[#allocation8 + $0xfd8] sm:$0xff]
        %v6462 = vld [vmem:[#allocation8 + $0xfe0] sm:$0xff]
        %v6463 = vld [vmem:[#allocation8 + $0xfe8] sm:$0xff]
        %v6464 = vld [vmem:[#allocation8 + $0xff0] sm:$0xff]
        %v6465 = vld [vmem:[#allocation8 + $0xff8] sm:$0xff]
        %v6466 = vld [vmem:[#allocation10] sm:$0xf]
        %v6468 = vlaneseq
        %v6469 = vshrl.u32 %v6468, 7
        %v6470 = vsub.s32 0, %v6469
        %v6471 = vrot.slane %v6466, %v6470
        %v6472 = vlaneseq
        %v6473 = vshrl.u32 %v6472, 7
        %v6474 = vsub.s32 1, %v6473
        %v6475 = vrot.slane %v6466, %v6474
        %v6476 = vlaneseq
        %v6477 = vshrl.u32 %v6476, 7
        %v6478 = vsub.s32 2, %v6477
        %v6479 = vrot.slane %v6466, %v6478
        %v6480 = vlaneseq
        %v6481 = vshrl.u32 %v6480, 7
        %v6482 = vsub.s32 3, %v6481
        %v6483 = vrot.slane %v6466, %v6482
        %v7000 = vunpack.c.l.b16 %v5954
        %v7001 = vunpack.c.h.b16 %v5954
        %v7002 = vunpack.c.l.b16 %v5955
        %v7003 = vunpack.c.h.b16 %v5955
        %v7004 = vunpack.c.l.b16 %v5956
        %v7005 = vunpack.c.h.b16 %v5956
        %v7006 = vunpack.c.l.b16 %v5957
        %v7007 = vunpack.c.h.b16 %v5957
        %v7008 = vunpack.c.l.b16 %v5958
        %v7009 = vunpack.c.h.b16 %v5958
        %v7010 = vunpack.c.l.b16 %v5959
        %v7011 = vunpack.c.h.b16 %v5959
        %v7012 = vunpack.c.l.b16 %v5960
        %v7013 = vunpack.c.h.b16 %v5960
        %v7014 = vunpack.c.l.b16 %v5961
        %v7015 = vunpack.c.h.b16 %v5961
        %v7016 = vunpack.c.l.b16 %v5962
        %v7017 = vunpack.c.h.b16 %v5962
        %v7018 = vunpack.c.l.b16 %v5963
        %v7019 = vunpack.c.h.b16 %v5963
        %v7020 = vunpack.c.l.b16 %v5964
        %v7021 = vunpack.c.h.b16 %v5964
        %v7022 = vunpack.c.l.b16 %v5965
        %v7023 = vunpack.c.h.b16 %v5965
        %v7024 = vunpack.c.l.b16 %v5966
        %v7025 = vunpack.c.h.b16 %v5966
        %v7026 = vunpack.c.l.b16 %v5967
        %v7027 = vunpack.c.h.b16 %v5967
        %v7028 = vunpack.c.l.b16 %v5968
        %v7029 = vunpack.c.h.b16 %v5968
        %v7030 = vunpack.c.l.b16 %v5969
        %v7031 = vunpack.c.h.b16 %v5969
        %v7032 = vunpack.c.l.b16 %v5970
        %v7033 = vunpack.c.h.b16 %v5970
        %v7034 = vunpack.c.l.b16 %v5971
        %v7035 = vunpack.c.h.b16 %v5971
        %v7036 = vunpack.c.l.b16 %v5972
        %v7037 = vunpack.c.h.b16 %v5972
        %v7038 = vunpack.c.l.b16 %v5973
        %v7039 = vunpack.c.h.b16 %v5973
        %v7040 = vunpack.c.l.b16 %v5974
        %v7041 = vunpack.c.h.b16 %v5974
        %v7042 = vunpack.c.l.b16 %v5975
        %v7043 = vunpack.c.h.b16 %v5975
        %v7044 = vunpack.c.l.b16 %v5976
        %v7045 = vunpack.c.h.b16 %v5976
        %v7046 = vunpack.c.l.b16 %v5977
        %v7047 = vunpack.c.h.b16 %v5977
        %v7048 = vunpack.c.l.b16 %v5978
        %v7049 = vunpack.c.h.b16 %v5978
        %v7050 = vunpack.c.l.b16 %v5979
        %v7051 = vunpack.c.h.b16 %v5979
        %v7052 = vunpack.c.l.b16 %v5980
        %v7053 = vunpack.c.h.b16 %v5980
        %v7054 = vunpack.c.l.b16 %v5981
        %v7055 = vunpack.c.h.b16 %v5981
        %v7056 = vunpack.c.l.b16 %v5982
        %v7057 = vunpack.c.h.b16 %v5982
        %v7058 = vunpack.c.l.b16 %v5983
        %v7059 = vunpack.c.h.b16 %v5983
        %v7060 = vunpack.c.l.b16 %v5984
        %v7061 = vunpack.c.h.b16 %v5984
        %v7062 = vunpack.c.l.b16 %v5985
        %v7063 = vunpack.c.h.b16 %v5985
        %v7064 = vunpack.c.l.b16 %v5986
        %v7065 = vunpack.c.h.b16 %v5986
        %v7066 = vunpack.c.l.b16 %v5987
        %v7067 = vunpack.c.h.b16 %v5987
        %v7068 = vunpack.c.l.b16 %v5988
        %v7069 = vunpack.c.h.b16 %v5988
        %v7070 = vunpack.c.l.b16 %v5989
        %v7071 = vunpack.c.h.b16 %v5989
        %v7072 = vunpack.c.l.b16 %v5990
        %v7073 = vunpack.c.h.b16 %v5990
        %v7074 = vunpack.c.l.b16 %v5991
        %v7075 = vunpack.c.h.b16 %v5991
        %v7076 = vunpack.c.l.b16 %v5992
        %v7077 = vunpack.c.h.b16 %v5992
        %v7078 = vunpack.c.l.b16 %v5993
        %v7079 = vunpack.c.h.b16 %v5993
        %v7080 = vunpack.c.l.b16 %v5994
        %v7081 = vunpack.c.h.b16 %v5994
        %v7082 = vunpack.c.l.b16 %v5995
        %v7083 = vunpack.c.h.b16 %v5995
        %v7084 = vunpack.c.l.b16 %v5996
        %v7085 = vunpack.c.h.b16 %v5996
        %v7086 = vunpack.c.l.b16 %v5997
        %v7087 = vunpack.c.h.b16 %v5997
        %v7088 = vunpack.c.l.b16 %v5998
        %v7089 = vunpack.c.h.b16 %v5998
        %v7090 = vunpack.c.l.b16 %v5999
        %v7091 = vunpack.c.h.b16 %v5999
        %v7092 = vunpack.c.l.b16 %v6000
        %v7093 = vunpack.c.h.b16 %v6000
        %v7094 = vunpack.c.l.b16 %v6001
        %v7095 = vunpack.c.h.b16 %v6001
        %v7096 = vunpack.c.l.b16 %v6002
        %v7097 = vunpack.c.h.b16 %v6002
        %v7098 = vunpack.c.l.b16 %v6003
        %v7099 = vunpack.c.h.b16 %v6003
        %v7100 = vunpack.c.l.b16 %v6004
        %v7101 = vunpack.c.h.b16 %v6004
        %v7102 = vunpack.c.l.b16 %v6005
        %v7103 = vunpack.c.h.b16 %v6005
        %v7104 = vunpack.c.l.b16 %v6006
        %v7105 = vunpack.c.h.b16 %v6006
        %v7106 = vunpack.c.l.b16 %v6007
        %v7107 = vunpack.c.h.b16 %v6007
        %v7108 = vunpack.c.l.b16 %v6008
        %v7109 = vunpack.c.h.b16 %v6008
        %v7110 = vunpack.c.l.b16 %v6009
        %v7111 = vunpack.c.h.b16 %v6009
        %v7112 = vunpack.c.l.b16 %v6010
        %v7113 = vunpack.c.h.b16 %v6010
        %v7114 = vunpack.c.l.b16 %v6011
        %v7115 = vunpack.c.h.b16 %v6011
        %v7116 = vunpack.c.l.b16 %v6012
        %v7117 = vunpack.c.h.b16 %v6012
        %v7118 = vunpack.c.l.b16 %v6013
        %v7119 = vunpack.c.h.b16 %v6013
        %v7120 = vunpack.c.l.b16 %v6014
        %v7121 = vunpack.c.h.b16 %v6014
        %v7122 = vunpack.c.l.b16 %v6015
        %v7123 = vunpack.c.h.b16 %v6015
        %v7124 = vunpack.c.l.b16 %v6016
        %v7125 = vunpack.c.h.b16 %v6016
        %v7126 = vunpack.c.l.b16 %v6017
        %v7127 = vunpack.c.h.b16 %v6017
        %v7128 = vunpack.c.l.b16 %v6018
        %v7129 = vunpack.c.h.b16 %v6018
        %v7130 = vunpack.c.l.b16 %v6019
        %v7131 = vunpack.c.h.b16 %v6019
        %v7132 = vunpack.c.l.b16 %v6020
        %v7133 = vunpack.c.h.b16 %v6020
        %v7134 = vunpack.c.l.b16 %v6021
        %v7135 = vunpack.c.h.b16 %v6021
        %v7136 = vunpack.c.l.b16 %v6022
        %v7137 = vunpack.c.h.b16 %v6022
        %v7138 = vunpack.c.l.b16 %v6023
        %v7139 = vunpack.c.h.b16 %v6023
        %v7140 = vunpack.c.l.b16 %v6024
        %v7141 = vunpack.c.h.b16 %v6024
        %v7142 = vunpack.c.l.b16 %v6025
        %v7143 = vunpack.c.h.b16 %v6025
        %v7144 = vunpack.c.l.b16 %v6026
        %v7145 = vunpack.c.h.b16 %v6026
        %v7146 = vunpack.c.l.b16 %v6027
        %v7147 = vunpack.c.h.b16 %v6027
        %v7148 = vunpack.c.l.b16 %v6028
        %v7149 = vunpack.c.h.b16 %v6028
        %v7150 = vunpack.c.l.b16 %v6029
        %v7151 = vunpack.c.h.b16 %v6029
        %v7152 = vunpack.c.l.b16 %v6030
        %v7153 = vunpack.c.h.b16 %v6030
        %v7154 = vunpack.c.l.b16 %v6031
        %v7155 = vunpack.c.h.b16 %v6031
        %v7156 = vunpack.c.l.b16 %v6032
        %v7157 = vunpack.c.h.b16 %v6032
        %v7158 = vunpack.c.l.b16 %v6033
        %v7159 = vunpack.c.h.b16 %v6033
        %v7160 = vunpack.c.l.b16 %v6034
        %v7161 = vunpack.c.h.b16 %v6034
        %v7162 = vunpack.c.l.b16 %v6035
        %v7163 = vunpack.c.h.b16 %v6035
        %v7164 = vunpack.c.l.b16 %v6036
        %v7165 = vunpack.c.h.b16 %v6036
        %v7166 = vunpack.c.l.b16 %v6037
        %v7167 = vunpack.c.h.b16 %v6037
        %v7168 = vunpack.c.l.b16 %v6038
        %v7169 = vunpack.c.h.b16 %v6038
        %v7170 = vunpack.c.l.b16 %v6039
        %v7171 = vunpack.c.h.b16 %v6039
        %v7172 = vunpack.c.l.b16 %v6040
        %v7173 = vunpack.c.h.b16 %v6040
        %v7174 = vunpack.c.l.b16 %v6041
        %v7175 = vunpack.c.h.b16 %v6041
        %v7176 = vunpack.c.l.b16 %v6042
        %v7177 = vunpack.c.h.b16 %v6042
        %v7178 = vunpack.c.l.b16 %v6043
        %v7179 = vunpack.c.h.b16 %v6043
        %v7180 = vunpack.c.l.b16 %v6044
        %v7181 = vunpack.c.h.b16 %v6044
        %v7182 = vunpack.c.l.b16 %v6045
        %v7183 = vunpack.c.h.b16 %v6045
        %v7184 = vunpack.c.l.b16 %v6046
        %v7185 = vunpack.c.h.b16 %v6046
        %v7186 = vunpack.c.l.b16 %v6047
        %v7187 = vunpack.c.h.b16 %v6047
        %v7188 = vunpack.c.l.b16 %v6048
        %v7189 = vunpack.c.h.b16 %v6048
        %v7190 = vunpack.c.l.b16 %v6049
        %v7191 = vunpack.c.h.b16 %v6049
        %v7192 = vunpack.c.l.b16 %v6050
        %v7193 = vunpack.c.h.b16 %v6050
        %v7194 = vunpack.c.l.b16 %v6051
        %v7195 = vunpack.c.h.b16 %v6051
        %v7196 = vunpack.c.l.b16 %v6052
        %v7197 = vunpack.c.h.b16 %v6052
        %v7198 = vunpack.c.l.b16 %v6053
        %v7199 = vunpack.c.h.b16 %v6053
        %v7200 = vunpack.c.l.b16 %v6054
        %v7201 = vunpack.c.h.b16 %v6054
        %v7202 = vunpack.c.l.b16 %v6055
        %v7203 = vunpack.c.h.b16 %v6055
        %v7204 = vunpack.c.l.b16 %v6056
        %v7205 = vunpack.c.h.b16 %v6056
        %v7206 = vunpack.c.l.b16 %v6057
        %v7207 = vunpack.c.h.b16 %v6057
        %v7208 = vunpack.c.l.b16 %v6058
        %v7209 = vunpack.c.h.b16 %v6058
        %v7210 = vunpack.c.l.b16 %v6059
        %v7211 = vunpack.c.h.b16 %v6059
        %v7212 = vunpack.c.l.b16 %v6060
        %v7213 = vunpack.c.h.b16 %v6060
        %v7214 = vunpack.c.l.b16 %v6061
        %v7215 = vunpack.c.h.b16 %v6061
        %v7216 = vunpack.c.l.b16 %v6062
        %v7217 = vunpack.c.h.b16 %v6062
        %v7218 = vunpack.c.l.b16 %v6063
        %v7219 = vunpack.c.h.b16 %v6063
        %v7220 = vunpack.c.l.b16 %v6064
        %v7221 = vunpack.c.h.b16 %v6064
        %v7222 = vunpack.c.l.b16 %v6065
        %v7223 = vunpack.c.h.b16 %v6065
        %v7224 = vunpack.c.l.b16 %v6066
        %v7225 = vunpack.c.h.b16 %v6066
        %v7226 = vunpack.c.l.b16 %v6067
        %v7227 = vunpack.c.h.b16 %v6067
        %v7228 = vunpack.c.l.b16 %v6068
        %v7229 = vunpack.c.h.b16 %v6068
        %v7230 = vunpack.c.l.b16 %v6069
        %v7231 = vunpack.c.h.b16 %v6069
        %v7232 = vunpack.c.l.b16 %v6070
        %v7233 = vunpack.c.h.b16 %v6070
        %v7234 = vunpack.c.l.b16 %v6071
        %v7235 = vunpack.c.h.b16 %v6071
        %v7236 = vunpack.c.l.b16 %v6072
        %v7237 = vunpack.c.h.b16 %v6072
        %v7238 = vunpack.c.l.b16 %v6073
        %v7239 = vunpack.c.h.b16 %v6073
        %v7240 = vunpack.c.l.b16 %v6074
        %v7241 = vunpack.c.h.b16 %v6074
        %v7242 = vunpack.c.l.b16 %v6075
        %v7243 = vunpack.c.h.b16 %v6075
        %v7244 = vunpack.c.l.b16 %v6076
        %v7245 = vunpack.c.h.b16 %v6076
        %v7246 = vunpack.c.l.b16 %v6077
        %v7247 = vunpack.c.h.b16 %v6077
        %v7248 = vunpack.c.l.b16 %v6078
        %v7249 = vunpack.c.h.b16 %v6078
        %v7250 = vunpack.c.l.b16 %v6079
        %v7251 = vunpack.c.h.b16 %v6079
        %v7252 = vunpack.c.l.b16 %v6080
        %v7253 = vunpack.c.h.b16 %v6080
        %v7254 = vunpack.c.l.b16 %v6081
        %v7255 = vunpack.c.h.b16 %v6081
        %v7256 = vunpack.c.l.b16 %v6082
        %v7257 = vunpack.c.h.b16 %v6082
        %v7258 = vunpack.c.l.b16 %v6083
        %v7259 = vunpack.c.h.b16 %v6083
        %v7260 = vunpack.c.l.b16 %v6084
        %v7261 = vunpack.c.h.b16 %v6084
        %v7262 = vunpack.c.l.b16 %v6085
        %v7263 = vunpack.c.h.b16 %v6085
        %v7264 = vunpack.c.l.b16 %v6086
        %v7265 = vunpack.c.h.b16 %v6086
        %v7266 = vunpack.c.l.b16 %v6087
        %v7267 = vunpack.c.h.b16 %v6087
        %v7268 = vunpack.c.l.b16 %v6088
        %v7269 = vunpack.c.h.b16 %v6088
        %v7270 = vunpack.c.l.b16 %v6089
        %v7271 = vunpack.c.h.b16 %v6089
        %v7272 = vunpack.c.l.b16 %v6090
        %v7273 = vunpack.c.h.b16 %v6090
        %v7274 = vunpack.c.l.b16 %v6091
        %v7275 = vunpack.c.h.b16 %v6091
        %v7276 = vunpack.c.l.b16 %v6092
        %v7277 = vunpack.c.h.b16 %v6092
        %v7278 = vunpack.c.l.b16 %v6093
        %v7279 = vunpack.c.h.b16 %v6093
        %v7280 = vunpack.c.l.b16 %v6094
        %v7281 = vunpack.c.h.b16 %v6094
        %v7282 = vunpack.c.l.b16 %v6095
        %v7283 = vunpack.c.h.b16 %v6095
        %v7284 = vunpack.c.l.b16 %v6096
        %v7285 = vunpack.c.h.b16 %v6096
        %v7286 = vunpack.c.l.b16 %v6097
        %v7287 = vunpack.c.h.b16 %v6097
        %v7288 = vunpack.c.l.b16 %v6098
        %v7289 = vunpack.c.h.b16 %v6098
        %v7290 = vunpack.c.l.b16 %v6099
        %v7291 = vunpack.c.h.b16 %v6099
        %v7292 = vunpack.c.l.b16 %v6100
        %v7293 = vunpack.c.h.b16 %v6100
        %v7294 = vunpack.c.l.b16 %v6101
        %v7295 = vunpack.c.h.b16 %v6101
        %v7296 = vunpack.c.l.b16 %v6102
        %v7297 = vunpack.c.h.b16 %v6102
        %v7298 = vunpack.c.l.b16 %v6103
        %v7299 = vunpack.c.h.b16 %v6103
        %v7300 = vunpack.c.l.b16 %v6104
        %v7301 = vunpack.c.h.b16 %v6104
        %v7302 = vunpack.c.l.b16 %v6105
        %v7303 = vunpack.c.h.b16 %v6105
        %v7304 = vunpack.c.l.b16 %v6106
        %v7305 = vunpack.c.h.b16 %v6106
        %v7306 = vunpack.c.l.b16 %v6107
        %v7307 = vunpack.c.h.b16 %v6107
        %v7308 = vunpack.c.l.b16 %v6108
        %v7309 = vunpack.c.h.b16 %v6108
        %v7310 = vunpack.c.l.b16 %v6109
        %v7311 = vunpack.c.h.b16 %v6109
        %v7312 = vunpack.c.l.b16 %v6110
        %v7313 = vunpack.c.h.b16 %v6110
        %v7314 = vunpack.c.l.b16 %v6111
        %v7315 = vunpack.c.h.b16 %v6111
        %v7316 = vunpack.c.l.b16 %v6112
        %v7317 = vunpack.c.h.b16 %v6112
        %v7318 = vunpack.c.l.b16 %v6113
        %v7319 = vunpack.c.h.b16 %v6113
        %v7320 = vunpack.c.l.b16 %v6114
        %v7321 = vunpack.c.h.b16 %v6114
        %v7322 = vunpack.c.l.b16 %v6115
        %v7323 = vunpack.c.h.b16 %v6115
        %v7324 = vunpack.c.l.b16 %v6116
        %v7325 = vunpack.c.h.b16 %v6116
        %v7326 = vunpack.c.l.b16 %v6117
        %v7327 = vunpack.c.h.b16 %v6117
        %v7328 = vunpack.c.l.b16 %v6118
        %v7329 = vunpack.c.h.b16 %v6118
        %v7330 = vunpack.c.l.b16 %v6119
        %v7331 = vunpack.c.h.b16 %v6119
        %v7332 = vunpack.c.l.b16 %v6120
        %v7333 = vunpack.c.h.b16 %v6120
        %v7334 = vunpack.c.l.b16 %v6121
        %v7335 = vunpack.c.h.b16 %v6121
        %v7336 = vunpack.c.l.b16 %v6122
        %v7337 = vunpack.c.h.b16 %v6122
        %v7338 = vunpack.c.l.b16 %v6123
        %v7339 = vunpack.c.h.b16 %v6123
        %v7340 = vunpack.c.l.b16 %v6124
        %v7341 = vunpack.c.h.b16 %v6124
        %v7342 = vunpack.c.l.b16 %v6125
        %v7343 = vunpack.c.h.b16 %v6125
        %v7344 = vunpack.c.l.b16 %v6126
        %v7345 = vunpack.c.h.b16 %v6126
        %v7346 = vunpack.c.l.b16 %v6127
        %v7347 = vunpack.c.h.b16 %v6127
        %v7348 = vunpack.c.l.b16 %v6128
        %v7349 = vunpack.c.h.b16 %v6128
        %v7350 = vunpack.c.l.b16 %v6129
        %v7351 = vunpack.c.h.b16 %v6129
        %v7352 = vunpack.c.l.b16 %v6130
        %v7353 = vunpack.c.h.b16 %v6130
        %v7354 = vunpack.c.l.b16 %v6131
        %v7355 = vunpack.c.h.b16 %v6131
        %v7356 = vunpack.c.l.b16 %v6132
        %v7357 = vunpack.c.h.b16 %v6132
        %v7358 = vunpack.c.l.b16 %v6133
        %v7359 = vunpack.c.h.b16 %v6133
        %v7360 = vunpack.c.l.b16 %v6134
        %v7361 = vunpack.c.h.b16 %v6134
        %v7362 = vunpack.c.l.b16 %v6135
        %v7363 = vunpack.c.h.b16 %v6135
        %v7364 = vunpack.c.l.b16 %v6136
        %v7365 = vunpack.c.h.b16 %v6136
        %v7366 = vunpack.c.l.b16 %v6137
        %v7367 = vunpack.c.h.b16 %v6137
        %v7368 = vunpack.c.l.b16 %v6138
        %v7369 = vunpack.c.h.b16 %v6138
        %v7370 = vunpack.c.l.b16 %v6139
        %v7371 = vunpack.c.h.b16 %v6139
        %v7372 = vunpack.c.l.b16 %v6140
        %v7373 = vunpack.c.h.b16 %v6140
        %v7374 = vunpack.c.l.b16 %v6141
        %v7375 = vunpack.c.h.b16 %v6141
        %v7376 = vunpack.c.l.b16 %v6142
        %v7377 = vunpack.c.h.b16 %v6142
        %v7378 = vunpack.c.l.b16 %v6143
        %v7379 = vunpack.c.h.b16 %v6143
        %v7380 = vunpack.c.l.b16 %v6144
        %v7381 = vunpack.c.h.b16 %v6144
        %v7382 = vunpack.c.l.b16 %v6145
        %v7383 = vunpack.c.h.b16 %v6145
        %v7384 = vunpack.c.l.b16 %v6146
        %v7385 = vunpack.c.h.b16 %v6146
        %v7386 = vunpack.c.l.b16 %v6147
        %v7387 = vunpack.c.h.b16 %v6147
        %v7388 = vunpack.c.l.b16 %v6148
        %v7389 = vunpack.c.h.b16 %v6148
        %v7390 = vunpack.c.l.b16 %v6149
        %v7391 = vunpack.c.h.b16 %v6149
        %v7392 = vunpack.c.l.b16 %v6150
        %v7393 = vunpack.c.h.b16 %v6150
        %v7394 = vunpack.c.l.b16 %v6151
        %v7395 = vunpack.c.h.b16 %v6151
        %v7396 = vunpack.c.l.b16 %v6152
        %v7397 = vunpack.c.h.b16 %v6152
        %v7398 = vunpack.c.l.b16 %v6153
        %v7399 = vunpack.c.h.b16 %v6153
        %v7400 = vunpack.c.l.b16 %v6154
        %v7401 = vunpack.c.h.b16 %v6154
        %v7402 = vunpack.c.l.b16 %v6155
        %v7403 = vunpack.c.h.b16 %v6155
        %v7404 = vunpack.c.l.b16 %v6156
        %v7405 = vunpack.c.h.b16 %v6156
        %v7406 = vunpack.c.l.b16 %v6157
        %v7407 = vunpack.c.h.b16 %v6157
        %v7408 = vunpack.c.l.b16 %v6158
        %v7409 = vunpack.c.h.b16 %v6158
        %v7410 = vunpack.c.l.b16 %v6159
        %v7411 = vunpack.c.h.b16 %v6159
        %v7412 = vunpack.c.l.b16 %v6160
        %v7413 = vunpack.c.h.b16 %v6160
        %v7414 = vunpack.c.l.b16 %v6161
        %v7415 = vunpack.c.h.b16 %v6161
        %v7416 = vunpack.c.l.b16 %v6162
        %v7417 = vunpack.c.h.b16 %v6162
        %v7418 = vunpack.c.l.b16 %v6163
        %v7419 = vunpack.c.h.b16 %v6163
        %v7420 = vunpack.c.l.b16 %v6164
        %v7421 = vunpack.c.h.b16 %v6164
        %v7422 = vunpack.c.l.b16 %v6165
        %v7423 = vunpack.c.h.b16 %v6165
        %v7424 = vunpack.c.l.b16 %v6166
        %v7425 = vunpack.c.h.b16 %v6166
        %v7426 = vunpack.c.l.b16 %v6167
        %v7427 = vunpack.c.h.b16 %v6167
        %v7428 = vunpack.c.l.b16 %v6168
        %v7429 = vunpack.c.h.b16 %v6168
        %v7430 = vunpack.c.l.b16 %v6169
        %v7431 = vunpack.c.h.b16 %v6169
        %v7432 = vunpack.c.l.b16 %v6170
        %v7433 = vunpack.c.h.b16 %v6170
        %v7434 = vunpack.c.l.b16 %v6171
        %v7435 = vunpack.c.h.b16 %v6171
        %v7436 = vunpack.c.l.b16 %v6172
        %v7437 = vunpack.c.h.b16 %v6172
        %v7438 = vunpack.c.l.b16 %v6173
        %v7439 = vunpack.c.h.b16 %v6173
        %v7440 = vunpack.c.l.b16 %v6174
        %v7441 = vunpack.c.h.b16 %v6174
        %v7442 = vunpack.c.l.b16 %v6175
        %v7443 = vunpack.c.h.b16 %v6175
        %v7444 = vunpack.c.l.b16 %v6176
        %v7445 = vunpack.c.h.b16 %v6176
        %v7446 = vunpack.c.l.b16 %v6177
        %v7447 = vunpack.c.h.b16 %v6177
        %v7448 = vunpack.c.l.b16 %v6178
        %v7449 = vunpack.c.h.b16 %v6178
        %v7450 = vunpack.c.l.b16 %v6179
        %v7451 = vunpack.c.h.b16 %v6179
        %v7452 = vunpack.c.l.b16 %v6180
        %v7453 = vunpack.c.h.b16 %v6180
        %v7454 = vunpack.c.l.b16 %v6181
        %v7455 = vunpack.c.h.b16 %v6181
        %v7456 = vunpack.c.l.b16 %v6182
        %v7457 = vunpack.c.h.b16 %v6182
        %v7458 = vunpack.c.l.b16 %v6183
        %v7459 = vunpack.c.h.b16 %v6183
        %v7460 = vunpack.c.l.b16 %v6184
        %v7461 = vunpack.c.h.b16 %v6184
        %v7462 = vunpack.c.l.b16 %v6185
        %v7463 = vunpack.c.h.b16 %v6185
        %v7464 = vunpack.c.l.b16 %v6186
        %v7465 = vunpack.c.h.b16 %v6186
        %v7466 = vunpack.c.l.b16 %v6187
        %v7467 = vunpack.c.h.b16 %v6187
        %v7468 = vunpack.c.l.b16 %v6188
        %v7469 = vunpack.c.h.b16 %v6188
        %v7470 = vunpack.c.l.b16 %v6189
        %v7471 = vunpack.c.h.b16 %v6189
        %v7472 = vunpack.c.l.b16 %v6190
        %v7473 = vunpack.c.h.b16 %v6190
        %v7474 = vunpack.c.l.b16 %v6191
        %v7475 = vunpack.c.h.b16 %v6191
        %v7476 = vunpack.c.l.b16 %v6192
        %v7477 = vunpack.c.h.b16 %v6192
        %v7478 = vunpack.c.l.b16 %v6193
        %v7479 = vunpack.c.h.b16 %v6193
        %v7480 = vunpack.c.l.b16 %v6194
        %v7481 = vunpack.c.h.b16 %v6194
        %v7482 = vunpack.c.l.b16 %v6195
        %v7483 = vunpack.c.h.b16 %v6195
        %v7484 = vunpack.c.l.b16 %v6196
        %v7485 = vunpack.c.h.b16 %v6196
        %v7486 = vunpack.c.l.b16 %v6197
        %v7487 = vunpack.c.h.b16 %v6197
        %v7488 = vunpack.c.l.b16 %v6198
        %v7489 = vunpack.c.h.b16 %v6198
        %v7490 = vunpack.c.l.b16 %v6199
        %v7491 = vunpack.c.h.b16 %v6199
        %v7492 = vunpack.c.l.b16 %v6200
        %v7493 = vunpack.c.h.b16 %v6200
        %v7494 = vunpack.c.l.b16 %v6201
        %v7495 = vunpack.c.h.b16 %v6201
        %v7496 = vunpack.c.l.b16 %v6202
        %v7497 = vunpack.c.h.b16 %v6202
        %v7498 = vunpack.c.l.b16 %v6203
        %v7499 = vunpack.c.h.b16 %v6203
        %v7500 = vunpack.c.l.b16 %v6204
        %v7501 = vunpack.c.h.b16 %v6204
        %v7502 = vunpack.c.l.b16 %v6205
        %v7503 = vunpack.c.h.b16 %v6205
        %v7504 = vunpack.c.l.b16 %v6206
        %v7505 = vunpack.c.h.b16 %v6206
        %v7506 = vunpack.c.l.b16 %v6207
        %v7507 = vunpack.c.h.b16 %v6207
        %v7508 = vunpack.c.l.b16 %v6208
        %v7509 = vunpack.c.h.b16 %v6208
        %v7510 = vunpack.c.l.b16 %v6209
        %v7511 = vunpack.c.h.b16 %v6209
        %v7512 = vunpack.c.l.b16 %v6210
        %v7513 = vunpack.c.h.b16 %v6210
        %v7514 = vunpack.c.l.b16 %v6211
        %v7515 = vunpack.c.h.b16 %v6211
        %v7516 = vunpack.c.l.b16 %v6212
        %v7517 = vunpack.c.h.b16 %v6212
        %v7518 = vunpack.c.l.b16 %v6213
        %v7519 = vunpack.c.h.b16 %v6213
        %v7520 = vunpack.c.l.b16 %v6214
        %v7521 = vunpack.c.h.b16 %v6214
        %v7522 = vunpack.c.l.b16 %v6215
        %v7523 = vunpack.c.h.b16 %v6215
        %v7524 = vunpack.c.l.b16 %v6216
        %v7525 = vunpack.c.h.b16 %v6216
        %v7526 = vunpack.c.l.b16 %v6217
        %v7527 = vunpack.c.h.b16 %v6217
        %v7528 = vunpack.c.l.b16 %v6218
        %v7529 = vunpack.c.h.b16 %v6218
        %v7530 = vunpack.c.l.b16 %v6219
        %v7531 = vunpack.c.h.b16 %v6219
        %v7532 = vunpack.c.l.b16 %v6220
        %v7533 = vunpack.c.h.b16 %v6220
        %v7534 = vunpack.c.l.b16 %v6221
        %v7535 = vunpack.c.h.b16 %v6221
        %v7536 = vunpack.c.l.b16 %v6222
        %v7537 = vunpack.c.h.b16 %v6222
        %v7538 = vunpack.c.l.b16 %v6223
        %v7539 = vunpack.c.h.b16 %v6223
        %v7540 = vunpack.c.l.b16 %v6224
        %v7541 = vunpack.c.h.b16 %v6224
        %v7542 = vunpack.c.l.b16 %v6225
        %v7543 = vunpack.c.h.b16 %v6225
        %v7544 = vunpack.c.l.b16 %v6226
        %v7545 = vunpack.c.h.b16 %v6226
        %v7546 = vunpack.c.l.b16 %v6227
        %v7547 = vunpack.c.h.b16 %v6227
        %v7548 = vunpack.c.l.b16 %v6228
        %v7549 = vunpack.c.h.b16 %v6228
        %v7550 = vunpack.c.l.b16 %v6229
        %v7551 = vunpack.c.h.b16 %v6229
        %v7552 = vunpack.c.l.b16 %v6230
        %v7553 = vunpack.c.h.b16 %v6230
        %v7554 = vunpack.c.l.b16 %v6231
        %v7555 = vunpack.c.h.b16 %v6231
        %v7556 = vunpack.c.l.b16 %v6232
        %v7557 = vunpack.c.h.b16 %v6232
        %v7558 = vunpack.c.l.b16 %v6233
        %v7559 = vunpack.c.h.b16 %v6233
        %v7560 = vunpack.c.l.b16 %v6234
        %v7561 = vunpack.c.h.b16 %v6234
        %v7562 = vunpack.c.l.b16 %v6235
        %v7563 = vunpack.c.h.b16 %v6235
        %v7564 = vunpack.c.l.b16 %v6236
        %v7565 = vunpack.c.h.b16 %v6236
        %v7566 = vunpack.c.l.b16 %v6237
        %v7567 = vunpack.c.h.b16 %v6237
        %v7568 = vunpack.c.l.b16 %v6238
        %v7569 = vunpack.c.h.b16 %v6238
        %v7570 = vunpack.c.l.b16 %v6239
        %v7571 = vunpack.c.h.b16 %v6239
        %v7572 = vunpack.c.l.b16 %v6240
        %v7573 = vunpack.c.h.b16 %v6240
        %v7574 = vunpack.c.l.b16 %v6241
        %v7575 = vunpack.c.h.b16 %v6241
        %v7576 = vunpack.c.l.b16 %v6242
        %v7577 = vunpack.c.h.b16 %v6242
        %v7578 = vunpack.c.l.b16 %v6243
        %v7579 = vunpack.c.h.b16 %v6243
        %v7580 = vunpack.c.l.b16 %v6244
        %v7581 = vunpack.c.h.b16 %v6244
        %v7582 = vunpack.c.l.b16 %v6245
        %v7583 = vunpack.c.h.b16 %v6245
        %v7584 = vunpack.c.l.b16 %v6246
        %v7585 = vunpack.c.h.b16 %v6246
        %v7586 = vunpack.c.l.b16 %v6247
        %v7587 = vunpack.c.h.b16 %v6247
        %v7588 = vunpack.c.l.b16 %v6248
        %v7589 = vunpack.c.h.b16 %v6248
        %v7590 = vunpack.c.l.b16 %v6249
        %v7591 = vunpack.c.h.b16 %v6249
        %v7592 = vunpack.c.l.b16 %v6250
        %v7593 = vunpack.c.h.b16 %v6250
        %v7594 = vunpack.c.l.b16 %v6251
        %v7595 = vunpack.c.h.b16 %v6251
        %v7596 = vunpack.c.l.b16 %v6252
        %v7597 = vunpack.c.h.b16 %v6252
        %v7598 = vunpack.c.l.b16 %v6253
        %v7599 = vunpack.c.h.b16 %v6253
        %v7600 = vunpack.c.l.b16 %v6254
        %v7601 = vunpack.c.h.b16 %v6254
        %v7602 = vunpack.c.l.b16 %v6255
        %v7603 = vunpack.c.h.b16 %v6255
        %v7604 = vunpack.c.l.b16 %v6256
        %v7605 = vunpack.c.h.b16 %v6256
        %v7606 = vunpack.c.l.b16 %v6257
        %v7607 = vunpack.c.h.b16 %v6257
        %v7608 = vunpack.c.l.b16 %v6258
        %v7609 = vunpack.c.h.b16 %v6258
        %v7610 = vunpack.c.l.b16 %v6259
        %v7611 = vunpack.c.h.b16 %v6259
        %v7612 = vunpack.c.l.b16 %v6260
        %v7613 = vunpack.c.h.b16 %v6260
        %v7614 = vunpack.c.l.b16 %v6261
        %v7615 = vunpack.c.h.b16 %v6261
        %v7616 = vunpack.c.l.b16 %v6262
        %v7617 = vunpack.c.h.b16 %v6262
        %v7618 = vunpack.c.l.b16 %v6263
        %v7619 = vunpack.c.h.b16 %v6263
        %v7620 = vunpack.c.l.b16 %v6264
        %v7621 = vunpack.c.h.b16 %v6264
        %v7622 = vunpack.c.l.b16 %v6265
        %v7623 = vunpack.c.h.b16 %v6265
        %v7624 = vunpack.c.l.b16 %v6266
        %v7625 = vunpack.c.h.b16 %v6266
        %v7626 = vunpack.c.l.b16 %v6267
        %v7627 = vunpack.c.h.b16 %v6267
        %v7628 = vunpack.c.l.b16 %v6268
        %v7629 = vunpack.c.h.b16 %v6268
        %v7630 = vunpack.c.l.b16 %v6269
        %v7631 = vunpack.c.h.b16 %v6269
        %v7632 = vunpack.c.l.b16 %v6270
        %v7633 = vunpack.c.h.b16 %v6270
        %v7634 = vunpack.c.l.b16 %v6271
        %v7635 = vunpack.c.h.b16 %v6271
        %v7636 = vunpack.c.l.b16 %v6272
        %v7637 = vunpack.c.h.b16 %v6272
        %v7638 = vunpack.c.l.b16 %v6273
        %v7639 = vunpack.c.h.b16 %v6273
        %v7640 = vunpack.c.l.b16 %v6274
        %v7641 = vunpack.c.h.b16 %v6274
        %v7642 = vunpack.c.l.b16 %v6275
        %v7643 = vunpack.c.h.b16 %v6275
        %v7644 = vunpack.c.l.b16 %v6276
        %v7645 = vunpack.c.h.b16 %v6276
        %v7646 = vunpack.c.l.b16 %v6277
        %v7647 = vunpack.c.h.b16 %v6277
        %v7648 = vunpack.c.l.b16 %v6278
        %v7649 = vunpack.c.h.b16 %v6278
        %v7650 = vunpack.c.l.b16 %v6279
        %v7651 = vunpack.c.h.b16 %v6279
        %v7652 = vunpack.c.l.b16 %v6280
        %v7653 = vunpack.c.h.b16 %v6280
        %v7654 = vunpack.c.l.b16 %v6281
        %v7655 = vunpack.c.h.b16 %v6281
        %v7656 = vunpack.c.l.b16 %v6282
        %v7657 = vunpack.c.h.b16 %v6282
        %v7658 = vunpack.c.l.b16 %v6283
        %v7659 = vunpack.c.h.b16 %v6283
        %v7660 = vunpack.c.l.b16 %v6284
        %v7661 = vunpack.c.h.b16 %v6284
        %v7662 = vunpack.c.l.b16 %v6285
        %v7663 = vunpack.c.h.b16 %v6285
        %v7664 = vunpack.c.l.b16 %v6286
        %v7665 = vunpack.c.h.b16 %v6286
        %v7666 = vunpack.c.l.b16 %v6287
        %v7667 = vunpack.c.h.b16 %v6287
        %v7668 = vunpack.c.l.b16 %v6288
        %v7669 = vunpack.c.h.b16 %v6288
        %v7670 = vunpack.c.l.b16 %v6289
        %v7671 = vunpack.c.h.b16 %v6289
        %v7672 = vunpack.c.l.b16 %v6290
        %v7673 = vunpack.c.h.b16 %v6290
        %v7674 = vunpack.c.l.b16 %v6291
        %v7675 = vunpack.c.h.b16 %v6291
        %v7676 = vunpack.c.l.b16 %v6292
        %v7677 = vunpack.c.h.b16 %v6292
        %v7678 = vunpack.c.l.b16 %v6293
        %v7679 = vunpack.c.h.b16 %v6293
        %v7680 = vunpack.c.l.b16 %v6294
        %v7681 = vunpack.c.h.b16 %v6294
        %v7682 = vunpack.c.l.b16 %v6295
        %v7683 = vunpack.c.h.b16 %v6295
        %v7684 = vunpack.c.l.b16 %v6296
        %v7685 = vunpack.c.h.b16 %v6296
        %v7686 = vunpack.c.l.b16 %v6297
        %v7687 = vunpack.c.h.b16 %v6297
        %v7688 = vunpack.c.l.b16 %v6298
        %v7689 = vunpack.c.h.b16 %v6298
        %v7690 = vunpack.c.l.b16 %v6299
        %v7691 = vunpack.c.h.b16 %v6299
        %v7692 = vunpack.c.l.b16 %v6300
        %v7693 = vunpack.c.h.b16 %v6300
        %v7694 = vunpack.c.l.b16 %v6301
        %v7695 = vunpack.c.h.b16 %v6301
        %v7696 = vunpack.c.l.b16 %v6302
        %v7697 = vunpack.c.h.b16 %v6302
        %v7698 = vunpack.c.l.b16 %v6303
        %v7699 = vunpack.c.h.b16 %v6303
        %v7700 = vunpack.c.l.b16 %v6304
        %v7701 = vunpack.c.h.b16 %v6304
        %v7702 = vunpack.c.l.b16 %v6305
        %v7703 = vunpack.c.h.b16 %v6305
        %v7704 = vunpack.c.l.b16 %v6306
        %v7705 = vunpack.c.h.b16 %v6306
        %v7706 = vunpack.c.l.b16 %v6307
        %v7707 = vunpack.c.h.b16 %v6307
        %v7708 = vunpack.c.l.b16 %v6308
        %v7709 = vunpack.c.h.b16 %v6308
        %v7710 = vunpack.c.l.b16 %v6309
        %v7711 = vunpack.c.h.b16 %v6309
        %v7712 = vunpack.c.l.b16 %v6310
        %v7713 = vunpack.c.h.b16 %v6310
        %v7714 = vunpack.c.l.b16 %v6311
        %v7715 = vunpack.c.h.b16 %v6311
        %v7716 = vunpack.c.l.b16 %v6312
        %v7717 = vunpack.c.h.b16 %v6312
        %v7718 = vunpack.c.l.b16 %v6313
        %v7719 = vunpack.c.h.b16 %v6313
        %v7720 = vunpack.c.l.b16 %v6314
        %v7721 = vunpack.c.h.b16 %v6314
        %v7722 = vunpack.c.l.b16 %v6315
        %v7723 = vunpack.c.h.b16 %v6315
        %v7724 = vunpack.c.l.b16 %v6316
        %v7725 = vunpack.c.h.b16 %v6316
        %v7726 = vunpack.c.l.b16 %v6317
        %v7727 = vunpack.c.h.b16 %v6317
        %v7728 = vunpack.c.l.b16 %v6318
        %v7729 = vunpack.c.h.b16 %v6318
        %v7730 = vunpack.c.l.b16 %v6319
        %v7731 = vunpack.c.h.b16 %v6319
        %v7732 = vunpack.c.l.b16 %v6320
        %v7733 = vunpack.c.h.b16 %v6320
        %v7734 = vunpack.c.l.b16 %v6321
        %v7735 = vunpack.c.h.b16 %v6321
        %v7736 = vunpack.c.l.b16 %v6322
        %v7737 = vunpack.c.h.b16 %v6322
        %v7738 = vunpack.c.l.b16 %v6323
        %v7739 = vunpack.c.h.b16 %v6323
        %v7740 = vunpack.c.l.b16 %v6324
        %v7741 = vunpack.c.h.b16 %v6324
        %v7742 = vunpack.c.l.b16 %v6325
        %v7743 = vunpack.c.h.b16 %v6325
        %v7744 = vunpack.c.l.b16 %v6326
        %v7745 = vunpack.c.h.b16 %v6326
        %v7746 = vunpack.c.l.b16 %v6327
        %v7747 = vunpack.c.h.b16 %v6327
        %v7748 = vunpack.c.l.b16 %v6328
        %v7749 = vunpack.c.h.b16 %v6328
        %v7750 = vunpack.c.l.b16 %v6329
        %v7751 = vunpack.c.h.b16 %v6329
        %v7752 = vunpack.c.l.b16 %v6330
        %v7753 = vunpack.c.h.b16 %v6330
        %v7754 = vunpack.c.l.b16 %v6331
        %v7755 = vunpack.c.h.b16 %v6331
        %v7756 = vunpack.c.l.b16 %v6332
        %v7757 = vunpack.c.h.b16 %v6332
        %v7758 = vunpack.c.l.b16 %v6333
        %v7759 = vunpack.c.h.b16 %v6333
        %v7760 = vunpack.c.l.b16 %v6334
        %v7761 = vunpack.c.h.b16 %v6334
        %v7762 = vunpack.c.l.b16 %v6335
        %v7763 = vunpack.c.h.b16 %v6335
        %v7764 = vunpack.c.l.b16 %v6336
        %v7765 = vunpack.c.h.b16 %v6336
        %v7766 = vunpack.c.l.b16 %v6337
        %v7767 = vunpack.c.h.b16 %v6337
        %v7768 = vunpack.c.l.b16 %v6338
        %v7769 = vunpack.c.h.b16 %v6338
        %v7770 = vunpack.c.l.b16 %v6339
        %v7771 = vunpack.c.h.b16 %v6339
        %v7772 = vunpack.c.l.b16 %v6340
        %v7773 = vunpack.c.h.b16 %v6340
        %v7774 = vunpack.c.l.b16 %v6341
        %v7775 = vunpack.c.h.b16 %v6341
        %v7776 = vunpack.c.l.b16 %v6342
        %v7777 = vunpack.c.h.b16 %v6342
        %v7778 = vunpack.c.l.b16 %v6343
        %v7779 = vunpack.c.h.b16 %v6343
        %v7780 = vunpack.c.l.b16 %v6344
        %v7781 = vunpack.c.h.b16 %v6344
        %v7782 = vunpack.c.l.b16 %v6345
        %v7783 = vunpack.c.h.b16 %v6345
        %v7784 = vunpack.c.l.b16 %v6346
        %v7785 = vunpack.c.h.b16 %v6346
        %v7786 = vunpack.c.l.b16 %v6347
        %v7787 = vunpack.c.h.b16 %v6347
        %v7788 = vunpack.c.l.b16 %v6348
        %v7789 = vunpack.c.h.b16 %v6348
        %v7790 = vunpack.c.l.b16 %v6349
        %v7791 = vunpack.c.h.b16 %v6349
        %v7792 = vunpack.c.l.b16 %v6350
        %v7793 = vunpack.c.h.b16 %v6350
        %v7794 = vunpack.c.l.b16 %v6351
        %v7795 = vunpack.c.h.b16 %v6351
        %v7796 = vunpack.c.l.b16 %v6352
        %v7797 = vunpack.c.h.b16 %v6352
        %v7798 = vunpack.c.l.b16 %v6353
        %v7799 = vunpack.c.h.b16 %v6353
        %v7800 = vunpack.c.l.b16 %v6354
        %v7801 = vunpack.c.h.b16 %v6354
        %v7802 = vunpack.c.l.b16 %v6355
        %v7803 = vunpack.c.h.b16 %v6355
        %v7804 = vunpack.c.l.b16 %v6356
        %v7805 = vunpack.c.h.b16 %v6356
        %v7806 = vunpack.c.l.b16 %v6357
        %v7807 = vunpack.c.h.b16 %v6357
        %v7808 = vunpack.c.l.b16 %v6358
        %v7809 = vunpack.c.h.b16 %v6358
        %v7810 = vunpack.c.l.b16 %v6359
        %v7811 = vunpack.c.h.b16 %v6359
        %v7812 = vunpack.c.l.b16 %v6360
        %v7813 = vunpack.c.h.b16 %v6360
        %v7814 = vunpack.c.l.b16 %v6361
        %v7815 = vunpack.c.h.b16 %v6361
        %v7816 = vunpack.c.l.b16 %v6362
        %v7817 = vunpack.c.h.b16 %v6362
        %v7818 = vunpack.c.l.b16 %v6363
        %v7819 = vunpack.c.h.b16 %v6363
        %v7820 = vunpack.c.l.b16 %v6364
        %v7821 = vunpack.c.h.b16 %v6364
        %v7822 = vunpack.c.l.b16 %v6365
        %v7823 = vunpack.c.h.b16 %v6365
        %v7824 = vunpack.c.l.b16 %v6366
        %v7825 = vunpack.c.h.b16 %v6366
        %v7826 = vunpack.c.l.b16 %v6367
        %v7827 = vunpack.c.h.b16 %v6367
        %v7828 = vunpack.c.l.b16 %v6368
        %v7829 = vunpack.c.h.b16 %v6368
        %v7830 = vunpack.c.l.b16 %v6369
        %v7831 = vunpack.c.h.b16 %v6369
        %v7832 = vunpack.c.l.b16 %v6370
        %v7833 = vunpack.c.h.b16 %v6370
        %v7834 = vunpack.c.l.b16 %v6371
        %v7835 = vunpack.c.h.b16 %v6371
        %v7836 = vunpack.c.l.b16 %v6372
        %v7837 = vunpack.c.h.b16 %v6372
        %v7838 = vunpack.c.l.b16 %v6373
        %v7839 = vunpack.c.h.b16 %v6373
        %v7840 = vunpack.c.l.b16 %v6374
        %v7841 = vunpack.c.h.b16 %v6374
        %v7842 = vunpack.c.l.b16 %v6375
        %v7843 = vunpack.c.h.b16 %v6375
        %v7844 = vunpack.c.l.b16 %v6376
        %v7845 = vunpack.c.h.b16 %v6376
        %v7846 = vunpack.c.l.b16 %v6377
        %v7847 = vunpack.c.h.b16 %v6377
        %v7848 = vunpack.c.l.b16 %v6378
        %v7849 = vunpack.c.h.b16 %v6378
        %v7850 = vunpack.c.l.b16 %v6379
        %v7851 = vunpack.c.h.b16 %v6379
        %v7852 = vunpack.c.l.b16 %v6380
        %v7853 = vunpack.c.h.b16 %v6380
        %v7854 = vunpack.c.l.b16 %v6381
        %v7855 = vunpack.c.h.b16 %v6381
        %v7856 = vunpack.c.l.b16 %v6382
        %v7857 = vunpack.c.h.b16 %v6382
        %v7858 = vunpack.c.l.b16 %v6383
        %v7859 = vunpack.c.h.b16 %v6383
        %v7860 = vunpack.c.l.b16 %v6384
        %v7861 = vunpack.c.h.b16 %v6384
        %v7862 = vunpack.c.l.b16 %v6385
        %v7863 = vunpack.c.h.b16 %v6385
        %v7864 = vunpack.c.l.b16 %v6386
        %v7865 = vunpack.c.h.b16 %v6386
        %v7866 = vunpack.c.l.b16 %v6387
        %v7867 = vunpack.c.h.b16 %v6387
        %v7868 = vunpack.c.l.b16 %v6388
        %v7869 = vunpack.c.h.b16 %v6388
        %v7870 = vunpack.c.l.b16 %v6389
        %v7871 = vunpack.c.h.b16 %v6389
        %v7872 = vunpack.c.l.b16 %v6390
        %v7873 = vunpack.c.h.b16 %v6390
        %v7874 = vunpack.c.l.b16 %v6391
        %v7875 = vunpack.c.h.b16 %v6391
        %v7876 = vunpack.c.l.b16 %v6392
        %v7877 = vunpack.c.h.b16 %v6392
        %v7878 = vunpack.c.l.b16 %v6393
        %v7879 = vunpack.c.h.b16 %v6393
        %v7880 = vunpack.c.l.b16 %v6394
        %v7881 = vunpack.c.h.b16 %v6394
        %v7882 = vunpack.c.l.b16 %v6395
        %v7883 = vunpack.c.h.b16 %v6395
        %v7884 = vunpack.c.l.b16 %v6396
        %v7885 = vunpack.c.h.b16 %v6396
        %v7886 = vunpack.c.l.b16 %v6397
        %v7887 = vunpack.c.h.b16 %v6397
        %v7888 = vunpack.c.l.b16 %v6398
        %v7889 = vunpack.c.h.b16 %v6398
        %v7890 = vunpack.c.l.b16 %v6399
        %v7891 = vunpack.c.h.b16 %v6399
        %v7892 = vunpack.c.l.b16 %v6400
        %v7893 = vunpack.c.h.b16 %v6400
        %v7894 = vunpack.c.l.b16 %v6401
        %v7895 = vunpack.c.h.b16 %v6401
        %v7896 = vunpack.c.l.b16 %v6402
        %v7897 = vunpack.c.h.b16 %v6402
        %v7898 = vunpack.c.l.b16 %v6403
        %v7899 = vunpack.c.h.b16 %v6403
        %v7900 = vunpack.c.l.b16 %v6404
        %v7901 = vunpack.c.h.b16 %v6404
        %v7902 = vunpack.c.l.b16 %v6405
        %v7903 = vunpack.c.h.b16 %v6405
        %v7904 = vunpack.c.l.b16 %v6406
        %v7905 = vunpack.c.h.b16 %v6406
        %v7906 = vunpack.c.l.b16 %v6407
        %v7907 = vunpack.c.h.b16 %v6407
        %v7908 = vunpack.c.l.b16 %v6408
        %v7909 = vunpack.c.h.b16 %v6408
        %v7910 = vunpack.c.l.b16 %v6409
        %v7911 = vunpack.c.h.b16 %v6409
        %v7912 = vunpack.c.l.b16 %v6410
        %v7913 = vunpack.c.h.b16 %v6410
        %v7914 = vunpack.c.l.b16 %v6411
        %v7915 = vunpack.c.h.b16 %v6411
        %v7916 = vunpack.c.l.b16 %v6412
        %v7917 = vunpack.c.h.b16 %v6412
        %v7918 = vunpack.c.l.b16 %v6413
        %v7919 = vunpack.c.h.b16 %v6413
        %v7920 = vunpack.c.l.b16 %v6414
        %v7921 = vunpack.c.h.b16 %v6414
        %v7922 = vunpack.c.l.b16 %v6415
        %v7923 = vunpack.c.h.b16 %v6415
        %v7924 = vunpack.c.l.b16 %v6416
        %v7925 = vunpack.c.h.b16 %v6416
        %v7926 = vunpack.c.l.b16 %v6417
        %v7927 = vunpack.c.h.b16 %v6417
        %v7928 = vunpack.c.l.b16 %v6418
        %v7929 = vunpack.c.h.b16 %v6418
        %v7930 = vunpack.c.l.b16 %v6419
        %v7931 = vunpack.c.h.b16 %v6419
        %v7932 = vunpack.c.l.b16 %v6420
        %v7933 = vunpack.c.h.b16 %v6420
        %v7934 = vunpack.c.l.b16 %v6421
        %v7935 = vunpack.c.h.b16 %v6421
        %v7936 = vunpack.c.l.b16 %v6422
        %v7937 = vunpack.c.h.b16 %v6422
        %v7938 = vunpack.c.l.b16 %v6423
        %v7939 = vunpack.c.h.b16 %v6423
        %v7940 = vunpack.c.l.b16 %v6424
        %v7941 = vunpack.c.h.b16 %v6424
        %v7942 = vunpack.c.l.b16 %v6425
        %v7943 = vunpack.c.h.b16 %v6425
        %v7944 = vunpack.c.l.b16 %v6426
        %v7945 = vunpack.c.h.b16 %v6426
        %v7946 = vunpack.c.l.b16 %v6427
        %v7947 = vunpack.c.h.b16 %v6427
        %v7948 = vunpack.c.l.b16 %v6428
        %v7949 = vunpack.c.h.b16 %v6428
        %v7950 = vunpack.c.l.b16 %v6429
        %v7951 = vunpack.c.h.b16 %v6429
        %v7952 = vunpack.c.l.b16 %v6430
        %v7953 = vunpack.c.h.b16 %v6430
        %v7954 = vunpack.c.l.b16 %v6431
        %v7955 = vunpack.c.h.b16 %v6431
        %v7956 = vunpack.c.l.b16 %v6432
        %v7957 = vunpack.c.h.b16 %v6432
        %v7958 = vunpack.c.l.b16 %v6433
        %v7959 = vunpack.c.h.b16 %v6433
        %v7960 = vunpack.c.l.b16 %v6434
        %v7961 = vunpack.c.h.b16 %v6434
        %v7962 = vunpack.c.l.b16 %v6435
        %v7963 = vunpack.c.h.b16 %v6435
        %v7964 = vunpack.c.l.b16 %v6436
        %v7965 = vunpack.c.h.b16 %v6436
        %v7966 = vunpack.c.l.b16 %v6437
        %v7967 = vunpack.c.h.b16 %v6437
        %v7968 = vunpack.c.l.b16 %v6438
        %v7969 = vunpack.c.h.b16 %v6438
        %v7970 = vunpack.c.l.b16 %v6439
        %v7971 = vunpack.c.h.b16 %v6439
        %v7972 = vunpack.c.l.b16 %v6440
        %v7973 = vunpack.c.h.b16 %v6440
        %v7974 = vunpack.c.l.b16 %v6441
        %v7975 = vunpack.c.h.b16 %v6441
        %v7976 = vunpack.c.l.b16 %v6442
        %v7977 = vunpack.c.h.b16 %v6442
        %v7978 = vunpack.c.l.b16 %v6443
        %v7979 = vunpack.c.h.b16 %v6443
        %v7980 = vunpack.c.l.b16 %v6444
        %v7981 = vunpack.c.h.b16 %v6444
        %v7982 = vunpack.c.l.b16 %v6445
        %v7983 = vunpack.c.h.b16 %v6445
        %v7984 = vunpack.c.l.b16 %v6446
        %v7985 = vunpack.c.h.b16 %v6446
        %v7986 = vunpack.c.l.b16 %v6447
        %v7987 = vunpack.c.h.b16 %v6447
        %v7988 = vunpack.c.l.b16 %v6448
        %v7989 = vunpack.c.h.b16 %v6448
        %v7990 = vunpack.c.l.b16 %v6449
        %v7991 = vunpack.c.h.b16 %v6449
        %v7992 = vunpack.c.l.b16 %v6450
        %v7993 = vunpack.c.h.b16 %v6450
        %v7994 = vunpack.c.l.b16 %v6451
        %v7995 = vunpack.c.h.b16 %v6451
        %v7996 = vunpack.c.l.b16 %v6452
        %v7997 = vunpack.c.h.b16 %v6452
        %v7998 = vunpack.c.l.b16 %v6453
        %v7999 = vunpack.c.h.b16 %v6453
        %v8000 = vunpack.c.l.b16 %v6454
        %v8001 = vunpack.c.h.b16 %v6454
        %v8002 = vunpack.c.l.b16 %v6455
        %v8003 = vunpack.c.h.b16 %v6455
        %v8004 = vunpack.c.l.b16 %v6456
        %v8005 = vunpack.c.h.b16 %v6456
        %v8006 = vunpack.c.l.b16 %v6457
        %v8007 = vunpack.c.h.b16 %v6457
        %v8008 = vunpack.c.l.b16 %v6458
        %v8009 = vunpack.c.h.b16 %v6458
        %v8010 = vunpack.c.l.b16 %v6459
        %v8011 = vunpack.c.h.b16 %v6459
        %v8012 = vunpack.c.l.b16 %v6460
        %v8013 = vunpack.c.h.b16 %v6460
        %v8014 = vunpack.c.l.b16 %v6461
        %v8015 = vunpack.c.h.b16 %v6461
        %v8016 = vunpack.c.l.b16 %v6462
        %v8017 = vunpack.c.h.b16 %v6462
        %v8018 = vunpack.c.l.b16 %v6463
        %v8019 = vunpack.c.h.b16 %v6463
        %v8020 = vunpack.c.l.b16 %v6464
        %v8021 = vunpack.c.h.b16 %v6464
        %v8022 = vunpack.c.l.b16 %v6465
        %v8023 = vunpack.c.h.b16 %v6465
        %v8024 = vpack.c.b16 %v7004, %v7000
        %v8025 = vpack.c.b16 %v7005, %v7001
        %v8026 = vpack.c.b16 %v7006, %v7002
        %v8027 = vpack.c.b16 %v7007, %v7003
        %v8028 = vpack.c.b16 %v7012, %v7008
        %v8029 = vpack.c.b16 %v7013, %v7009
        %v8030 = vpack.c.b16 %v7014, %v7010
        %v8031 = vpack.c.b16 %v7015, %v7011
        %v8032 = vpack.c.b16 %v7020, %v7016
        %v8033 = vpack.c.b16 %v7021, %v7017
        %v8034 = vpack.c.b16 %v7022, %v7018
        %v8035 = vpack.c.b16 %v7023, %v7019
        %v8036 = vpack.c.b16 %v7028, %v7024
        %v8037 = vpack.c.b16 %v7029, %v7025
        %v8038 = vpack.c.b16 %v7030, %v7026
        %v8039 = vpack.c.b16 %v7031, %v7027
        %v8040 = vpack.c.b16 %v7036, %v7032
        %v8041 = vpack.c.b16 %v7037, %v7033
        %v8042 = vpack.c.b16 %v7038, %v7034
        %v8043 = vpack.c.b16 %v7039, %v7035
        %v8044 = vpack.c.b16 %v7044, %v7040
        %v8045 = vpack.c.b16 %v7045, %v7041
        %v8046 = vpack.c.b16 %v7046, %v7042
        %v8047 = vpack.c.b16 %v7047, %v7043
        %v8048 = vpack.c.b16 %v7052, %v7048
        %v8049 = vpack.c.b16 %v7053, %v7049
        %v8050 = vpack.c.b16 %v7054, %v7050
        %v8051 = vpack.c.b16 %v7055, %v7051
        %v8052 = vpack.c.b16 %v7060, %v7056
        %v8053 = vpack.c.b16 %v7061, %v7057
        %v8054 = vpack.c.b16 %v7062, %v7058
        %v8055 = vpack.c.b16 %v7063, %v7059
        %v8056 = vpack.c.b16 %v7068, %v7064
        %v8057 = vpack.c.b16 %v7069, %v7065
        %v8058 = vpack.c.b16 %v7070, %v7066
        %v8059 = vpack.c.b16 %v7071, %v7067
        %v8060 = vpack.c.b16 %v7076, %v7072
        %v8061 = vpack.c.b16 %v7077, %v7073
        %v8062 = vpack.c.b16 %v7078, %v7074
        %v8063 = vpack.c.b16 %v7079, %v7075
        %v8064 = vpack.c.b16 %v7084, %v7080
        %v8065 = vpack.c.b16 %v7085, %v7081
        %v8066 = vpack.c.b16 %v7086, %v7082
        %v8067 = vpack.c.b16 %v7087, %v7083
        %v8068 = vpack.c.b16 %v7092, %v7088
        %v8069 = vpack.c.b16 %v7093, %v7089
        %v8070 = vpack.c.b16 %v7094, %v7090
        %v8071 = vpack.c.b16 %v7095, %v7091
        %v8072 = vpack.c.b16 %v7100, %v7096
        %v8073 = vpack.c.b16 %v7101, %v7097
        %v8074 = vpack.c.b16 %v7102, %v7098
        %v8075 = vpack.c.b16 %v7103, %v7099
        %v8076 = vpack.c.b16 %v7108, %v7104
        %v8077 = vpack.c.b16 %v7109, %v7105
        %v8078 = vpack.c.b16 %v7110, %v7106
        %v8079 = vpack.c.b16 %v7111, %v7107
        %v8080 = vpack.c.b16 %v7116, %v7112
        %v8081 = vpack.c.b16 %v7117, %v7113
        %v8082 = vpack.c.b16 %v7118, %v7114
        %v8083 = vpack.c.b16 %v7119, %v7115
        %v8084 = vpack.c.b16 %v7124, %v7120
        %v8085 = vpack.c.b16 %v7125, %v7121
        %v8086 = vpack.c.b16 %v7126, %v7122
        %v8087 = vpack.c.b16 %v7127, %v7123
        %v8088 = vpack.c.b16 %v7132, %v7128
        %v8089 = vpack.c.b16 %v7133, %v7129
        %v8090 = vpack.c.b16 %v7134, %v7130
        %v8091 = vpack.c.b16 %v7135, %v7131
        %v8092 = vpack.c.b16 %v7140, %v7136
        %v8093 = vpack.c.b16 %v7141, %v7137
        %v8094 = vpack.c.b16 %v7142, %v7138
        %v8095 = vpack.c.b16 %v7143, %v7139
        %v8096 = vpack.c.b16 %v7148, %v7144
        %v8097 = vpack.c.b16 %v7149, %v7145
        %v8098 = vpack.c.b16 %v7150, %v7146
        %v8099 = vpack.c.b16 %v7151, %v7147
        %v8100 = vpack.c.b16 %v7156, %v7152
        %v8101 = vpack.c.b16 %v7157, %v7153
        %v8102 = vpack.c.b16 %v7158, %v7154
        %v8103 = vpack.c.b16 %v7159, %v7155
        %v8104 = vpack.c.b16 %v7164, %v7160
        %v8105 = vpack.c.b16 %v7165, %v7161
        %v8106 = vpack.c.b16 %v7166, %v7162
        %v8107 = vpack.c.b16 %v7167, %v7163
        %v8108 = vpack.c.b16 %v7172, %v7168
        %v8109 = vpack.c.b16 %v7173, %v7169
        %v8110 = vpack.c.b16 %v7174, %v7170
        %v8111 = vpack.c.b16 %v7175, %v7171
        %v8112 = vpack.c.b16 %v7180, %v7176
        %v8113 = vpack.c.b16 %v7181, %v7177
        %v8114 = vpack.c.b16 %v7182, %v7178
        %v8115 = vpack.c.b16 %v7183, %v7179
        %v8116 = vpack.c.b16 %v7188, %v7184
        %v8117 = vpack.c.b16 %v7189, %v7185
        %v8118 = vpack.c.b16 %v7190, %v7186
        %v8119 = vpack.c.b16 %v7191, %v7187
        %v8120 = vpack.c.b16 %v7196, %v7192
        %v8121 = vpack.c.b16 %v7197, %v7193
        %v8122 = vpack.c.b16 %v7198, %v7194
        %v8123 = vpack.c.b16 %v7199, %v7195
        %v8124 = vpack.c.b16 %v7204, %v7200
        %v8125 = vpack.c.b16 %v7205, %v7201
        %v8126 = vpack.c.b16 %v7206, %v7202
        %v8127 = vpack.c.b16 %v7207, %v7203
        %v8128 = vpack.c.b16 %v7212, %v7208
        %v8129 = vpack.c.b16 %v7213, %v7209
        %v8130 = vpack.c.b16 %v7214, %v7210
        %v8131 = vpack.c.b16 %v7215, %v7211
        %v8132 = vpack.c.b16 %v7220, %v7216
        %v8133 = vpack.c.b16 %v7221, %v7217
        %v8134 = vpack.c.b16 %v7222, %v7218
        %v8135 = vpack.c.b16 %v7223, %v7219
        %v8136 = vpack.c.b16 %v7228, %v7224
        %v8137 = vpack.c.b16 %v7229, %v7225
        %v8138 = vpack.c.b16 %v7230, %v7226
        %v8139 = vpack.c.b16 %v7231, %v7227
        %v8140 = vpack.c.b16 %v7236, %v7232
        %v8141 = vpack.c.b16 %v7237, %v7233
        %v8142 = vpack.c.b16 %v7238, %v7234
        %v8143 = vpack.c.b16 %v7239, %v7235
        %v8144 = vpack.c.b16 %v7244, %v7240
        %v8145 = vpack.c.b16 %v7245, %v7241
        %v8146 = vpack.c.b16 %v7246, %v7242
        %v8147 = vpack.c.b16 %v7247, %v7243
        %v8148 = vpack.c.b16 %v7252, %v7248
        %v8149 = vpack.c.b16 %v7253, %v7249
        %v8150 = vpack.c.b16 %v7254, %v7250
        %v8151 = vpack.c.b16 %v7255, %v7251
        %v8152 = vpack.c.b16 %v7260, %v7256
        %v8153 = vpack.c.b16 %v7261, %v7257
        %v8154 = vpack.c.b16 %v7262, %v7258
        %v8155 = vpack.c.b16 %v7263, %v7259
        %v8156 = vpack.c.b16 %v7268, %v7264
        %v8157 = vpack.c.b16 %v7269, %v7265
        %v8158 = vpack.c.b16 %v7270, %v7266
        %v8159 = vpack.c.b16 %v7271, %v7267
        %v8160 = vpack.c.b16 %v7276, %v7272
        %v8161 = vpack.c.b16 %v7277, %v7273
        %v8162 = vpack.c.b16 %v7278, %v7274
        %v8163 = vpack.c.b16 %v7279, %v7275
        %v8164 = vpack.c.b16 %v7284, %v7280
        %v8165 = vpack.c.b16 %v7285, %v7281
        %v8166 = vpack.c.b16 %v7286, %v7282
        %v8167 = vpack.c.b16 %v7287, %v7283
        %v8168 = vpack.c.b16 %v7292, %v7288
        %v8169 = vpack.c.b16 %v7293, %v7289
        %v8170 = vpack.c.b16 %v7294, %v7290
        %v8171 = vpack.c.b16 %v7295, %v7291
        %v8172 = vpack.c.b16 %v7300, %v7296
        %v8173 = vpack.c.b16 %v7301, %v7297
        %v8174 = vpack.c.b16 %v7302, %v7298
        %v8175 = vpack.c.b16 %v7303, %v7299
        %v8176 = vpack.c.b16 %v7308, %v7304
        %v8177 = vpack.c.b16 %v7309, %v7305
        %v8178 = vpack.c.b16 %v7310, %v7306
        %v8179 = vpack.c.b16 %v7311, %v7307
        %v8180 = vpack.c.b16 %v7316, %v7312
        %v8181 = vpack.c.b16 %v7317, %v7313
        %v8182 = vpack.c.b16 %v7318, %v7314
        %v8183 = vpack.c.b16 %v7319, %v7315
        %v8184 = vpack.c.b16 %v7324, %v7320
        %v8185 = vpack.c.b16 %v7325, %v7321
        %v8186 = vpack.c.b16 %v7326, %v7322
        %v8187 = vpack.c.b16 %v7327, %v7323
        %v8188 = vpack.c.b16 %v7332, %v7328
        %v8189 = vpack.c.b16 %v7333, %v7329
        %v8190 = vpack.c.b16 %v7334, %v7330
        %v8191 = vpack.c.b16 %v7335, %v7331
        %v8192 = vpack.c.b16 %v7340, %v7336
        %v8193 = vpack.c.b16 %v7341, %v7337
        %v8194 = vpack.c.b16 %v7342, %v7338
        %v8195 = vpack.c.b16 %v7343, %v7339
        %v8196 = vpack.c.b16 %v7348, %v7344
        %v8197 = vpack.c.b16 %v7349, %v7345
        %v8198 = vpack.c.b16 %v7350, %v7346
        %v8199 = vpack.c.b16 %v7351, %v7347
        %v8200 = vpack.c.b16 %v7356, %v7352
        %v8201 = vpack.c.b16 %v7357, %v7353
        %v8202 = vpack.c.b16 %v7358, %v7354
        %v8203 = vpack.c.b16 %v7359, %v7355
        %v8204 = vpack.c.b16 %v7364, %v7360
        %v8205 = vpack.c.b16 %v7365, %v7361
        %v8206 = vpack.c.b16 %v7366, %v7362
        %v8207 = vpack.c.b16 %v7367, %v7363
        %v8208 = vpack.c.b16 %v7372, %v7368
        %v8209 = vpack.c.b16 %v7373, %v7369
        %v8210 = vpack.c.b16 %v7374, %v7370
        %v8211 = vpack.c.b16 %v7375, %v7371
        %v8212 = vpack.c.b16 %v7380, %v7376
        %v8213 = vpack.c.b16 %v7381, %v7377
        %v8214 = vpack.c.b16 %v7382, %v7378
        %v8215 = vpack.c.b16 %v7383, %v7379
        %v8216 = vpack.c.b16 %v7388, %v7384
        %v8217 = vpack.c.b16 %v7389, %v7385
        %v8218 = vpack.c.b16 %v7390, %v7386
        %v8219 = vpack.c.b16 %v7391, %v7387
        %v8220 = vpack.c.b16 %v7396, %v7392
        %v8221 = vpack.c.b16 %v7397, %v7393
        %v8222 = vpack.c.b16 %v7398, %v7394
        %v8223 = vpack.c.b16 %v7399, %v7395
        %v8224 = vpack.c.b16 %v7404, %v7400
        %v8225 = vpack.c.b16 %v7405, %v7401
        %v8226 = vpack.c.b16 %v7406, %v7402
        %v8227 = vpack.c.b16 %v7407, %v7403
        %v8228 = vpack.c.b16 %v7412, %v7408
        %v8229 = vpack.c.b16 %v7413, %v7409
        %v8230 = vpack.c.b16 %v7414, %v7410
        %v8231 = vpack.c.b16 %v7415, %v7411
        %v8232 = vpack.c.b16 %v7420, %v7416
        %v8233 = vpack.c.b16 %v7421, %v7417
        %v8234 = vpack.c.b16 %v7422, %v7418
        %v8235 = vpack.c.b16 %v7423, %v7419
        %v8236 = vpack.c.b16 %v7428, %v7424
        %v8237 = vpack.c.b16 %v7429, %v7425
        %v8238 = vpack.c.b16 %v7430, %v7426
        %v8239 = vpack.c.b16 %v7431, %v7427
        %v8240 = vpack.c.b16 %v7436, %v7432
        %v8241 = vpack.c.b16 %v7437, %v7433
        %v8242 = vpack.c.b16 %v7438, %v7434
        %v8243 = vpack.c.b16 %v7439, %v7435
        %v8244 = vpack.c.b16 %v7444, %v7440
        %v8245 = vpack.c.b16 %v7445, %v7441
        %v8246 = vpack.c.b16 %v7446, %v7442
        %v8247 = vpack.c.b16 %v7447, %v7443
        %v8248 = vpack.c.b16 %v7452, %v7448
        %v8249 = vpack.c.b16 %v7453, %v7449
        %v8250 = vpack.c.b16 %v7454, %v7450
        %v8251 = vpack.c.b16 %v7455, %v7451
        %v8252 = vpack.c.b16 %v7460, %v7456
        %v8253 = vpack.c.b16 %v7461, %v7457
        %v8254 = vpack.c.b16 %v7462, %v7458
        %v8255 = vpack.c.b16 %v7463, %v7459
        %v8256 = vpack.c.b16 %v7468, %v7464
        %v8257 = vpack.c.b16 %v7469, %v7465
        %v8258 = vpack.c.b16 %v7470, %v7466
        %v8259 = vpack.c.b16 %v7471, %v7467
        %v8260 = vpack.c.b16 %v7476, %v7472
        %v8261 = vpack.c.b16 %v7477, %v7473
        %v8262 = vpack.c.b16 %v7478, %v7474
        %v8263 = vpack.c.b16 %v7479, %v7475
        %v8264 = vpack.c.b16 %v7484, %v7480
        %v8265 = vpack.c.b16 %v7485, %v7481
        %v8266 = vpack.c.b16 %v7486, %v7482
        %v8267 = vpack.c.b16 %v7487, %v7483
        %v8268 = vpack.c.b16 %v7492, %v7488
        %v8269 = vpack.c.b16 %v7493, %v7489
        %v8270 = vpack.c.b16 %v7494, %v7490
        %v8271 = vpack.c.b16 %v7495, %v7491
        %v8272 = vpack.c.b16 %v7500, %v7496
        %v8273 = vpack.c.b16 %v7501, %v7497
        %v8274 = vpack.c.b16 %v7502, %v7498
        %v8275 = vpack.c.b16 %v7503, %v7499
        %v8276 = vpack.c.b16 %v7508, %v7504
        %v8277 = vpack.c.b16 %v7509, %v7505
        %v8278 = vpack.c.b16 %v7510, %v7506
        %v8279 = vpack.c.b16 %v7511, %v7507
        %v8280 = vpack.c.b16 %v7516, %v7512
        %v8281 = vpack.c.b16 %v7517, %v7513
        %v8282 = vpack.c.b16 %v7518, %v7514
        %v8283 = vpack.c.b16 %v7519, %v7515
        %v8284 = vpack.c.b16 %v7524, %v7520
        %v8285 = vpack.c.b16 %v7525, %v7521
        %v8286 = vpack.c.b16 %v7526, %v7522
        %v8287 = vpack.c.b16 %v7527, %v7523
        %v8288 = vpack.c.b16 %v7532, %v7528
        %v8289 = vpack.c.b16 %v7533, %v7529
        %v8290 = vpack.c.b16 %v7534, %v7530
        %v8291 = vpack.c.b16 %v7535, %v7531
        %v8292 = vpack.c.b16 %v7540, %v7536
        %v8293 = vpack.c.b16 %v7541, %v7537
        %v8294 = vpack.c.b16 %v7542, %v7538
        %v8295 = vpack.c.b16 %v7543, %v7539
        %v8296 = vpack.c.b16 %v7548, %v7544
        %v8297 = vpack.c.b16 %v7549, %v7545
        %v8298 = vpack.c.b16 %v7550, %v7546
        %v8299 = vpack.c.b16 %v7551, %v7547
        %v8300 = vpack.c.b16 %v7556, %v7552
        %v8301 = vpack.c.b16 %v7557, %v7553
        %v8302 = vpack.c.b16 %v7558, %v7554
        %v8303 = vpack.c.b16 %v7559, %v7555
        %v8304 = vpack.c.b16 %v7564, %v7560
        %v8305 = vpack.c.b16 %v7565, %v7561
        %v8306 = vpack.c.b16 %v7566, %v7562
        %v8307 = vpack.c.b16 %v7567, %v7563
        %v8308 = vpack.c.b16 %v7572, %v7568
        %v8309 = vpack.c.b16 %v7573, %v7569
        %v8310 = vpack.c.b16 %v7574, %v7570
        %v8311 = vpack.c.b16 %v7575, %v7571
        %v8312 = vpack.c.b16 %v7580, %v7576
        %v8313 = vpack.c.b16 %v7581, %v7577
        %v8314 = vpack.c.b16 %v7582, %v7578
        %v8315 = vpack.c.b16 %v7583, %v7579
        %v8316 = vpack.c.b16 %v7588, %v7584
        %v8317 = vpack.c.b16 %v7589, %v7585
        %v8318 = vpack.c.b16 %v7590, %v7586
        %v8319 = vpack.c.b16 %v7591, %v7587
        %v8320 = vpack.c.b16 %v7596, %v7592
        %v8321 = vpack.c.b16 %v7597, %v7593
        %v8322 = vpack.c.b16 %v7598, %v7594
        %v8323 = vpack.c.b16 %v7599, %v7595
        %v8324 = vpack.c.b16 %v7604, %v7600
        %v8325 = vpack.c.b16 %v7605, %v7601
        %v8326 = vpack.c.b16 %v7606, %v7602
        %v8327 = vpack.c.b16 %v7607, %v7603
        %v8328 = vpack.c.b16 %v7612, %v7608
        %v8329 = vpack.c.b16 %v7613, %v7609
        %v8330 = vpack.c.b16 %v7614, %v7610
        %v8331 = vpack.c.b16 %v7615, %v7611
        %v8332 = vpack.c.b16 %v7620, %v7616
        %v8333 = vpack.c.b16 %v7621, %v7617
        %v8334 = vpack.c.b16 %v7622, %v7618
        %v8335 = vpack.c.b16 %v7623, %v7619
        %v8336 = vpack.c.b16 %v7628, %v7624
        %v8337 = vpack.c.b16 %v7629, %v7625
        %v8338 = vpack.c.b16 %v7630, %v7626
        %v8339 = vpack.c.b16 %v7631, %v7627
        %v8340 = vpack.c.b16 %v7636, %v7632
        %v8341 = vpack.c.b16 %v7637, %v7633
        %v8342 = vpack.c.b16 %v7638, %v7634
        %v8343 = vpack.c.b16 %v7639, %v7635
        %v8344 = vpack.c.b16 %v7644, %v7640
        %v8345 = vpack.c.b16 %v7645, %v7641
        %v8346 = vpack.c.b16 %v7646, %v7642
        %v8347 = vpack.c.b16 %v7647, %v7643
        %v8348 = vpack.c.b16 %v7652, %v7648
        %v8349 = vpack.c.b16 %v7653, %v7649
        %v8350 = vpack.c.b16 %v7654, %v7650
        %v8351 = vpack.c.b16 %v7655, %v7651
        %v8352 = vpack.c.b16 %v7660, %v7656
        %v8353 = vpack.c.b16 %v7661, %v7657
        %v8354 = vpack.c.b16 %v7662, %v7658
        %v8355 = vpack.c.b16 %v7663, %v7659
        %v8356 = vpack.c.b16 %v7668, %v7664
        %v8357 = vpack.c.b16 %v7669, %v7665
        %v8358 = vpack.c.b16 %v7670, %v7666
        %v8359 = vpack.c.b16 %v7671, %v7667
        %v8360 = vpack.c.b16 %v7676, %v7672
        %v8361 = vpack.c.b16 %v7677, %v7673
        %v8362 = vpack.c.b16 %v7678, %v7674
        %v8363 = vpack.c.b16 %v7679, %v7675
        %v8364 = vpack.c.b16 %v7684, %v7680
        %v8365 = vpack.c.b16 %v7685, %v7681
        %v8366 = vpack.c.b16 %v7686, %v7682
        %v8367 = vpack.c.b16 %v7687, %v7683
        %v8368 = vpack.c.b16 %v7692, %v7688
        %v8369 = vpack.c.b16 %v7693, %v7689
        %v8370 = vpack.c.b16 %v7694, %v7690
        %v8371 = vpack.c.b16 %v7695, %v7691
        %v8372 = vpack.c.b16 %v7700, %v7696
        %v8373 = vpack.c.b16 %v7701, %v7697
        %v8374 = vpack.c.b16 %v7702, %v7698
        %v8375 = vpack.c.b16 %v7703, %v7699
        %v8376 = vpack.c.b16 %v7708, %v7704
        %v8377 = vpack.c.b16 %v7709, %v7705
        %v8378 = vpack.c.b16 %v7710, %v7706
        %v8379 = vpack.c.b16 %v7711, %v7707
        %v8380 = vpack.c.b16 %v7716, %v7712
        %v8381 = vpack.c.b16 %v7717, %v7713
        %v8382 = vpack.c.b16 %v7718, %v7714
        %v8383 = vpack.c.b16 %v7719, %v7715
        %v8384 = vpack.c.b16 %v7724, %v7720
        %v8385 = vpack.c.b16 %v7725, %v7721
        %v8386 = vpack.c.b16 %v7726, %v7722
        %v8387 = vpack.c.b16 %v7727, %v7723
        %v8388 = vpack.c.b16 %v7732, %v7728
        %v8389 = vpack.c.b16 %v7733, %v7729
        %v8390 = vpack.c.b16 %v7734, %v7730
        %v8391 = vpack.c.b16 %v7735, %v7731
        %v8392 = vpack.c.b16 %v7740, %v7736
        %v8393 = vpack.c.b16 %v7741, %v7737
        %v8394 = vpack.c.b16 %v7742, %v7738
        %v8395 = vpack.c.b16 %v7743, %v7739
        %v8396 = vpack.c.b16 %v7748, %v7744
        %v8397 = vpack.c.b16 %v7749, %v7745
        %v8398 = vpack.c.b16 %v7750, %v7746
        %v8399 = vpack.c.b16 %v7751, %v7747
        %v8400 = vpack.c.b16 %v7756, %v7752
        %v8401 = vpack.c.b16 %v7757, %v7753
        %v8402 = vpack.c.b16 %v7758, %v7754
        %v8403 = vpack.c.b16 %v7759, %v7755
        %v8404 = vpack.c.b16 %v7764, %v7760
        %v8405 = vpack.c.b16 %v7765, %v7761
        %v8406 = vpack.c.b16 %v7766, %v7762
        %v8407 = vpack.c.b16 %v7767, %v7763
        %v8408 = vpack.c.b16 %v7772, %v7768
        %v8409 = vpack.c.b16 %v7773, %v7769
        %v8410 = vpack.c.b16 %v7774, %v7770
        %v8411 = vpack.c.b16 %v7775, %v7771
        %v8412 = vpack.c.b16 %v7780, %v7776
        %v8413 = vpack.c.b16 %v7781, %v7777
        %v8414 = vpack.c.b16 %v7782, %v7778
        %v8415 = vpack.c.b16 %v7783, %v7779
        %v8416 = vpack.c.b16 %v7788, %v7784
        %v8417 = vpack.c.b16 %v7789, %v7785
        %v8418 = vpack.c.b16 %v7790, %v7786
        %v8419 = vpack.c.b16 %v7791, %v7787
        %v8420 = vpack.c.b16 %v7796, %v7792
        %v8421 = vpack.c.b16 %v7797, %v7793
        %v8422 = vpack.c.b16 %v7798, %v7794
        %v8423 = vpack.c.b16 %v7799, %v7795
        %v8424 = vpack.c.b16 %v7804, %v7800
        %v8425 = vpack.c.b16 %v7805, %v7801
        %v8426 = vpack.c.b16 %v7806, %v7802
        %v8427 = vpack.c.b16 %v7807, %v7803
        %v8428 = vpack.c.b16 %v7812, %v7808
        %v8429 = vpack.c.b16 %v7813, %v7809
        %v8430 = vpack.c.b16 %v7814, %v7810
        %v8431 = vpack.c.b16 %v7815, %v7811
        %v8432 = vpack.c.b16 %v7820, %v7816
        %v8433 = vpack.c.b16 %v7821, %v7817
        %v8434 = vpack.c.b16 %v7822, %v7818
        %v8435 = vpack.c.b16 %v7823, %v7819
        %v8436 = vpack.c.b16 %v7828, %v7824
        %v8437 = vpack.c.b16 %v7829, %v7825
        %v8438 = vpack.c.b16 %v7830, %v7826
        %v8439 = vpack.c.b16 %v7831, %v7827
        %v8440 = vpack.c.b16 %v7836, %v7832
        %v8441 = vpack.c.b16 %v7837, %v7833
        %v8442 = vpack.c.b16 %v7838, %v7834
        %v8443 = vpack.c.b16 %v7839, %v7835
        %v8444 = vpack.c.b16 %v7844, %v7840
        %v8445 = vpack.c.b16 %v7845, %v7841
        %v8446 = vpack.c.b16 %v7846, %v7842
        %v8447 = vpack.c.b16 %v7847, %v7843
        %v8448 = vpack.c.b16 %v7852, %v7848
        %v8449 = vpack.c.b16 %v7853, %v7849
        %v8450 = vpack.c.b16 %v7854, %v7850
        %v8451 = vpack.c.b16 %v7855, %v7851
        %v8452 = vpack.c.b16 %v7860, %v7856
        %v8453 = vpack.c.b16 %v7861, %v7857
        %v8454 = vpack.c.b16 %v7862, %v7858
        %v8455 = vpack.c.b16 %v7863, %v7859
        %v8456 = vpack.c.b16 %v7868, %v7864
        %v8457 = vpack.c.b16 %v7869, %v7865
        %v8458 = vpack.c.b16 %v7870, %v7866
        %v8459 = vpack.c.b16 %v7871, %v7867
        %v8460 = vpack.c.b16 %v7876, %v7872
        %v8461 = vpack.c.b16 %v7877, %v7873
        %v8462 = vpack.c.b16 %v7878, %v7874
        %v8463 = vpack.c.b16 %v7879, %v7875
        %v8464 = vpack.c.b16 %v7884, %v7880
        %v8465 = vpack.c.b16 %v7885, %v7881
        %v8466 = vpack.c.b16 %v7886, %v7882
        %v8467 = vpack.c.b16 %v7887, %v7883
        %v8468 = vpack.c.b16 %v7892, %v7888
        %v8469 = vpack.c.b16 %v7893, %v7889
        %v8470 = vpack.c.b16 %v7894, %v7890
        %v8471 = vpack.c.b16 %v7895, %v7891
        %v8472 = vpack.c.b16 %v7900, %v7896
        %v8473 = vpack.c.b16 %v7901, %v7897
        %v8474 = vpack.c.b16 %v7902, %v7898
        %v8475 = vpack.c.b16 %v7903, %v7899
        %v8476 = vpack.c.b16 %v7908, %v7904
        %v8477 = vpack.c.b16 %v7909, %v7905
        %v8478 = vpack.c.b16 %v7910, %v7906
        %v8479 = vpack.c.b16 %v7911, %v7907
        %v8480 = vpack.c.b16 %v7916, %v7912
        %v8481 = vpack.c.b16 %v7917, %v7913
        %v8482 = vpack.c.b16 %v7918, %v7914
        %v8483 = vpack.c.b16 %v7919, %v7915
        %v8484 = vpack.c.b16 %v7924, %v7920
        %v8485 = vpack.c.b16 %v7925, %v7921
        %v8486 = vpack.c.b16 %v7926, %v7922
        %v8487 = vpack.c.b16 %v7927, %v7923
        %v8488 = vpack.c.b16 %v7932, %v7928
        %v8489 = vpack.c.b16 %v7933, %v7929
        %v8490 = vpack.c.b16 %v7934, %v7930
        %v8491 = vpack.c.b16 %v7935, %v7931
        %v8492 = vpack.c.b16 %v7940, %v7936
        %v8493 = vpack.c.b16 %v7941, %v7937
        %v8494 = vpack.c.b16 %v7942, %v7938
        %v8495 = vpack.c.b16 %v7943, %v7939
        %v8496 = vpack.c.b16 %v7948, %v7944
        %v8497 = vpack.c.b16 %v7949, %v7945
        %v8498 = vpack.c.b16 %v7950, %v7946
        %v8499 = vpack.c.b16 %v7951, %v7947
        %v8500 = vpack.c.b16 %v7956, %v7952
        %v8501 = vpack.c.b16 %v7957, %v7953
        %v8502 = vpack.c.b16 %v7958, %v7954
        %v8503 = vpack.c.b16 %v7959, %v7955
        %v8504 = vpack.c.b16 %v7964, %v7960
        %v8505 = vpack.c.b16 %v7965, %v7961
        %v8506 = vpack.c.b16 %v7966, %v7962
        %v8507 = vpack.c.b16 %v7967, %v7963
        %v8508 = vpack.c.b16 %v7972, %v7968
        %v8509 = vpack.c.b16 %v7973, %v7969
        %v8510 = vpack.c.b16 %v7974, %v7970
        %v8511 = vpack.c.b16 %v7975, %v7971
        %v8512 = vpack.c.b16 %v7980, %v7976
        %v8513 = vpack.c.b16 %v7981, %v7977
        %v8514 = vpack.c.b16 %v7982, %v7978
        %v8515 = vpack.c.b16 %v7983, %v7979
        %v8516 = vpack.c.b16 %v7988, %v7984
        %v8517 = vpack.c.b16 %v7989, %v7985
        %v8518 = vpack.c.b16 %v7990, %v7986
        %v8519 = vpack.c.b16 %v7991, %v7987
        %v8520 = vpack.c.b16 %v7996, %v7992
        %v8521 = vpack.c.b16 %v7997, %v7993
        %v8522 = vpack.c.b16 %v7998, %v7994
        %v8523 = vpack.c.b16 %v7999, %v7995
        %v8524 = vpack.c.b16 %v8004, %v8000
        %v8525 = vpack.c.b16 %v8005, %v8001
        %v8526 = vpack.c.b16 %v8006, %v8002
        %v8527 = vpack.c.b16 %v8007, %v8003
        %v8528 = vpack.c.b16 %v8012, %v8008
        %v8529 = vpack.c.b16 %v8013, %v8009
        %v8530 = vpack.c.b16 %v8014, %v8010
        %v8531 = vpack.c.b16 %v8015, %v8011
        %v8532 = vpack.c.b16 %v8020, %v8016
        %v8533 = vpack.c.b16 %v8021, %v8017
        %v8534 = vpack.c.b16 %v8022, %v8018
        %v8535 = vpack.c.b16 %v8023, %v8019
        %9048 = vmatprep.subr.bf16.mxu0 %v8025
        %9049 = vmatpush1.bf16.msra.mxu0 %v8024
        %9050 = vmatprep.subr.bf16.mxu0 %v8029
        %9051 = vmatpush1.bf16.msra.mxu0 %v8028
        %9052 = vmatprep.subr.bf16.mxu0 %v8033
        %9053 = vmatpush1.bf16.msra.mxu0 %v8032
        %9054 = vmatprep.subr.bf16.mxu0 %v8037
        %9055 = vmatpush1.bf16.msra.mxu0 %v8036
        %9056 = vmatprep.subr.bf16.mxu0 %v8041
        %9057 = vmatpush1.bf16.msra.mxu0 %v8040
        %9058 = vmatprep.subr.bf16.mxu0 %v8045
        %9059 = vmatpush1.bf16.msra.mxu0 %v8044
        %9060 = vmatprep.subr.bf16.mxu0 %v8049
        %9061 = vmatpush1.bf16.msra.mxu0 %v8048
        %9062 = vmatprep.subr.bf16.mxu0 %v8053
        %9063 = vmatpush1.bf16.msra.mxu0 %v8052
        %9064 = vmatprep.subr.bf16.mxu0 %v8057
        %9065 = vmatpush1.bf16.msra.mxu0 %v8056
        %9066 = vmatprep.subr.bf16.mxu0 %v8061
        %9067 = vmatpush1.bf16.msra.mxu0 %v8060
        %9068 = vmatprep.subr.bf16.mxu0 %v8065
        %9069 = vmatpush1.bf16.msra.mxu0 %v8064
        %9070 = vmatprep.subr.bf16.mxu0 %v8069
        %9071 = vmatpush1.bf16.msra.mxu0 %v8068
        %9072 = vmatprep.subr.bf16.mxu0 %v8073
        %9073 = vmatpush1.bf16.msra.mxu0 %v8072
        %9074 = vmatprep.subr.bf16.mxu0 %v8077
        %9075 = vmatpush1.bf16.msra.mxu0 %v8076
        %9076 = vmatprep.subr.bf16.mxu0 %v8081
        %9077 = vmatpush1.bf16.msra.mxu0 %v8080
        %9078 = vmatprep.subr.bf16.mxu0 %v8085
        %9079 = vmatpush1.bf16.msra.mxu0 %v8084
        %9080 = vmatprep.mubr.bf16.mxu0 %v5827
        %9081 = vmatmul.mubr.bf16.gmra.mrb[0].mxu0 %v5826
        %v9082 = vpop.f32.mrb[0].mxu0
        %v9083 = vadd.f32 %v6471, %v9082
        %v9084 = vpop.f32.mrb[0].mxu0
        %v9085 = vadd.f32 %v6475, %v9084
        %v9086 = vpop.f32.mrb[0].mxu0
        %v9087 = vadd.f32 %v6471, %v9086
        %v9088 = vpop.f32.mrb[0].mxu0
        %v9089 = vadd.f32 %v6475, %v9088
        %9090 = vmatprep.mubr.bf16.mxu0 %v5843
        %9091 = vmatmul.mubr.bf16.gmra.mrb[0].mxu0 %v5842
        %v9092 = vpop.f32.mrb[0].mxu0
        %v9093 = vadd.f32 %v6471, %v9092
        %v9094 = vpop.f32.mrb[0].mxu0
        %v9095 = vadd.f32 %v6475, %v9094
        %v9096 = vpop.f32.mrb[0].mxu0
        %v9097 = vadd.f32 %v6471, %v9096
        %v9098 = vpop.f32.mrb[0].mxu0
        %v9099 = vadd.f32 %v6475, %v9098
        %9100 = vmatprep.mubr.bf16.mxu0 %v5859
        %9101 = vmatmul.mubr.bf16.gmra.mrb[0].mxu0 %v5858
        %v9102 = vpop.f32.mrb[0].mxu0
        %v9103 = vadd.f32 %v6471, %v9102
        %v9104 = vpop.f32.mrb[0].mxu0
        %v9105 = vadd.f32 %v6475, %v9104
        %v9106 = vpop.f32.mrb[0].mxu0
        %v9107 = vadd.f32 %v6471, %v9106
        %v9108 = vpop.f32.mrb[0].mxu0
        %v9109 = vadd.f32 %v6475, %v9108
        %9110 = vmatprep.mubr.bf16.mxu0 %v5875
        %9111 = vmatmul.mubr.bf16.gmra.mrb[0].mxu0 %v5874
        %v9112 = vpop.f32.mrb[0].mxu0
        %v9113 = vadd.f32 %v6471, %v9112
        %v9114 = vpop.f32.mrb[0].mxu0
        %v9115 = vadd.f32 %v6475, %v9114
        %v9116 = vpop.f32.mrb[0].mxu0
        %v9117 = vadd.f32 %v6471, %v9116
        %v9118 = vpop.f32.mrb[0].mxu0
        %v9119 = vadd.f32 %v6475, %v9118
        %9120 = vmatprep.mubr.bf16.mxu0 %v5891
        %9121 = vmatmul.mubr.bf16.gmra.mrb[0].mxu0 %v5890
        %v9122 = vpop.f32.mrb[0].mxu0
        %v9123 = vadd.f32 %v6471, %v9122
        %v9124 = vpop.f32.mrb[0].mxu0
        %v9125 = vadd.f32 %v6475, %v9124
        %v9126 = vpop.f32.mrb[0].mxu0
        %v9127 = vadd.f32 %v6471, %v9126
        %v9128 = vpop.f32.mrb[0].mxu0
        %v9129 = vadd.f32 %v6475, %v9128
        %9130 = vmatprep.mubr.bf16.mxu0 %v5907
        %9131 = vmatmul.mubr.bf16.gmra.mrb[0].mxu0 %v5906
        %v9132 = vpop.f32.mrb[0].mxu0
        %v9133 = vadd.f32 %v6471, %v9132
        %v9134 = vpop.f32.mrb[0].mxu0
        %v9135 = vadd.f32 %v6475, %v9134
        %v9136 = vpop.f32.mrb[0].mxu0
        %v9137 = vadd.f32 %v6471, %v9136
        %v9138 = vpop.f32.mrb[0].mxu0
        %v9139 = vadd.f32 %v6475, %v9138
        %9140 = vmatprep.mubr.bf16.mxu0 %v5923
        %9141 = vmatmul.mubr.bf16.gmra.mrb[0].mxu0 %v5922
        %v9142 = vpop.f32.mrb[0].mxu0
        %v9143 = vadd.f32 %v6471, %v9142
        %v9144 = vpop.f32.mrb[0].mxu0
        %v9145 = vadd.f32 %v6475, %v9144
        %v9146 = vpop.f32.mrb[0].mxu0
        %v9147 = vadd.f32 %v6471, %v9146
        %v9148 = vpop.f32.mrb[0].mxu0
        %v9149 = vadd.f32 %v6475, %v9148
        %9150 = vmatprep.mubr.bf16.mxu0 %v5939
        %9151 = vmatmul.mubr.bf16.gmra.mrb[0].mxu0 %v5938
        %v9152 = vpop.f32.mrb[0].mxu0
        %v9153 = vadd.f32 %v6471, %v9152
        %v9154 = vpop.f32.mrb[0].mxu0
        %v9155 = vadd.f32 %v6475, %v9154
        %v9156 = vpop.f32.mrb[0].mxu0
        %v9157 = vadd.f32 %v6471, %v9156
        %v9158 = vpop.f32.mrb[0].mxu0
        %v9159 = vadd.f32 %v6475, %v9158
        %9160 = vdwg.mxu0
        %9161 = vmatprep.subr.bf16.mxu0 %v8089
        %9162 = vmatpush1.bf16.msra.mxu0 %v8088
        %9163 = vmatprep.subr.bf16.mxu0 %v8093
        %9164 = vmatpush1.bf16.msra.mxu0 %v8092
        %9165 = vmatprep.subr.bf16.mxu0 %v8097
        %9166 = vmatpush1.bf16.msra.mxu0 %v8096
        %9167 = vmatprep.subr.bf16.mxu0 %v8101
        %9168 = vmatpush1.bf16.msra.mxu0 %v8100
        %9169 = vmatprep.subr.bf16.mxu0 %v8105
        %9170 = vmatpush1.bf16.msra.mxu0 %v8104
        %9171 = vmatprep.subr.bf16.mxu0 %v8109
        %9172 = vmatpush1.bf16.msra.mxu0 %v8108
        %9173 = vmatprep.subr.bf16.mxu0 %v8113
        %9174 = vmatpush1.bf16.msra.mxu0 %v8112
        %9175 = vmatprep.subr.bf16.mxu0 %v8117
        %9176 = vmatpush1.bf16.msra.mxu0 %v8116
        %9177 = vmatprep.subr.bf16.mxu0 %v8121
        %9178 = vmatpush1.bf16.msra.mxu0 %v8120
        %9179 = vmatprep.subr.bf16.mxu0 %v8125
        %9180 = vmatpush1.bf16.msra.mxu0 %v8124
        %9181 = vmatprep.subr.bf16.mxu0 %v8129
        %9182 = vmatpush1.bf16.msra.mxu0 %v8128
        %9183 = vmatprep.subr.bf16.mxu0 %v8133
        %9184 = vmatpush1.bf16.msra.mxu0 %v8132
        %9185 = vmatprep.subr.bf16.mxu0 %v8137
        %9186 = vmatpush1.bf16.msra.mxu0 %v8136
        %9187 = vmatprep.subr.bf16.mxu0 %v8141
        %9188 = vmatpush1.bf16.msra.mxu0 %v8140
        %9189 = vmatprep.subr.bf16.mxu0 %v8145
        %9190 = vmatpush1.bf16.msra.mxu0 %v8144
        %9191 = vmatprep.subr.bf16.mxu0 %v8149
        %9192 = vmatpush1.bf16.msra.mxu0 %v8148
        %9193 = vmatprep.mubr.bf16.mxu0 %v5829
        %9194 = vmatmul.mubr.bf16.gmra.mrb[0].mxu0 %v5828
        %v9195 = vpop.f32.mrb[0].mxu0
        %v9196 = vadd.f32 %v9083, %v9195
        %v9197 = vpop.f32.mrb[0].mxu0
        %v9198 = vadd.f32 %v9085, %v9197
        %v9199 = vpop.f32.mrb[0].mxu0
        %v9200 = vadd.f32 %v9087, %v9199
        %v9201 = vpop.f32.mrb[0].mxu0
        %v9202 = vadd.f32 %v9089, %v9201
        %9203 = vmatprep.mubr.bf16.mxu0 %v5845
        %9204 = vmatmul.mubr.bf16.gmra.mrb[0].mxu0 %v5844
        %v9205 = vpop.f32.mrb[0].mxu0
        %v9206 = vadd.f32 %v9093, %v9205
        %v9207 = vpop.f32.mrb[0].mxu0
        %v9208 = vadd.f32 %v9095, %v9207
        %v9209 = vpop.f32.mrb[0].mxu0
        %v9210 = vadd.f32 %v9097, %v9209
        %v9211 = vpop.f32.mrb[0].mxu0
        %v9212 = vadd.f32 %v9099, %v9211
        %9213 = vmatprep.mubr.bf16.mxu0 %v5861
        %9214 = vmatmul.mubr.bf16.gmra.mrb[0].mxu0 %v5860
        %v9215 = vpop.f32.mrb[0].mxu0
        %v9216 = vadd.f32 %v9103, %v9215
        %v9217 = vpop.f32.mrb[0].mxu0
        %v9218 = vadd.f32 %v9105, %v9217
        %v9219 = vpop.f32.mrb[0].mxu0
        %v9220 = vadd.f32 %v9107, %v9219
        %v9221 = vpop.f32.mrb[0].mxu0
        %v9222 = vadd.f32 %v9109, %v9221
        %9223 = vmatprep.mubr.bf16.mxu0 %v5877
        %9224 = vmatmul.mubr.bf16.gmra.mrb[0].mxu0 %v5876
        %v9225 = vpop.f32.mrb[0].mxu0
        %v9226 = vadd.f32 %v9113, %v9225
        %v9227 = vpop.f32.mrb[0].mxu0
        %v9228 = vadd.f32 %v9115, %v9227
        %v9229 = vpop.f32.mrb[0].mxu0
        %v9230 = vadd.f32 %v9117, %v9229
        %v9231 = vpop.f32.mrb[0].mxu0
        %v9232 = vadd.f32 %v9119, %v9231
        %9233 = vmatprep.mubr.bf16.mxu0 %v5893
        %9234 = vmatmul.mubr.bf16.gmra.mrb[0].mxu0 %v5892
        %v9235 = vpop.f32.mrb[0].mxu0
        %v9236 = vadd.f32 %v9123, %v9235
        %v9237 = vpop.f32.mrb[0].mxu0
        %v9238 = vadd.f32 %v9125, %v9237
        %v9239 = vpop.f32.mrb[0].mxu0
        %v9240 = vadd.f32 %v9127, %v9239
        %v9241 = vpop.f32.mrb[0].mxu0
        %v9242 = vadd.f32 %v9129, %v9241
        %9243 = vmatprep.mubr.bf16.mxu0 %v5909
        %9244 = vmatmul.mubr.bf16.gmra.mrb[0].mxu0 %v5908
        %v9245 = vpop.f32.mrb[0].mxu0
        %v9246 = vadd.f32 %v9133, %v9245
        %v9247 = vpop.f32.mrb[0].mxu0
        %v9248 = vadd.f32 %v9135, %v9247
        %v9249 = vpop.f32.mrb[0].mxu0
        %v9250 = vadd.f32 %v9137, %v9249
        %v9251 = vpop.f32.mrb[0].mxu0
        %v9252 = vadd.f32 %v9139, %v9251
        %9253 = vmatprep.mubr.bf16.mxu0 %v5925
        %9254 = vmatmul.mubr.bf16.gmra.mrb[0].mxu0 %v5924
        %v9255 = vpop.f32.mrb[0].mxu0
        %v9256 = vadd.f32 %v9143, %v9255
        %v9257 = vpop.f32.mrb[0].mxu0
        %v9258 = vadd.f32 %v9145, %v9257
        %v9259 = vpop.f32.mrb[0].mxu0
        %v9260 = vadd.f32 %v9147, %v9259
        %v9261 = vpop.f32.mrb[0].mxu0
        %v9262 = vadd.f32 %v9149, %v9261
        %9263 = vmatprep.mubr.bf16.mxu0 %v5941
        %9264 = vmatmul.mubr.bf16.gmra.mrb[0].mxu0 %v5940
        %v9265 = vpop.f32.mrb[0].mxu0
        %v9266 = vadd.f32 %v9153, %v9265
        %v9267 = vpop.f32.mrb[0].mxu0
        %v9268 = vadd.f32 %v9155, %v9267
        %v9269 = vpop.f32.mrb[0].mxu0
        %v9270 = vadd.f32 %v9157, %v9269
        %v9271 = vpop.f32.mrb[0].mxu0
        %v9272 = vadd.f32 %v9159, %v9271
        %9273 = vdwg.mxu0
        %9274 = vmatprep.subr.bf16.mxu0 %v8153
        %9275 = vmatpush1.bf16.msra.mxu0 %v8152
        %9276 = vmatprep.subr.bf16.mxu0 %v8157
        %9277 = vmatpush1.bf16.msra.mxu0 %v8156
        %9278 = vmatprep.subr.bf16.mxu0 %v8161
        %9279 = vmatpush1.bf16.msra.mxu0 %v8160
        %9280 = vmatprep.subr.bf16.mxu0 %v8165
        %9281 = vmatpush1.bf16.msra.mxu0 %v8164
        %9282 = vmatprep.subr.bf16.mxu0 %v8169
        %9283 = vmatpush1.bf16.msra.mxu0 %v8168
        %9284 = vmatprep.subr.bf16.mxu0 %v8173
        %9285 = vmatpush1.bf16.msra.mxu0 %v8172
        %9286 = vmatprep.subr.bf16.mxu0 %v8177
        %9287 = vmatpush1.bf16.msra.mxu0 %v8176
        %9288 = vmatprep.subr.bf16.mxu0 %v8181
        %9289 = vmatpush1.bf16.msra.mxu0 %v8180
        %9290 = vmatprep.subr.bf16.mxu0 %v8185
        %9291 = vmatpush1.bf16.msra.mxu0 %v8184
        %9292 = vmatprep.subr.bf16.mxu0 %v8189
        %9293 = vmatpush1.bf16.msra.mxu0 %v8188
        %9294 = vmatprep.subr.bf16.mxu0 %v8193
        %9295 = vmatpush1.bf16.msra.mxu0 %v8192
        %9296 = vmatprep.subr.bf16.mxu0 %v8197
        %9297 = vmatpush1.bf16.msra.mxu0 %v8196
        %9298 = vmatprep.subr.bf16.mxu0 %v8201
        %9299 = vmatpush1.bf16.msra.mxu0 %v8200
        %9300 = vmatprep.subr.bf16.mxu0 %v8205
        %9301 = vmatpush1.bf16.msra.mxu0 %v8204
        %9302 = vmatprep.subr.bf16.mxu0 %v8209
        %9303 = vmatpush1.bf16.msra.mxu0 %v8208
        %9304 = vmatprep.subr.bf16.mxu0 %v8213
        %9305 = vmatpush1.bf16.msra.mxu0 %v8212
        %9306 = vmatprep.mubr.bf16.mxu0 %v5831
        %9307 = vmatmul.mubr.bf16.gmra.mrb[0].mxu0 %v5830
        %v9308 = vpop.f32.mrb[0].mxu0
        %v9309 = vadd.f32 %v9196, %v9308
        %v9310 = vpop.f32.mrb[0].mxu0
        %v9311 = vadd.f32 %v9198, %v9310
        %v9312 = vpop.f32.mrb[0].mxu0
        %v9313 = vadd.f32 %v9200, %v9312
        %v9314 = vpop.f32.mrb[0].mxu0
        %v9315 = vadd.f32 %v9202, %v9314
        %9316 = vmatprep.mubr.bf16.mxu0 %v5847
        %9317 = vmatmul.mubr.bf16.gmra.mrb[0].mxu0 %v5846
        %v9318 = vpop.f32.mrb[0].mxu0
        %v9319 = vadd.f32 %v9206, %v9318
        %v9320 = vpop.f32.mrb[0].mxu0
        %v9321 = vadd.f32 %v9208, %v9320
        %v9322 = vpop.f32.mrb[0].mxu0
        %v9323 = vadd.f32 %v9210, %v9322
        %v9324 = vpop.f32.mrb[0].mxu0
        %v9325 = vadd.f32 %v9212, %v9324
        %9326 = vmatprep.mubr.bf16.mxu0 %v5863
        %9327 = vmatmul.mubr.bf16.gmra.mrb[0].mxu0 %v5862
        %v9328 = vpop.f32.mrb[0].mxu0
        %v9329 = vadd.f32 %v9216, %v9328
        %v9330 = vpop.f32.mrb[0].mxu0
        %v9331 = vadd.f32 %v9218, %v9330
        %v9332 = vpop.f32.mrb[0].mxu0
        %v9333 = vadd.f32 %v9220, %v9332
        %v9334 = vpop.f32.mrb[0].mxu0
        %v9335 = vadd.f32 %v9222, %v9334
        %9336 = vmatprep.mubr.bf16.mxu0 %v5879
        %9337 = vmatmul.mubr.bf16.gmra.mrb[0].mxu0 %v5878
        %v9338 = vpop.f32.mrb[0].mxu0
        %v9339 = vadd.f32 %v9226, %v9338
        %v9340 = vpop.f32.mrb[0].mxu0
        %v9341 = vadd.f32 %v9228, %v9340
        %v9342 = vpop.f32.mrb[0].mxu0
        %v9343 = vadd.f32 %v9230, %v9342
        %v9344 = vpop.f32.mrb[0].mxu0
        %v9345 = vadd.f32 %v9232, %v9344
        %9346 = vmatprep.mubr.bf16.mxu0 %v5895
        %9347 = vmatmul.mubr.bf16.gmra.mrb[0].mxu0 %v5894
        %v9348 = vpop.f32.mrb[0].mxu0
        %v9349 = vadd.f32 %v9236, %v9348
        %v9350 = vpop.f32.mrb[0].mxu0
        %v9351 = vadd.f32 %v9238, %v9350
        %v9352 = vpop.f32.mrb[0].mxu0
        %v9353 = vadd.f32 %v9240, %v9352
        %v9354 = vpop.f32.mrb[0].mxu0
        %v9355 = vadd.f32 %v9242, %v9354
        %9356 = vmatprep.mubr.bf16.mxu0 %v5911
        %9357 = vmatmul.mubr.bf16.gmra.mrb[0].mxu0 %v5910
        %v9358 = vpop.f32.mrb[0].mxu0
        %v9359 = vadd.f32 %v9246, %v9358
        %v9360 = vpop.f32.mrb[0].mxu0
        %v9361 = vadd.f32 %v9248, %v9360
        %v9362 = vpop.f32.mrb[0].mxu0
        %v9363 = vadd.f32 %v9250, %v9362
        %v9364 = vpop.f32.mrb[0].mxu0
        %v9365 = vadd.f32 %v9252, %v9364
        %9366 = vmatprep.mubr.bf16.mxu0 %v5927
        %9367 = vmatmul.mubr.bf16.gmra.mrb[0].mxu0 %v5926
        %v9368 = vpop.f32.mrb[0].mxu0
        %v9369 = vadd.f32 %v9256, %v9368
        %v9370 = vpop.f32.mrb[0].mxu0
        %v9371 = vadd.f32 %v9258, %v9370
        %v9372 = vpop.f32.mrb[0].mxu0
        %v9373 = vadd.f32 %v9260, %v9372
        %v9374 = vpop.f32.mrb[0].mxu0
        %v9375 = vadd.f32 %v9262, %v9374
        %9376 = vmatprep.mubr.bf16.mxu0 %v5943
        %9377 = vmatmul.mubr.bf16.gmra.mrb[0].mxu0 %v5942
        %v9378 = vpop.f32.mrb[0].mxu0
        %v9379 = vadd.f32 %v9266, %v9378
        %v9380 = vpop.f32.mrb[0].mxu0
        %v9381 = vadd.f32 %v9268, %v9380
        %v9382 = vpop.f32.mrb[0].mxu0
        %v9383 = vadd.f32 %v9270, %v9382
        %v9384 = vpop.f32.mrb[0].mxu0
        %v9385 = vadd.f32 %v9272, %v9384
        %9386 = vdwg.mxu0
        %9387 = vmatprep.subr.bf16.mxu0 %v8217
        %9388 = vmatpush1.bf16.msra.mxu0 %v8216
        %9389 = vmatprep.subr.bf16.mxu0 %v8221
        %9390 = vmatpush1.bf16.msra.mxu0 %v8220
        %9391 = vmatprep.subr.bf16.mxu0 %v8225
        %9392 = vmatpush1.bf16.msra.mxu0 %v8224
        %9393 = vmatprep.subr.bf16.mxu0 %v8229
        %9394 = vmatpush1.bf16.msra.mxu0 %v8228
        %9395 = vmatprep.subr.bf16.mxu0 %v8233
        %9396 = vmatpush1.bf16.msra.mxu0 %v8232
        %9397 = vmatprep.subr.bf16.mxu0 %v8237
        %9398 = vmatpush1.bf16.msra.mxu0 %v8236
        %9399 = vmatprep.subr.bf16.mxu0 %v8241
        %9400 = vmatpush1.bf16.msra.mxu0 %v8240
        %9401 = vmatprep.subr.bf16.mxu0 %v8245
        %9402 = vmatpush1.bf16.msra.mxu0 %v8244
        %9403 = vmatprep.subr.bf16.mxu0 %v8249
        %9404 = vmatpush1.bf16.msra.mxu0 %v8248
        %9405 = vmatprep.subr.bf16.mxu0 %v8253
        %9406 = vmatpush1.bf16.msra.mxu0 %v8252
        %9407 = vmatprep.subr.bf16.mxu0 %v8257
        %9408 = vmatpush1.bf16.msra.mxu0 %v8256
        %9409 = vmatprep.subr.bf16.mxu0 %v8261
        %9410 = vmatpush1.bf16.msra.mxu0 %v8260
        %9411 = vmatprep.subr.bf16.mxu0 %v8265
        %9412 = vmatpush1.bf16.msra.mxu0 %v8264
        %9413 = vmatprep.subr.bf16.mxu0 %v8269
        %9414 = vmatpush1.bf16.msra.mxu0 %v8268
        %9415 = vmatprep.subr.bf16.mxu0 %v8273
        %9416 = vmatpush1.bf16.msra.mxu0 %v8272
        %9417 = vmatprep.subr.bf16.mxu0 %v8277
        %9418 = vmatpush1.bf16.msra.mxu0 %v8276
        %9419 = vmatprep.mubr.bf16.mxu0 %v5833
        %9420 = vmatmul.mubr.bf16.gmra.mrb[0].mxu0 %v5832
        %v9421 = vpop.f32.mrb[0].mxu0
        %v9422 = vadd.f32 %v9309, %v9421
        %v9423 = vpop.f32.mrb[0].mxu0
        %v9424 = vadd.f32 %v9311, %v9423
        %v9425 = vpop.f32.mrb[0].mxu0
        %v9426 = vadd.f32 %v9313, %v9425
        %v9427 = vpop.f32.mrb[0].mxu0
        %v9428 = vadd.f32 %v9315, %v9427
        %9429 = vmatprep.mubr.bf16.mxu0 %v5849
        %9430 = vmatmul.mubr.bf16.gmra.mrb[0].mxu0 %v5848
        %v9431 = vpop.f32.mrb[0].mxu0
        %v9432 = vadd.f32 %v9319, %v9431
        %v9433 = vpop.f32.mrb[0].mxu0
        %v9434 = vadd.f32 %v9321, %v9433
        %v9435 = vpop.f32.mrb[0].mxu0
        %v9436 = vadd.f32 %v9323, %v9435
        %v9437 = vpop.f32.mrb[0].mxu0
        %v9438 = vadd.f32 %v9325, %v9437
        %9439 = vmatprep.mubr.bf16.mxu0 %v5865
        %9440 = vmatmul.mubr.bf16.gmra.mrb[0].mxu0 %v5864
        %v9441 = vpop.f32.mrb[0].mxu0
        %v9442 = vadd.f32 %v9329, %v9441
        %v9443 = vpop.f32.mrb[0].mxu0
        %v9444 = vadd.f32 %v9331, %v9443
        %v9445 = vpop.f32.mrb[0].mxu0
        %v9446 = vadd.f32 %v9333, %v9445
        %v9447 = vpop.f32.mrb[0].mxu0
        %v9448 = vadd.f32 %v9335, %v9447
        %9449 = vmatprep.mubr.bf16.mxu0 %v5881
        %9450 = vmatmul.mubr.bf16.gmra.mrb[0].mxu0 %v5880
        %v9451 = vpop.f32.mrb[0].mxu0
        %v9452 = vadd.f32 %v9339, %v9451
        %v9453 = vpop.f32.mrb[0].mxu0
        %v9454 = vadd.f32 %v9341, %v9453
        %v9455 = vpop.f32.mrb[0].mxu0
        %v9456 = vadd.f32 %v9343, %v9455
        %v9457 = vpop.f32.mrb[0].mxu0
        %v9458 = vadd.f32 %v9345, %v9457
        %9459 = vmatprep.mubr.bf16.mxu0 %v5897
        %9460 = vmatmul.mubr.bf16.gmra.mrb[0].mxu0 %v5896
        %v9461 = vpop.f32.mrb[0].mxu0
        %v9462 = vadd.f32 %v9349, %v9461
        %v9463 = vpop.f32.mrb[0].mxu0
        %v9464 = vadd.f32 %v9351, %v9463
        %v9465 = vpop.f32.mrb[0].mxu0
        %v9466 = vadd.f32 %v9353, %v9465
        %v9467 = vpop.f32.mrb[0].mxu0
        %v9468 = vadd.f32 %v9355, %v9467
        %9469 = vmatprep.mubr.bf16.mxu0 %v5913
        %9470 = vmatmul.mubr.bf16.gmra.mrb[0].mxu0 %v5912
        %v9471 = vpop.f32.mrb[0].mxu0
        %v9472 = vadd.f32 %v9359, %v9471
        %v9473 = vpop.f32.mrb[0].mxu0
        %v9474 = vadd.f32 %v9361, %v9473
        %v9475 = vpop.f32.mrb[0].mxu0
        %v9476 = vadd.f32 %v9363, %v9475
        %v9477 = vpop.f32.mrb[0].mxu0
        %v9478 = vadd.f32 %v9365, %v9477
        %9479 = vmatprep.mubr.bf16.mxu0 %v5929
        %9480 = vmatmul.mubr.bf16.gmra.mrb[0].mxu0 %v5928
        %v9481 = vpop.f32.mrb[0].mxu0
        %v9482 = vadd.f32 %v9369, %v9481
        %v9483 = vpop.f32.mrb[0].mxu0
        %v9484 = vadd.f32 %v9371, %v9483
        %v9485 = vpop.f32.mrb[0].mxu0
        %v9486 = vadd.f32 %v9373, %v9485
        %v9487 = vpop.f32.mrb[0].mxu0
        %v9488 = vadd.f32 %v9375, %v9487
        %9489 = vmatprep.mubr.bf16.mxu0 %v5945
        %9490 = vmatmul.mubr.bf16.gmra.mrb[0].mxu0 %v5944
        %v9491 = vpop.f32.mrb[0].mxu0
        %v9492 = vadd.f32 %v9379, %v9491
        %v9493 = vpop.f32.mrb[0].mxu0
        %v9494 = vadd.f32 %v9381, %v9493
        %v9495 = vpop.f32.mrb[0].mxu0
        %v9496 = vadd.f32 %v9383, %v9495
        %v9497 = vpop.f32.mrb[0].mxu0
        %v9498 = vadd.f32 %v9385, %v9497
        %9499 = vdwg.mxu0
        %9500 = vmatprep.subr.bf16.mxu0 %v8281
        %9501 = vmatpush1.bf16.msra.mxu0 %v8280
        %9502 = vmatprep.subr.bf16.mxu0 %v8285
        %9503 = vmatpush1.bf16.msra.mxu0 %v8284
        %9504 = vmatprep.subr.bf16.mxu0 %v8289
        %9505 = vmatpush1.bf16.msra.mxu0 %v8288
        %9506 = vmatprep.subr.bf16.mxu0 %v8293
        %9507 = vmatpush1.bf16.msra.mxu0 %v8292
        %9508 = vmatprep.subr.bf16.mxu0 %v8297
        %9509 = vmatpush1.bf16.msra.mxu0 %v8296
        %9510 = vmatprep.subr.bf16.mxu0 %v8301
        %9511 = vmatpush1.bf16.msra.mxu0 %v8300
        %9512 = vmatprep.subr.bf16.mxu0 %v8305
        %9513 = vmatpush1.bf16.msra.mxu0 %v8304
        %9514 = vmatprep.subr.bf16.mxu0 %v8309
        %9515 = vmatpush1.bf16.msra.mxu0 %v8308
        %9516 = vmatprep.subr.bf16.mxu0 %v8313
        %9517 = vmatpush1.bf16.msra.mxu0 %v8312
        %9518 = vmatprep.subr.bf16.mxu0 %v8317
        %9519 = vmatpush1.bf16.msra.mxu0 %v8316
        %9520 = vmatprep.subr.bf16.mxu0 %v8321
        %9521 = vmatpush1.bf16.msra.mxu0 %v8320
        %9522 = vmatprep.subr.bf16.mxu0 %v8325
        %9523 = vmatpush1.bf16.msra.mxu0 %v8324
        %9524 = vmatprep.subr.bf16.mxu0 %v8329
        %9525 = vmatpush1.bf16.msra.mxu0 %v8328
        %9526 = vmatprep.subr.bf16.mxu0 %v8333
        %9527 = vmatpush1.bf16.msra.mxu0 %v8332
        %9528 = vmatprep.subr.bf16.mxu0 %v8337
        %9529 = vmatpush1.bf16.msra.mxu0 %v8336
        %9530 = vmatprep.subr.bf16.mxu0 %v8341
        %9531 = vmatpush1.bf16.msra.mxu0 %v8340
        %9532 = vmatprep.mubr.bf16.mxu0 %v5835
        %9533 = vmatmul.mubr.bf16.gmra.mrb[0].mxu0 %v5834
        %v9534 = vpop.f32.mrb[0].mxu0
        %v9535 = vadd.f32 %v9422, %v9534
        %v9536 = vpop.f32.mrb[0].mxu0
        %v9537 = vadd.f32 %v9424, %v9536
        %v9538 = vpop.f32.mrb[0].mxu0
        %v9539 = vadd.f32 %v9426, %v9538
        %v9540 = vpop.f32.mrb[0].mxu0
        %v9541 = vadd.f32 %v9428, %v9540
        %9542 = vmatprep.mubr.bf16.mxu0 %v5851
        %9543 = vmatmul.mubr.bf16.gmra.mrb[0].mxu0 %v5850
        %v9544 = vpop.f32.mrb[0].mxu0
        %v9545 = vadd.f32 %v9432, %v9544
        %v9546 = vpop.f32.mrb[0].mxu0
        %v9547 = vadd.f32 %v9434, %v9546
        %v9548 = vpop.f32.mrb[0].mxu0
        %v9549 = vadd.f32 %v9436, %v9548
        %v9550 = vpop.f32.mrb[0].mxu0
        %v9551 = vadd.f32 %v9438, %v9550
        %9552 = vmatprep.mubr.bf16.mxu0 %v5867
        %9553 = vmatmul.mubr.bf16.gmra.mrb[0].mxu0 %v5866
        %v9554 = vpop.f32.mrb[0].mxu0
        %v9555 = vadd.f32 %v9442, %v9554
        %v9556 = vpop.f32.mrb[0].mxu0
        %v9557 = vadd.f32 %v9444, %v9556
        %v9558 = vpop.f32.mrb[0].mxu0
        %v9559 = vadd.f32 %v9446, %v9558
        %v9560 = vpop.f32.mrb[0].mxu0
        %v9561 = vadd.f32 %v9448, %v9560
        %9562 = vmatprep.mubr.bf16.mxu0 %v5883
        %9563 = vmatmul.mubr.bf16.gmra.mrb[0].mxu0 %v5882
        %v9564 = vpop.f32.mrb[0].mxu0
        %v9565 = vadd.f32 %v9452, %v9564
        %v9566 = vpop.f32.mrb[0].mxu0
        %v9567 = vadd.f32 %v9454, %v9566
        %v9568 = vpop.f32.mrb[0].mxu0
        %v9569 = vadd.f32 %v9456, %v9568
        %v9570 = vpop.f32.mrb[0].mxu0
        %v9571 = vadd.f32 %v9458, %v9570
        %9572 = vmatprep.mubr.bf16.mxu0 %v5899
        %9573 = vmatmul.mubr.bf16.gmra.mrb[0].mxu0 %v5898
        %v9574 = vpop.f32.mrb[0].mxu0
        %v9575 = vadd.f32 %v9462, %v9574
        %v9576 = vpop.f32.mrb[0].mxu0
        %v9577 = vadd.f32 %v9464, %v9576
        %v9578 = vpop.f32.mrb[0].mxu0
        %v9579 = vadd.f32 %v9466, %v9578
        %v9580 = vpop.f32.mrb[0].mxu0
        %v9581 = vadd.f32 %v9468, %v9580
        %9582 = vmatprep.mubr.bf16.mxu0 %v5915
        %9583 = vmatmul.mubr.bf16.gmra.mrb[0].mxu0 %v5914
        %v9584 = vpop.f32.mrb[0].mxu0
        %v9585 = vadd.f32 %v9472, %v9584
        %v9586 = vpop.f32.mrb[0].mxu0
        %v9587 = vadd.f32 %v9474, %v9586
        %v9588 = vpop.f32.mrb[0].mxu0
        %v9589 = vadd.f32 %v9476, %v9588
        %v9590 = vpop.f32.mrb[0].mxu0
        %v9591 = vadd.f32 %v9478, %v9590
        %9592 = vmatprep.mubr.bf16.mxu0 %v5931
        %9593 = vmatmul.mubr.bf16.gmra.mrb[0].mxu0 %v5930
        %v9594 = vpop.f32.mrb[0].mxu0
        %v9595 = vadd.f32 %v9482, %v9594
        %v9596 = vpop.f32.mrb[0].mxu0
        %v9597 = vadd.f32 %v9484, %v9596
        %v9598 = vpop.f32.mrb[0].mxu0
        %v9599 = vadd.f32 %v9486, %v9598
        %v9600 = vpop.f32.mrb[0].mxu0
        %v9601 = vadd.f32 %v9488, %v9600
        %9602 = vmatprep.mubr.bf16.mxu0 %v5947
        %9603 = vmatmul.mubr.bf16.gmra.mrb[0].mxu0 %v5946
        %v9604 = vpop.f32.mrb[0].mxu0
        %v9605 = vadd.f32 %v9492, %v9604
        %v9606 = vpop.f32.mrb[0].mxu0
        %v9607 = vadd.f32 %v9494, %v9606
        %v9608 = vpop.f32.mrb[0].mxu0
        %v9609 = vadd.f32 %v9496, %v9608
        %v9610 = vpop.f32.mrb[0].mxu0
        %v9611 = vadd.f32 %v9498, %v9610
        %9612 = vdwg.mxu0
        %9613 = vmatprep.subr.bf16.mxu0 %v8345
        %9614 = vmatpush1.bf16.msra.mxu0 %v8344
        %9615 = vmatprep.subr.bf16.mxu0 %v8349
        %9616 = vmatpush1.bf16.msra.mxu0 %v8348
        %9617 = vmatprep.subr.bf16.mxu0 %v8353
        %9618 = vmatpush1.bf16.msra.mxu0 %v8352
        %9619 = vmatprep.subr.bf16.mxu0 %v8357
        %9620 = vmatpush1.bf16.msra.mxu0 %v8356
        %9621 = vmatprep.subr.bf16.mxu0 %v8361
        %9622 = vmatpush1.bf16.msra.mxu0 %v8360
        %9623 = vmatprep.subr.bf16.mxu0 %v8365
        %9624 = vmatpush1.bf16.msra.mxu0 %v8364
        %9625 = vmatprep.subr.bf16.mxu0 %v8369
        %9626 = vmatpush1.bf16.msra.mxu0 %v8368
        %9627 = vmatprep.subr.bf16.mxu0 %v8373
        %9628 = vmatpush1.bf16.msra.mxu0 %v8372
        %9629 = vmatprep.subr.bf16.mxu0 %v8377
        %9630 = vmatpush1.bf16.msra.mxu0 %v8376
        %9631 = vmatprep.subr.bf16.mxu0 %v8381
        %9632 = vmatpush1.bf16.msra.mxu0 %v8380
        %9633 = vmatprep.subr.bf16.mxu0 %v8385
        %9634 = vmatpush1.bf16.msra.mxu0 %v8384
        %9635 = vmatprep.subr.bf16.mxu0 %v8389
        %9636 = vmatpush1.bf16.msra.mxu0 %v8388
        %9637 = vmatprep.subr.bf16.mxu0 %v8393
        %9638 = vmatpush1.bf16.msra.mxu0 %v8392
        %9639 = vmatprep.subr.bf16.mxu0 %v8397
        %9640 = vmatpush1.bf16.msra.mxu0 %v8396
        %9641 = vmatprep.subr.bf16.mxu0 %v8401
        %9642 = vmatpush1.bf16.msra.mxu0 %v8400
        %9643 = vmatprep.subr.bf16.mxu0 %v8405
        %9644 = vmatpush1.bf16.msra.mxu0 %v8404
        %9645 = vmatprep.mubr.bf16.mxu0 %v5837
        %9646 = vmatmul.mubr.bf16.gmra.mrb[0].mxu0 %v5836
        %v9647 = vpop.f32.mrb[0].mxu0
        %v9648 = vadd.f32 %v9535, %v9647
        %v9649 = vpop.f32.mrb[0].mxu0
        %v9650 = vadd.f32 %v9537, %v9649
        %v9651 = vpop.f32.mrb[0].mxu0
        %v9652 = vadd.f32 %v9539, %v9651
        %v9653 = vpop.f32.mrb[0].mxu0
        %v9654 = vadd.f32 %v9541, %v9653
        %9655 = vmatprep.mubr.bf16.mxu0 %v5853
        %9656 = vmatmul.mubr.bf16.gmra.mrb[0].mxu0 %v5852
        %v9657 = vpop.f32.mrb[0].mxu0
        %v9658 = vadd.f32 %v9545, %v9657
        %v9659 = vpop.f32.mrb[0].mxu0
        %v9660 = vadd.f32 %v9547, %v9659
        %v9661 = vpop.f32.mrb[0].mxu0
        %v9662 = vadd.f32 %v9549, %v9661
        %v9663 = vpop.f32.mrb[0].mxu0
        %v9664 = vadd.f32 %v9551, %v9663
        %9665 = vmatprep.mubr.bf16.mxu0 %v5869
        %9666 = vmatmul.mubr.bf16.gmra.mrb[0].mxu0 %v5868
        %v9667 = vpop.f32.mrb[0].mxu0
        %v9668 = vadd.f32 %v9555, %v9667
        %v9669 = vpop.f32.mrb[0].mxu0
        %v9670 = vadd.f32 %v9557, %v9669
        %v9671 = vpop.f32.mrb[0].mxu0
        %v9672 = vadd.f32 %v9559, %v9671
        %v9673 = vpop.f32.mrb[0].mxu0
        %v9674 = vadd.f32 %v9561, %v9673
        %9675 = vmatprep.mubr.bf16.mxu0 %v5885
        %9676 = vmatmul.mubr.bf16.gmra.mrb[0].mxu0 %v5884
        %v9677 = vpop.f32.mrb[0].mxu0
        %v9678 = vadd.f32 %v9565, %v9677
        %v9679 = vpop.f32.mrb[0].mxu0
        %v9680 = vadd.f32 %v9567, %v9679
        %v9681 = vpop.f32.mrb[0].mxu0
        %v9682 = vadd.f32 %v9569, %v9681
        %v9683 = vpop.f32.mrb[0].mxu0
        %v9684 = vadd.f32 %v9571, %v9683
        %9685 = vmatprep.mubr.bf16.mxu0 %v5901
        %9686 = vmatmul.mubr.bf16.gmra.mrb[0].mxu0 %v5900
        %v9687 = vpop.f32.mrb[0].mxu0
        %v9688 = vadd.f32 %v9575, %v9687
        %v9689 = vpop.f32.mrb[0].mxu0
        %v9690 = vadd.f32 %v9577, %v9689
        %v9691 = vpop.f32.mrb[0].mxu0
        %v9692 = vadd.f32 %v9579, %v9691
        %v9693 = vpop.f32.mrb[0].mxu0
        %v9694 = vadd.f32 %v9581, %v9693
        %9695 = vmatprep.mubr.bf16.mxu0 %v5917
        %9696 = vmatmul.mubr.bf16.gmra.mrb[0].mxu0 %v5916
        %v9697 = vpop.f32.mrb[0].mxu0
        %v9698 = vadd.f32 %v9585, %v9697
        %v9699 = vpop.f32.mrb[0].mxu0
        %v9700 = vadd.f32 %v9587, %v9699
        %v9701 = vpop.f32.mrb[0].mxu0
        %v9702 = vadd.f32 %v9589, %v9701
        %v9703 = vpop.f32.mrb[0].mxu0
        %v9704 = vadd.f32 %v9591, %v9703
        %9705 = vmatprep.mubr.bf16.mxu0 %v5933
        %9706 = vmatmul.mubr.bf16.gmra.mrb[0].mxu0 %v5932
        %v9707 = vpop.f32.mrb[0].mxu0
        %v9708 = vadd.f32 %v9595, %v9707
        %v9709 = vpop.f32.mrb[0].mxu0
        %v9710 = vadd.f32 %v9597, %v9709
        %v9711 = vpop.f32.mrb[0].mxu0
        %v9712 = vadd.f32 %v9599, %v9711
        %v9713 = vpop.f32.mrb[0].mxu0
        %v9714 = vadd.f32 %v9601, %v9713
        %9715 = vmatprep.mubr.bf16.mxu0 %v5949
        %9716 = vmatmul.mubr.bf16.gmra.mrb[0].mxu0 %v5948
        %v9717 = vpop.f32.mrb[0].mxu0
        %v9718 = vadd.f32 %v9605, %v9717
        %v9719 = vpop.f32.mrb[0].mxu0
        %v9720 = vadd.f32 %v9607, %v9719
        %v9721 = vpop.f32.mrb[0].mxu0
        %v9722 = vadd.f32 %v9609, %v9721
        %v9723 = vpop.f32.mrb[0].mxu0
        %v9724 = vadd.f32 %v9611, %v9723
        %9725 = vdwg.mxu0
        %9726 = vmatprep.subr.bf16.mxu0 %v8409
        %9727 = vmatpush1.bf16.msra.mxu0 %v8408
        %9728 = vmatprep.subr.bf16.mxu0 %v8413
        %9729 = vmatpush1.bf16.msra.mxu0 %v8412
        %9730 = vmatprep.subr.bf16.mxu0 %v8417
        %9731 = vmatpush1.bf16.msra.mxu0 %v8416
        %9732 = vmatprep.subr.bf16.mxu0 %v8421
        %9733 = vmatpush1.bf16.msra.mxu0 %v8420
        %9734 = vmatprep.subr.bf16.mxu0 %v8425
        %9735 = vmatpush1.bf16.msra.mxu0 %v8424
        %9736 = vmatprep.subr.bf16.mxu0 %v8429
        %9737 = vmatpush1.bf16.msra.mxu0 %v8428
        %9738 = vmatprep.subr.bf16.mxu0 %v8433
        %9739 = vmatpush1.bf16.msra.mxu0 %v8432
        %9740 = vmatprep.subr.bf16.mxu0 %v8437
        %9741 = vmatpush1.bf16.msra.mxu0 %v8436
        %9742 = vmatprep.subr.bf16.mxu0 %v8441
        %9743 = vmatpush1.bf16.msra.mxu0 %v8440
        %9744 = vmatprep.subr.bf16.mxu0 %v8445
        %9745 = vmatpush1.bf16.msra.mxu0 %v8444
        %9746 = vmatprep.subr.bf16.mxu0 %v8449
        %9747 = vmatpush1.bf16.msra.mxu0 %v8448
        %9748 = vmatprep.subr.bf16.mxu0 %v8453
        %9749 = vmatpush1.bf16.msra.mxu0 %v8452
        %9750 = vmatprep.subr.bf16.mxu0 %v8457
        %9751 = vmatpush1.bf16.msra.mxu0 %v8456
        %9752 = vmatprep.subr.bf16.mxu0 %v8461
        %9753 = vmatpush1.bf16.msra.mxu0 %v8460
        %9754 = vmatprep.subr.bf16.mxu0 %v8465
        %9755 = vmatpush1.bf16.msra.mxu0 %v8464
        %9756 = vmatprep.subr.bf16.mxu0 %v8469
        %9757 = vmatpush1.bf16.msra.mxu0 %v8468
        %9758 = vmatprep.mubr.bf16.mxu0 %v5839
        %9759 = vmatmul.mubr.bf16.gmra.mrb[0].mxu0 %v5838
        %v9760 = vpop.f32.mrb[0].mxu0
        %v9761 = vadd.f32 %v9648, %v9760
        %v9762 = vpop.f32.mrb[0].mxu0
        %v9763 = vadd.f32 %v9650, %v9762
        %v9764 = vpop.f32.mrb[0].mxu0
        %v9765 = vadd.f32 %v9652, %v9764
        %v9766 = vpop.f32.mrb[0].mxu0
        %v9767 = vadd.f32 %v9654, %v9766
        %9768 = vmatprep.mubr.bf16.mxu0 %v5855
        %9769 = vmatmul.mubr.bf16.gmra.mrb[0].mxu0 %v5854
        %v9770 = vpop.f32.mrb[0].mxu0
        %v9771 = vadd.f32 %v9658, %v9770
        %v9772 = vpop.f32.mrb[0].mxu0
        %v9773 = vadd.f32 %v9660, %v9772
        %v9774 = vpop.f32.mrb[0].mxu0
        %v9775 = vadd.f32 %v9662, %v9774
        %v9776 = vpop.f32.mrb[0].mxu0
        %v9777 = vadd.f32 %v9664, %v9776
        %9778 = vmatprep.mubr.bf16.mxu0 %v5871
        %9779 = vmatmul.mubr.bf16.gmra.mrb[0].mxu0 %v5870
        %v9780 = vpop.f32.mrb[0].mxu0
        %v9781 = vadd.f32 %v9668, %v9780
        %v9782 = vpop.f32.mrb[0].mxu0
        %v9783 = vadd.f32 %v9670, %v9782
        %v9784 = vpop.f32.mrb[0].mxu0
        %v9785 = vadd.f32 %v9672, %v9784
        %v9786 = vpop.f32.mrb[0].mxu0
        %v9787 = vadd.f32 %v9674, %v9786
        %9788 = vmatprep.mubr.bf16.mxu0 %v5887
        %9789 = vmatmul.mubr.bf16.gmra.mrb[0].mxu0 %v5886
        %v9790 = vpop.f32.mrb[0].mxu0
        %v9791 = vadd.f32 %v9678, %v9790
        %v9792 = vpop.f32.mrb[0].mxu0
        %v9793 = vadd.f32 %v9680, %v9792
        %v9794 = vpop.f32.mrb[0].mxu0
        %v9795 = vadd.f32 %v9682, %v9794
        %v9796 = vpop.f32.mrb[0].mxu0
        %v9797 = vadd.f32 %v9684, %v9796
        %9798 = vmatprep.mubr.bf16.mxu0 %v5903
        %9799 = vmatmul.mubr.bf16.gmra.mrb[0].mxu0 %v5902
        %v9800 = vpop.f32.mrb[0].mxu0
        %v9801 = vadd.f32 %v9688, %v9800
        %v9802 = vpop.f32.mrb[0].mxu0
        %v9803 = vadd.f32 %v9690, %v9802
        %v9804 = vpop.f32.mrb[0].mxu0
        %v9805 = vadd.f32 %v9692, %v9804
        %v9806 = vpop.f32.mrb[0].mxu0
        %v9807 = vadd.f32 %v9694, %v9806
        %9808 = vmatprep.mubr.bf16.mxu0 %v5919
        %9809 = vmatmul.mubr.bf16.gmra.mrb[0].mxu0 %v5918
        %v9810 = vpop.f32.mrb[0].mxu0
        %v9811 = vadd.f32 %v9698, %v9810
        %v9812 = vpop.f32.mrb[0].mxu0
        %v9813 = vadd.f32 %v9700, %v9812
        %v9814 = vpop.f32.mrb[0].mxu0
        %v9815 = vadd.f32 %v9702, %v9814
        %v9816 = vpop.f32.mrb[0].mxu0
        %v9817 = vadd.f32 %v9704, %v9816
        %9818 = vmatprep.mubr.bf16.mxu0 %v5935
        %9819 = vmatmul.mubr.bf16.gmra.mrb[0].mxu0 %v5934
        %v9820 = vpop.f32.mrb[0].mxu0
        %v9821 = vadd.f32 %v9708, %v9820
        %v9822 = vpop.f32.mrb[0].mxu0
        %v9823 = vadd.f32 %v9710, %v9822
        %v9824 = vpop.f32.mrb[0].mxu0
        %v9825 = vadd.f32 %v9712, %v9824
        %v9826 = vpop.f32.mrb[0].mxu0
        %v9827 = vadd.f32 %v9714, %v9826
        %9828 = vmatprep.mubr.bf16.mxu0 %v5951
        %9829 = vmatmul.mubr.bf16.gmra.mrb[0].mxu0 %v5950
        %v9830 = vpop.f32.mrb[0].mxu0
        %v9831 = vadd.f32 %v9718, %v9830
        %v9832 = vpop.f32.mrb[0].mxu0
        %v9833 = vadd.f32 %v9720, %v9832
        %v9834 = vpop.f32.mrb[0].mxu0
        %v9835 = vadd.f32 %v9722, %v9834
        %v9836 = vpop.f32.mrb[0].mxu0
        %v9837 = vadd.f32 %v9724, %v9836
        %9838 = vdwg.mxu0
        %9839 = vmatprep.subr.bf16.mxu0 %v8473
        %9840 = vmatpush1.bf16.msra.mxu0 %v8472
        %9841 = vmatprep.subr.bf16.mxu0 %v8477
        %9842 = vmatpush1.bf16.msra.mxu0 %v8476
        %9843 = vmatprep.subr.bf16.mxu0 %v8481
        %9844 = vmatpush1.bf16.msra.mxu0 %v8480
        %9845 = vmatprep.subr.bf16.mxu0 %v8485
        %9846 = vmatpush1.bf16.msra.mxu0 %v8484
        %9847 = vmatprep.subr.bf16.mxu0 %v8489
        %9848 = vmatpush1.bf16.msra.mxu0 %v8488
        %9849 = vmatprep.subr.bf16.mxu0 %v8493
        %9850 = vmatpush1.bf16.msra.mxu0 %v8492
        %9851 = vmatprep.subr.bf16.mxu0 %v8497
        %9852 = vmatpush1.bf16.msra.mxu0 %v8496
        %9853 = vmatprep.subr.bf16.mxu0 %v8501
        %9854 = vmatpush1.bf16.msra.mxu0 %v8500
        %9855 = vmatprep.subr.bf16.mxu0 %v8505
        %9856 = vmatpush1.bf16.msra.mxu0 %v8504
        %9857 = vmatprep.subr.bf16.mxu0 %v8509
        %9858 = vmatpush1.bf16.msra.mxu0 %v8508
        %9859 = vmatprep.subr.bf16.mxu0 %v8513
        %9860 = vmatpush1.bf16.msra.mxu0 %v8512
        %9861 = vmatprep.subr.bf16.mxu0 %v8517
        %9862 = vmatpush1.bf16.msra.mxu0 %v8516
        %9863 = vmatprep.subr.bf16.mxu0 %v8521
        %9864 = vmatpush1.bf16.msra.mxu0 %v8520
        %9865 = vmatprep.subr.bf16.mxu0 %v8525
        %9866 = vmatpush1.bf16.msra.mxu0 %v8524
        %9867 = vmatprep.subr.bf16.mxu0 %v8529
        %9868 = vmatpush1.bf16.msra.mxu0 %v8528
        %9869 = vmatprep.subr.bf16.mxu0 %v8533
        %9870 = vmatpush1.bf16.msra.mxu0 %v8532
        %9871 = vmatprep.mubr.bf16.mxu0 %v5841
        %9872 = vmatmul.mubr.bf16.gmra.mrb[0].mxu0 %v5840
        %v9873 = vpop.f32.mrb[0].mxu0
        %v9874 = vadd.f32 %v9761, %v9873
        %v9875 = vpop.f32.mrb[0].mxu0
        %v9876 = vadd.f32 %v9763, %v9875
        %v9877 = vpop.f32.mrb[0].mxu0
        %v9878 = vadd.f32 %v9765, %v9877
        %v9879 = vpop.f32.mrb[0].mxu0
        %v9880 = vadd.f32 %v9767, %v9879
        %9881 = vmatprep.mubr.bf16.mxu0 %v5857
        %9882 = vmatmul.mubr.bf16.gmra.mrb[0].mxu0 %v5856
        %v9883 = vpop.f32.mrb[0].mxu0
        %v9884 = vadd.f32 %v9771, %v9883
        %v9885 = vpop.f32.mrb[0].mxu0
        %v9886 = vadd.f32 %v9773, %v9885
        %v9887 = vpop.f32.mrb[0].mxu0
        %v9888 = vadd.f32 %v9775, %v9887
        %v9889 = vpop.f32.mrb[0].mxu0
        %v9890 = vadd.f32 %v9777, %v9889
        %9891 = vmatprep.mubr.bf16.mxu0 %v5873
        %9892 = vmatmul.mubr.bf16.gmra.mrb[0].mxu0 %v5872
        %v9893 = vpop.f32.mrb[0].mxu0
        %v9894 = vadd.f32 %v9781, %v9893
        %v9895 = vpop.f32.mrb[0].mxu0
        %v9896 = vadd.f32 %v9783, %v9895
        %v9897 = vpop.f32.mrb[0].mxu0
        %v9898 = vadd.f32 %v9785, %v9897
        %v9899 = vpop.f32.mrb[0].mxu0
        %v9900 = vadd.f32 %v9787, %v9899
        %9901 = vmatprep.mubr.bf16.mxu0 %v5889
        %9902 = vmatmul.mubr.bf16.gmra.mrb[0].mxu0 %v5888
        %v9903 = vpop.f32.mrb[0].mxu0
        %v9904 = vadd.f32 %v9791, %v9903
        %v9905 = vpop.f32.mrb[0].mxu0
        %v9906 = vadd.f32 %v9793, %v9905
        %v9907 = vpop.f32.mrb[0].mxu0
        %v9908 = vadd.f32 %v9795, %v9907
        %v9909 = vpop.f32.mrb[0].mxu0
        %v9910 = vadd.f32 %v9797, %v9909
        %9911 = vmatprep.mubr.bf16.mxu0 %v5905
        %9912 = vmatmul.mubr.bf16.gmra.mrb[0].mxu0 %v5904
        %v9913 = vpop.f32.mrb[0].mxu0
        %v9914 = vadd.f32 %v9801, %v9913
        %v9915 = vpop.f32.mrb[0].mxu0
        %v9916 = vadd.f32 %v9803, %v9915
        %v9917 = vpop.f32.mrb[0].mxu0
        %v9918 = vadd.f32 %v9805, %v9917
        %v9919 = vpop.f32.mrb[0].mxu0
        %v9920 = vadd.f32 %v9807, %v9919
        %9921 = vmatprep.mubr.bf16.mxu0 %v5921
        %9922 = vmatmul.mubr.bf16.gmra.mrb[0].mxu0 %v5920
        %v9923 = vpop.f32.mrb[0].mxu0
        %v9924 = vadd.f32 %v9811, %v9923
        %v9925 = vpop.f32.mrb[0].mxu0
        %v9926 = vadd.f32 %v9813, %v9925
        %v9927 = vpop.f32.mrb[0].mxu0
        %v9928 = vadd.f32 %v9815, %v9927
        %v9929 = vpop.f32.mrb[0].mxu0
        %v9930 = vadd.f32 %v9817, %v9929
        %9931 = vmatprep.mubr.bf16.mxu0 %v5937
        %9932 = vmatmul.mubr.bf16.gmra.mrb[0].mxu0 %v5936
        %v9933 = vpop.f32.mrb[0].mxu0
        %v9934 = vadd.f32 %v9821, %v9933
        %v9935 = vpop.f32.mrb[0].mxu0
        %v9936 = vadd.f32 %v9823, %v9935
        %v9937 = vpop.f32.mrb[0].mxu0
        %v9938 = vadd.f32 %v9825, %v9937
        %v9939 = vpop.f32.mrb[0].mxu0
        %v9940 = vadd.f32 %v9827, %v9939
        %9941 = vmatprep.mubr.bf16.mxu0 %v5953
        %9942 = vmatmul.mubr.bf16.gmra.mrb[0].mxu0 %v5952
        %v9943 = vpop.f32.mrb[0].mxu0
        %v9944 = vadd.f32 %v9831, %v9943
        %v9945 = vpop.f32.mrb[0].mxu0
        %v9946 = vadd.f32 %v9833, %v9945
        %v9947 = vpop.f32.mrb[0].mxu0
        %v9948 = vadd.f32 %v9835, %v9947
        %v9949 = vpop.f32.mrb[0].mxu0
        %v9950 = vadd.f32 %v9837, %v9949
        %9951 = vdwg.mxu0
        %9952 = vmatprep.subr.bf16.mxu0 %v8027
        %9953 = vmatpush1.bf16.msra.mxu0 %v8026
        %9954 = vmatprep.subr.bf16.mxu0 %v8031
        %9955 = vmatpush1.bf16.msra.mxu0 %v8030
        %9956 = vmatprep.subr.bf16.mxu0 %v8035
        %9957 = vmatpush1.bf16.msra.mxu0 %v8034
        %9958 = vmatprep.subr.bf16.mxu0 %v8039
        %9959 = vmatpush1.bf16.msra.mxu0 %v8038
        %9960 = vmatprep.subr.bf16.mxu0 %v8043
        %9961 = vmatpush1.bf16.msra.mxu0 %v8042
        %9962 = vmatprep.subr.bf16.mxu0 %v8047
        %9963 = vmatpush1.bf16.msra.mxu0 %v8046
        %9964 = vmatprep.subr.bf16.mxu0 %v8051
        %9965 = vmatpush1.bf16.msra.mxu0 %v8050
        %9966 = vmatprep.subr.bf16.mxu0 %v8055
        %9967 = vmatpush1.bf16.msra.mxu0 %v8054
        %9968 = vmatprep.subr.bf16.mxu0 %v8059
        %9969 = vmatpush1.bf16.msra.mxu0 %v8058
        %9970 = vmatprep.subr.bf16.mxu0 %v8063
        %9971 = vmatpush1.bf16.msra.mxu0 %v8062
        %9972 = vmatprep.subr.bf16.mxu0 %v8067
        %9973 = vmatpush1.bf16.msra.mxu0 %v8066
        %9974 = vmatprep.subr.bf16.mxu0 %v8071
        %9975 = vmatpush1.bf16.msra.mxu0 %v8070
        %9976 = vmatprep.subr.bf16.mxu0 %v8075
        %9977 = vmatpush1.bf16.msra.mxu0 %v8074
        %9978 = vmatprep.subr.bf16.mxu0 %v8079
        %9979 = vmatpush1.bf16.msra.mxu0 %v8078
        %9980 = vmatprep.subr.bf16.mxu0 %v8083
        %9981 = vmatpush1.bf16.msra.mxu0 %v8082
        %9982 = vmatprep.subr.bf16.mxu0 %v8087
        %9983 = vmatpush1.bf16.msra.mxu0 %v8086
        %9984 = vmatprep.mubr.bf16.mxu0 %v5827
        %9985 = vmatmul.mubr.bf16.gmra.mrb[0].mxu0 %v5826
        %v9986 = vpop.f32.mrb[0].mxu0
        %v9987 = vadd.f32 %v6479, %v9986
        %v9988 = vpop.f32.mrb[0].mxu0
        %v9989 = vadd.f32 %v6483, %v9988
        %v9990 = vpop.f32.mrb[0].mxu0
        %v9991 = vadd.f32 %v6479, %v9990
        %v9992 = vpop.f32.mrb[0].mxu0
        %v9993 = vadd.f32 %v6483, %v9992
        %9994 = vmatprep.mubr.bf16.mxu0 %v5843
        %9995 = vmatmul.mubr.bf16.gmra.mrb[0].mxu0 %v5842
        %v9996 = vpop.f32.mrb[0].mxu0
        %v9997 = vadd.f32 %v6479, %v9996
        %v9998 = vpop.f32.mrb[0].mxu0
        %v9999 = vadd.f32 %v6483, %v9998
        %v10000 = vpop.f32.mrb[0].mxu0
        %v10001 = vadd.f32 %v6479, %v10000
        %v10002 = vpop.f32.mrb[0].mxu0
        %v10003 = vadd.f32 %v6483, %v10002
        %10004 = vmatprep.mubr.bf16.mxu0 %v5859
        %10005 = vmatmul.mubr.bf16.gmra.mrb[0].mxu0 %v5858
        %v10006 = vpop.f32.mrb[0].mxu0
        %v10007 = vadd.f32 %v6479, %v10006
        %v10008 = vpop.f32.mrb[0].mxu0
        %v10009 = vadd.f32 %v6483, %v10008
        %v10010 = vpop.f32.mrb[0].mxu0
        %v10011 = vadd.f32 %v6479, %v10010
        %v10012 = vpop.f32.mrb[0].mxu0
        %v10013 = vadd.f32 %v6483, %v10012
        %10014 = vmatprep.mubr.bf16.mxu0 %v5875
        %10015 = vmatmul.mubr.bf16.gmra.mrb[0].mxu0 %v5874
        %v10016 = vpop.f32.mrb[0].mxu0
        %v10017 = vadd.f32 %v6479, %v10016
        %v10018 = vpop.f32.mrb[0].mxu0
        %v10019 = vadd.f32 %v6483, %v10018
        %v10020 = vpop.f32.mrb[0].mxu0
        %v10021 = vadd.f32 %v6479, %v10020
        %v10022 = vpop.f32.mrb[0].mxu0
        %v10023 = vadd.f32 %v6483, %v10022
        %10024 = vmatprep.mubr.bf16.mxu0 %v5891
        %10025 = vmatmul.mubr.bf16.gmra.mrb[0].mxu0 %v5890
        %v10026 = vpop.f32.mrb[0].mxu0
        %v10027 = vadd.f32 %v6479, %v10026
        %v10028 = vpop.f32.mrb[0].mxu0
        %v10029 = vadd.f32 %v6483, %v10028
        %v10030 = vpop.f32.mrb[0].mxu0
        %v10031 = vadd.f32 %v6479, %v10030
        %v10032 = vpop.f32.mrb[0].mxu0
        %v10033 = vadd.f32 %v6483, %v10032
        %10034 = vmatprep.mubr.bf16.mxu0 %v5907
        %10035 = vmatmul.mubr.bf16.gmra.mrb[0].mxu0 %v5906
        %v10036 = vpop.f32.mrb[0].mxu0
        %v10037 = vadd.f32 %v6479, %v10036
        %v10038 = vpop.f32.mrb[0].mxu0
        %v10039 = vadd.f32 %v6483, %v10038
        %v10040 = vpop.f32.mrb[0].mxu0
        %v10041 = vadd.f32 %v6479, %v10040
        %v10042 = vpop.f32.mrb[0].mxu0
        %v10043 = vadd.f32 %v6483, %v10042
        %10044 = vmatprep.mubr.bf16.mxu0 %v5923
        %10045 = vmatmul.mubr.bf16.gmra.mrb[0].mxu0 %v5922
        %v10046 = vpop.f32.mrb[0].mxu0
        %v10047 = vadd.f32 %v6479, %v10046
        %v10048 = vpop.f32.mrb[0].mxu0
        %v10049 = vadd.f32 %v6483, %v10048
        %v10050 = vpop.f32.mrb[0].mxu0
        %v10051 = vadd.f32 %v6479, %v10050
        %v10052 = vpop.f32.mrb[0].mxu0
        %v10053 = vadd.f32 %v6483, %v10052
        %10054 = vmatprep.mubr.bf16.mxu0 %v5939
        %10055 = vmatmul.mubr.bf16.gmra.mrb[0].mxu0 %v5938
        %v10056 = vpop.f32.mrb[0].mxu0
        %v10057 = vadd.f32 %v6479, %v10056
        %v10058 = vpop.f32.mrb[0].mxu0
        %v10059 = vadd.f32 %v6483, %v10058
        %v10060 = vpop.f32.mrb[0].mxu0
        %v10061 = vadd.f32 %v6479, %v10060
        %v10062 = vpop.f32.mrb[0].mxu0
        %v10063 = vadd.f32 %v6483, %v10062
        %10064 = vdwg.mxu0
        %10065 = vmatprep.subr.bf16.mxu0 %v8091
        %10066 = vmatpush1.bf16.msra.mxu0 %v8090
        %10067 = vmatprep.subr.bf16.mxu0 %v8095
        %10068 = vmatpush1.bf16.msra.mxu0 %v8094
        %10069 = vmatprep.subr.bf16.mxu0 %v8099
        %10070 = vmatpush1.bf16.msra.mxu0 %v8098
        %10071 = vmatprep.subr.bf16.mxu0 %v8103
        %10072 = vmatpush1.bf16.msra.mxu0 %v8102
        %10073 = vmatprep.subr.bf16.mxu0 %v8107
        %10074 = vmatpush1.bf16.msra.mxu0 %v8106
        %10075 = vmatprep.subr.bf16.mxu0 %v8111
        %10076 = vmatpush1.bf16.msra.mxu0 %v8110
        %10077 = vmatprep.subr.bf16.mxu0 %v8115
        %10078 = vmatpush1.bf16.msra.mxu0 %v8114
        %10079 = vmatprep.subr.bf16.mxu0 %v8119
        %10080 = vmatpush1.bf16.msra.mxu0 %v8118
        %10081 = vmatprep.subr.bf16.mxu0 %v8123
        %10082 = vmatpush1.bf16.msra.mxu0 %v8122
        %10083 = vmatprep.subr.bf16.mxu0 %v8127
        %10084 = vmatpush1.bf16.msra.mxu0 %v8126
        %10085 = vmatprep.subr.bf16.mxu0 %v8131
        %10086 = vmatpush1.bf16.msra.mxu0 %v8130
        %10087 = vmatprep.subr.bf16.mxu0 %v8135
        %10088 = vmatpush1.bf16.msra.mxu0 %v8134
        %10089 = vmatprep.subr.bf16.mxu0 %v8139
        %10090 = vmatpush1.bf16.msra.mxu0 %v8138
        %10091 = vmatprep.subr.bf16.mxu0 %v8143
        %10092 = vmatpush1.bf16.msra.mxu0 %v8142
        %10093 = vmatprep.subr.bf16.mxu0 %v8147
        %10094 = vmatpush1.bf16.msra.mxu0 %v8146
        %10095 = vmatprep.subr.bf16.mxu0 %v8151
        %10096 = vmatpush1.bf16.msra.mxu0 %v8150
        %10097 = vmatprep.mubr.bf16.mxu0 %v5829
        %10098 = vmatmul.mubr.bf16.gmra.mrb[0].mxu0 %v5828
        %v10099 = vpop.f32.mrb[0].mxu0
        %v10100 = vadd.f32 %v9987, %v10099
        %v10101 = vpop.f32.mrb[0].mxu0
        %v10102 = vadd.f32 %v9989, %v10101
        %v10103 = vpop.f32.mrb[0].mxu0
        %v10104 = vadd.f32 %v9991, %v10103
        %v10105 = vpop.f32.mrb[0].mxu0
        %v10106 = vadd.f32 %v9993, %v10105
        %10107 = vmatprep.mubr.bf16.mxu0 %v5845
        %10108 = vmatmul.mubr.bf16.gmra.mrb[0].mxu0 %v5844
        %v10109 = vpop.f32.mrb[0].mxu0
        %v10110 = vadd.f32 %v9997, %v10109
        %v10111 = vpop.f32.mrb[0].mxu0
        %v10112 = vadd.f32 %v9999, %v10111
        %v10113 = vpop.f32.mrb[0].mxu0
        %v10114 = vadd.f32 %v10001, %v10113
        %v10115 = vpop.f32.mrb[0].mxu0
        %v10116 = vadd.f32 %v10003, %v10115
        %10117 = vmatprep.mubr.bf16.mxu0 %v5861
        %10118 = vmatmul.mubr.bf16.gmra.mrb[0].mxu0 %v5860
        %v10119 = vpop.f32.mrb[0].mxu0
        %v10120 = vadd.f32 %v10007, %v10119
        %v10121 = vpop.f32.mrb[0].mxu0
        %v10122 = vadd.f32 %v10009, %v10121
        %v10123 = vpop.f32.mrb[0].mxu0
        %v10124 = vadd.f32 %v10011, %v10123
        %v10125 = vpop.f32.mrb[0].mxu0
        %v10126 = vadd.f32 %v10013, %v10125
        %10127 = vmatprep.mubr.bf16.mxu0 %v5877
        %10128 = vmatmul.mubr.bf16.gmra.mrb[0].mxu0 %v5876
        %v10129 = vpop.f32.mrb[0].mxu0
        %v10130 = vadd.f32 %v10017, %v10129
        %v10131 = vpop.f32.mrb[0].mxu0
        %v10132 = vadd.f32 %v10019, %v10131
        %v10133 = vpop.f32.mrb[0].mxu0
        %v10134 = vadd.f32 %v10021, %v10133
        %v10135 = vpop.f32.mrb[0].mxu0
        %v10136 = vadd.f32 %v10023, %v10135
        %10137 = vmatprep.mubr.bf16.mxu0 %v5893
        %10138 = vmatmul.mubr.bf16.gmra.mrb[0].mxu0 %v5892
        %v10139 = vpop.f32.mrb[0].mxu0
        %v10140 = vadd.f32 %v10027, %v10139
        %v10141 = vpop.f32.mrb[0].mxu0
        %v10142 = vadd.f32 %v10029, %v10141
        %v10143 = vpop.f32.mrb[0].mxu0
        %v10144 = vadd.f32 %v10031, %v10143
        %v10145 = vpop.f32.mrb[0].mxu0
        %v10146 = vadd.f32 %v10033, %v10145
        %10147 = vmatprep.mubr.bf16.mxu0 %v5909
        %10148 = vmatmul.mubr.bf16.gmra.mrb[0].mxu0 %v5908
        %v10149 = vpop.f32.mrb[0].mxu0
        %v10150 = vadd.f32 %v10037, %v10149
        %v10151 = vpop.f32.mrb[0].mxu0
        %v10152 = vadd.f32 %v10039, %v10151
        %v10153 = vpop.f32.mrb[0].mxu0
        %v10154 = vadd.f32 %v10041, %v10153
        %v10155 = vpop.f32.mrb[0].mxu0
        %v10156 = vadd.f32 %v10043, %v10155
        %10157 = vmatprep.mubr.bf16.mxu0 %v5925
        %10158 = vmatmul.mubr.bf16.gmra.mrb[0].mxu0 %v5924
        %v10159 = vpop.f32.mrb[0].mxu0
        %v10160 = vadd.f32 %v10047, %v10159
        %v10161 = vpop.f32.mrb[0].mxu0
        %v10162 = vadd.f32 %v10049, %v10161
        %v10163 = vpop.f32.mrb[0].mxu0
        %v10164 = vadd.f32 %v10051, %v10163
        %v10165 = vpop.f32.mrb[0].mxu0
        %v10166 = vadd.f32 %v10053, %v10165
        %10167 = vmatprep.mubr.bf16.mxu0 %v5941
        %10168 = vmatmul.mubr.bf16.gmra.mrb[0].mxu0 %v5940
        %v10169 = vpop.f32.mrb[0].mxu0
        %v10170 = vadd.f32 %v10057, %v10169
        %v10171 = vpop.f32.mrb[0].mxu0
        %v10172 = vadd.f32 %v10059, %v10171
        %v10173 = vpop.f32.mrb[0].mxu0
        %v10174 = vadd.f32 %v10061, %v10173
        %v10175 = vpop.f32.mrb[0].mxu0
        %v10176 = vadd.f32 %v10063, %v10175
        %10177 = vdwg.mxu0
        %10178 = vmatprep.subr.bf16.mxu0 %v8155
        %10179 = vmatpush1.bf16.msra.mxu0 %v8154
        %10180 = vmatprep.subr.bf16.mxu0 %v8159
        %10181 = vmatpush1.bf16.msra.mxu0 %v8158
        %10182 = vmatprep.subr.bf16.mxu0 %v8163
        %10183 = vmatpush1.bf16.msra.mxu0 %v8162
        %10184 = vmatprep.subr.bf16.mxu0 %v8167
        %10185 = vmatpush1.bf16.msra.mxu0 %v8166
        %10186 = vmatprep.subr.bf16.mxu0 %v8171
        %10187 = vmatpush1.bf16.msra.mxu0 %v8170
        %10188 = vmatprep.subr.bf16.mxu0 %v8175
        %10189 = vmatpush1.bf16.msra.mxu0 %v8174
        %10190 = vmatprep.subr.bf16.mxu0 %v8179
        %10191 = vmatpush1.bf16.msra.mxu0 %v8178
        %10192 = vmatprep.subr.bf16.mxu0 %v8183
        %10193 = vmatpush1.bf16.msra.mxu0 %v8182
        %10194 = vmatprep.subr.bf16.mxu0 %v8187
        %10195 = vmatpush1.bf16.msra.mxu0 %v8186
        %10196 = vmatprep.subr.bf16.mxu0 %v8191
        %10197 = vmatpush1.bf16.msra.mxu0 %v8190
        %10198 = vmatprep.subr.bf16.mxu0 %v8195
        %10199 = vmatpush1.bf16.msra.mxu0 %v8194
        %10200 = vmatprep.subr.bf16.mxu0 %v8199
        %10201 = vmatpush1.bf16.msra.mxu0 %v8198
        %10202 = vmatprep.subr.bf16.mxu0 %v8203
        %10203 = vmatpush1.bf16.msra.mxu0 %v8202
        %10204 = vmatprep.subr.bf16.mxu0 %v8207
        %10205 = vmatpush1.bf16.msra.mxu0 %v8206
        %10206 = vmatprep.subr.bf16.mxu0 %v8211
        %10207 = vmatpush1.bf16.msra.mxu0 %v8210
        %10208 = vmatprep.subr.bf16.mxu0 %v8215
        %10209 = vmatpush1.bf16.msra.mxu0 %v8214
        %10210 = vmatprep.mubr.bf16.mxu0 %v5831
        %10211 = vmatmul.mubr.bf16.gmra.mrb[0].mxu0 %v5830
        %v10212 = vpop.f32.mrb[0].mxu0
        %v10213 = vadd.f32 %v10100, %v10212
        %v10214 = vpop.f32.mrb[0].mxu0
        %v10215 = vadd.f32 %v10102, %v10214
        %v10216 = vpop.f32.mrb[0].mxu0
        %v10217 = vadd.f32 %v10104, %v10216
        %v10218 = vpop.f32.mrb[0].mxu0
        %v10219 = vadd.f32 %v10106, %v10218
        %10220 = vmatprep.mubr.bf16.mxu0 %v5847
        %10221 = vmatmul.mubr.bf16.gmra.mrb[0].mxu0 %v5846
        %v10222 = vpop.f32.mrb[0].mxu0
        %v10223 = vadd.f32 %v10110, %v10222
        %v10224 = vpop.f32.mrb[0].mxu0
        %v10225 = vadd.f32 %v10112, %v10224
        %v10226 = vpop.f32.mrb[0].mxu0
        %v10227 = vadd.f32 %v10114, %v10226
        %v10228 = vpop.f32.mrb[0].mxu0
        %v10229 = vadd.f32 %v10116, %v10228
        %10230 = vmatprep.mubr.bf16.mxu0 %v5863
        %10231 = vmatmul.mubr.bf16.gmra.mrb[0].mxu0 %v5862
        %v10232 = vpop.f32.mrb[0].mxu0
        %v10233 = vadd.f32 %v10120, %v10232
        %v10234 = vpop.f32.mrb[0].mxu0
        %v10235 = vadd.f32 %v10122, %v10234
        %v10236 = vpop.f32.mrb[0].mxu0
        %v10237 = vadd.f32 %v10124, %v10236
        %v10238 = vpop.f32.mrb[0].mxu0
        %v10239 = vadd.f32 %v10126, %v10238
        %10240 = vmatprep.mubr.bf16.mxu0 %v5879
        %10241 = vmatmul.mubr.bf16.gmra.mrb[0].mxu0 %v5878
        %v10242 = vpop.f32.mrb[0].mxu0
        %v10243 = vadd.f32 %v10130, %v10242
        %v10244 = vpop.f32.mrb[0].mxu0
        %v10245 = vadd.f32 %v10132, %v10244
        %v10246 = vpop.f32.mrb[0].mxu0
        %v10247 = vadd.f32 %v10134, %v10246
        %v10248 = vpop.f32.mrb[0].mxu0
        %v10249 = vadd.f32 %v10136, %v10248
        %10250 = vmatprep.mubr.bf16.mxu0 %v5895
        %10251 = vmatmul.mubr.bf16.gmra.mrb[0].mxu0 %v5894
        %v10252 = vpop.f32.mrb[0].mxu0
        %v10253 = vadd.f32 %v10140, %v10252
        %v10254 = vpop.f32.mrb[0].mxu0
        %v10255 = vadd.f32 %v10142, %v10254
        %v10256 = vpop.f32.mrb[0].mxu0
        %v10257 = vadd.f32 %v10144, %v10256
        %v10258 = vpop.f32.mrb[0].mxu0
        %v10259 = vadd.f32 %v10146, %v10258
        %10260 = vmatprep.mubr.bf16.mxu0 %v5911
        %10261 = vmatmul.mubr.bf16.gmra.mrb[0].mxu0 %v5910
        %v10262 = vpop.f32.mrb[0].mxu0
        %v10263 = vadd.f32 %v10150, %v10262
        %v10264 = vpop.f32.mrb[0].mxu0
        %v10265 = vadd.f32 %v10152, %v10264
        %v10266 = vpop.f32.mrb[0].mxu0
        %v10267 = vadd.f32 %v10154, %v10266
        %v10268 = vpop.f32.mrb[0].mxu0
        %v10269 = vadd.f32 %v10156, %v10268
        %10270 = vmatprep.mubr.bf16.mxu0 %v5927
        %10271 = vmatmul.mubr.bf16.gmra.mrb[0].mxu0 %v5926
        %v10272 = vpop.f32.mrb[0].mxu0
        %v10273 = vadd.f32 %v10160, %v10272
        %v10274 = vpop.f32.mrb[0].mxu0
        %v10275 = vadd.f32 %v10162, %v10274
        %v10276 = vpop.f32.mrb[0].mxu0
        %v10277 = vadd.f32 %v10164, %v10276
        %v10278 = vpop.f32.mrb[0].mxu0
        %v10279 = vadd.f32 %v10166, %v10278
        %10280 = vmatprep.mubr.bf16.mxu0 %v5943
        %10281 = vmatmul.mubr.bf16.gmra.mrb[0].mxu0 %v5942
        %v10282 = vpop.f32.mrb[0].mxu0
        %v10283 = vadd.f32 %v10170, %v10282
        %v10284 = vpop.f32.mrb[0].mxu0
        %v10285 = vadd.f32 %v10172, %v10284
        %v10286 = vpop.f32.mrb[0].mxu0
        %v10287 = vadd.f32 %v10174, %v10286
        %v10288 = vpop.f32.mrb[0].mxu0
        %v10289 = vadd.f32 %v10176, %v10288
        %10290 = vdwg.mxu0
        %10291 = vmatprep.subr.bf16.mxu0 %v8219
        %10292 = vmatpush1.bf16.msra.mxu0 %v8218
        %10293 = vmatprep.subr.bf16.mxu0 %v8223
        %10294 = vmatpush1.bf16.msra.mxu0 %v8222
        %10295 = vmatprep.subr.bf16.mxu0 %v8227
        %10296 = vmatpush1.bf16.msra.mxu0 %v8226
        %10297 = vmatprep.subr.bf16.mxu0 %v8231
        %10298 = vmatpush1.bf16.msra.mxu0 %v8230
        %10299 = vmatprep.subr.bf16.mxu0 %v8235
        %10300 = vmatpush1.bf16.msra.mxu0 %v8234
        %10301 = vmatprep.subr.bf16.mxu0 %v8239
        %10302 = vmatpush1.bf16.msra.mxu0 %v8238
        %10303 = vmatprep.subr.bf16.mxu0 %v8243
        %10304 = vmatpush1.bf16.msra.mxu0 %v8242
        %10305 = vmatprep.subr.bf16.mxu0 %v8247
        %10306 = vmatpush1.bf16.msra.mxu0 %v8246
        %10307 = vmatprep.subr.bf16.mxu0 %v8251
        %10308 = vmatpush1.bf16.msra.mxu0 %v8250
        %10309 = vmatprep.subr.bf16.mxu0 %v8255
        %10310 = vmatpush1.bf16.msra.mxu0 %v8254
        %10311 = vmatprep.subr.bf16.mxu0 %v8259
        %10312 = vmatpush1.bf16.msra.mxu0 %v8258
        %10313 = vmatprep.subr.bf16.mxu0 %v8263
        %10314 = vmatpush1.bf16.msra.mxu0 %v8262
        %10315 = vmatprep.subr.bf16.mxu0 %v8267
        %10316 = vmatpush1.bf16.msra.mxu0 %v8266
        %10317 = vmatprep.subr.bf16.mxu0 %v8271
        %10318 = vmatpush1.bf16.msra.mxu0 %v8270
        %10319 = vmatprep.subr.bf16.mxu0 %v8275
        %10320 = vmatpush1.bf16.msra.mxu0 %v8274
        %10321 = vmatprep.subr.bf16.mxu0 %v8279
        %10322 = vmatpush1.bf16.msra.mxu0 %v8278
        %10323 = vmatprep.mubr.bf16.mxu0 %v5833
        %10324 = vmatmul.mubr.bf16.gmra.mrb[0].mxu0 %v5832
        %v10325 = vpop.f32.mrb[0].mxu0
        %v10326 = vadd.f32 %v10213, %v10325
        %v10327 = vpop.f32.mrb[0].mxu0
        %v10328 = vadd.f32 %v10215, %v10327
        %v10329 = vpop.f32.mrb[0].mxu0
        %v10330 = vadd.f32 %v10217, %v10329
        %v10331 = vpop.f32.mrb[0].mxu0
        %v10332 = vadd.f32 %v10219, %v10331
        %10333 = vmatprep.mubr.bf16.mxu0 %v5849
        %10334 = vmatmul.mubr.bf16.gmra.mrb[0].mxu0 %v5848
        %v10335 = vpop.f32.mrb[0].mxu0
        %v10336 = vadd.f32 %v10223, %v10335
        %v10337 = vpop.f32.mrb[0].mxu0
        %v10338 = vadd.f32 %v10225, %v10337
        %v10339 = vpop.f32.mrb[0].mxu0
        %v10340 = vadd.f32 %v10227, %v10339
        %v10341 = vpop.f32.mrb[0].mxu0
        %v10342 = vadd.f32 %v10229, %v10341
        %10343 = vmatprep.mubr.bf16.mxu0 %v5865
        %10344 = vmatmul.mubr.bf16.gmra.mrb[0].mxu0 %v5864
        %v10345 = vpop.f32.mrb[0].mxu0
        %v10346 = vadd.f32 %v10233, %v10345
        %v10347 = vpop.f32.mrb[0].mxu0
        %v10348 = vadd.f32 %v10235, %v10347
        %v10349 = vpop.f32.mrb[0].mxu0
        %v10350 = vadd.f32 %v10237, %v10349
        %v10351 = vpop.f32.mrb[0].mxu0
        %v10352 = vadd.f32 %v10239, %v10351
        %10353 = vmatprep.mubr.bf16.mxu0 %v5881
        %10354 = vmatmul.mubr.bf16.gmra.mrb[0].mxu0 %v5880
        %v10355 = vpop.f32.mrb[0].mxu0
        %v10356 = vadd.f32 %v10243, %v10355
        %v10357 = vpop.f32.mrb[0].mxu0
        %v10358 = vadd.f32 %v10245, %v10357
        %v10359 = vpop.f32.mrb[0].mxu0
        %v10360 = vadd.f32 %v10247, %v10359
        %v10361 = vpop.f32.mrb[0].mxu0
        %v10362 = vadd.f32 %v10249, %v10361
        %10363 = vmatprep.mubr.bf16.mxu0 %v5897
        %10364 = vmatmul.mubr.bf16.gmra.mrb[0].mxu0 %v5896
        %v10365 = vpop.f32.mrb[0].mxu0
        %v10366 = vadd.f32 %v10253, %v10365
        %v10367 = vpop.f32.mrb[0].mxu0
        %v10368 = vadd.f32 %v10255, %v10367
        %v10369 = vpop.f32.mrb[0].mxu0
        %v10370 = vadd.f32 %v10257, %v10369
        %v10371 = vpop.f32.mrb[0].mxu0
        %v10372 = vadd.f32 %v10259, %v10371
        %10373 = vmatprep.mubr.bf16.mxu0 %v5913
        %10374 = vmatmul.mubr.bf16.gmra.mrb[0].mxu0 %v5912
        %v10375 = vpop.f32.mrb[0].mxu0
        %v10376 = vadd.f32 %v10263, %v10375
        %v10377 = vpop.f32.mrb[0].mxu0
        %v10378 = vadd.f32 %v10265, %v10377
        %v10379 = vpop.f32.mrb[0].mxu0
        %v10380 = vadd.f32 %v10267, %v10379
        %v10381 = vpop.f32.mrb[0].mxu0
        %v10382 = vadd.f32 %v10269, %v10381
        %10383 = vmatprep.mubr.bf16.mxu0 %v5929
        %10384 = vmatmul.mubr.bf16.gmra.mrb[0].mxu0 %v5928
        %v10385 = vpop.f32.mrb[0].mxu0
        %v10386 = vadd.f32 %v10273, %v10385
        %v10387 = vpop.f32.mrb[0].mxu0
        %v10388 = vadd.f32 %v10275, %v10387
        %v10389 = vpop.f32.mrb[0].mxu0
        %v10390 = vadd.f32 %v10277, %v10389
        %v10391 = vpop.f32.mrb[0].mxu0
        %v10392 = vadd.f32 %v10279, %v10391
        %10393 = vmatprep.mubr.bf16.mxu0 %v5945
        %10394 = vmatmul.mubr.bf16.gmra.mrb[0].mxu0 %v5944
        %v10395 = vpop.f32.mrb[0].mxu0
        %v10396 = vadd.f32 %v10283, %v10395
        %v10397 = vpop.f32.mrb[0].mxu0
        %v10398 = vadd.f32 %v10285, %v10397
        %v10399 = vpop.f32.mrb[0].mxu0
        %v10400 = vadd.f32 %v10287, %v10399
        %v10401 = vpop.f32.mrb[0].mxu0
        %v10402 = vadd.f32 %v10289, %v10401
        %10403 = vdwg.mxu0
        %10404 = vmatprep.subr.bf16.mxu0 %v8283
        %10405 = vmatpush1.bf16.msra.mxu0 %v8282
        %10406 = vmatprep.subr.bf16.mxu0 %v8287
        %10407 = vmatpush1.bf16.msra.mxu0 %v8286
        %10408 = vmatprep.subr.bf16.mxu0 %v8291
        %10409 = vmatpush1.bf16.msra.mxu0 %v8290
        %10410 = vmatprep.subr.bf16.mxu0 %v8295
        %10411 = vmatpush1.bf16.msra.mxu0 %v8294
        %10412 = vmatprep.subr.bf16.mxu0 %v8299
        %10413 = vmatpush1.bf16.msra.mxu0 %v8298
        %10414 = vmatprep.subr.bf16.mxu0 %v8303
        %10415 = vmatpush1.bf16.msra.mxu0 %v8302
        %10416 = vmatprep.subr.bf16.mxu0 %v8307
        %10417 = vmatpush1.bf16.msra.mxu0 %v8306
        %10418 = vmatprep.subr.bf16.mxu0 %v8311
        %10419 = vmatpush1.bf16.msra.mxu0 %v8310
        %10420 = vmatprep.subr.bf16.mxu0 %v8315
        %10421 = vmatpush1.bf16.msra.mxu0 %v8314
        %10422 = vmatprep.subr.bf16.mxu0 %v8319
        %10423 = vmatpush1.bf16.msra.mxu0 %v8318
        %10424 = vmatprep.subr.bf16.mxu0 %v8323
        %10425 = vmatpush1.bf16.msra.mxu0 %v8322
        %10426 = vmatprep.subr.bf16.mxu0 %v8327
        %10427 = vmatpush1.bf16.msra.mxu0 %v8326
        %10428 = vmatprep.subr.bf16.mxu0 %v8331
        %10429 = vmatpush1.bf16.msra.mxu0 %v8330
        %10430 = vmatprep.subr.bf16.mxu0 %v8335
        %10431 = vmatpush1.bf16.msra.mxu0 %v8334
        %10432 = vmatprep.subr.bf16.mxu0 %v8339
        %10433 = vmatpush1.bf16.msra.mxu0 %v8338
        %10434 = vmatprep.subr.bf16.mxu0 %v8343
        %10435 = vmatpush1.bf16.msra.mxu0 %v8342
        %10436 = vmatprep.mubr.bf16.mxu0 %v5835
        %10437 = vmatmul.mubr.bf16.gmra.mrb[0].mxu0 %v5834
        %v10438 = vpop.f32.mrb[0].mxu0
        %v10439 = vadd.f32 %v10326, %v10438
        %v10440 = vpop.f32.mrb[0].mxu0
        %v10441 = vadd.f32 %v10328, %v10440
        %v10442 = vpop.f32.mrb[0].mxu0
        %v10443 = vadd.f32 %v10330, %v10442
        %v10444 = vpop.f32.mrb[0].mxu0
        %v10445 = vadd.f32 %v10332, %v10444
        %10446 = vmatprep.mubr.bf16.mxu0 %v5851
        %10447 = vmatmul.mubr.bf16.gmra.mrb[0].mxu0 %v5850
        %v10448 = vpop.f32.mrb[0].mxu0
        %v10449 = vadd.f32 %v10336, %v10448
        %v10450 = vpop.f32.mrb[0].mxu0
        %v10451 = vadd.f32 %v10338, %v10450
        %v10452 = vpop.f32.mrb[0].mxu0
        %v10453 = vadd.f32 %v10340, %v10452
        %v10454 = vpop.f32.mrb[0].mxu0
        %v10455 = vadd.f32 %v10342, %v10454
        %10456 = vmatprep.mubr.bf16.mxu0 %v5867
        %10457 = vmatmul.mubr.bf16.gmra.mrb[0].mxu0 %v5866
        %v10458 = vpop.f32.mrb[0].mxu0
        %v10459 = vadd.f32 %v10346, %v10458
        %v10460 = vpop.f32.mrb[0].mxu0
        %v10461 = vadd.f32 %v10348, %v10460
        %v10462 = vpop.f32.mrb[0].mxu0
        %v10463 = vadd.f32 %v10350, %v10462
        %v10464 = vpop.f32.mrb[0].mxu0
        %v10465 = vadd.f32 %v10352, %v10464
        %10466 = vmatprep.mubr.bf16.mxu0 %v5883
        %10467 = vmatmul.mubr.bf16.gmra.mrb[0].mxu0 %v5882
        %v10468 = vpop.f32.mrb[0].mxu0
        %v10469 = vadd.f32 %v10356, %v10468
        %v10470 = vpop.f32.mrb[0].mxu0
        %v10471 = vadd.f32 %v10358, %v10470
        %v10472 = vpop.f32.mrb[0].mxu0
        %v10473 = vadd.f32 %v10360, %v10472
        %v10474 = vpop.f32.mrb[0].mxu0
        %v10475 = vadd.f32 %v10362, %v10474
        %10476 = vmatprep.mubr.bf16.mxu0 %v5899
        %10477 = vmatmul.mubr.bf16.gmra.mrb[0].mxu0 %v5898
        %v10478 = vpop.f32.mrb[0].mxu0
        %v10479 = vadd.f32 %v10366, %v10478
        %v10480 = vpop.f32.mrb[0].mxu0
        %v10481 = vadd.f32 %v10368, %v10480
        %v10482 = vpop.f32.mrb[0].mxu0
        %v10483 = vadd.f32 %v10370, %v10482
        %v10484 = vpop.f32.mrb[0].mxu0
        %v10485 = vadd.f32 %v10372, %v10484
        %10486 = vmatprep.mubr.bf16.mxu0 %v5915
        %10487 = vmatmul.mubr.bf16.gmra.mrb[0].mxu0 %v5914
        %v10488 = vpop.f32.mrb[0].mxu0
        %v10489 = vadd.f32 %v10376, %v10488
        %v10490 = vpop.f32.mrb[0].mxu0
        %v10491 = vadd.f32 %v10378, %v10490
        %v10492 = vpop.f32.mrb[0].mxu0
        %v10493 = vadd.f32 %v10380, %v10492
        %v10494 = vpop.f32.mrb[0].mxu0
        %v10495 = vadd.f32 %v10382, %v10494
        %10496 = vmatprep.mubr.bf16.mxu0 %v5931
        %10497 = vmatmul.mubr.bf16.gmra.mrb[0].mxu0 %v5930
        %v10498 = vpop.f32.mrb[0].mxu0
        %v10499 = vadd.f32 %v10386, %v10498
        %v10500 = vpop.f32.mrb[0].mxu0
        %v10501 = vadd.f32 %v10388, %v10500
        %v10502 = vpop.f32.mrb[0].mxu0
        %v10503 = vadd.f32 %v10390, %v10502
        %v10504 = vpop.f32.mrb[0].mxu0
        %v10505 = vadd.f32 %v10392, %v10504
        %10506 = vmatprep.mubr.bf16.mxu0 %v5947
        %10507 = vmatmul.mubr.bf16.gmra.mrb[0].mxu0 %v5946
        %v10508 = vpop.f32.mrb[0].mxu0
        %v10509 = vadd.f32 %v10396, %v10508
        %v10510 = vpop.f32.mrb[0].mxu0
        %v10511 = vadd.f32 %v10398, %v10510
        %v10512 = vpop.f32.mrb[0].mxu0
        %v10513 = vadd.f32 %v10400, %v10512
        %v10514 = vpop.f32.mrb[0].mxu0
        %v10515 = vadd.f32 %v10402, %v10514
        %10516 = vdwg.mxu0
        %10517 = vmatprep.subr.bf16.mxu0 %v8347
        %10518 = vmatpush1.bf16.msra.mxu0 %v8346
        %10519 = vmatprep.subr.bf16.mxu0 %v8351
        %10520 = vmatpush1.bf16.msra.mxu0 %v8350
        %10521 = vmatprep.subr.bf16.mxu0 %v8355
        %10522 = vmatpush1.bf16.msra.mxu0 %v8354
        %10523 = vmatprep.subr.bf16.mxu0 %v8359
        %10524 = vmatpush1.bf16.msra.mxu0 %v8358
        %10525 = vmatprep.subr.bf16.mxu0 %v8363
        %10526 = vmatpush1.bf16.msra.mxu0 %v8362
        %10527 = vmatprep.subr.bf16.mxu0 %v8367
        %10528 = vmatpush1.bf16.msra.mxu0 %v8366
        %10529 = vmatprep.subr.bf16.mxu0 %v8371
        %10530 = vmatpush1.bf16.msra.mxu0 %v8370
        %10531 = vmatprep.subr.bf16.mxu0 %v8375
        %10532 = vmatpush1.bf16.msra.mxu0 %v8374
        %10533 = vmatprep.subr.bf16.mxu0 %v8379
        %10534 = vmatpush1.bf16.msra.mxu0 %v8378
        %10535 = vmatprep.subr.bf16.mxu0 %v8383
        %10536 = vmatpush1.bf16.msra.mxu0 %v8382
        %10537 = vmatprep.subr.bf16.mxu0 %v8387
        %10538 = vmatpush1.bf16.msra.mxu0 %v8386
        %10539 = vmatprep.subr.bf16.mxu0 %v8391
        %10540 = vmatpush1.bf16.msra.mxu0 %v8390
        %10541 = vmatprep.subr.bf16.mxu0 %v8395
        %10542 = vmatpush1.bf16.msra.mxu0 %v8394
        %10543 = vmatprep.subr.bf16.mxu0 %v8399
        %10544 = vmatpush1.bf16.msra.mxu0 %v8398
        %10545 = vmatprep.subr.bf16.mxu0 %v8403
        %10546 = vmatpush1.bf16.msra.mxu0 %v8402
        %10547 = vmatprep.subr.bf16.mxu0 %v8407
        %10548 = vmatpush1.bf16.msra.mxu0 %v8406
        %10549 = vmatprep.mubr.bf16.mxu0 %v5837
        %10550 = vmatmul.mubr.bf16.gmra.mrb[0].mxu0 %v5836
        %v10551 = vpop.f32.mrb[0].mxu0
        %v10552 = vadd.f32 %v10439, %v10551
        %v10553 = vpop.f32.mrb[0].mxu0
        %v10554 = vadd.f32 %v10441, %v10553
        %v10555 = vpop.f32.mrb[0].mxu0
        %v10556 = vadd.f32 %v10443, %v10555
        %v10557 = vpop.f32.mrb[0].mxu0
        %v10558 = vadd.f32 %v10445, %v10557
        %10559 = vmatprep.mubr.bf16.mxu0 %v5853
        %10560 = vmatmul.mubr.bf16.gmra.mrb[0].mxu0 %v5852
        %v10561 = vpop.f32.mrb[0].mxu0
        %v10562 = vadd.f32 %v10449, %v10561
        %v10563 = vpop.f32.mrb[0].mxu0
        %v10564 = vadd.f32 %v10451, %v10563
        %v10565 = vpop.f32.mrb[0].mxu0
        %v10566 = vadd.f32 %v10453, %v10565
        %v10567 = vpop.f32.mrb[0].mxu0
        %v10568 = vadd.f32 %v10455, %v10567
        %10569 = vmatprep.mubr.bf16.mxu0 %v5869
        %10570 = vmatmul.mubr.bf16.gmra.mrb[0].mxu0 %v5868
        %v10571 = vpop.f32.mrb[0].mxu0
        %v10572 = vadd.f32 %v10459, %v10571
        %v10573 = vpop.f32.mrb[0].mxu0
        %v10574 = vadd.f32 %v10461, %v10573
        %v10575 = vpop.f32.mrb[0].mxu0
        %v10576 = vadd.f32 %v10463, %v10575
        %v10577 = vpop.f32.mrb[0].mxu0
        %v10578 = vadd.f32 %v10465, %v10577
        %10579 = vmatprep.mubr.bf16.mxu0 %v5885
        %10580 = vmatmul.mubr.bf16.gmra.mrb[0].mxu0 %v5884
        %v10581 = vpop.f32.mrb[0].mxu0
        %v10582 = vadd.f32 %v10469, %v10581
        %v10583 = vpop.f32.mrb[0].mxu0
        %v10584 = vadd.f32 %v10471, %v10583
        %v10585 = vpop.f32.mrb[0].mxu0
        %v10586 = vadd.f32 %v10473, %v10585
        %v10587 = vpop.f32.mrb[0].mxu0
        %v10588 = vadd.f32 %v10475, %v10587
        %10589 = vmatprep.mubr.bf16.mxu0 %v5901
        %10590 = vmatmul.mubr.bf16.gmra.mrb[0].mxu0 %v5900
        %v10591 = vpop.f32.mrb[0].mxu0
        %v10592 = vadd.f32 %v10479, %v10591
        %v10593 = vpop.f32.mrb[0].mxu0
        %v10594 = vadd.f32 %v10481, %v10593
        %v10595 = vpop.f32.mrb[0].mxu0
        %v10596 = vadd.f32 %v10483, %v10595
        %v10597 = vpop.f32.mrb[0].mxu0
        %v10598 = vadd.f32 %v10485, %v10597
        %10599 = vmatprep.mubr.bf16.mxu0 %v5917
        %10600 = vmatmul.mubr.bf16.gmra.mrb[0].mxu0 %v5916
        %v10601 = vpop.f32.mrb[0].mxu0
        %v10602 = vadd.f32 %v10489, %v10601
        %v10603 = vpop.f32.mrb[0].mxu0
        %v10604 = vadd.f32 %v10491, %v10603
        %v10605 = vpop.f32.mrb[0].mxu0
        %v10606 = vadd.f32 %v10493, %v10605
        %v10607 = vpop.f32.mrb[0].mxu0
        %v10608 = vadd.f32 %v10495, %v10607
        %10609 = vmatprep.mubr.bf16.mxu0 %v5933
        %10610 = vmatmul.mubr.bf16.gmra.mrb[0].mxu0 %v5932
        %v10611 = vpop.f32.mrb[0].mxu0
        %v10612 = vadd.f32 %v10499, %v10611
        %v10613 = vpop.f32.mrb[0].mxu0
        %v10614 = vadd.f32 %v10501, %v10613
        %v10615 = vpop.f32.mrb[0].mxu0
        %v10616 = vadd.f32 %v10503, %v10615
        %v10617 = vpop.f32.mrb[0].mxu0
        %v10618 = vadd.f32 %v10505, %v10617
        %10619 = vmatprep.mubr.bf16.mxu0 %v5949
        %10620 = vmatmul.mubr.bf16.gmra.mrb[0].mxu0 %v5948
        %v10621 = vpop.f32.mrb[0].mxu0
        %v10622 = vadd.f32 %v10509, %v10621
        %v10623 = vpop.f32.mrb[0].mxu0
        %v10624 = vadd.f32 %v10511, %v10623
        %v10625 = vpop.f32.mrb[0].mxu0
        %v10626 = vadd.f32 %v10513, %v10625
        %v10627 = vpop.f32.mrb[0].mxu0
        %v10628 = vadd.f32 %v10515, %v10627
        %10629 = vdwg.mxu0
        %10630 = vmatprep.subr.bf16.mxu0 %v8411
        %10631 = vmatpush1.bf16.msra.mxu0 %v8410
        %10632 = vmatprep.subr.bf16.mxu0 %v8415
        %10633 = vmatpush1.bf16.msra.mxu0 %v8414
        %10634 = vmatprep.subr.bf16.mxu0 %v8419
        %10635 = vmatpush1.bf16.msra.mxu0 %v8418
        %10636 = vmatprep.subr.bf16.mxu0 %v8423
        %10637 = vmatpush1.bf16.msra.mxu0 %v8422
        %10638 = vmatprep.subr.bf16.mxu0 %v8427
        %10639 = vmatpush1.bf16.msra.mxu0 %v8426
        %10640 = vmatprep.subr.bf16.mxu0 %v8431
        %10641 = vmatpush1.bf16.msra.mxu0 %v8430
        %10642 = vmatprep.subr.bf16.mxu0 %v8435
        %10643 = vmatpush1.bf16.msra.mxu0 %v8434
        %10644 = vmatprep.subr.bf16.mxu0 %v8439
        %10645 = vmatpush1.bf16.msra.mxu0 %v8438
        %10646 = vmatprep.subr.bf16.mxu0 %v8443
        %10647 = vmatpush1.bf16.msra.mxu0 %v8442
        %10648 = vmatprep.subr.bf16.mxu0 %v8447
        %10649 = vmatpush1.bf16.msra.mxu0 %v8446
        %10650 = vmatprep.subr.bf16.mxu0 %v8451
        %10651 = vmatpush1.bf16.msra.mxu0 %v8450
        %10652 = vmatprep.subr.bf16.mxu0 %v8455
        %10653 = vmatpush1.bf16.msra.mxu0 %v8454
        %10654 = vmatprep.subr.bf16.mxu0 %v8459
        %10655 = vmatpush1.bf16.msra.mxu0 %v8458
        %10656 = vmatprep.subr.bf16.mxu0 %v8463
        %10657 = vmatpush1.bf16.msra.mxu0 %v8462
        %10658 = vmatprep.subr.bf16.mxu0 %v8467
        %10659 = vmatpush1.bf16.msra.mxu0 %v8466
        %10660 = vmatprep.subr.bf16.mxu0 %v8471
        %10661 = vmatpush1.bf16.msra.mxu0 %v8470
        %10662 = vmatprep.mubr.bf16.mxu0 %v5839
        %10663 = vmatmul.mubr.bf16.gmra.mrb[0].mxu0 %v5838
        %v10664 = vpop.f32.mrb[0].mxu0
        %v10665 = vadd.f32 %v10552, %v10664
        %v10666 = vpop.f32.mrb[0].mxu0
        %v10667 = vadd.f32 %v10554, %v10666
        %v10668 = vpop.f32.mrb[0].mxu0
        %v10669 = vadd.f32 %v10556, %v10668
        %v10670 = vpop.f32.mrb[0].mxu0
        %v10671 = vadd.f32 %v10558, %v10670
        %10672 = vmatprep.mubr.bf16.mxu0 %v5855
        %10673 = vmatmul.mubr.bf16.gmra.mrb[0].mxu0 %v5854
        %v10674 = vpop.f32.mrb[0].mxu0
        %v10675 = vadd.f32 %v10562, %v10674
        %v10676 = vpop.f32.mrb[0].mxu0
        %v10677 = vadd.f32 %v10564, %v10676
        %v10678 = vpop.f32.mrb[0].mxu0
        %v10679 = vadd.f32 %v10566, %v10678
        %v10680 = vpop.f32.mrb[0].mxu0
        %v10681 = vadd.f32 %v10568, %v10680
        %10682 = vmatprep.mubr.bf16.mxu0 %v5871
        %10683 = vmatmul.mubr.bf16.gmra.mrb[0].mxu0 %v5870
        %v10684 = vpop.f32.mrb[0].mxu0
        %v10685 = vadd.f32 %v10572, %v10684
        %v10686 = vpop.f32.mrb[0].mxu0
        %v10687 = vadd.f32 %v10574, %v10686
        %v10688 = vpop.f32.mrb[0].mxu0
        %v10689 = vadd.f32 %v10576, %v10688
        %v10690 = vpop.f32.mrb[0].mxu0
        %v10691 = vadd.f32 %v10578, %v10690
        %10692 = vmatprep.mubr.bf16.mxu0 %v5887
        %10693 = vmatmul.mubr.bf16.gmra.mrb[0].mxu0 %v5886
        %v10694 = vpop.f32.mrb[0].mxu0
        %v10695 = vadd.f32 %v10582, %v10694
        %v10696 = vpop.f32.mrb[0].mxu0
        %v10697 = vadd.f32 %v10584, %v10696
        %v10698 = vpop.f32.mrb[0].mxu0
        %v10699 = vadd.f32 %v10586, %v10698
        %v10700 = vpop.f32.mrb[0].mxu0
        %v10701 = vadd.f32 %v10588, %v10700
        %10702 = vmatprep.mubr.bf16.mxu0 %v5903
        %10703 = vmatmul.mubr.bf16.gmra.mrb[0].mxu0 %v5902
        %v10704 = vpop.f32.mrb[0].mxu0
        %v10705 = vadd.f32 %v10592, %v10704
        %v10706 = vpop.f32.mrb[0].mxu0
        %v10707 = vadd.f32 %v10594, %v10706
        %v10708 = vpop.f32.mrb[0].mxu0
        %v10709 = vadd.f32 %v10596, %v10708
        %v10710 = vpop.f32.mrb[0].mxu0
        %v10711 = vadd.f32 %v10598, %v10710
        %10712 = vmatprep.mubr.bf16.mxu0 %v5919
        %10713 = vmatmul.mubr.bf16.gmra.mrb[0].mxu0 %v5918
        %v10714 = vpop.f32.mrb[0].mxu0
        %v10715 = vadd.f32 %v10602, %v10714
        %v10716 = vpop.f32.mrb[0].mxu0
        %v10717 = vadd.f32 %v10604, %v10716
        %v10718 = vpop.f32.mrb[0].mxu0
        %v10719 = vadd.f32 %v10606, %v10718
        %v10720 = vpop.f32.mrb[0].mxu0
        %v10721 = vadd.f32 %v10608, %v10720
        %10722 = vmatprep.mubr.bf16.mxu0 %v5935
        %10723 = vmatmul.mubr.bf16.gmra.mrb[0].mxu0 %v5934
        %v10724 = vpop.f32.mrb[0].mxu0
        %v10725 = vadd.f32 %v10612, %v10724
        %v10726 = vpop.f32.mrb[0].mxu0
        %v10727 = vadd.f32 %v10614, %v10726
        %v10728 = vpop.f32.mrb[0].mxu0
        %v10729 = vadd.f32 %v10616, %v10728
        %v10730 = vpop.f32.mrb[0].mxu0
        %v10731 = vadd.f32 %v10618, %v10730
        %10732 = vmatprep.mubr.bf16.mxu0 %v5951
        %10733 = vmatmul.mubr.bf16.gmra.mrb[0].mxu0 %v5950
        %v10734 = vpop.f32.mrb[0].mxu0
        %v10735 = vadd.f32 %v10622, %v10734
        %v10736 = vpop.f32.mrb[0].mxu0
        %v10737 = vadd.f32 %v10624, %v10736
        %v10738 = vpop.f32.mrb[0].mxu0
        %v10739 = vadd.f32 %v10626, %v10738
        %v10740 = vpop.f32.mrb[0].mxu0
        %v10741 = vadd.f32 %v10628, %v10740
        %10742 = vdwg.mxu0
        %10743 = vmatprep.subr.bf16.mxu0 %v8475
        %10744 = vmatpush1.bf16.msra.mxu0 %v8474
        %10745 = vmatprep.subr.bf16.mxu0 %v8479
        %10746 = vmatpush1.bf16.msra.mxu0 %v8478
        %10747 = vmatprep.subr.bf16.mxu0 %v8483
        %10748 = vmatpush1.bf16.msra.mxu0 %v8482
        %10749 = vmatprep.subr.bf16.mxu0 %v8487
        %10750 = vmatpush1.bf16.msra.mxu0 %v8486
        %10751 = vmatprep.subr.bf16.mxu0 %v8491
        %10752 = vmatpush1.bf16.msra.mxu0 %v8490
        %10753 = vmatprep.subr.bf16.mxu0 %v8495
        %10754 = vmatpush1.bf16.msra.mxu0 %v8494
        %10755 = vmatprep.subr.bf16.mxu0 %v8499
        %10756 = vmatpush1.bf16.msra.mxu0 %v8498
        %10757 = vmatprep.subr.bf16.mxu0 %v8503
        %10758 = vmatpush1.bf16.msra.mxu0 %v8502
        %10759 = vmatprep.subr.bf16.mxu0 %v8507
        %10760 = vmatpush1.bf16.msra.mxu0 %v8506
        %10761 = vmatprep.subr.bf16.mxu0 %v8511
        %10762 = vmatpush1.bf16.msra.mxu0 %v8510
        %10763 = vmatprep.subr.bf16.mxu0 %v8515
        %10764 = vmatpush1.bf16.msra.mxu0 %v8514
        %10765 = vmatprep.subr.bf16.mxu0 %v8519
        %10766 = vmatpush1.bf16.msra.mxu0 %v8518
        %10767 = vmatprep.subr.bf16.mxu0 %v8523
        %10768 = vmatpush1.bf16.msra.mxu0 %v8522
        %10769 = vmatprep.subr.bf16.mxu0 %v8527
        %10770 = vmatpush1.bf16.msra.mxu0 %v8526
        %10771 = vmatprep.subr.bf16.mxu0 %v8531
        %10772 = vmatpush1.bf16.msra.mxu0 %v8530
        %10773 = vmatprep.subr.bf16.mxu0 %v8535
        %10774 = vmatpush1.bf16.msra.mxu0 %v8534
        %10775 = vmatprep.mubr.bf16.mxu0 %v5841
        %10776 = vmatmul.mubr.bf16.gmra.mrb[0].mxu0 %v5840
        %v10777 = vpop.f32.mrb[0].mxu0
        %v10778 = vadd.f32 %v10665, %v10777
        %v10779 = vpop.f32.mrb[0].mxu0
        %v10780 = vadd.f32 %v10667, %v10779
        %v10781 = vpop.f32.mrb[0].mxu0
        %v10782 = vadd.f32 %v10669, %v10781
        %v10783 = vpop.f32.mrb[0].mxu0
        %v10784 = vadd.f32 %v10671, %v10783
        %10785 = vmatprep.mubr.bf16.mxu0 %v5857
        %10786 = vmatmul.mubr.bf16.gmra.mrb[0].mxu0 %v5856
        %v10787 = vpop.f32.mrb[0].mxu0
        %v10788 = vadd.f32 %v10675, %v10787
        %v10789 = vpop.f32.mrb[0].mxu0
        %v10790 = vadd.f32 %v10677, %v10789
        %v10791 = vpop.f32.mrb[0].mxu0
        %v10792 = vadd.f32 %v10679, %v10791
        %v10793 = vpop.f32.mrb[0].mxu0
        %v10794 = vadd.f32 %v10681, %v10793
        %10795 = vmatprep.mubr.bf16.mxu0 %v5873
        %10796 = vmatmul.mubr.bf16.gmra.mrb[0].mxu0 %v5872
        %v10797 = vpop.f32.mrb[0].mxu0
        %v10798 = vadd.f32 %v10685, %v10797
        %v10799 = vpop.f32.mrb[0].mxu0
        %v10800 = vadd.f32 %v10687, %v10799
        %v10801 = vpop.f32.mrb[0].mxu0
        %v10802 = vadd.f32 %v10689, %v10801
        %v10803 = vpop.f32.mrb[0].mxu0
        %v10804 = vadd.f32 %v10691, %v10803
        %10805 = vmatprep.mubr.bf16.mxu0 %v5889
        %10806 = vmatmul.mubr.bf16.gmra.mrb[0].mxu0 %v5888
        %v10807 = vpop.f32.mrb[0].mxu0
        %v10808 = vadd.f32 %v10695, %v10807
        %v10809 = vpop.f32.mrb[0].mxu0
        %v10810 = vadd.f32 %v10697, %v10809
        %v10811 = vpop.f32.mrb[0].mxu0
        %v10812 = vadd.f32 %v10699, %v10811
        %v10813 = vpop.f32.mrb[0].mxu0
        %v10814 = vadd.f32 %v10701, %v10813
        %10815 = vmatprep.mubr.bf16.mxu0 %v5905
        %10816 = vmatmul.mubr.bf16.gmra.mrb[0].mxu0 %v5904
        %v10817 = vpop.f32.mrb[0].mxu0
        %v10818 = vadd.f32 %v10705, %v10817
        %v10819 = vpop.f32.mrb[0].mxu0
        %v10820 = vadd.f32 %v10707, %v10819
        %v10821 = vpop.f32.mrb[0].mxu0
        %v10822 = vadd.f32 %v10709, %v10821
        %v10823 = vpop.f32.mrb[0].mxu0
        %v10824 = vadd.f32 %v10711, %v10823
        %10825 = vmatprep.mubr.bf16.mxu0 %v5921
        %10826 = vmatmul.mubr.bf16.gmra.mrb[0].mxu0 %v5920
        %v10827 = vpop.f32.mrb[0].mxu0
        %v10828 = vadd.f32 %v10715, %v10827
        %v10829 = vpop.f32.mrb[0].mxu0
        %v10830 = vadd.f32 %v10717, %v10829
        %v10831 = vpop.f32.mrb[0].mxu0
        %v10832 = vadd.f32 %v10719, %v10831
        %v10833 = vpop.f32.mrb[0].mxu0
        %v10834 = vadd.f32 %v10721, %v10833
        %10835 = vmatprep.mubr.bf16.mxu0 %v5937
        %10836 = vmatmul.mubr.bf16.gmra.mrb[0].mxu0 %v5936
        %v10837 = vpop.f32.mrb[0].mxu0
        %v10838 = vadd.f32 %v10725, %v10837
        %v10839 = vpop.f32.mrb[0].mxu0
        %v10840 = vadd.f32 %v10727, %v10839
        %v10841 = vpop.f32.mrb[0].mxu0
        %v10842 = vadd.f32 %v10729, %v10841
        %v10843 = vpop.f32.mrb[0].mxu0
        %v10844 = vadd.f32 %v10731, %v10843
        %10845 = vmatprep.mubr.bf16.mxu0 %v5953
        %10846 = vmatmul.mubr.bf16.gmra.mrb[0].mxu0 %v5952
        %v10847 = vpop.f32.mrb[0].mxu0
        %v10848 = vadd.f32 %v10735, %v10847
        %v10849 = vpop.f32.mrb[0].mxu0
        %v10850 = vadd.f32 %v10737, %v10849
        %v10851 = vpop.f32.mrb[0].mxu0
        %v10852 = vadd.f32 %v10739, %v10851
        %v10853 = vpop.f32.mrb[0].mxu0
        %v10854 = vadd.f32 %v10741, %v10853
        %10855 = vdwg.mxu0
        %v10856 = vadd.f32 %v9874, %v380
        %v10857 = vadd.f32 %v9876, %v381
        %v10858 = vadd.f32 %v10778, %v382
        %v10859 = vadd.f32 %v10780, %v383
        %v10860 = vadd.f32 %v9878, %v384
        %v10861 = vadd.f32 %v9880, %v385
        %v10862 = vadd.f32 %v10782, %v386
        %v10863 = vadd.f32 %v10784, %v387
        %v10864 = vadd.f32 %v9884, %v388
        %v10865 = vadd.f32 %v9886, %v389
        %v10866 = vadd.f32 %v10788, %v390
        %v10867 = vadd.f32 %v10790, %v391
        %v10868 = vadd.f32 %v9888, %v392
        %v10869 = vadd.f32 %v9890, %v393
        %v10870 = vadd.f32 %v10792, %v394
        %v10871 = vadd.f32 %v10794, %v395
        %v10872 = vadd.f32 %v9894, %v396
        %v10873 = vadd.f32 %v9896, %v397
        %v10874 = vadd.f32 %v10798, %v398
        %v10875 = vadd.f32 %v10800, %v399
        %v10876 = vadd.f32 %v9898, %v400
        %v10877 = vadd.f32 %v9900, %v401
        %v10878 = vadd.f32 %v10802, %v402
        %v10879 = vadd.f32 %v10804, %v403
        %v10880 = vadd.f32 %v9904, %v404
        %v10881 = vadd.f32 %v9906, %v405
        %v10882 = vadd.f32 %v10808, %v406
        %v10883 = vadd.f32 %v10810, %v407
        %v10884 = vadd.f32 %v9908, %v408
        %v10885 = vadd.f32 %v9910, %v409
        %v10886 = vadd.f32 %v10812, %v410
        %v10887 = vadd.f32 %v10814, %v411
        %v10888 = vadd.f32 %v9914, %v412
        %v10889 = vadd.f32 %v9916, %v413
        %v10890 = vadd.f32 %v10818, %v414
        %v10891 = vadd.f32 %v10820, %v415
        %v10892 = vadd.f32 %v9918, %v416
        %v10893 = vadd.f32 %v9920, %v417
        %v10894 = vadd.f32 %v10822, %v418
        %v10895 = vadd.f32 %v10824, %v419
        %v10896 = vadd.f32 %v9924, %v420
        %v10897 = vadd.f32 %v9926, %v421
        %v10898 = vadd.f32 %v10828, %v422
        %v10899 = vadd.f32 %v10830, %v423
        %v10900 = vadd.f32 %v9928, %v424
        %v10901 = vadd.f32 %v9930, %v425
        %v10902 = vadd.f32 %v10832, %v426
        %v10903 = vadd.f32 %v10834, %v427
        %v10904 = vadd.f32 %v9934, %v428
        %v10905 = vadd.f32 %v9936, %v429
        %v10906 = vadd.f32 %v10838, %v430
        %v10907 = vadd.f32 %v10840, %v431
        %v10908 = vadd.f32 %v9938, %v432
        %v10909 = vadd.f32 %v9940, %v433
        %v10910 = vadd.f32 %v10842, %v434
        %v10911 = vadd.f32 %v10844, %v435
        %v10912 = vadd.f32 %v9944, %v436
        %v10913 = vadd.f32 %v9946, %v437
        %v10914 = vadd.f32 %v10848, %v438
        %v10915 = vadd.f32 %v10850, %v439
        %v10916 = vadd.f32 %v9948, %v440
        %v10917 = vadd.f32 %v9950, %v441
        %v10918 = vadd.f32 %v10852, %v442
        %v10919 = vadd.f32 %v10854, %v443
        %v10920 = vadd.f32 %v10856, %v10857
        %v10921 = vadd.f32 %v10920, %v10858
        %v10922 = vadd.f32 %v10921, %v10859
        %10923 = vadd.xlane.f32.xlu0 %v10922
        %v10924 = vpop.xlane.xlu0 %10923
        %v10925 = vadd.f32 %v10860, %v10861
        %v10926 = vadd.f32 %v10925, %v10862
        %v10927 = vadd.f32 %v10926, %v10863
        %10928 = vadd.xlane.f32.xlu0 %v10927
        %v10929 = vpop.xlane.xlu0 %10928
        %v10930 = vadd.f32 %v10864, %v10865
        %v10931 = vadd.f32 %v10930, %v10866
        %v10932 = vadd.f32 %v10931, %v10867
        %10933 = vadd.xlane.f32.xlu0 %v10932
        %v10934 = vpop.xlane.xlu0 %10933
        %v10935 = vadd.f32 %v10868, %v10869
        %v10936 = vadd.f32 %v10935, %v10870
        %v10937 = vadd.f32 %v10936, %v10871
        %10938 = vadd.xlane.f32.xlu0 %v10937
        %v10939 = vpop.xlane.xlu0 %10938
        %v10940 = vadd.f32 %v10872, %v10873
        %v10941 = vadd.f32 %v10940, %v10874
        %v10942 = vadd.f32 %v10941, %v10875
        %10943 = vadd.xlane.f32.xlu0 %v10942
        %v10944 = vpop.xlane.xlu0 %10943
        %v10945 = vadd.f32 %v10876, %v10877
        %v10946 = vadd.f32 %v10945, %v10878
        %v10947 = vadd.f32 %v10946, %v10879
        %10948 = vadd.xlane.f32.xlu0 %v10947
        %v10949 = vpop.xlane.xlu0 %10948
        %v10950 = vadd.f32 %v10880, %v10881
        %v10951 = vadd.f32 %v10950, %v10882
        %v10952 = vadd.f32 %v10951, %v10883
        %10953 = vadd.xlane.f32.xlu0 %v10952
        %v10954 = vpop.xlane.xlu0 %10953
        %v10955 = vadd.f32 %v10884, %v10885
        %v10956 = vadd.f32 %v10955, %v10886
        %v10957 = vadd.f32 %v10956, %v10887
        %10958 = vadd.xlane.f32.xlu0 %v10957
        %v10959 = vpop.xlane.xlu0 %10958
        %v10960 = vadd.f32 %v10888, %v10889
        %v10961 = vadd.f32 %v10960, %v10890
        %v10962 = vadd.f32 %v10961, %v10891
        %10963 = vadd.xlane.f32.xlu0 %v10962
        %v10964 = vpop.xlane.xlu0 %10963
        %v10965 = vadd.f32 %v10892, %v10893
        %v10966 = vadd.f32 %v10965, %v10894
        %v10967 = vadd.f32 %v10966, %v10895
        %10968 = vadd.xlane.f32.xlu0 %v10967
        %v10969 = vpop.xlane.xlu0 %10968
        %v10970 = vadd.f32 %v10896, %v10897
        %v10971 = vadd.f32 %v10970, %v10898
        %v10972 = vadd.f32 %v10971, %v10899
        %10973 = vadd.xlane.f32.xlu0 %v10972
        %v10974 = vpop.xlane.xlu0 %10973
        %v10975 = vadd.f32 %v10900, %v10901
        %v10976 = vadd.f32 %v10975, %v10902
        %v10977 = vadd.f32 %v10976, %v10903
        %10978 = vadd.xlane.f32.xlu0 %v10977
        %v10979 = vpop.xlane.xlu0 %10978
        %v10980 = vadd.f32 %v10904, %v10905
        %v10981 = vadd.f32 %v10980, %v10906
        %v10982 = vadd.f32 %v10981, %v10907
        %10983 = vadd.xlane.f32.xlu0 %v10982
        %v10984 = vpop.xlane.xlu0 %10983
        %v10985 = vadd.f32 %v10908, %v10909
        %v10986 = vadd.f32 %v10985, %v10910
        %v10987 = vadd.f32 %v10986, %v10911
        %10988 = vadd.xlane.f32.xlu0 %v10987
        %v10989 = vpop.xlane.xlu0 %10988
        %v10990 = vadd.f32 %v10912, %v10913
        %v10991 = vadd.f32 %v10990, %v10914
        %v10992 = vadd.f32 %v10991, %v10915
        %10993 = vadd.xlane.f32.xlu0 %v10992
        %v10994 = vpop.xlane.xlu0 %10993
        %v10995 = vadd.f32 %v10916, %v10917
        %v10996 = vadd.f32 %v10995, %v10918
        %v10997 = vadd.f32 %v10996, %v10919
        %10998 = vadd.xlane.f32.xlu0 %v10997
        %v10999 = vpop.xlane.xlu0 %10998
        %v11000 = vrcp.pop 512.0
        %v11001 = vmul.f32 %v10924, %v11000
        %v11002 = vmul.f32 %v10929, %v11000
        %v11003 = vmul.f32 %v10934, %v11000
        %v11004 = vmul.f32 %v10939, %v11000
        %v11005 = vmul.f32 %v10944, %v11000
        %v11006 = vmul.f32 %v10949, %v11000
        %v11007 = vmul.f32 %v10954, %v11000
        %v11008 = vmul.f32 %v10959, %v11000
        %v11009 = vmul.f32 %v10964, %v11000
        %v11010 = vmul.f32 %v10969, %v11000
        %v11011 = vmul.f32 %v10974, %v11000
        %v11012 = vmul.f32 %v10979, %v11000
        %v11013 = vmul.f32 %v10984, %v11000
        %v11014 = vmul.f32 %v10989, %v11000
        %v11015 = vmul.f32 %v10994, %v11000
        %v11016 = vmul.f32 %v10999, %v11000
        %v11017 = vsub.f32 %v10856, %v11001
        %v11018 = vsub.f32 %v10857, %v11001
        %v11019 = vsub.f32 %v10858, %v11001
        %v11020 = vsub.f32 %v10859, %v11001
        %v11021 = vsub.f32 %v10860, %v11002
        %v11022 = vsub.f32 %v10861, %v11002
        %v11023 = vsub.f32 %v10862, %v11002
        %v11024 = vsub.f32 %v10863, %v11002
        %v11025 = vsub.f32 %v10864, %v11003
        %v11026 = vsub.f32 %v10865, %v11003
        %v11027 = vsub.f32 %v10866, %v11003
        %v11028 = vsub.f32 %v10867, %v11003
        %v11029 = vsub.f32 %v10868, %v11004
        %v11030 = vsub.f32 %v10869, %v11004
        %v11031 = vsub.f32 %v10870, %v11004
        %v11032 = vsub.f32 %v10871, %v11004
        %v11033 = vsub.f32 %v10872, %v11005
        %v11034 = vsub.f32 %v10873, %v11005
        %v11035 = vsub.f32 %v10874, %v11005
        %v11036 = vsub.f32 %v10875, %v11005
        %v11037 = vsub.f32 %v10876, %v11006
        %v11038 = vsub.f32 %v10877, %v11006
        %v11039 = vsub.f32 %v10878, %v11006
        %v11040 = vsub.f32 %v10879, %v11006
        %v11041 = vsub.f32 %v10880, %v11007
        %v11042 = vsub.f32 %v10881, %v11007
        %v11043 = vsub.f32 %v10882, %v11007
        %v11044 = vsub.f32 %v10883, %v11007
        %v11045 = vsub.f32 %v10884, %v11008
        %v11046 = vsub.f32 %v10885, %v11008
        %v11047 = vsub.f32 %v10886, %v11008
        %v11048 = vsub.f32 %v10887, %v11008
        %v11049 = vsub.f32 %v10888, %v11009
        %v11050 = vsub.f32 %v10889, %v11009
        %v11051 = vsub.f32 %v10890, %v11009
        %v11052 = vsub.f32 %v10891, %v11009
        %v11053 = vsub.f32 %v10892, %v11010
        %v11054 = vsub.f32 %v10893, %v11010
        %v11055 = vsub.f32 %v10894, %v11010
        %v11056 = vsub.f32 %v10895, %v11010
        %v11057 = vsub.f32 %v10896, %v11011
        %v11058 = vsub.f32 %v10897, %v11011
        %v11059 = vsub.f32 %v10898, %v11011
        %v11060 = vsub.f32 %v10899, %v11011
        %v11061 = vsub.f32 %v10900, %v11012
        %v11062 = vsub.f32 %v10901, %v11012
        %v11063 = vsub.f32 %v10902, %v11012
        %v11064 = vsub.f32 %v10903, %v11012
        %v11065 = vsub.f32 %v10904, %v11013
        %v11066 = vsub.f32 %v10905, %v11013
        %v11067 = vsub.f32 %v10906, %v11013
        %v11068 = vsub.f32 %v10907, %v11013
        %v11069 = vsub.f32 %v10908, %v11014
        %v11070 = vsub.f32 %v10909, %v11014
        %v11071 = vsub.f32 %v10910, %v11014
        %v11072 = vsub.f32 %v10911, %v11014
        %v11073 = vsub.f32 %v10912, %v11015
        %v11074 = vsub.f32 %v10913, %v11015
        %v11075 = vsub.f32 %v10914, %v11015
        %v11076 = vsub.f32 %v10915, %v11015
        %v11077 = vsub.f32 %v10916, %v11016
        %v11078 = vsub.f32 %v10917, %v11016
        %v11079 = vsub.f32 %v10918, %v11016
        %v11080 = vsub.f32 %v10919, %v11016
        %v11081 = vmul.f32 %v11017, %v11017
        %v11082 = vmul.f32 %v11018, %v11018
        %v11083 = vmul.f32 %v11019, %v11019
        %v11084 = vmul.f32 %v11020, %v11020
        %v11085 = vmul.f32 %v11021, %v11021
        %v11086 = vmul.f32 %v11022, %v11022
        %v11087 = vmul.f32 %v11023, %v11023
        %v11088 = vmul.f32 %v11024, %v11024
        %v11089 = vmul.f32 %v11025, %v11025
        %v11090 = vmul.f32 %v11026, %v11026
        %v11091 = vmul.f32 %v11027, %v11027
        %v11092 = vmul.f32 %v11028, %v11028
        %v11093 = vmul.f32 %v11029, %v11029
        %v11094 = vmul.f32 %v11030, %v11030
        %v11095 = vmul.f32 %v11031, %v11031
        %v11096 = vmul.f32 %v11032, %v11032
        %v11097 = vmul.f32 %v11033, %v11033
        %v11098 = vmul.f32 %v11034, %v11034
        %v11099 = vmul.f32 %v11035, %v11035
        %v11100 = vmul.f32 %v11036, %v11036
        %v11101 = vmul.f32 %v11037, %v11037
        %v11102 = vmul.f32 %v11038, %v11038
        %v11103 = vmul.f32 %v11039, %v11039
        %v11104 = vmul.f32 %v11040, %v11040
        %v11105 = vmul.f32 %v11041, %v11041
        %v11106 = vmul.f32 %v11042, %v11042
        %v11107 = vmul.f32 %v11043, %v11043
        %v11108 = vmul.f32 %v11044, %v11044
        %v11109 = vmul.f32 %v11045, %v11045
        %v11110 = vmul.f32 %v11046, %v11046
        %v11111 = vmul.f32 %v11047, %v11047
        %v11112 = vmul.f32 %v11048, %v11048
        %v11113 = vmul.f32 %v11049, %v11049
        %v11114 = vmul.f32 %v11050, %v11050
        %v11115 = vmul.f32 %v11051, %v11051
        %v11116 = vmul.f32 %v11052, %v11052
        %v11117 = vmul.f32 %v11053, %v11053
        %v11118 = vmul.f32 %v11054, %v11054
        %v11119 = vmul.f32 %v11055, %v11055
        %v11120 = vmul.f32 %v11056, %v11056
        %v11121 = vmul.f32 %v11057, %v11057
        %v11122 = vmul.f32 %v11058, %v11058
        %v11123 = vmul.f32 %v11059, %v11059
        %v11124 = vmul.f32 %v11060, %v11060
        %v11125 = vmul.f32 %v11061, %v11061
        %v11126 = vmul.f32 %v11062, %v11062
        %v11127 = vmul.f32 %v11063, %v11063
        %v11128 = vmul.f32 %v11064, %v11064
        %v11129 = vmul.f32 %v11065, %v11065
        %v11130 = vmul.f32 %v11066, %v11066
        %v11131 = vmul.f32 %v11067, %v11067
        %v11132 = vmul.f32 %v11068, %v11068
        %v11133 = vmul.f32 %v11069, %v11069
        %v11134 = vmul.f32 %v11070, %v11070
        %v11135 = vmul.f32 %v11071, %v11071
        %v11136 = vmul.f32 %v11072, %v11072
        %v11137 = vmul.f32 %v11073, %v11073
        %v11138 = vmul.f32 %v11074, %v11074
        %v11139 = vmul.f32 %v11075, %v11075
        %v11140 = vmul.f32 %v11076, %v11076
        %v11141 = vmul.f32 %v11077, %v11077
        %v11142 = vmul.f32 %v11078, %v11078
        %v11143 = vmul.f32 %v11079, %v11079
        %v11144 = vmul.f32 %v11080, %v11080
        %v11145 = vadd.f32 %v11081, %v11082
        %v11146 = vadd.f32 %v11145, %v11083
        %v11147 = vadd.f32 %v11146, %v11084
        %11148 = vadd.xlane.f32.xlu0 %v11147
        %v11149 = vpop.xlane.xlu0 %11148
        %v11150 = vadd.f32 %v11085, %v11086
        %v11151 = vadd.f32 %v11150, %v11087
        %v11152 = vadd.f32 %v11151, %v11088
        %11153 = vadd.xlane.f32.xlu0 %v11152
        %v11154 = vpop.xlane.xlu0 %11153
        %v11155 = vadd.f32 %v11089, %v11090
        %v11156 = vadd.f32 %v11155, %v11091
        %v11157 = vadd.f32 %v11156, %v11092
        %11158 = vadd.xlane.f32.xlu0 %v11157
        %v11159 = vpop.xlane.xlu0 %11158
        %v11160 = vadd.f32 %v11093, %v11094
        %v11161 = vadd.f32 %v11160, %v11095
        %v11162 = vadd.f32 %v11161, %v11096
        %11163 = vadd.xlane.f32.xlu0 %v11162
        %v11164 = vpop.xlane.xlu0 %11163
        %v11165 = vadd.f32 %v11097, %v11098
        %v11166 = vadd.f32 %v11165, %v11099
        %v11167 = vadd.f32 %v11166, %v11100
        %11168 = vadd.xlane.f32.xlu0 %v11167
        %v11169 = vpop.xlane.xlu0 %11168
        %v11170 = vadd.f32 %v11101, %v11102
        %v11171 = vadd.f32 %v11170, %v11103
        %v11172 = vadd.f32 %v11171, %v11104
        %11173 = vadd.xlane.f32.xlu0 %v11172
        %v11174 = vpop.xlane.xlu0 %11173
        %v11175 = vadd.f32 %v11105, %v11106
        %v11176 = vadd.f32 %v11175, %v11107
        %v11177 = vadd.f32 %v11176, %v11108
        %11178 = vadd.xlane.f32.xlu0 %v11177
        %v11179 = vpop.xlane.xlu0 %11178
        %v11180 = vadd.f32 %v11109, %v11110
        %v11181 = vadd.f32 %v11180, %v11111
        %v11182 = vadd.f32 %v11181, %v11112
        %11183 = vadd.xlane.f32.xlu0 %v11182
        %v11184 = vpop.xlane.xlu0 %11183
        %v11185 = vadd.f32 %v11113, %v11114
        %v11186 = vadd.f32 %v11185, %v11115
        %v11187 = vadd.f32 %v11186, %v11116
        %11188 = vadd.xlane.f32.xlu0 %v11187
        %v11189 = vpop.xlane.xlu0 %11188
        %v11190 = vadd.f32 %v11117, %v11118
        %v11191 = vadd.f32 %v11190, %v11119
        %v11192 = vadd.f32 %v11191, %v11120
        %11193 = vadd.xlane.f32.xlu0 %v11192
        %v11194 = vpop.xlane.xlu0 %11193
        %v11195 = vadd.f32 %v11121, %v11122
        %v11196 = vadd.f32 %v11195, %v11123
        %v11197 = vadd.f32 %v11196, %v11124
        %11198 = vadd.xlane.f32.xlu0 %v11197
        %v11199 = vpop.xlane.xlu0 %11198
        %v11200 = vadd.f32 %v11125, %v11126
        %v11201 = vadd.f32 %v11200, %v11127
        %v11202 = vadd.f32 %v11201, %v11128
        %11203 = vadd.xlane.f32.xlu0 %v11202
        %v11204 = vpop.xlane.xlu0 %11203
        %v11205 = vadd.f32 %v11129, %v11130
        %v11206 = vadd.f32 %v11205, %v11131
        %v11207 = vadd.f32 %v11206, %v11132
        %11208 = vadd.xlane.f32.xlu0 %v11207
        %v11209 = vpop.xlane.xlu0 %11208
        %v11210 = vadd.f32 %v11133, %v11134
        %v11211 = vadd.f32 %v11210, %v11135
        %v11212 = vadd.f32 %v11211, %v11136
        %11213 = vadd.xlane.f32.xlu0 %v11212
        %v11214 = vpop.xlane.xlu0 %11213
        %v11215 = vadd.f32 %v11137, %v11138
        %v11216 = vadd.f32 %v11215, %v11139
        %v11217 = vadd.f32 %v11216, %v11140
        %11218 = vadd.xlane.f32.xlu0 %v11217
        %v11219 = vpop.xlane.xlu0 %11218
        %v11220 = vadd.f32 %v11141, %v11142
        %v11221 = vadd.f32 %v11220, %v11143
        %v11222 = vadd.f32 %v11221, %v11144
        %11223 = vadd.xlane.f32.xlu0 %v11222
        %v11224 = vpop.xlane.xlu0 %11223
        %v11225 = vmul.f32 %v11149, %v11000
        %v11226 = vmul.f32 %v11154, %v11000
        %v11227 = vmul.f32 %v11159, %v11000
        %v11228 = vmul.f32 %v11164, %v11000
        %v11229 = vmul.f32 %v11169, %v11000
        %v11230 = vmul.f32 %v11174, %v11000
        %v11231 = vmul.f32 %v11179, %v11000
        %v11232 = vmul.f32 %v11184, %v11000
        %v11233 = vmul.f32 %v11189, %v11000
        %v11234 = vmul.f32 %v11194, %v11000
        %v11235 = vmul.f32 %v11199, %v11000
        %v11236 = vmul.f32 %v11204, %v11000
        %v11237 = vmul.f32 %v11209, %v11000
        %v11238 = vmul.f32 %v11214, %v11000
        %v11239 = vmul.f32 %v11219, %v11000
        %v11240 = vmul.f32 %v11224, %v11000
        %v11241 = vadd.f32 %v11225, 1e-05
        %v11242 = vadd.f32 %v11226, 1e-05
        %v11243 = vadd.f32 %v11227, 1e-05
        %v11244 = vadd.f32 %v11228, 1e-05
        %v11245 = vadd.f32 %v11229, 1e-05
        %v11246 = vadd.f32 %v11230, 1e-05
        %v11247 = vadd.f32 %v11231, 1e-05
        %v11248 = vadd.f32 %v11232, 1e-05
        %v11249 = vadd.f32 %v11233, 1e-05
        %v11250 = vadd.f32 %v11234, 1e-05
        %v11251 = vadd.f32 %v11235, 1e-05
        %v11252 = vadd.f32 %v11236, 1e-05
        %v11253 = vadd.f32 %v11237, 1e-05
        %v11254 = vadd.f32 %v11238, 1e-05
        %v11255 = vadd.f32 %v11239, 1e-05
        %v11256 = vadd.f32 %v11240, 1e-05
        %v11257 = vrsqrt.pop %v11241
        %v11258 = vrsqrt.pop %v11242
        %v11259 = vrsqrt.pop %v11243
        %v11260 = vrsqrt.pop %v11244
        %v11261 = vrsqrt.pop %v11245
        %v11262 = vrsqrt.pop %v11246
        %v11263 = vrsqrt.pop %v11247
        %v11264 = vrsqrt.pop %v11248
        %v11265 = vrsqrt.pop %v11249
        %v11266 = vrsqrt.pop %v11250
        %v11267 = vrsqrt.pop %v11251
        %v11268 = vrsqrt.pop %v11252
        %v11269 = vrsqrt.pop %v11253
        %v11270 = vrsqrt.pop %v11254
        %v11271 = vrsqrt.pop %v11255
        %v11272 = vrsqrt.pop %v11256
        %v11273 = vmul.f32 %v11017, %v11257
        %v11274 = vmul.f32 %v11018, %v11257
        %v11275 = vmul.f32 %v11019, %v11257
        %v11276 = vmul.f32 %v11020, %v11257
        %v11277 = vmul.f32 %v11021, %v11258
        %v11278 = vmul.f32 %v11022, %v11258
        %v11279 = vmul.f32 %v11023, %v11258
        %v11280 = vmul.f32 %v11024, %v11258
        %v11281 = vmul.f32 %v11025, %v11259
        %v11282 = vmul.f32 %v11026, %v11259
        %v11283 = vmul.f32 %v11027, %v11259
        %v11284 = vmul.f32 %v11028, %v11259
        %v11285 = vmul.f32 %v11029, %v11260
        %v11286 = vmul.f32 %v11030, %v11260
        %v11287 = vmul.f32 %v11031, %v11260
        %v11288 = vmul.f32 %v11032, %v11260
        %v11289 = vmul.f32 %v11033, %v11261
        %v11290 = vmul.f32 %v11034, %v11261
        %v11291 = vmul.f32 %v11035, %v11261
        %v11292 = vmul.f32 %v11036, %v11261
        %v11293 = vmul.f32 %v11037, %v11262
        %v11294 = vmul.f32 %v11038, %v11262
        %v11295 = vmul.f32 %v11039, %v11262
        %v11296 = vmul.f32 %v11040, %v11262
        %v11297 = vmul.f32 %v11041, %v11263
        %v11298 = vmul.f32 %v11042, %v11263
        %v11299 = vmul.f32 %v11043, %v11263
        %v11300 = vmul.f32 %v11044, %v11263
        %v11301 = vmul.f32 %v11045, %v11264
        %v11302 = vmul.f32 %v11046, %v11264
        %v11303 = vmul.f32 %v11047, %v11264
        %v11304 = vmul.f32 %v11048, %v11264
        %v11305 = vmul.f32 %v11049, %v11265
        %v11306 = vmul.f32 %v11050, %v11265
        %v11307 = vmul.f32 %v11051, %v11265
        %v11308 = vmul.f32 %v11052, %v11265
        %v11309 = vmul.f32 %v11053, %v11266
        %v11310 = vmul.f32 %v11054, %v11266
        %v11311 = vmul.f32 %v11055, %v11266
        %v11312 = vmul.f32 %v11056, %v11266
        %v11313 = vmul.f32 %v11057, %v11267
        %v11314 = vmul.f32 %v11058, %v11267
        %v11315 = vmul.f32 %v11059, %v11267
        %v11316 = vmul.f32 %v11060, %v11267
        %v11317 = vmul.f32 %v11061, %v11268
        %v11318 = vmul.f32 %v11062, %v11268
        %v11319 = vmul.f32 %v11063, %v11268
        %v11320 = vmul.f32 %v11064, %v11268
        %v11321 = vmul.f32 %v11065, %v11269
        %v11322 = vmul.f32 %v11066, %v11269
        %v11323 = vmul.f32 %v11067, %v11269
        %v11324 = vmul.f32 %v11068, %v11269
        %v11325 = vmul.f32 %v11069, %v11270
        %v11326 = vmul.f32 %v11070, %v11270
        %v11327 = vmul.f32 %v11071, %v11270
        %v11328 = vmul.f32 %v11072, %v11270
        %v11329 = vmul.f32 %v11073, %v11271
        %v11330 = vmul.f32 %v11074, %v11271
        %v11331 = vmul.f32 %v11075, %v11271
        %v11332 = vmul.f32 %v11076, %v11271
        %v11333 = vmul.f32 %v11077, %v11272
        %v11334 = vmul.f32 %v11078, %v11272
        %v11335 = vmul.f32 %v11079, %v11272
        %v11336 = vmul.f32 %v11080, %v11272
        %v11337 = vld [vmem:[#allocation11] sm:$0xf]
        %v11339 = vlaneseq
        %v11340 = vshrl.u32 %v11339, 7
        %v11341 = vsub.s32 0, %v11340
        %v11342 = vrot.slane %v11337, %v11341
        %v11343 = vlaneseq
        %v11344 = vshrl.u32 %v11343, 7
        %v11345 = vsub.s32 1, %v11344
        %v11346 = vrot.slane %v11337, %v11345
        %v11347 = vlaneseq
        %v11348 = vshrl.u32 %v11347, 7
        %v11349 = vsub.s32 2, %v11348
        %v11350 = vrot.slane %v11337, %v11349
        %v11351 = vlaneseq
        %v11352 = vshrl.u32 %v11351, 7
        %v11353 = vsub.s32 3, %v11352
        %v11354 = vrot.slane %v11337, %v11353
        %v11359 = vmul.f32 %v11273, %v11342
        %v11360 = vmul.f32 %v11274, %v11346
        %v11361 = vmul.f32 %v11275, %v11350
        %v11362 = vmul.f32 %v11276, %v11354
        %v11363 = vmul.f32 %v11277, %v11342
        %v11364 = vmul.f32 %v11278, %v11346
        %v11365 = vmul.f32 %v11279, %v11350
        %v11366 = vmul.f32 %v11280, %v11354
        %v11367 = vmul.f32 %v11281, %v11342
        %v11368 = vmul.f32 %v11282, %v11346
        %v11369 = vmul.f32 %v11283, %v11350
        %v11370 = vmul.f32 %v11284, %v11354
        %v11371 = vmul.f32 %v11285, %v11342
        %v11372 = vmul.f32 %v11286, %v11346
        %v11373 = vmul.f32 %v11287, %v11350
        %v11374 = vmul.f32 %v11288, %v11354
        %v11375 = vmul.f32 %v11289, %v11342
        %v11376 = vmul.f32 %v11290, %v11346
        %v11377 = vmul.f32 %v11291, %v11350
        %v11378 = vmul.f32 %v11292, %v11354
        %v11379 = vmul.f32 %v11293, %v11342
        %v11380 = vmul.f32 %v11294, %v11346
        %v11381 = vmul.f32 %v11295, %v11350
        %v11382 = vmul.f32 %v11296, %v11354
        %v11383 = vmul.f32 %v11297, %v11342
        %v11384 = vmul.f32 %v11298, %v11346
        %v11385 = vmul.f32 %v11299, %v11350
        %v11386 = vmul.f32 %v11300, %v11354
        %v11387 = vmul.f32 %v11301, %v11342
        %v11388 = vmul.f32 %v11302, %v11346
        %v11389 = vmul.f32 %v11303, %v11350
        %v11390 = vmul.f32 %v11304, %v11354
        %v11391 = vmul.f32 %v11305, %v11342
        %v11392 = vmul.f32 %v11306, %v11346
        %v11393 = vmul.f32 %v11307, %v11350
        %v11394 = vmul.f32 %v11308, %v11354
        %v11395 = vmul.f32 %v11309, %v11342
        %v11396 = vmul.f32 %v11310, %v11346
        %v11397 = vmul.f32 %v11311, %v11350
        %v11398 = vmul.f32 %v11312, %v11354
        %v11399 = vmul.f32 %v11313, %v11342
        %v11400 = vmul.f32 %v11314, %v11346
        %v11401 = vmul.f32 %v11315, %v11350
        %v11402 = vmul.f32 %v11316, %v11354
        %v11403 = vmul.f32 %v11317, %v11342
        %v11404 = vmul.f32 %v11318, %v11346
        %v11405 = vmul.f32 %v11319, %v11350
        %v11406 = vmul.f32 %v11320, %v11354
        %v11407 = vmul.f32 %v11321, %v11342
        %v11408 = vmul.f32 %v11322, %v11346
        %v11409 = vmul.f32 %v11323, %v11350
        %v11410 = vmul.f32 %v11324, %v11354
        %v11411 = vmul.f32 %v11325, %v11342
        %v11412 = vmul.f32 %v11326, %v11346
        %v11413 = vmul.f32 %v11327, %v11350
        %v11414 = vmul.f32 %v11328, %v11354
        %v11415 = vmul.f32 %v11329, %v11342
        %v11416 = vmul.f32 %v11330, %v11346
        %v11417 = vmul.f32 %v11331, %v11350
        %v11418 = vmul.f32 %v11332, %v11354
        %v11419 = vmul.f32 %v11333, %v11342
        %v11420 = vmul.f32 %v11334, %v11346
        %v11421 = vmul.f32 %v11335, %v11350
        %v11422 = vmul.f32 %v11336, %v11354
        %v11423 = vld [vmem:[#allocation13] sm:$0xf]
        %v11425 = vlaneseq
        %v11426 = vshrl.u32 %v11425, 7
        %v11427 = vsub.s32 0, %v11426
        %v11428 = vrot.slane %v11423, %v11427
        %v11429 = vlaneseq
        %v11430 = vshrl.u32 %v11429, 7
        %v11431 = vsub.s32 1, %v11430
        %v11432 = vrot.slane %v11423, %v11431
        %v11433 = vlaneseq
        %v11434 = vshrl.u32 %v11433, 7
        %v11435 = vsub.s32 2, %v11434
        %v11436 = vrot.slane %v11423, %v11435
        %v11437 = vlaneseq
        %v11438 = vshrl.u32 %v11437, 7
        %v11439 = vsub.s32 3, %v11438
        %v11440 = vrot.slane %v11423, %v11439
        %v11445 = vadd.f32 %v11359, %v11428
        %v11446 = vadd.f32 %v11360, %v11432
        %v11447 = vadd.f32 %v11361, %v11436
        %v11448 = vadd.f32 %v11362, %v11440
        %v11449 = vadd.f32 %v11363, %v11428
        %v11450 = vadd.f32 %v11364, %v11432
        %v11451 = vadd.f32 %v11365, %v11436
        %v11452 = vadd.f32 %v11366, %v11440
        %v11453 = vadd.f32 %v11367, %v11428
        %v11454 = vadd.f32 %v11368, %v11432
        %v11455 = vadd.f32 %v11369, %v11436
        %v11456 = vadd.f32 %v11370, %v11440
        %v11457 = vadd.f32 %v11371, %v11428
        %v11458 = vadd.f32 %v11372, %v11432
        %v11459 = vadd.f32 %v11373, %v11436
        %v11460 = vadd.f32 %v11374, %v11440
        %v11461 = vadd.f32 %v11375, %v11428
        %v11462 = vadd.f32 %v11376, %v11432
        %v11463 = vadd.f32 %v11377, %v11436
        %v11464 = vadd.f32 %v11378, %v11440
        %v11465 = vadd.f32 %v11379, %v11428
        %v11466 = vadd.f32 %v11380, %v11432
        %v11467 = vadd.f32 %v11381, %v11436
        %v11468 = vadd.f32 %v11382, %v11440
        %v11469 = vadd.f32 %v11383, %v11428
        %v11470 = vadd.f32 %v11384, %v11432
        %v11471 = vadd.f32 %v11385, %v11436
        %v11472 = vadd.f32 %v11386, %v11440
        %v11473 = vadd.f32 %v11387, %v11428
        %v11474 = vadd.f32 %v11388, %v11432
        %v11475 = vadd.f32 %v11389, %v11436
        %v11476 = vadd.f32 %v11390, %v11440
        %v11477 = vadd.f32 %v11391, %v11428
        %v11478 = vadd.f32 %v11392, %v11432
        %v11479 = vadd.f32 %v11393, %v11436
        %v11480 = vadd.f32 %v11394, %v11440
        %v11481 = vadd.f32 %v11395, %v11428
        %v11482 = vadd.f32 %v11396, %v11432
        %v11483 = vadd.f32 %v11397, %v11436
        %v11484 = vadd.f32 %v11398, %v11440
        %v11485 = vadd.f32 %v11399, %v11428
        %v11486 = vadd.f32 %v11400, %v11432
        %v11487 = vadd.f32 %v11401, %v11436
        %v11488 = vadd.f32 %v11402, %v11440
        %v11489 = vadd.f32 %v11403, %v11428
        %v11490 = vadd.f32 %v11404, %v11432
        %v11491 = vadd.f32 %v11405, %v11436
        %v11492 = vadd.f32 %v11406, %v11440
        %v11493 = vadd.f32 %v11407, %v11428
        %v11494 = vadd.f32 %v11408, %v11432
        %v11495 = vadd.f32 %v11409, %v11436
        %v11496 = vadd.f32 %v11410, %v11440
        %v11497 = vadd.f32 %v11411, %v11428
        %v11498 = vadd.f32 %v11412, %v11432
        %v11499 = vadd.f32 %v11413, %v11436
        %v11500 = vadd.f32 %v11414, %v11440
        %v11501 = vadd.f32 %v11415, %v11428
        %v11502 = vadd.f32 %v11416, %v11432
        %v11503 = vadd.f32 %v11417, %v11436
        %v11504 = vadd.f32 %v11418, %v11440
        %v11505 = vadd.f32 %v11419, %v11428
        %v11506 = vadd.f32 %v11420, %v11432
        %v11507 = vadd.f32 %v11421, %v11436
        %v11508 = vadd.f32 %v11422, %v11440
        %11509 = vst [vmem:[%s376] sm:$0xff] %v11445
        %11510 = vst [vmem:[%s376 + $0x8] sm:$0xff] %v11446
        %11511 = vst [vmem:[%s376 + $0x10] sm:$0xff] %v11447
        %11512 = vst [vmem:[%s376 + $0x18] sm:$0xff] %v11448
        %11513 = vst [vmem:[%s376 + $0x20] sm:$0xff] %v11449
        %11514 = vst [vmem:[%s376 + $0x28] sm:$0xff] %v11450
        %11515 = vst [vmem:[%s376 + $0x30] sm:$0xff] %v11451
        %11516 = vst [vmem:[%s376 + $0x38] sm:$0xff] %v11452
        %11517 = vst [vmem:[%s376 + $0x40] sm:$0xff] %v11453
        %11518 = vst [vmem:[%s376 + $0x48] sm:$0xff] %v11454
        %11519 = vst [vmem:[%s376 + $0x50] sm:$0xff] %v11455
        %11520 = vst [vmem:[%s376 + $0x58] sm:$0xff] %v11456
        %11521 = vst [vmem:[%s376 + $0x60] sm:$0xff] %v11457
        %11522 = vst [vmem:[%s376 + $0x68] sm:$0xff] %v11458
        %11523 = vst [vmem:[%s376 + $0x70] sm:$0xff] %v11459
        %11524 = vst [vmem:[%s376 + $0x78] sm:$0xff] %v11460
        %11525 = vst [vmem:[%s376 + $0x80] sm:$0xff] %v11461
        %11526 = vst [vmem:[%s376 + $0x88] sm:$0xff] %v11462
        %11527 = vst [vmem:[%s376 + $0x90] sm:$0xff] %v11463
        %11528 = vst [vmem:[%s376 + $0x98] sm:$0xff] %v11464
        %11529 = vst [vmem:[%s376 + $0xa0] sm:$0xff] %v11465
        %11530 = vst [vmem:[%s376 + $0xa8] sm:$0xff] %v11466
        %11531 = vst [vmem:[%s376 + $0xb0] sm:$0xff] %v11467
        %11532 = vst [vmem:[%s376 + $0xb8] sm:$0xff] %v11468
        %11533 = vst [vmem:[%s376 + $0xc0] sm:$0xff] %v11469
        %11534 = vst [vmem:[%s376 + $0xc8] sm:$0xff] %v11470
        %11535 = vst [vmem:[%s376 + $0xd0] sm:$0xff] %v11471
        %11536 = vst [vmem:[%s376 + $0xd8] sm:$0xff] %v11472
        %11537 = vst [vmem:[%s376 + $0xe0] sm:$0xff] %v11473
        %11538 = vst [vmem:[%s376 + $0xe8] sm:$0xff] %v11474
        %11539 = vst [vmem:[%s376 + $0xf0] sm:$0xff] %v11475
        %11540 = vst [vmem:[%s376 + $0xf8] sm:$0xff] %v11476
        %11541 = vst [vmem:[%s376 + $0x100] sm:$0xff] %v11477
        %11542 = vst [vmem:[%s376 + $0x108] sm:$0xff] %v11478
        %11543 = vst [vmem:[%s376 + $0x110] sm:$0xff] %v11479
        %11544 = vst [vmem:[%s376 + $0x118] sm:$0xff] %v11480
        %11545 = vst [vmem:[%s376 + $0x120] sm:$0xff] %v11481
        %11546 = vst [vmem:[%s376 + $0x128] sm:$0xff] %v11482
        %11547 = vst [vmem:[%s376 + $0x130] sm:$0xff] %v11483
        %11548 = vst [vmem:[%s376 + $0x138] sm:$0xff] %v11484
        %11549 = vst [vmem:[%s376 + $0x140] sm:$0xff] %v11485
        %11550 = vst [vmem:[%s376 + $0x148] sm:$0xff] %v11486
        %11551 = vst [vmem:[%s376 + $0x150] sm:$0xff] %v11487
        %11552 = vst [vmem:[%s376 + $0x158] sm:$0xff] %v11488
        %11553 = vst [vmem:[%s376 + $0x160] sm:$0xff] %v11489
        %11554 = vst [vmem:[%s376 + $0x168] sm:$0xff] %v11490
        %11555 = vst [vmem:[%s376 + $0x170] sm:$0xff] %v11491
        %11556 = vst [vmem:[%s376 + $0x178] sm:$0xff] %v11492
        %11557 = vst [vmem:[%s376 + $0x180] sm:$0xff] %v11493
        %11558 = vst [vmem:[%s376 + $0x188] sm:$0xff] %v11494
        %11559 = vst [vmem:[%s376 + $0x190] sm:$0xff] %v11495
        %11560 = vst [vmem:[%s376 + $0x198] sm:$0xff] %v11496
        %11561 = vst [vmem:[%s376 + $0x1a0] sm:$0xff] %v11497
        %11562 = vst [vmem:[%s376 + $0x1a8] sm:$0xff] %v11498
        %11563 = vst [vmem:[%s376 + $0x1b0] sm:$0xff] %v11499
        %11564 = vst [vmem:[%s376 + $0x1b8] sm:$0xff] %v11500
        %11565 = vst [vmem:[%s376 + $0x1c0] sm:$0xff] %v11501
        %11566 = vst [vmem:[%s376 + $0x1c8] sm:$0xff] %v11502
        %11567 = vst [vmem:[%s376 + $0x1d0] sm:$0xff] %v11503
        %11568 = vst [vmem:[%s376 + $0x1d8] sm:$0xff] %v11504
        %11569 = vst [vmem:[%s376 + $0x1e0] sm:$0xff] %v11505
        %11570 = vst [vmem:[%s376 + $0x1e8] sm:$0xff] %v11506
        %11571 = vst [vmem:[%s376 + $0x1f0] sm:$0xff] %v11507
        %11572 = vst [vmem:[%s376 + $0x1f8] sm:$0xff] %v11508
        %s11573 = sand.u32 %s187, 1
        %s11574 = scalar_lea.sflag [#allocation4], %s11573
        %s11575 = sand.u32 %s187, 1
        %s11576 = smul.addr %s11575, 512
        %s11577 = scalar_lea.vmem [#allocation14], %s11576
        // Predicated region
        $region77: #{tpu_custom_call.1} parent=47 // pred_check
          %p11578 = pneg %p197
        $region78: #{tpu_custom_call.1} parent=47 // pred_check_branch
          %11580 = sbr.rel (%p11578) target = $region80
        $region79: #{tpu_custom_call.1} parent=47 // pred_region
          %s11581 = smul.u32 16, %s27
          %s11583 = ssub.s32 8192, 8192
          %11584 = vsyncadd %s11574, %s11583
          %s11585 = smul.addr %s11581, 4
          %s11586 = smul.addr %s11585, 128
          %s11587 = scalar_lea.hbm %s7, %s11586
          %s11588 = sshll.u32 %s11577, 4
          %s11589 = int_to_ptr.vmem [resolvable:$true] %s11588
          %11594 = dma.vmem_to_hbm [thread:$0]  %s11589, 8192, %s11587, %s11574, 512, 512, 32
        $region80: #{tpu_custom_call.1} parent=47 // pred_fallthru
          _
      $region48: #{tpu_custom_call.1} parent=5 // pred_fallthru
        _
      %p11595 = scmp.le.s32.totalorder 2, %s22
      // Predicated region
      $region81: #{tpu_custom_call.1} parent=5 // pred_check
        %p11596 = pneg %p11595
      $region82: #{tpu_custom_call.1} parent=5 // pred_check_branch
        %11598 = sbr.rel (%p11596) target = $region84
      $region83: #{tpu_custom_call.1} parent=5 // pred_region
        %s11599 = ssub.s32 %s22, 2
        // Predicated region
        $region85: #{tpu_custom_call.1} parent=83 // pred_check
          %p11600 = pneg %p203
        $region86: #{tpu_custom_call.1} parent=83 // pred_check_branch
          %11602 = sbr.rel (%p11600) target = $region88
        $region87: #{tpu_custom_call.1} parent=83 // pred_region
          %s11603 = sand.u32 %s188, 1
          %s11604 = scalar_lea.sflag [#allocation4], %s11603
          %s11605 = sand.u32 %s188, 1
          %s11606 = smul.addr %s11605, 512
          %s11607 = scalar_lea.vmem [#allocation14], %s11606
          %11608 = dma.done %s11604, 8192
        $region88: #{tpu_custom_call.1} parent=83 // pred_fallthru
          _
      $region84: #{tpu_custom_call.1} parent=5 // pred_fallthru
        _
    $region6: #{tpu_custom_call.1} parent=1 // loop_footer
      %s26 = sadd.s32 1, %s22
    $region7: #{tpu_custom_call.1} parent=1 // loop_footer_branch
      %21 = sbr.rel target = $region3
    $region8: #{tpu_custom_call.1} parent=1 // loop_exit
      _
    %11609 = vsyncpa [#allocation3], 1
    %s11610 = scalar_lea.sflag [#allocation3], 1
    %11611 = vsyncpa %s11610, 1
    %11612 = vsyncpa [#allocation6], 1
    %11613 = vsyncpa [#allocation9], 1
    %11614 = vsyncpa [#allocation12], 1
    %11615 = vsyncpa [#allocation4], 1
    %s11616 = scalar_lea.sflag [#allocation4], 1
    %11617 = vsyncpa %s11616, 1

</llo_original>
